<compile_context>
chip_gen: v6e
topology: v6e:2x2x1
jax: 0.10.0
libtpu: 0.0.40
codegen_flags: <defaults>
</compile_context>

<pallas_src>
import functools
import numpy as np
import jax
import jax.numpy as jnp
from jax.experimental import pallas as pl
from jax.experimental.pallas import tpu as pltpu

_TAPS = [(dy, dx) for dy in range(3) for dx in range(3)]


def _pick_chunk(n, cap=2048, mult=8):
    """Largest d <= cap with n % d == 0 and d % mult == 0 (falls back to n)."""
    if n <= cap:
        return n
    for d in range(cap, 0, -1):
        if n % d == 0 and d % mult == 0:
            return d
    return n


def _conv_compiler_params(block_bytes, scratch_bytes):
    vmem = int(min(2 * block_bytes + scratch_bytes + (8 << 20), 128 << 20))
    return pltpu.CompilerParams(dimension_semantics=("parallel",),
                                vmem_limit_bytes=vmem)


# ----------------------------------------------------------------------------
# Fused VGG slice1: conv(cin->64) + ReLU + conv(64->64) + ReLU, one step/image
# ----------------------------------------------------------------------------
def vgg_slice1_fused(xcol, w1r, b1, w2r, b2, H, W):
    # xcol: (N, H*W, 9*cin) bf16 wrapper im2col; w1r (9*cin,64) / w2r (576,64) bf16
    N, HW, K1 = xcol.shape
    C1 = w1r.shape[1]
    C2 = w2r.shape[1]
    b1r = b1.reshape(1, C1).astype(jnp.float32)
    b2r = b2.reshape(1, C2).astype(jnp.float32)

    def kernel(xc_ref, w1_ref, b1_ref, w2_ref, b2_ref, o_ref, ypad_ref, icol_ref):
        # conv1: single (HW, K1) @ (K1, C1) bf16 matmul, f32 accumulate
        y1 = jnp.dot(xc_ref[0], w1_ref[...], preferred_element_type=jnp.float32)
        y1 = jnp.maximum(y1 + b1_ref[...], 0.0)

        # zero ONLY the 1-px halo border (interior fully overwritten below)
        zr = jnp.zeros((1, W + 2, C1), jnp.float32)
        ypad_ref[0:1, :, :] = zr
        ypad_ref[H + 1:H + 2, :, :] = zr
        zc = jnp.zeros((H + 2, 1, C1), jnp.float32)
        ypad_ref[:, 0:1, :] = zc
        ypad_ref[:, W + 1:W + 2, :] = zc
        ypad_ref[1:H + 1, 1:W + 1, :] = y1.reshape(H, W, C1)

        # im2col of the padded intermediate -> conv2 as ONE K=9*C1 matmul
        for t, (dy, dx) in enumerate(_TAPS):
            icol_ref[:, t * C1:(t + 1) * C1] = (
                ypad_ref[dy:dy + H, dx:dx + W, :]
                .reshape(HW, C1).astype(jnp.bfloat16))
        acc = jnp.dot(icol_ref[...], w2_ref[...],
                      preferred_element_type=jnp.float32)
        o_ref[...] = jnp.maximum(acc + b2_ref[...], 0.0)[None].astype(o_ref.dtype)

    block_bytes = (HW * K1 * 2 + K1 * C1 * 2 + C1 * 4 +
                   9 * C1 * C2 * 2 + C2 * 4 + HW * C2 * 4)
    scratch_bytes = (H + 2) * (W + 2) * C1 * 4 + HW * 9 * C1 * 2
    return pl.pallas_call(
        kernel,
        out_shape=jax.ShapeDtypeStruct((N, HW, C2), jnp.float32),
        grid=(N,),
        in_specs=[
            pl.BlockSpec((1, HW, K1), lambda i: (i, 0, 0)),
            pl.BlockSpec((K1, C1), lambda i: (0, 0)),
            pl.BlockSpec((1, C1), lambda i: (0, 0)),
            pl.BlockSpec((9 * C1, C2), lambda i: (0, 0)),
            pl.BlockSpec((1, C2), lambda i: (0, 0)),
        ],
        out_specs=pl.BlockSpec((1, HW, C2), lambda i: (i, 0, 0)),
        scratch_shapes=[pltpu.VMEM((H + 2, W + 2, C1), jnp.float32),
                        pltpu.VMEM((HW, 9 * C1), jnp.bfloat16)],
        compiler_params=_conv_compiler_params(block_bytes, scratch_bytes),
    )(xcol, w1r, b1r, w2r, b2r)


# ----------------------------------------------------------------------------
# Fused VGG slice2 (post-pool): conv(64->128)+ReLU + conv(128->128)+ReLU
# ----------------------------------------------------------------------------
def vgg_slice2_fused(x, w3r, b3, w4r, b4):
    # x: (N, H, W, 64) bf16 (already max-pooled); returns (N, H*W, 128) f32
    N, H, W, Cin = x.shape
    HW = H * W
    C3 = w3r.shape[1]
    C4 = w4r.shape[1]
    b3r = b3.reshape(1, C3).astype(jnp.float32)
    b4r = b4.reshape(1, C4).astype(jnp.float32)
    KI = 9 * Cin
    KM = 9 * C3   # im2col scratch width, reused by both convs

    def kernel(x_ref, w3_ref, b3_ref, w4_ref, b4_ref, o_ref,
               xpad_ref, ypad_ref, icol_ref):
        # ---- conv3: border-zeroed halo + im2col + one K=9*Cin matmul ----
        zr = jnp.zeros((1, W + 2, Cin), jnp.float32)
        xpad_ref[0:1, :, :] = zr
        xpad_ref[H + 1:H + 2, :, :] = zr
        zc = jnp.zeros((H + 2, 1, Cin), jnp.float32)
        xpad_ref[:, 0:1, :] = zc
        xpad_ref[:, W + 1:W + 2, :] = zc
        xpad_ref[1:H + 1, 1:W + 1, :] = x_ref[0].astype(jnp.float32)

        for t, (dy, dx) in enumerate(_TAPS):
            icol_ref[:, t * Cin:(t + 1) * Cin] = (
                xpad_ref[dy:dy + H, dx:dx + W, :]
                .reshape(HW, Cin).astype(jnp.bfloat16))
        y3 = jnp.dot(icol_ref[:, 0:KI], w3_ref[...],
                     preferred_element_type=jnp.float32)
        y3 = jnp.maximum(y3 + b3_ref[...], 0.0)

        # ---- conv4: same pattern, reusing the im2col scratch ----
        zr2 = jnp.zeros((1, W + 2, C3), jnp.float32)
        ypad_ref[0:1, :, :] = zr2
        ypad_ref[H + 1:H + 2, :, :] = zr2
        zc2 = jnp.zeros((H + 2, 1, C3), jnp.float32)
        ypad_ref[:, 0:1, :] = zc2
        ypad_ref[:, W + 1:W + 2, :] = zc2
        ypad_ref[1:H + 1, 1:W + 1, :] = y3.reshape(H, W, C3)

        for t, (dy, dx) in enumerate(_TAPS):
            icol_ref[:, t * C3:(t + 1) * C3] = (
                ypad_ref[dy:dy + H, dx:dx + W, :]
                .reshape(HW, C3).astype(jnp.bfloat16))
        acc = jnp.dot(icol_ref[...], w4_ref[...],
                      preferred_element_type=jnp.float32)
        o_ref[...] = jnp.maximum(acc + b4_ref[...], 0.0)[None].astype(o_ref.dtype)

    block_bytes = (HW * Cin * 2 + KI * C3 * 2 + C3 * 4 +
                   KM * C4 * 2 + C4 * 4 + HW * C4 * 4)
    scratch_bytes = ((H + 2) * (W + 2) * (Cin + C3) * 4 + HW * KM * 2)
    return pl.pallas_call(
        kernel,
        out_shape=jax.ShapeDtypeStruct((N, HW, C4), jnp.float32),
        grid=(N,),
        in_specs=[
            pl.BlockSpec((1, H, W, Cin), lambda i: (i, 0, 0, 0)),
            pl.BlockSpec((KI, C3), lambda i: (0, 0)),
            pl.BlockSpec((1, C3), lambda i: (0, 0)),
            pl.BlockSpec((KM, C4), lambda i: (0, 0)),
            pl.BlockSpec((1, C4), lambda i: (0, 0)),
        ],
        out_specs=pl.BlockSpec((1, HW, C4), lambda i: (i, 0, 0)),
        scratch_shapes=[pltpu.VMEM((H + 2, W + 2, Cin), jnp.float32),
                        pltpu.VMEM((H + 2, W + 2, C3), jnp.float32),
                        pltpu.VMEM((HW, KM), jnp.bfloat16)],
        compiler_params=_conv_compiler_params(block_bytes, scratch_bytes),
    )(x, w3r, b3r, w4r, b4r)


# ----------------------------------------------------------------------------
# Gram matrix on flat features: gram[b] = f[b]^T @ f[b] / (C*M)
# ----------------------------------------------------------------------------
def gram_matrix_flat(f):
    # f: (N, M, C) f32 -> (N, C, C) f32   (matches torch F F^T / (c*h*w))
    N, M, C = f.shape
    tk = _pick_chunk(M)
    kt = M // tk
    scale = 1.0 / float(C * M)

    def kernel(f_ref, o_ref, acc_ref):
        k = pl.program_id(1)

        @pl.when(k == 0)
        def _():
            acc_ref[...] = jnp.zeros_like(acc_ref)

        fb = f_ref[0].astype(jnp.bfloat16)
        acc_ref[...] += jax.lax.dot_general(
            fb, fb, (((0,), (0,)), ((), ())),
            preferred_element_type=jnp.float32)

        @pl.when(k == kt - 1)
        def _():
            o_ref[...] = (acc_ref[...] * scale)[None].astype(o_ref.dtype)

    return pl.pallas_call(
        kernel,
        out_shape=jax.ShapeDtypeStruct((N, C, C), jnp.float32),
        grid=(N, kt),
        in_specs=[pl.BlockSpec((1, tk, C), lambda i, k: (i, k, 0))],
        out_specs=pl.BlockSpec((1, C, C), lambda i, k: (i, 0, 0)),
        scratch_shapes=[pltpu.VMEM((C, C), jnp.float32)],
        compiler_params=pltpu.CompilerParams(
            dimension_semantics=("parallel", "arbitrary")),
    )(f)


# ----------------------------------------------------------------------------
# MSE between two arrays: row-tiled, 2-way core-parallel partial sums
# ----------------------------------------------------------------------------
def mse_pallas(a, b, max_tile_rows=4096):
    n = int(a.size)
    af = a.reshape(-1).astype(jnp.float32)
    bf = b.reshape(-1).astype(jnp.float32)

    rows_needed = -(-n // 128)
    tile_rows = min(max_tile_rows, -(-rows_needed // 8) * 8)
    chunk = tile_rows * 128
    total = -(-n // chunk) * chunk
    pad = total - n
    if pad:
        af = jnp.pad(af, (0, pad))
        bf = jnp.pad(bf, (0, pad))
    a2 = af.reshape(-1, 128)
    b2 = bf.reshape(-1, 128)
    nsteps = a2.shape[0] // tile_rows
    P = 2 if (nsteps % 2 == 0 and nsteps >= 2) else 1
    steps = nsteps // P

    def kernel(a_ref, b_ref, o_ref, acc_ref):
        s = pl.program_id(1)

        @pl.when(s == 0)
        def _():
            acc_ref[...] = jnp.zeros_like(acc_ref)

        d = a_ref[...] - b_ref[...]
        acc_ref[...] += jnp.sum((d * d).reshape(tile_rows // 8, 8, 128), axis=0)

        @pl.when(s == steps - 1)
        def _():
            o_ref[...] = jnp.sum(acc_ref[...]).reshape(1, 1, 1)

    out = pl.pallas_call(
        kernel,
        out_shape=jax.ShapeDtypeStruct((P, 1, 1), jnp.float32),
        grid=(P, steps),
        in_specs=[pl.BlockSpec((tile_rows, 128), lambda p, s: (p * steps + s, 0)),
                  pl.BlockSpec((tile_rows, 128), lambda p, s: (p * steps + s, 0))],
        out_specs=pl.BlockSpec((1, 1, 1), lambda p, s: (p, 0, 0)),
        scratch_shapes=[pltpu.VMEM((8, 128), jnp.float32)],
        compiler_params=pltpu.CompilerParams(
            dimension_semantics=("parallel", "arbitrary")),
    )(a2, b2)
    return jnp.sum(out) / n


# ----------------------------------------------------------------------------
# MSE between the two halves of ONE array (no HBM slice copies)
# ----------------------------------------------------------------------------
def paired_mse_pallas(x):
    # x: (2B, M, C) f32 -> mean((x[:B] - x[B:])**2)
    N2, M, C = x.shape
    B = N2 // 2
    tm = _pick_chunk(M)
    mt = M // tm

    def kernel(a_ref, b_ref, o_ref):
        m = pl.program_id(1)

        @pl.when(m == 0)
        def _():
            o_ref[...] = jnp.zeros_like(o_ref)

        d = a_ref[...] - b_ref[...]
        o_ref[...] += jnp.sum(d * d).reshape(1, 1, 1)

    out = pl.pallas_call(
        kernel,
        out_shape=jax.ShapeDtypeStruct((B, 1, 1), jnp.float32),
        grid=(B, mt),
        in_specs=[pl.BlockSpec((1, tm, C), lambda b, m: (b, m, 0)),
                  pl.BlockSpec((1, tm, C), lambda b, m: (b + B, m, 0))],
        out_specs=pl.BlockSpec((1, 1, 1), lambda b, m: (b, 0, 0)),
        compiler_params=pltpu.CompilerParams(
            dimension_semantics=("parallel", "arbitrary")),
    )(x, x)
    return jnp.sum(out) / float(B * M * C)


# ----------------------------------------------------------------------------
# SSIM (pytorch_msssim-style: 11-tap Gaussian, sigma=1.5, valid conv) on MXU
# ----------------------------------------------------------------------------
def _gauss1d(size, sigma):
    coords = np.arange(size, dtype=np.float64) - size // 2
    g = np.exp(-(coords ** 2) / (2.0 * sigma ** 2))
    g /= g.sum()
    return g.astype(np.float32)


def ssim_pallas(x_nchw, y_nchw, data_range=1.0, win_size=11, win_sigma=1.5):
    B, C, H, W = x_nchw.shape
    BC = B * C
    x = x_nchw.reshape(BC, H, W).astype(jnp.float32)
    y = y_nchw.reshape(BC, H, W).astype(jnp.float32)
    Ho, Wo = H - win_size + 1, W - win_size + 1
    g = _gauss1d(win_size, win_sigma)
    C1c = (0.01 * data_range) ** 2
    C2c = (0.03 * data_range) ** 2

    # banded-Toeplitz matrices -> separable Gaussian filter as MXU matmuls
    gh_np = np.zeros((W, Wo), np.float32)
    for o in range(Wo):
        gh_np[o:o + win_size, o] = g
    gvt_np = np.zeros((Ho, H), np.float32)
    for o in range(Ho):
        gvt_np[o, o:o + win_size] = g
    gh = jnp.asarray(gh_np)
    gvt = jnp.asarray(gvt_np)

    P = 2 if BC % 2 == 0 else 1
    per = BC // P

    def kernel(x_ref, y_ref, gh_ref, gvt_ref, o_ref, maps_ref, acc_ref):
        j = pl.program_id(1)

        @pl.when(j == 0)
        def _():
            acc_ref[...] = jnp.zeros_like(acc_ref)

        xi = x_ref[0]
        yi = y_ref[0]
        # stack the 5 filter inputs along rows -> ONE fat stage-1 MXU matmul
        maps_ref[0 * H:1 * H, :] = xi
        maps_ref[1 * H:2 * H, :] = yi
        maps_ref[2 * H:3 * H, :] = xi * xi
        maps_ref[3 * H:4 * H, :] = yi * yi
        maps_ref[4 * H:5 * H, :] = xi * yi
        t = jnp.dot(maps_ref[...], gh_ref[...],
                    preferred_element_type=jnp.float32)          # (5H, Wo)

        gvtv = gvt_ref[...]
        mu1 = jnp.dot(gvtv, t[0 * H:1 * H, :], preferred_element_type=jnp.float32)
        mu2 = jnp.dot(gvtv, t[1 * H:2 * H, :], preferred_element_type=jnp.float32)
        x2f = jnp.dot(gvtv, t[2 * H:3 * H, :], preferred_element_type=jnp.float32)
        y2f = jnp.dot(gvtv, t[3 * H:4 * H, :], preferred_element_type=jnp.float32)
        xyf = jnp.dot(gvtv, t[4 * H:5 * H, :], preferred_element_type=jnp.float32)

        mu1_sq = mu1 * mu1
        mu2_sq = mu2 * mu2
        mu1_mu2 = mu1 * mu2
        s1 = x2f - mu1_sq
        s2 = y2f - mu2_sq
        s12 = xyf - mu1_mu2
        cs_map = (2.0 * s12 + C2c) / (s1 + s2 + C2c)
        ssim_map = ((2.0 * mu1_mu2 + C1c) / (mu1_sq + mu2_sq + C1c)) * cs_map
        acc_ref[...] += jnp.sum(ssim_map).reshape(1, 1)

        @pl.when(j == per - 1)
        def _():
            o_ref[...] = acc_ref[...][None]

    out = pl.pallas_call(
        kernel,
        out_shape=jax.ShapeDtypeStruct((P, 1, 1), jnp.float32),
        grid=(P, per),
        in_specs=[pl.BlockSpec((1, H, W), lambda p, j: (p * per + j, 0, 0)),
                  pl.BlockSpec((1, H, W), lambda p, j: (p * per + j, 0, 0)),
                  pl.BlockSpec((W, Wo), lambda p, j: (0, 0)),
                  pl.BlockSpec((Ho, H), lambda p, j: (0, 0))],
        out_specs=pl.BlockSpec((1, 1, 1), lambda p, j: (p, 0, 0)),
        scratch_shapes=[pltpu.VMEM((5 * H, W), jnp.float32),
                        pltpu.VMEM((1, 1), jnp.float32)],
        compiler_params=pltpu.CompilerParams(
            dimension_semantics=("parallel", "arbitrary")),
    )(x, y, gh, gvt)
    return jnp.sum(out) / float(BC * Ho * Wo)


# ----------------------------------------------------------------------------
# Glue: 2x2 max-pool (not a hot path) and parameter init
# ----------------------------------------------------------------------------
def maxpool2x2(x):  # NHWC, floor behaviour like nn.MaxPool2d(2, 2)
    B, H, W, C = x.shape
    x = x[:, :(H // 2) * 2, :(W // 2) * 2, :]
    return jnp.max(x.reshape(B, H // 2, 2, W // 2, 2, C), axis=(2, 4))


def init_vgg_params(key):
    # TODO(synk): deterministic synthetic init; real module loads pretrained
    # IMAGENET1K_V1 VGG19 weights (no checkpoint loading here by design).
    shapes = [(3, 3, 3, 64), (3, 3, 64, 64), (3, 3, 64, 128), (3, 3, 128, 128)]
    keys = jax.random.split(key, len(shapes))
    params = {}
    for i, (s, k) in enumerate(zip(shapes, keys), start=1):
        fan_in = s[0] * s[1] * s[2]
        params[f"w{i}"] = (jax.random.normal(k, s, jnp.float32)
                           * np.sqrt(2.0 / fan_in)).astype(jnp.float32)
        params[f"b{i}"] = jnp.zeros((s[3],), jnp.float32)
    return params


# ----------------------------------------------------------------------------
# CombinedLoss forward
# ----------------------------------------------------------------------------
@functools.partial(jax.jit, static_argnames=("alpha", "vgg_weight"))
def combined_loss(pred_nchw, target_nchw, params, alpha=0.84, vgg_weight=0.1):
    pred_nchw = pred_nchw.astype(jnp.float32)
    target_nchw = target_nchw.astype(jnp.float32)
    B, C, H, W = pred_nchw.shape

    # elementwise / windowed losses take NCHW directly (no transpose passes)
    mse_loss = mse_pallas(pred_nchw, target_nchw)
    ssim_loss = 1.0 - ssim_pallas(pred_nchw, target_nchw, data_range=1.0)

    # ---- VGG path: pred & target batched through ONE fused conv chain ----
    # (reference PyTorch VGGLoss applies no ImageNet normalization; neither do we)
    xi = jnp.transpose(jnp.concatenate([pred_nchw, target_nchw], axis=0),
                       (0, 2, 3, 1))                        # (2B, H, W, C) NHWC
    N = 2 * B
    C1 = params["w1"].shape[-1]
    if C == 1:
        # fold the torch `.repeat(1, 3, 1, 1)` into the first-layer weights
        w1_eff = params["w1"].sum(axis=2, keepdims=True)    # (3, 3, 1, 64)
        cin = 1
    elif C == 3:
        w1_eff = params["w1"]
        cin = 3
    else:
        raise ValueError("CombinedLoss expects 1- or 3-channel images")
    K1 = 9 * cin

    # wrapper-side im2col (bf16) of the tiny cin-channel input for conv1
    xp = jnp.pad(xi, ((0, 0), (1, 1), (1, 1), (0, 0)))
    xcol = jnp.concatenate(
        [xp[:, dy:dy + H, dx:dx + W, :] for dy in range(3) for dx in range(3)],
        axis=-1).reshape(N, H * W, K1).astype(jnp.bfloat16)

    w1r = w1_eff.reshape(K1, C1).astype(jnp.bfloat16)
    w2r = params["w2"].reshape(9 * C1, -1).astype(jnp.bfloat16)
    f1 = vgg_slice1_fused(xcol, w1r, params["b1"], w2r, params["b2"], H, W)
    C2 = f1.shape[-1]                                       # 64

    pooled = maxpool2x2(f1.reshape(N, H, W, C2)).astype(jnp.bfloat16)
    w3r = params["w3"].reshape(9 * C2, -1).astype(jnp.bfloat16)
    C3 = params["w3"].shape[-1]
    w4r = params["w4"].reshape(9 * C3, -1).astype(jnp.bfloat16)
    f2 = vgg_slice2_fused(pooled, w3r, params["b3"], w4r, params["b4"])

    # content + style losses read pred/target halves of the SAME arrays
    content_loss = paired_mse_pallas(f1)                    # f1: (2B, H*W, 64)
    g1 = gram_matrix_flat(f1)                               # (2B, 64, 64)
    g2 = gram_matrix_flat(f2)                               # (2B, 128, 128)
    style_loss = paired_mse_pallas(g1) + paired_mse_pallas(g2)
    vgg_loss = content_loss + style_loss

    return alpha * mse_loss + (1.0 - alpha) * ssim_loss + vgg_weight * vgg_loss


if __name__ == "__main__":
    key = jax.random.PRNGKey(0)
    k1, k2, kp = jax.random.split(key, 3)
    B, C, H, W = 2, 1, 16, 16
    pred = jax.random.uniform(k1, (B, C, H, W), jnp.float32)
    target = jax.random.uniform(k2, (B, C, H, W), jnp.float32)
    params = init_vgg_params(kp)

    loss = combined_loss(pred, target, params)
    loss = jax.block_until_ready(loss)
    assert bool(jnp.isfinite(loss)), f"non-finite loss: {loss}"
    print("KERNEL_OK")
</pallas_src>

<mosaic_0001>
module attributes {stable_mosaic.version = 11 : i64} {
  func.func @kernel(%arg0: i32, %arg1: i32, %arg2: memref<8x128xf32, #tpu.memory_space<vmem>>, %arg3: memref<8x128xf32, #tpu.memory_space<vmem>>, %arg4: memref<1x1x1xf32, #tpu.memory_space<vmem>>, %arg5: memref<8x128xf32, #tpu.memory_space<vmem>>) attributes {dimension_semantics = [#tpu.dimension_semantics<parallel>, #tpu.dimension_semantics<arbitrary>], iteration_bounds = array<i64: 1, 1>, scalar_prefetch = 0 : i64, scratch_operands = 1 : i64, tpu.core_type = #tpu.core_type<tc>, window_params = [{transform_indices = @transform_0, window_bounds = array<i64: 8, 128>}, {transform_indices = @transform_1, window_bounds = array<i64: 8, 128>}, {transform_indices = @transform_2, window_bounds = array<i64: 1, 1, 1>}]} {
    %c0_i32 = arith.constant 0 : i32
    %0 = arith.cmpi eq, %arg1, %c0_i32 : i32
    %1 = arith.extui %0 : i1 to i32
    %c0_i32_0 = arith.constant 0 : i32
    %2 = arith.cmpi ne, %1, %c0_i32_0 : i32
    scf.if %2 {
      %cst_10 = arith.constant 0.000000e+00 : f32
      %15 = vector.broadcast %cst_10 : f32 to vector<8x128xf32>
      %c0_11 = arith.constant 0 : index
      %c0_12 = arith.constant 0 : index
      %16 = vector.load %arg5[%c0_11, %c0_12] : memref<8x128xf32, #tpu.memory_space<vmem>>, vector<8x128xf32>
      tpu.vector_store %arg5[%c0_11, %c0_12], %15 {strides = array<i32>} : memref<8x128xf32, #tpu.memory_space<vmem>>, vector<8x128xf32>,
    } else {
    }
    %c0 = arith.constant 0 : index
    %c0_1 = arith.constant 0 : index
    %3 = vector.load %arg2[%c0, %c0_1] : memref<8x128xf32, #tpu.memory_space<vmem>>, vector<8x128xf32>
    %c0_2 = arith.constant 0 : index
    %c0_3 = arith.constant 0 : index
    %4 = vector.load %arg3[%c0_2, %c0_3] : memref<8x128xf32, #tpu.memory_space<vmem>>, vector<8x128xf32>
    %5 = arith.subf %3, %4 : vector<8x128xf32>
    %c0_4 = arith.constant 0 : index
    %c0_5 = arith.constant 0 : index
    %6 = vector.load %arg5[%c0_4, %c0_5] : memref<8x128xf32, #tpu.memory_space<vmem>>, vector<8x128xf32>
    %7 = arith.mulf %5, %5 : vector<8x128xf32>
    %8 = vector.shape_cast %7 : vector<8x128xf32> to vector<1x8x128xf32>
    %cst = arith.constant dense<0.000000e+00> : vector<8x128xf32>
    %9 = vector.multi_reduction <add>, %8, %cst [0] : vector<1x8x128xf32> to vector<8x128xf32>
    %10 = arith.addf %6, %9 : vector<8x128xf32>
    %c0_6 = arith.constant 0 : index
    %c0_7 = arith.constant 0 : index
    %11 = vector.load %arg5[%c0_6, %c0_7] : memref<8x128xf32, #tpu.memory_space<vmem>>, vector<8x128xf32>
    tpu.vector_store %arg5[%c0_6, %c0_7], %10 {strides = array<i32>} : memref<8x128xf32, #tpu.memory_space<vmem>>, vector<8x128xf32>,
    %c0_i32_8 = arith.constant 0 : i32
    %12 = arith.cmpi eq, %arg1, %c0_i32_8 : i32
    %13 = arith.extui %12 : i1 to i32
    %c0_i32_9 = arith.constant 0 : i32
    %14 = arith.cmpi ne, %13, %c0_i32_9 : i32
    scf.if %14 {
      %c0_10 = arith.constant 0 : index
      %c0_11 = arith.constant 0 : index
      %15 = vector.load %arg5[%c0_10, %c0_11] : memref<8x128xf32, #tpu.memory_space<vmem>>, vector<8x128xf32>
      %16 = vector.shape_cast %15 : vector<8x128xf32> to vector<1x8x128xf32>
      %cst_12 = arith.constant dense<0.000000e+00> : vector<1xf32>
      %17 = vector.multi_reduction <add>, %16, %cst_12 [1, 2] : vector<1x8x128xf32> to vector<1xf32>
      %18 = vector.shape_cast %17 : vector<1xf32> to vector<1x1x1xf32>
      %19 = vector.extract %18[0, 0, 0] : f32 from vector<1x1x1xf32>
      %20 = vector.broadcast %19 : f32 to vector<1x1x1xf32>
      %c0_13 = arith.constant 0 : index
      %c0_14 = arith.constant 0 : index
      %c0_15 = arith.constant 0 : index
      %21 = vector.load %arg4[%c0_13, %c0_14, %c0_15] : memref<1x1x1xf32, #tpu.memory_space<vmem>>, vector<1x1x1xf32>
      tpu.vector_store %arg4[%c0_13, %c0_14, %c0_15], %20 {strides = array<i32>} : memref<1x1x1xf32, #tpu.memory_space<vmem>>, vector<1x1x1xf32>,
    } else {
    }
    return
  }
  func.func @transform_0(%arg0: i32, %arg1: i32) -> (i32, i32) {
    %c1_i32 = arith.constant 1 : i32
    %0 = arith.muli %arg0, %c1_i32 : i32
    %1 = arith.addi %0, %arg1 : i32
    %c0_i32 = arith.constant 0 : i32
    %c0_i32_0 = arith.constant 0 : i32
    return %1, %c0_i32 : i32, i32
  }
  func.func @transform_1(%arg0: i32, %arg1: i32) -> (i32, i32) {
    %c1_i32 = arith.constant 1 : i32
    %0 = arith.muli %arg0, %c1_i32 : i32
    %1 = arith.addi %0, %arg1 : i32
    %c0_i32 = arith.constant 0 : i32
    %c0_i32_0 = arith.constant 0 : i32
    return %1, %c0_i32 : i32, i32
  }
  func.func @transform_2(%arg0: i32, %arg1: i32) -> (i32, i32, i32) {
    %c0_i32 = arith.constant 0 : i32
    %c0_i32_0 = arith.constant 0 : i32
    %c0_i32_1 = arith.constant 0 : i32
    return %arg0, %c0_i32, %c0_i32_0 : i32, i32, i32
  }
}

module attributes {stable_mosaic.version = 11 : i64} {
  func.func @kernel(%arg0: i32, %arg1: i32, %arg2: memref<1x16x16xf32, #tpu.memory_space<vmem>>, %arg3: memref<1x16x16xf32, #tpu.memory_space<vmem>>, %arg4: memref<16x6xf32, #tpu.memory_space<vmem>>, %arg5: memref<6x16xf32, #tpu.memory_space<vmem>>, %arg6: memref<1x1x1xf32, #tpu.memory_space<vmem>>, %arg7: memref<80x16xf32, #tpu.memory_space<vmem>>, %arg8: memref<1x1xf32, #tpu.memory_space<vmem>>) attributes {dimension_semantics = [#tpu.dimension_semantics<parallel>, #tpu.dimension_semantics<arbitrary>], iteration_bounds = array<i64: 2, 1>, scalar_prefetch = 0 : i64, scratch_operands = 2 : i64, tpu.core_type = #tpu.core_type<tc>, window_params = [{transform_indices = @transform_0, window_bounds = array<i64: 1, 16, 16>}, {transform_indices = @transform_1, window_bounds = array<i64: 1, 16, 16>}, {pipeline_mode = #tpu.pipeline_mode<synchronous>, transform_indices = @transform_2, window_bounds = array<i64: 16, 6>}, {pipeline_mode = #tpu.pipeline_mode<synchronous>, transform_indices = @transform_3, window_bounds = array<i64: 6, 16>}, {transform_indices = @transform_4, window_bounds = array<i64: 1, 1, 1>}]} {
    %c0_i32 = arith.constant 0 : i32
    %0 = arith.cmpi eq, %arg1, %c0_i32 : i32
    %1 = arith.extui %0 : i1 to i32
    %c0_i32_0 = arith.constant 0 : i32
    %2 = arith.cmpi ne, %1, %c0_i32_0 : i32
    scf.if %2 {
      %cst_36 = arith.constant 0.000000e+00 : f32
      %63 = vector.broadcast %cst_36 : f32 to vector<1x1xf32>
      %c0_37 = arith.constant 0 : index
      %c0_38 = arith.constant 0 : index
      %64 = vector.load %arg8[%c0_37, %c0_38] : memref<1x1xf32, #tpu.memory_space<vmem>>, vector<1x1xf32>
      tpu.vector_store %arg8[%c0_37, %c0_38], %63 {strides = array<i32>} : memref<1x1xf32, #tpu.memory_space<vmem>>, vector<1x1xf32>,
    } else {
    }
    %c0 = arith.constant 0 : index
    %c0_1 = arith.constant 0 : index
    %c0_2 = arith.constant 0 : index
    %3 = vector.load %arg2[%c0, %c0_1, %c0_2] : memref<1x16x16xf32, #tpu.memory_space<vmem>>, vector<1x16x16xf32>
    %4 = vector.shape_cast %3 : vector<1x16x16xf32> to vector<16x16xf32>
    %c0_3 = arith.constant 0 : index
    %c0_4 = arith.constant 0 : index
    %c0_5 = arith.constant 0 : index
    %5 = vector.load %arg3[%c0_3, %c0_4, %c0_5] : memref<1x16x16xf32, #tpu.memory_space<vmem>>, vector<1x16x16xf32>
    %6 = vector.shape_cast %5 : vector<1x16x16xf32> to vector<16x16xf32>
    %c0_6 = arith.constant 0 : index
    %c0_7 = arith.constant 0 : index
    %7 = vector.load %arg7[%c0_6, %c0_7] : memref<80x16xf32, #tpu.memory_space<vmem>>, vector<16x16xf32>
    tpu.vector_store %arg7[%c0_6, %c0_7], %4 {strides = array<i32>} : memref<80x16xf32, #tpu.memory_space<vmem>>, vector<16x16xf32>,
    %c16 = arith.constant 16 : index
    %c0_8 = arith.constant 0 : index
    %8 = vector.load %arg7[%c16, %c0_8] : memref<80x16xf32, #tpu.memory_space<vmem>>, vector<16x16xf32>
    tpu.vector_store %arg7[%c16, %c0_8], %6 {strides = array<i32>} : memref<80x16xf32, #tpu.memory_space<vmem>>, vector<16x16xf32>,
    %9 = arith.mulf %4, %4 : vector<16x16xf32>
    %c32 = arith.constant 32 : index
    %c0_9 = arith.constant 0 : index
    %10 = vector.load %arg7[%c32, %c0_9] : memref<80x16xf32, #tpu.memory_space<vmem>>, vector<16x16xf32>
    tpu.vector_store %arg7[%c32, %c0_9], %9 {strides = array<i32>} : memref<80x16xf32, #tpu.memory_space<vmem>>, vector<16x16xf32>,
    %11 = arith.mulf %6, %6 : vector<16x16xf32>
    %c48 = arith.constant 48 : index
    %c0_10 = arith.constant 0 : index
    %12 = vector.load %arg7[%c48, %c0_10] : memref<80x16xf32, #tpu.memory_space<vmem>>, vector<16x16xf32>
    tpu.vector_store %arg7[%c48, %c0_10], %11 {strides = array<i32>} : memref<80x16xf32, #tpu.memory_space<vmem>>, vector<16x16xf32>,
    %13 = arith.mulf %4, %6 : vector<16x16xf32>
    %c64 = arith.constant 64 : index
    %c0_11 = arith.constant 0 : index
    %14 = vector.load %arg7[%c64, %c0_11] : memref<80x16xf32, #tpu.memory_space<vmem>>, vector<16x16xf32>
    tpu.vector_store %arg7[%c64, %c0_11], %13 {strides = array<i32>} : memref<80x16xf32, #tpu.memory_space<vmem>>, vector<16x16xf32>,
    %c0_12 = arith.constant 0 : index
    %c0_13 = arith.constant 0 : index
    %15 = vector.load %arg7[%c0_12, %c0_13] : memref<80x16xf32, #tpu.memory_space<vmem>>, vector<80x16xf32>
    %c0_14 = arith.constant 0 : index
    %c0_15 = arith.constant 0 : index
    %16 = vector.load %arg4[%c0_14, %c0_15] : memref<16x6xf32, #tpu.memory_space<vmem>>, vector<16x6xf32>
    %cst = arith.constant dense<0.000000e+00> : vector<80x6xf32>
    %17 = tpu.matmul %15, %16, %cst {dimension_numbers = #tpu.dot_dimension_numbers<[1], [0], [0], [1], [0, 0, 1, 1], [], []>} : vector<80x16xf32>, vector<16x6xf32>, vector<80x6xf32> -> vector<80x6xf32>
    %c0_16 = arith.constant 0 : index
    %c0_17 = arith.constant 0 : index
    %18 = vector.load %arg5[%c0_16, %c0_17] : memref<6x16xf32, #tpu.memory_space<vmem>>, vector<6x16xf32>
    %19 = vector.extract_strided_slice %17 {offsets = [0, 0], sizes = [16, 6], strides = [1, 1]} : vector<80x6xf32> to vector<16x6xf32>
    %cst_18 = arith.constant dense<0.000000e+00> : vector<6x6xf32>
    %20 = tpu.matmul %18, %19, %cst_18 {dimension_numbers = #tpu.dot_dimension_numbers<[1], [0], [0], [1], [0, 0, 1, 1], [], []>} : vector<6x16xf32>, vector<16x6xf32>, vector<6x6xf32> -> vector<6x6xf32>
    %21 = vector.extract_strided_slice %17 {offsets = [16, 0], sizes = [16, 6], strides = [1, 1]} : vector<80x6xf32> to vector<16x6xf32>
    %cst_19 = arith.constant dense<0.000000e+00> : vector<6x6xf32>
    %22 = tpu.matmul %18, %21, %cst_19 {dimension_numbers = #tpu.dot_dimension_numbers<[1], [0], [0], [1], [0, 0, 1, 1], [], []>} : vector<6x16xf32>, vector<16x6xf32>, vector<6x6xf32> -> vector<6x6xf32>
    %23 = vector.extract_strided_slice %17 {offsets = [32, 0], sizes = [16, 6], strides = [1, 1]} : vector<80x6xf32> to vector<16x6xf32>
    %cst_20 = arith.constant dense<0.000000e+00> : vector<6x6xf32>
    %24 = tpu.matmul %18, %23, %cst_20 {dimension_numbers = #tpu.dot_dimension_numbers<[1], [0], [0], [1], [0, 0, 1, 1], [], []>} : vector<6x16xf32>, vector<16x6xf32>, vector<6x6xf32> -> vector<6x6xf32>
    %25 = vector.extract_strided_slice %17 {offsets = [48, 0], sizes = [16, 6], strides = [1, 1]} : vector<80x6xf32> to vector<16x6xf32>
    %cst_21 = arith.constant dense<0.000000e+00> : vector<6x6xf32>
    %26 = tpu.matmul %18, %25, %cst_21 {dimension_numbers = #tpu.dot_dimension_numbers<[1], [0], [0], [1], [0, 0, 1, 1], [], []>} : vector<6x16xf32>, vector<16x6xf32>, vector<6x6xf32> -> vector<6x6xf32>
    %27 = vector.extract_strided_slice %17 {offsets = [64, 0], sizes = [16, 6], strides = [1, 1]} : vector<80x6xf32> to vector<16x6xf32>
    %cst_22 = arith.constant dense<0.000000e+00> : vector<6x6xf32>
    %28 = tpu.matmul %18, %27, %cst_22 {dimension_numbers = #tpu.dot_dimension_numbers<[1], [0], [0], [1], [0, 0, 1, 1], [], []>} : vector<6x16xf32>, vector<16x6xf32>, vector<6x6xf32> -> vector<6x6xf32>
    %29 = arith.mulf %20, %20 : vector<6x6xf32>
    %30 = arith.mulf %22, %22 : vector<6x6xf32>
    %31 = arith.mulf %20, %22 : vector<6x6xf32>
    %32 = arith.subf %24, %29 : vector<6x6xf32>
    %33 = arith.subf %26, %30 : vector<6x6xf32>
    %34 = arith.subf %28, %31 : vector<6x6xf32>
    %cst_23 = arith.constant 2.000000e+00 : f32
    %35 = vector.broadcast %cst_23 : f32 to vector<6x6xf32>
    %36 = arith.mulf %35, %34 : vector<6x6xf32>
    %cst_24 = arith.constant 8.99999984E-4 : f32
    %37 = vector.broadcast %cst_24 : f32 to vector<6x6xf32>
    %38 = arith.addf %36, %37 : vector<6x6xf32>
    %39 = arith.addf %32, %33 : vector<6x6xf32>
    %cst_25 = arith.constant 8.99999984E-4 : f32
    %40 = vector.broadcast %cst_25 : f32 to vector<6x6xf32>
    %41 = arith.addf %39, %40 : vector<6x6xf32>
    %42 = arith.divf %38, %41 : vector<6x6xf32>
    %cst_26 = arith.constant 2.000000e+00 : f32
    %43 = vector.broadcast %cst_26 : f32 to vector<6x6xf32>
    %44 = arith.mulf %43, %31 : vector<6x6xf32>
    %cst_27 = arith.constant 9.99999974E-5 : f32
    %45 = vector.broadcast %cst_27 : f32 to vector<6x6xf32>
    %46 = arith.addf %44, %45 : vector<6x6xf32>
    %47 = arith.addf %29, %30 : vector<6x6xf32>
    %cst_28 = arith.constant 9.99999974E-5 : f32
    %48 = vector.broadcast %cst_28 : f32 to vector<6x6xf32>
    %49 = arith.addf %47, %48 : vector<6x6xf32>
    %50 = arith.divf %46, %49 : vector<6x6xf32>
    %51 = arith.mulf %50, %42 : vector<6x6xf32>
    %c0_29 = arith.constant 0 : index
    %c0_30 = arith.constant 0 : index
    %52 = vector.load %arg8[%c0_29, %c0_30] : memref<1x1xf32, #tpu.memory_space<vmem>>, vector<1x1xf32>
    %53 = vector.shape_cast %51 : vector<6x6xf32> to vector<1x6x6xf32>
    %cst_31 = arith.constant dense<0.000000e+00> : vector<1xf32>
    %54 = vector.multi_reduction <add>, %53, %cst_31 [1, 2] : vector<1x6x6xf32> to vector<1xf32>
    %55 = vector.shape_cast %54 : vector<1xf32> to vector<1x1x1xf32>
    %56 = vector.extract %55[0, 0, 0] : f32 from vector<1x1x1xf32>
    %57 = vector.broadcast %56 : f32 to vector<1x1xf32>
    %58 = arith.addf %52, %57 : vector<1x1xf32>
    %c0_32 = arith.constant 0 : index
    %c0_33 = arith.constant 0 : index
    %59 = vector.load %arg8[%c0_32, %c0_33] : memref<1x1xf32, #tpu.memory_space<vmem>>, vector<1x1xf32>
    tpu.vector_store %arg8[%c0_32, %c0_33], %58 {strides = array<i32>} : memref<1x1xf32, #tpu.memory_space<vmem>>, vector<1x1xf32>,
    %c0_i32_34 = arith.constant 0 : i32
    %60 = arith.cmpi eq, %arg1, %c0_i32_34 : i32
    %61 = arith.extui %60 : i1 to i32
    %c0_i32_35 = arith.constant 0 : i32
    %62 = arith.cmpi ne, %61, %c0_i32_35 : i32
    scf.if %62 {
      %c0_36 = arith.constant 0 : index
      %c0_37 = arith.constant 0 : index
      %63 = vector.load %arg8[%c0_36, %c0_37] : memref<1x1xf32, #tpu.memory_space<vmem>>, vector<1x1xf32>
      %64 = vector.shape_cast %63 : vector<1x1xf32> to vector<1x1x1xf32>
      %c0_38 = arith.constant 0 : index
      %c0_39 = arith.constant 0 : index
      %c0_40 = arith.constant 0 : index
      %65 = vector.load %arg6[%c0_38, %c0_39, %c0_40] : memref<1x1x1xf32, #tpu.memory_space<vmem>>, vector<1x1x1xf32>
      tpu.vector_store %arg6[%c0_38, %c0_39, %c0_40], %64 {strides = array<i32>} : memref<1x1x1xf32, #tpu.memory_space<vmem>>, vector<1x1x1xf32>,
    } else {
    }
    return
  }
  func.func @transform_0(%arg0: i32, %arg1: i32) -> (i32, i32, i32) {
    %c1_i32 = arith.constant 1 : i32
    %0 = arith.muli %arg0, %c1_i32 : i32
    %1 = arith.addi %0, %arg1 : i32
    %c0_i32 = arith.constant 0 : i32
    %c0_i32_0 = arith.constant 0 : i32
    %c0_i32_1 = arith.constant 0 : i32
    return %1, %c0_i32, %c0_i32_0 : i32, i32, i32
  }
  func.func @transform_1(%arg0: i32, %arg1: i32) -> (i32, i32, i32) {
    %c1_i32 = arith.constant 1 : i32
    %0 = arith.muli %arg0, %c1_i32 : i32
    %1 = arith.addi %0, %arg1 : i32
    %c0_i32 = arith.constant 0 : i32
    %c0_i32_0 = arith.constant 0 : i32
    %c0_i32_1 = arith.constant 0 : i32
    return %1, %c0_i32, %c0_i32_0 : i32, i32, i32
  }
  func.func @transform_2(%arg0: i32, %arg1: i32) -> (i32, i32) {
    %c0_i32 = arith.constant 0 : i32
    %c0_i32_0 = arith.constant 0 : i32
    %c0_i32_1 = arith.constant 0 : i32
    return %c0_i32, %c0_i32_0 : i32, i32
  }
  func.func @transform_3(%arg0: i32, %arg1: i32) -> (i32, i32) {
    %c0_i32 = arith.constant 0 : i32
    %c0_i32_0 = arith.constant 0 : i32
    %c0_i32_1 = arith.constant 0 : i32
    return %c0_i32, %c0_i32_0 : i32, i32
  }
  func.func @transform_4(%arg0: i32, %arg1: i32) -> (i32, i32, i32) {
    %c0_i32 = arith.constant 0 : i32
    %c0_i32_0 = arith.constant 0 : i32
    %c0_i32_1 = arith.constant 0 : i32
    return %arg0, %c0_i32, %c0_i32_0 : i32, i32, i32
  }
}

module attributes {stable_mosaic.version = 11 : i64} {
  func.func @kernel(%arg0: i32, %arg1: memref<1x256x9xbf16, #tpu.memory_space<vmem>>, %arg2: memref<9x64xbf16, #tpu.memory_space<vmem>>, %arg3: memref<1x64xf32, #tpu.memory_space<vmem>>, %arg4: memref<576x64xbf16, #tpu.memory_space<vmem>>, %arg5: memref<1x64xf32, #tpu.memory_space<vmem>>, %arg6: memref<1x256x64xf32, #tpu.memory_space<vmem>>, %arg7: memref<18x18x64xf32, #tpu.memory_space<vmem>>, %arg8: memref<256x576xbf16, #tpu.memory_space<vmem>>) attributes {dimension_semantics = [#tpu.dimension_semantics<parallel>], iteration_bounds = array<i64: 4>, scalar_prefetch = 0 : i64, scratch_operands = 2 : i64, tpu.core_type = #tpu.core_type<tc>, window_params = [{transform_indices = @transform_0, window_bounds = array<i64: 1, 256, 9>}, {pipeline_mode = #tpu.pipeline_mode<synchronous>, transform_indices = @transform_1, window_bounds = array<i64: 9, 64>}, {pipeline_mode = #tpu.pipeline_mode<synchronous>, transform_indices = @transform_2, window_bounds = array<i64: 1, 64>}, {pipeline_mode = #tpu.pipeline_mode<synchronous>, transform_indices = @transform_3, window_bounds = array<i64: 576, 64>}, {pipeline_mode = #tpu.pipeline_mode<synchronous>, transform_indices = @transform_4, window_bounds = array<i64: 1, 64>}, {transform_indices = @transform_5, window_bounds = array<i64: 1, 256, 64>}]} {
    %c0 = arith.constant 0 : index
    %c0_0 = arith.constant 0 : index
    %c0_1 = arith.constant 0 : index
    %0 = vector.load %arg1[%c0, %c0_0, %c0_1] : memref<1x256x9xbf16, #tpu.memory_space<vmem>>, vector<1x256x9xbf16>
    %1 = vector.shape_cast %0 : vector<1x256x9xbf16> to vector<256x9xbf16>
    %c0_2 = arith.constant 0 : index
    %c0_3 = arith.constant 0 : index
    %2 = vector.load %arg2[%c0_2, %c0_3] : memref<9x64xbf16, #tpu.memory_space<vmem>>, vector<9x64xbf16>
    %cst = arith.constant dense<0.000000e+00> : vector<256x64xf32>
    %3 = tpu.matmul %1, %2, %cst {dimension_numbers = #tpu.dot_dimension_numbers<[1], [0], [0], [1], [0, 0, 1, 1], [], []>} : vector<256x9xbf16>, vector<9x64xbf16>, vector<256x64xf32> -> vector<256x64xf32>
    %c0_4 = arith.constant 0 : index
    %c0_5 = arith.constant 0 : index
    %4 = vector.load %arg3[%c0_4, %c0_5] : memref<1x64xf32, #tpu.memory_space<vmem>>, vector<1x64xf32>
    %5 = vector.broadcast %4 : vector<1x64xf32> to vector<256x64xf32>
    %6 = arith.addf %3, %5 : vector<256x64xf32>
    %cst_6 = arith.constant 0.000000e+00 : f32
    %7 = vector.broadcast %cst_6 : f32 to vector<256x64xf32>
    %8 = arith.maximumf %6, %7 : vector<256x64xf32>
    %cst_7 = arith.constant 0.000000e+00 : f32
    %9 = vector.broadcast %cst_7 : f32 to vector<1x18x64xf32>
    %c0_8 = arith.constant 0 : index
    %c0_9 = arith.constant 0 : index
    %c0_10 = arith.constant 0 : index
    %10 = vector.load %arg7[%c0_8, %c0_9, %c0_10] : memref<18x18x64xf32, #tpu.memory_space<vmem>>, vector<1x18x64xf32>
    tpu.vector_store %arg7[%c0_8, %c0_9, %c0_10], %9 {strides = array<i32>} : memref<18x18x64xf32, #tpu.memory_space<vmem>>, vector<1x18x64xf32>,
    %c17 = arith.constant 17 : index
    %c0_11 = arith.constant 0 : index
    %c0_12 = arith.constant 0 : index
    %11 = vector.load %arg7[%c17, %c0_11, %c0_12] : memref<18x18x64xf32, #tpu.memory_space<vmem>>, vector<1x18x64xf32>
    tpu.vector_store %arg7[%c17, %c0_11, %c0_12], %9 {strides = array<i32>} : memref<18x18x64xf32, #tpu.memory_space<vmem>>, vector<1x18x64xf32>,
    %cst_13 = arith.constant 0.000000e+00 : f32
    %12 = vector.broadcast %cst_13 : f32 to vector<18x1x64xf32>
    %c0_14 = arith.constant 0 : index
    %c0_15 = arith.constant 0 : index
    %c0_16 = arith.constant 0 : index
    %13 = vector.load %arg7[%c0_14, %c0_15, %c0_16] : memref<18x18x64xf32, #tpu.memory_space<vmem>>, vector<18x1x64xf32>
    tpu.vector_store %arg7[%c0_14, %c0_15, %c0_16], %12 {strides = array<i32>} : memref<18x18x64xf32, #tpu.memory_space<vmem>>, vector<18x1x64xf32>,
    %c0_17 = arith.constant 0 : index
    %c17_18 = arith.constant 17 : index
    %c0_19 = arith.constant 0 : index
    %14 = vector.load %arg7[%c0_17, %c17_18, %c0_19] : memref<18x18x64xf32, #tpu.memory_space<vmem>>, vector<18x1x64xf32>
    tpu.vector_store %arg7[%c0_17, %c17_18, %c0_19], %12 {strides = array<i32>} : memref<18x18x64xf32, #tpu.memory_space<vmem>>, vector<18x1x64xf32>,
    %15 = vector.shape_cast %8 : vector<256x64xf32> to vector<16x16x64xf32>
    %c1 = arith.constant 1 : index
    %c1_20 = arith.constant 1 : index
    %c0_21 = arith.constant 0 : index
    %16 = vector.load %arg7[%c1, %c1_20, %c0_21] : memref<18x18x64xf32, #tpu.memory_space<vmem>>, vector<16x16x64xf32>
    tpu.vector_store %arg7[%c1, %c1_20, %c0_21], %15 {strides = array<i32>} : memref<18x18x64xf32, #tpu.memory_space<vmem>>, vector<16x16x64xf32>,
    %c0_22 = arith.constant 0 : index
    %c0_23 = arith.constant 0 : index
    %c0_24 = arith.constant 0 : index
    %17 = vector.load %arg7[%c0_22, %c0_23, %c0_24] : memref<18x18x64xf32, #tpu.memory_space<vmem>>, vector<16x16x64xf32>
    %18 = vector.shape_cast %17 : vector<16x16x64xf32> to vector<256x64xf32>
    %19 = arith.truncf %18 : vector<256x64xf32> to vector<256x64xbf16>
    %c0_25 = arith.constant 0 : index
    %c0_26 = arith.constant 0 : index
    %20 = vector.load %arg8[%c0_25, %c0_26] : memref<256x576xbf16, #tpu.memory_space<vmem>>, vector<256x64xbf16>
    tpu.vector_store %arg8[%c0_25, %c0_26], %19 {strides = array<i32>} : memref<256x576xbf16, #tpu.memory_space<vmem>>, vector<256x64xbf16>,
    %c0_27 = arith.constant 0 : index
    %c1_28 = arith.constant 1 : index
    %c0_29 = arith.constant 0 : index
    %21 = vector.load %arg7[%c0_27, %c1_28, %c0_29] : memref<18x18x64xf32, #tpu.memory_space<vmem>>, vector<16x16x64xf32>
    %22 = vector.shape_cast %21 : vector<16x16x64xf32> to vector<256x64xf32>
    %23 = arith.truncf %22 : vector<256x64xf32> to vector<256x64xbf16>
    %c0_30 = arith.constant 0 : index
    %c64 = arith.constant 64 : index
    %24 = vector.load %arg8[%c0_30, %c64] : memref<256x576xbf16, #tpu.memory_space<vmem>>, vector<256x64xbf16>
    tpu.vector_store %arg8[%c0_30, %c64], %23 {strides = array<i32>} : memref<256x576xbf16, #tpu.memory_space<vmem>>, vector<256x64xbf16>,
    %c0_31 = arith.constant 0 : index
    %c2 = arith.constant 2 : index
    %c0_32 = arith.constant 0 : index
    %25 = vector.load %arg7[%c0_31, %c2, %c0_32] : memref<18x18x64xf32, #tpu.memory_space<vmem>>, vector<16x16x64xf32>
    %26 = vector.shape_cast %25 : vector<16x16x64xf32> to vector<256x64xf32>
    %27 = arith.truncf %26 : vector<256x64xf32> to vector<256x64xbf16>
    %c0_33 = arith.constant 0 : index
    %c128 = arith.constant 128 : index
    %28 = vector.load %arg8[%c0_33, %c128] : memref<256x576xbf16, #tpu.memory_space<vmem>>, vector<256x64xbf16>
    tpu.vector_store %arg8[%c0_33, %c128], %27 {strides = array<i32>} : memref<256x576xbf16, #tpu.memory_space<vmem>>, vector<256x64xbf16>,
    %c1_34 = arith.constant 1 : index
    %c0_35 = arith.constant 0 : index
    %c0_36 = arith.constant 0 : index
    %29 = vector.load %arg7[%c1_34, %c0_35, %c0_36] : memref<18x18x64xf32, #tpu.memory_space<vmem>>, vector<16x16x64xf32>
    %30 = vector.shape_cast %29 : vector<16x16x64xf32> to vector<256x64xf32>
    %31 = arith.truncf %30 : vector<256x64xf32> to vector<256x64xbf16>
    %c0_37 = arith.constant 0 : index
    %c192 = arith.constant 192 : index
    %32 = vector.load %arg8[%c0_37, %c192] : memref<256x576xbf16, #tpu.memory_space<vmem>>, vector<256x64xbf16>
    tpu.vector_store %arg8[%c0_37, %c192], %31 {strides = array<i32>} : memref<256x576xbf16, #tpu.memory_space<vmem>>, vector<256x64xbf16>,
    %c1_38 = arith.constant 1 : index
    %c1_39 = arith.constant 1 : index
    %c0_40 = arith.constant 0 : index
    %33 = vector.load %arg7[%c1_38, %c1_39, %c0_40] : memref<18x18x64xf32, #tpu.memory_space<vmem>>, vector<16x16x64xf32>
    %34 = vector.shape_cast %33 : vector<16x16x64xf32> to vector<256x64xf32>
    %35 = arith.truncf %34 : vector<256x64xf32> to vector<256x64xbf16>
    %c0_41 = arith.constant 0 : index
    %c256 = arith.constant 256 : index
    %36 = vector.load %arg8[%c0_41, %c256] : memref<256x576xbf16, #tpu.memory_space<vmem>>, vector<256x64xbf16>
    tpu.vector_store %arg8[%c0_41, %c256], %35 {strides = array<i32>} : memref<256x576xbf16, #tpu.memory_space<vmem>>, vector<256x64xbf16>,
    %c1_42 = arith.constant 1 : index
    %c2_43 = arith.constant 2 : index
    %c0_44 = arith.constant 0 : index
    %37 = vector.load %arg7[%c1_42, %c2_43, %c0_44] : memref<18x18x64xf32, #tpu.memory_space<vmem>>, vector<16x16x64xf32>
    %38 = vector.shape_cast %37 : vector<16x16x64xf32> to vector<256x64xf32>
    %39 = arith.truncf %38 : vector<256x64xf32> to vector<256x64xbf16>
    %c0_45 = arith.constant 0 : index
    %c320 = arith.constant 320 : index
    %40 = vector.load %arg8[%c0_45, %c320] : memref<256x576xbf16, #tpu.memory_space<vmem>>, vector<256x64xbf16>
    tpu.vector_store %arg8[%c0_45, %c320], %39 {strides = array<i32>} : memref<256x576xbf16, #tpu.memory_space<vmem>>, vector<256x64xbf16>,
    %c2_46 = arith.constant 2 : index
    %c0_47 = arith.constant 0 : index
    %c0_48 = arith.constant 0 : index
    %41 = vector.load %arg7[%c2_46, %c0_47, %c0_48] : memref<18x18x64xf32, #tpu.memory_space<vmem>>, vector<16x16x64xf32>
    %42 = vector.shape_cast %41 : vector<16x16x64xf32> to vector<256x64xf32>
    %43 = arith.truncf %42 : vector<256x64xf32> to vector<256x64xbf16>
    %c0_49 = arith.constant 0 : index
    %c384 = arith.constant 384 : index
    %44 = vector.load %arg8[%c0_49, %c384] : memref<256x576xbf16, #tpu.memory_space<vmem>>, vector<256x64xbf16>
    tpu.vector_store %arg8[%c0_49, %c384], %43 {strides = array<i32>} : memref<256x576xbf16, #tpu.memory_space<vmem>>, vector<256x64xbf16>,
    %c2_50 = arith.constant 2 : index
    %c1_51 = arith.constant 1 : index
    %c0_52 = arith.constant 0 : index
    %45 = vector.load %arg7[%c2_50, %c1_51, %c0_52] : memref<18x18x64xf32, #tpu.memory_space<vmem>>, vector<16x16x64xf32>
    %46 = vector.shape_cast %45 : vector<16x16x64xf32> to vector<256x64xf32>
    %47 = arith.truncf %46 : vector<256x64xf32> to vector<256x64xbf16>
    %c0_53 = arith.constant 0 : index
    %c448 = arith.constant 448 : index
    %48 = vector.load %arg8[%c0_53, %c448] : memref<256x576xbf16, #tpu.memory_space<vmem>>, vector<256x64xbf16>
    tpu.vector_store %arg8[%c0_53, %c448], %47 {strides = array<i32>} : memref<256x576xbf16, #tpu.memory_space<vmem>>, vector<256x64xbf16>,
    %c2_54 = arith.constant 2 : index
    %c2_55 = arith.constant 2 : index
    %c0_56 = arith.constant 0 : index
    %49 = vector.load %arg7[%c2_54, %c2_55, %c0_56] : memref<18x18x64xf32, #tpu.memory_space<vmem>>, vector<16x16x64xf32>
    %50 = vector.shape_cast %49 : vector<16x16x64xf32> to vector<256x64xf32>
    %51 = arith.truncf %50 : vector<256x64xf32> to vector<256x64xbf16>
    %c0_57 = arith.constant 0 : index
    %c512 = arith.constant 512 : index
    %52 = vector.load %arg8[%c0_57, %c512] : memref<256x576xbf16, #tpu.memory_space<vmem>>, vector<256x64xbf16>
    tpu.vector_store %arg8[%c0_57, %c512], %51 {strides = array<i32>} : memref<256x576xbf16, #tpu.memory_space<vmem>>, vector<256x64xbf16>,
    %c0_58 = arith.constant 0 : index
    %c0_59 = arith.constant 0 : index
    %53 = vector.load %arg8[%c0_58, %c0_59] : memref<256x576xbf16, #tpu.memory_space<vmem>>, vector<256x576xbf16>
    %c0_60 = arith.constant 0 : index
    %c0_61 = arith.constant 0 : index
    %54 = vector.load %arg4[%c0_60, %c0_61] : memref<576x64xbf16, #tpu.memory_space<vmem>>, vector<576x64xbf16>
    %cst_62 = arith.constant dense<0.000000e+00> : vector<256x64xf32>
    %55 = tpu.matmul %53, %54, %cst_62 {dimension_numbers = #tpu.dot_dimension_numbers<[1], [0], [0], [1], [0, 0, 1, 1], [], []>} : vector<256x576xbf16>, vector<576x64xbf16>, vector<256x64xf32> -> vector<256x64xf32>
    %c0_63 = arith.constant 0 : index
    %c0_64 = arith.constant 0 : index
    %56 = vector.load %arg5[%c0_63, %c0_64] : memref<1x64xf32, #tpu.memory_space<vmem>>, vector<1x64xf32>
    %57 = vector.broadcast %56 : vector<1x64xf32> to vector<256x64xf32>
    %58 = arith.addf %55, %57 : vector<256x64xf32>
    %cst_65 = arith.constant 0.000000e+00 : f32
    %59 = vector.broadcast %cst_65 : f32 to vector<256x64xf32>
    %60 = arith.maximumf %58, %59 : vector<256x64xf32>
    %61 = vector.shape_cast %60 : vector<256x64xf32> to vector<1x256x64xf32>
    %c0_66 = arith.constant 0 : index
    %c0_67 = arith.constant 0 : index
    %c0_68 = arith.constant 0 : index
    %62 = vector.load %arg6[%c0_66, %c0_67, %c0_68] : memref<1x256x64xf32, #tpu.memory_space<vmem>>, vector<1x256x64xf32>
    tpu.vector_store %arg6[%c0_66, %c0_67, %c0_68], %61 {strides = array<i32>} : memref<1x256x64xf32, #tpu.memory_space<vmem>>, vector<1x256x64xf32>,
    return
  }
  func.func @transform_0(%arg0: i32) -> (i32, i32, i32) {
    %c0_i32 = arith.constant 0 : i32
    %c0_i32_0 = arith.constant 0 : i32
    %c0_i32_1 = arith.constant 0 : i32
    return %arg0, %c0_i32, %c0_i32_0 : i32, i32, i32
  }
  func.func @transform_1(%arg0: i32) -> (i32, i32) {
    %c0_i32 = arith.constant 0 : i32
    %c0_i32_0 = arith.constant 0 : i32
    %c0_i32_1 = arith.constant 0 : i32
    return %c0_i32, %c0_i32_0 : i32, i32
  }
  func.func @transform_2(%arg0: i32) -> (i32, i32) {
    %c0_i32 = arith.constant 0 : i32
    %c0_i32_0 = arith.constant 0 : i32
    %c0_i32_1 = arith.constant 0 : i32
    return %c0_i32, %c0_i32_0 : i32, i32
  }
  func.func @transform_3(%arg0: i32) -> (i32, i32) {
    %c0_i32 = arith.constant 0 : i32
    %c0_i32_0 = arith.constant 0 : i32
    %c0_i32_1 = arith.constant 0 : i32
    return %c0_i32, %c0_i32_0 : i32, i32
  }
  func.func @transform_4(%arg0: i32) -> (i32, i32) {
    %c0_i32 = arith.constant 0 : i32
    %c0_i32_0 = arith.constant 0 : i32
    %c0_i32_1 = arith.constant 0 : i32
    return %c0_i32, %c0_i32_0 : i32, i32
  }
  func.func @transform_5(%arg0: i32) -> (i32, i32, i32) {
    %c0_i32 = arith.constant 0 : i32
    %c0_i32_0 = arith.constant 0 : i32
    %c0_i32_1 = arith.constant 0 : i32
    return %arg0, %c0_i32, %c0_i32_0 : i32, i32, i32
  }
}

module attributes {stable_mosaic.version = 11 : i64} {
  func.func @kernel(%arg0: i32, %arg1: i32, %arg2: memref<1x256x64xf32, #tpu.memory_space<vmem>>, %arg3: memref<1x256x64xf32, #tpu.memory_space<vmem>>, %arg4: memref<1x1x1xf32, #tpu.memory_space<vmem>>) attributes {dimension_semantics = [#tpu.dimension_semantics<parallel>, #tpu.dimension_semantics<arbitrary>], iteration_bounds = array<i64: 2, 1>, scalar_prefetch = 0 : i64, scratch_operands = 0 : i64, tpu.core_type = #tpu.core_type<tc>, window_params = [{transform_indices = @transform_0, window_bounds = array<i64: 1, 256, 64>}, {transform_indices = @transform_1, window_bounds = array<i64: 1, 256, 64>}, {transform_indices = @transform_2, window_bounds = array<i64: 1, 1, 1>}]} {
    %c0_i32 = arith.constant 0 : i32
    %0 = arith.cmpi eq, %arg1, %c0_i32 : i32
    %1 = arith.extui %0 : i1 to i32
    %c0_i32_0 = arith.constant 0 : i32
    %2 = arith.cmpi ne, %1, %c0_i32_0 : i32
    scf.if %2 {
      %cst_12 = arith.constant 0.000000e+00 : f32
      %15 = vector.broadcast %cst_12 : f32 to vector<1x1x1xf32>
      %c0_13 = arith.constant 0 : index
      %c0_14 = arith.constant 0 : index
      %c0_15 = arith.constant 0 : index
      %16 = vector.load %arg4[%c0_13, %c0_14, %c0_15] : memref<1x1x1xf32, #tpu.memory_space<vmem>>, vector<1x1x1xf32>
      tpu.vector_store %arg4[%c0_13, %c0_14, %c0_15], %15 {strides = array<i32>} : memref<1x1x1xf32, #tpu.memory_space<vmem>>, vector<1x1x1xf32>,
    } else {
    }
    %c0 = arith.constant 0 : index
    %c0_1 = arith.constant 0 : index
    %c0_2 = arith.constant 0 : index
    %3 = vector.load %arg2[%c0, %c0_1, %c0_2] : memref<1x256x64xf32, #tpu.memory_space<vmem>>, vector<1x256x64xf32>
    %c0_3 = arith.constant 0 : index
    %c0_4 = arith.constant 0 : index
    %c0_5 = arith.constant 0 : index
    %4 = vector.load %arg3[%c0_3, %c0_4, %c0_5] : memref<1x256x64xf32, #tpu.memory_space<vmem>>, vector<1x256x64xf32>
    %5 = arith.subf %3, %4 : vector<1x256x64xf32>
    %c0_6 = arith.constant 0 : index
    %c0_7 = arith.constant 0 : index
    %c0_8 = arith.constant 0 : index
    %6 = vector.load %arg4[%c0_6, %c0_7, %c0_8] : memref<1x1x1xf32, #tpu.memory_space<vmem>>, vector<1x1x1xf32>
    %7 = arith.mulf %5, %5 : vector<1x256x64xf32>
    %8 = vector.shape_cast %7 : vector<1x256x64xf32> to vector<1x1x256x64xf32>
    %cst = arith.constant dense<0.000000e+00> : vector<1xf32>
    %9 = vector.multi_reduction <add>, %8, %cst [1, 2, 3] : vector<1x1x256x64xf32> to vector<1xf32>
    %10 = vector.shape_cast %9 : vector<1xf32> to vector<1x1x1x1xf32>
    %11 = vector.extract %10[0, 0, 0, 0] : f32 from vector<1x1x1x1xf32>
    %12 = vector.broadcast %11 : f32 to vector<1x1x1xf32>
    %13 = arith.addf %6, %12 : vector<1x1x1xf32>
    %c0_9 = arith.constant 0 : index
    %c0_10 = arith.constant 0 : index
    %c0_11 = arith.constant 0 : index
    %14 = vector.load %arg4[%c0_9, %c0_10, %c0_11] : memref<1x1x1xf32, #tpu.memory_space<vmem>>, vector<1x1x1xf32>
    tpu.vector_store %arg4[%c0_9, %c0_10, %c0_11], %13 {strides = array<i32>} : memref<1x1x1xf32, #tpu.memory_space<vmem>>, vector<1x1x1xf32>,
    return
  }
  func.func @transform_0(%arg0: i32, %arg1: i32) -> (i32, i32, i32) {
    %c0_i32 = arith.constant 0 : i32
    %c0_i32_0 = arith.constant 0 : i32
    return %arg0, %arg1, %c0_i32 : i32, i32, i32
  }
  func.func @transform_1(%arg0: i32, %arg1: i32) -> (i32, i32, i32) {
    %c2_i32 = arith.constant 2 : i32
    %0 = arith.addi %arg0, %c2_i32 : i32
    %c0_i32 = arith.constant 0 : i32
    %c0_i32_0 = arith.constant 0 : i32
    return %0, %arg1, %c0_i32 : i32, i32, i32
  }
  func.func @transform_2(%arg0: i32, %arg1: i32) -> (i32, i32, i32) {
    %c0_i32 = arith.constant 0 : i32
    %c0_i32_0 = arith.constant 0 : i32
    %c0_i32_1 = arith.constant 0 : i32
    return %arg0, %c0_i32, %c0_i32_0 : i32, i32, i32
  }
}

module attributes {stable_mosaic.version = 11 : i64} {
  func.func @kernel(%arg0: i32, %arg1: i32, %arg2: memref<1x256x64xf32, #tpu.memory_space<vmem>>, %arg3: memref<1x64x64xf32, #tpu.memory_space<vmem>>, %arg4: memref<64x64xf32, #tpu.memory_space<vmem>>) attributes {dimension_semantics = [#tpu.dimension_semantics<parallel>, #tpu.dimension_semantics<arbitrary>], iteration_bounds = array<i64: 4, 1>, scalar_prefetch = 0 : i64, scratch_operands = 1 : i64, tpu.core_type = #tpu.core_type<tc>, window_params = [{transform_indices = @transform_0, window_bounds = array<i64: 1, 256, 64>}, {transform_indices = @transform_1, window_bounds = array<i64: 1, 64, 64>}]} {
    %c0_i32 = arith.constant 0 : i32
    %0 = arith.cmpi eq, %arg1, %c0_i32 : i32
    %1 = arith.extui %0 : i1 to i32
    %c0_i32_0 = arith.constant 0 : i32
    %2 = arith.cmpi ne, %1, %c0_i32_0 : i32
    scf.if %2 {
      %cst_9 = arith.constant 0.000000e+00 : f32
      %13 = vector.broadcast %cst_9 : f32 to vector<64x64xf32>
      %c0_10 = arith.constant 0 : index
      %c0_11 = arith.constant 0 : index
      %14 = vector.load %arg4[%c0_10, %c0_11] : memref<64x64xf32, #tpu.memory_space<vmem>>, vector<64x64xf32>
      tpu.vector_store %arg4[%c0_10, %c0_11], %13 {strides = array<i32>} : memref<64x64xf32, #tpu.memory_space<vmem>>, vector<64x64xf32>,
    } else {
    }
    %c0 = arith.constant 0 : index
    %c0_1 = arith.constant 0 : index
    %c0_2 = arith.constant 0 : index
    %3 = vector.load %arg2[%c0, %c0_1, %c0_2] : memref<1x256x64xf32, #tpu.memory_space<vmem>>, vector<1x256x64xf32>
    %4 = vector.shape_cast %3 : vector<1x256x64xf32> to vector<256x64xf32>
    %5 = arith.truncf %4 : vector<256x64xf32> to vector<256x64xbf16>
    %c0_3 = arith.constant 0 : index
    %c0_4 = arith.constant 0 : index
    %6 = vector.load %arg4[%c0_3, %c0_4] : memref<64x64xf32, #tpu.memory_space<vmem>>, vector<64x64xf32>
    %cst = arith.constant dense<0.000000e+00> : vector<64x64xf32>
    %7 = tpu.matmul %5, %5, %cst {dimension_numbers = #tpu.dot_dimension_numbers<[0], [0], [1], [1], [0, 1, 1, 1], [], []>} : vector<256x64xbf16>, vector<256x64xbf16>, vector<64x64xf32> -> vector<64x64xf32>
    %8 = arith.addf %6, %7 : vector<64x64xf32>
    %c0_5 = arith.constant 0 : index
    %c0_6 = arith.constant 0 : index
    %9 = vector.load %arg4[%c0_5, %c0_6] : memref<64x64xf32, #tpu.memory_space<vmem>>, vector<64x64xf32>
    tpu.vector_store %arg4[%c0_5, %c0_6], %8 {strides = array<i32>} : memref<64x64xf32, #tpu.memory_space<vmem>>, vector<64x64xf32>,
    %c0_i32_7 = arith.constant 0 : i32
    %10 = arith.cmpi eq, %arg1, %c0_i32_7 : i32
    %11 = arith.extui %10 : i1 to i32
    %c0_i32_8 = arith.constant 0 : i32
    %12 = arith.cmpi ne, %11, %c0_i32_8 : i32
    scf.if %12 {
      %c0_9 = arith.constant 0 : index
      %c0_10 = arith.constant 0 : index
      %13 = vector.load %arg4[%c0_9, %c0_10] : memref<64x64xf32, #tpu.memory_space<vmem>>, vector<64x64xf32>
      %cst_11 = arith.constant 6.10351563E-5 : f32
      %14 = vector.broadcast %cst_11 : f32 to vector<64x64xf32>
      %15 = arith.mulf %13, %14 : vector<64x64xf32>
      %16 = vector.shape_cast %15 : vector<64x64xf32> to vector<1x64x64xf32>
      %c0_12 = arith.constant 0 : index
      %c0_13 = arith.constant 0 : index
      %c0_14 = arith.constant 0 : index
      %17 = vector.load %arg3[%c0_12, %c0_13, %c0_14] : memref<1x64x64xf32, #tpu.memory_space<vmem>>, vector<1x64x64xf32>
      tpu.vector_store %arg3[%c0_12, %c0_13, %c0_14], %16 {strides = array<i32>} : memref<1x64x64xf32, #tpu.memory_space<vmem>>, vector<1x64x64xf32>,
    } else {
    }
    return
  }
  func.func @transform_0(%arg0: i32, %arg1: i32) -> (i32, i32, i32) {
    %c0_i32 = arith.constant 0 : i32
    %c0_i32_0 = arith.constant 0 : i32
    return %arg0, %arg1, %c0_i32 : i32, i32, i32
  }
  func.func @transform_1(%arg0: i32, %arg1: i32) -> (i32, i32, i32) {
    %c0_i32 = arith.constant 0 : i32
    %c0_i32_0 = arith.constant 0 : i32
    %c0_i32_1 = arith.constant 0 : i32
    return %arg0, %c0_i32, %c0_i32_0 : i32, i32, i32
  }
}

module attributes {stable_mosaic.version = 11 : i64} {
  func.func @kernel(%arg0: i32, %arg1: i32, %arg2: memref<1x64x64xf32, #tpu.memory_space<vmem>>, %arg3: memref<1x64x64xf32, #tpu.memory_space<vmem>>, %arg4: memref<1x1x1xf32, #tpu.memory_space<vmem>>) attributes {dimension_semantics = [#tpu.dimension_semantics<parallel>, #tpu.dimension_semantics<arbitrary>], iteration_bounds = array<i64: 2, 1>, scalar_prefetch = 0 : i64, scratch_operands = 0 : i64, tpu.core_type = #tpu.core_type<tc>, window_params = [{transform_indices = @transform_0, window_bounds = array<i64: 1, 64, 64>}, {transform_indices = @transform_1, window_bounds = array<i64: 1, 64, 64>}, {transform_indices = @transform_2, window_bounds = array<i64: 1, 1, 1>}]} {
    %c0_i32 = arith.constant 0 : i32
    %0 = arith.cmpi eq, %arg1, %c0_i32 : i32
    %1 = arith.extui %0 : i1 to i32
    %c0_i32_0 = arith.constant 0 : i32
    %2 = arith.cmpi ne, %1, %c0_i32_0 : i32
    scf.if %2 {
      %cst_12 = arith.constant 0.000000e+00 : f32
      %15 = vector.broadcast %cst_12 : f32 to vector<1x1x1xf32>
      %c0_13 = arith.constant 0 : index
      %c0_14 = arith.constant 0 : index
      %c0_15 = arith.constant 0 : index
      %16 = vector.load %arg4[%c0_13, %c0_14, %c0_15] : memref<1x1x1xf32, #tpu.memory_space<vmem>>, vector<1x1x1xf32>
      tpu.vector_store %arg4[%c0_13, %c0_14, %c0_15], %15 {strides = array<i32>} : memref<1x1x1xf32, #tpu.memory_space<vmem>>, vector<1x1x1xf32>,
    } else {
    }
    %c0 = arith.constant 0 : index
    %c0_1 = arith.constant 0 : index
    %c0_2 = arith.constant 0 : index
    %3 = vector.load %arg2[%c0, %c0_1, %c0_2] : memref<1x64x64xf32, #tpu.memory_space<vmem>>, vector<1x64x64xf32>
    %c0_3 = arith.constant 0 : index
    %c0_4 = arith.constant 0 : index
    %c0_5 = arith.constant 0 : index
    %4 = vector.load %arg3[%c0_3, %c0_4, %c0_5] : memref<1x64x64xf32, #tpu.memory_space<vmem>>, vector<1x64x64xf32>
    %5 = arith.subf %3, %4 : vector<1x64x64xf32>
    %c0_6 = arith.constant 0 : index
    %c0_7 = arith.constant 0 : index
    %c0_8 = arith.constant 0 : index
    %6 = vector.load %arg4[%c0_6, %c0_7, %c0_8] : memref<1x1x1xf32, #tpu.memory_space<vmem>>, vector<1x1x1xf32>
    %7 = arith.mulf %5, %5 : vector<1x64x64xf32>
    %8 = vector.shape_cast %7 : vector<1x64x64xf32> to vector<1x1x64x64xf32>
    %cst = arith.constant dense<0.000000e+00> : vector<1xf32>
    %9 = vector.multi_reduction <add>, %8, %cst [1, 2, 3] : vector<1x1x64x64xf32> to vector<1xf32>
    %10 = vector.shape_cast %9 : vector<1xf32> to vector<1x1x1x1xf32>
    %11 = vector.extract %10[0, 0, 0, 0] : f32 from vector<1x1x1x1xf32>
    %12 = vector.broadcast %11 : f32 to vector<1x1x1xf32>
    %13 = arith.addf %6, %12 : vector<1x1x1xf32>
    %c0_9 = arith.constant 0 : index
    %c0_10 = arith.constant 0 : index
    %c0_11 = arith.constant 0 : index
    %14 = vector.load %arg4[%c0_9, %c0_10, %c0_11] : memref<1x1x1xf32, #tpu.memory_space<vmem>>, vector<1x1x1xf32>
    tpu.vector_store %arg4[%c0_9, %c0_10, %c0_11], %13 {strides = array<i32>} : memref<1x1x1xf32, #tpu.memory_space<vmem>>, vector<1x1x1xf32>,
    return
  }
  func.func @transform_0(%arg0: i32, %arg1: i32) -> (i32, i32, i32) {
    %c0_i32 = arith.constant 0 : i32
    %c0_i32_0 = arith.constant 0 : i32
    return %arg0, %arg1, %c0_i32 : i32, i32, i32
  }
  func.func @transform_1(%arg0: i32, %arg1: i32) -> (i32, i32, i32) {
    %c2_i32 = arith.constant 2 : i32
    %0 = arith.addi %arg0, %c2_i32 : i32
    %c0_i32 = arith.constant 0 : i32
    %c0_i32_0 = arith.constant 0 : i32
    return %0, %arg1, %c0_i32 : i32, i32, i32
  }
  func.func @transform_2(%arg0: i32, %arg1: i32) -> (i32, i32, i32) {
    %c0_i32 = arith.constant 0 : i32
    %c0_i32_0 = arith.constant 0 : i32
    %c0_i32_1 = arith.constant 0 : i32
    return %arg0, %c0_i32, %c0_i32_0 : i32, i32, i32
  }
}

module attributes {stable_mosaic.version = 11 : i64} {
  func.func @kernel(%arg0: i32, %arg1: memref<1x8x8x64xbf16, #tpu.memory_space<vmem>>, %arg2: memref<576x128xbf16, #tpu.memory_space<vmem>>, %arg3: memref<1x128xf32, #tpu.memory_space<vmem>>, %arg4: memref<1152x128xbf16, #tpu.memory_space<vmem>>, %arg5: memref<1x128xf32, #tpu.memory_space<vmem>>, %arg6: memref<1x64x128xf32, #tpu.memory_space<vmem>>, %arg7: memref<10x10x64xf32, #tpu.memory_space<vmem>>, %arg8: memref<10x10x128xf32, #tpu.memory_space<vmem>>, %arg9: memref<64x1152xbf16, #tpu.memory_space<vmem>>) attributes {dimension_semantics = [#tpu.dimension_semantics<parallel>], iteration_bounds = array<i64: 4>, scalar_prefetch = 0 : i64, scratch_operands = 3 : i64, tpu.core_type = #tpu.core_type<tc>, window_params = [{transform_indices = @transform_0, window_bounds = array<i64: 1, 8, 8, 64>}, {pipeline_mode = #tpu.pipeline_mode<synchronous>, transform_indices = @transform_1, window_bounds = array<i64: 576, 128>}, {pipeline_mode = #tpu.pipeline_mode<synchronous>, transform_indices = @transform_2, window_bounds = array<i64: 1, 128>}, {pipeline_mode = #tpu.pipeline_mode<synchronous>, transform_indices = @transform_3, window_bounds = array<i64: 1152, 128>}, {pipeline_mode = #tpu.pipeline_mode<synchronous>, transform_indices = @transform_4, window_bounds = array<i64: 1, 128>}, {transform_indices = @transform_5, window_bounds = array<i64: 1, 64, 128>}]} {
    %cst = arith.constant 0.000000e+00 : f32
    %0 = vector.broadcast %cst : f32 to vector<1x10x64xf32>
    %c0 = arith.constant 0 : index
    %c0_0 = arith.constant 0 : index
    %c0_1 = arith.constant 0 : index
    %1 = vector.load %arg7[%c0, %c0_0, %c0_1] : memref<10x10x64xf32, #tpu.memory_space<vmem>>, vector<1x10x64xf32>
    tpu.vector_store %arg7[%c0, %c0_0, %c0_1], %0 {strides = array<i32>} : memref<10x10x64xf32, #tpu.memory_space<vmem>>, vector<1x10x64xf32>,
    %c9 = arith.constant 9 : index
    %c0_2 = arith.constant 0 : index
    %c0_3 = arith.constant 0 : index
    %2 = vector.load %arg7[%c9, %c0_2, %c0_3] : memref<10x10x64xf32, #tpu.memory_space<vmem>>, vector<1x10x64xf32>
    tpu.vector_store %arg7[%c9, %c0_2, %c0_3], %0 {strides = array<i32>} : memref<10x10x64xf32, #tpu.memory_space<vmem>>, vector<1x10x64xf32>,
    %cst_4 = arith.constant 0.000000e+00 : f32
    %3 = vector.broadcast %cst_4 : f32 to vector<10x1x64xf32>
    %c0_5 = arith.constant 0 : index
    %c0_6 = arith.constant 0 : index
    %c0_7 = arith.constant 0 : index
    %4 = vector.load %arg7[%c0_5, %c0_6, %c0_7] : memref<10x10x64xf32, #tpu.memory_space<vmem>>, vector<10x1x64xf32>
    tpu.vector_store %arg7[%c0_5, %c0_6, %c0_7], %3 {strides = array<i32>} : memref<10x10x64xf32, #tpu.memory_space<vmem>>, vector<10x1x64xf32>,
    %c0_8 = arith.constant 0 : index
    %c9_9 = arith.constant 9 : index
    %c0_10 = arith.constant 0 : index
    %5 = vector.load %arg7[%c0_8, %c9_9, %c0_10] : memref<10x10x64xf32, #tpu.memory_space<vmem>>, vector<10x1x64xf32>
    tpu.vector_store %arg7[%c0_8, %c9_9, %c0_10], %3 {strides = array<i32>} : memref<10x10x64xf32, #tpu.memory_space<vmem>>, vector<10x1x64xf32>,
    %c0_11 = arith.constant 0 : index
    %c0_12 = arith.constant 0 : index
    %c0_13 = arith.constant 0 : index
    %c0_14 = arith.constant 0 : index
    %6 = vector.load %arg1[%c0_11, %c0_12, %c0_13, %c0_14] : memref<1x8x8x64xbf16, #tpu.memory_space<vmem>>, vector<1x8x8x64xbf16>
    %7 = vector.shape_cast %6 : vector<1x8x8x64xbf16> to vector<8x8x64xbf16>
    %8 = arith.extf %7 : vector<8x8x64xbf16> to vector<8x8x64xf32>
    %c1 = arith.constant 1 : index
    %c1_15 = arith.constant 1 : index
    %c0_16 = arith.constant 0 : index
    %9 = vector.load %arg7[%c1, %c1_15, %c0_16] : memref<10x10x64xf32, #tpu.memory_space<vmem>>, vector<8x8x64xf32>
    tpu.vector_store %arg7[%c1, %c1_15, %c0_16], %8 {strides = array<i32>} : memref<10x10x64xf32, #tpu.memory_space<vmem>>, vector<8x8x64xf32>,
    %c0_17 = arith.constant 0 : index
    %c0_18 = arith.constant 0 : index
    %c0_19 = arith.constant 0 : index
    %10 = vector.load %arg7[%c0_17, %c0_18, %c0_19] : memref<10x10x64xf32, #tpu.memory_space<vmem>>, vector<8x8x64xf32>
    %11 = vector.shape_cast %10 : vector<8x8x64xf32> to vector<64x64xf32>
    %12 = arith.truncf %11 : vector<64x64xf32> to vector<64x64xbf16>
    %c0_20 = arith.constant 0 : index
    %c0_21 = arith.constant 0 : index
    %13 = vector.load %arg9[%c0_20, %c0_21] : memref<64x1152xbf16, #tpu.memory_space<vmem>>, vector<64x64xbf16>
    tpu.vector_store %arg9[%c0_20, %c0_21], %12 {strides = array<i32>} : memref<64x1152xbf16, #tpu.memory_space<vmem>>, vector<64x64xbf16>,
    %c0_22 = arith.constant 0 : index
    %c1_23 = arith.constant 1 : index
    %c0_24 = arith.constant 0 : index
    %14 = vector.load %arg7[%c0_22, %c1_23, %c0_24] : memref<10x10x64xf32, #tpu.memory_space<vmem>>, vector<8x8x64xf32>
    %15 = vector.shape_cast %14 : vector<8x8x64xf32> to vector<64x64xf32>
    %16 = arith.truncf %15 : vector<64x64xf32> to vector<64x64xbf16>
    %c0_25 = arith.constant 0 : index
    %c64 = arith.constant 64 : index
    %17 = vector.load %arg9[%c0_25, %c64] : memref<64x1152xbf16, #tpu.memory_space<vmem>>, vector<64x64xbf16>
    tpu.vector_store %arg9[%c0_25, %c64], %16 {strides = array<i32>} : memref<64x1152xbf16, #tpu.memory_space<vmem>>, vector<64x64xbf16>,
    %c0_26 = arith.constant 0 : index
    %c2 = arith.constant 2 : index
    %c0_27 = arith.constant 0 : index
    %18 = vector.load %arg7[%c0_26, %c2, %c0_27] : memref<10x10x64xf32, #tpu.memory_space<vmem>>, vector<8x8x64xf32>
    %19 = vector.shape_cast %18 : vector<8x8x64xf32> to vector<64x64xf32>
    %20 = arith.truncf %19 : vector<64x64xf32> to vector<64x64xbf16>
    %c0_28 = arith.constant 0 : index
    %c128 = arith.constant 128 : index
    %21 = vector.load %arg9[%c0_28, %c128] : memref<64x1152xbf16, #tpu.memory_space<vmem>>, vector<64x64xbf16>
    tpu.vector_store %arg9[%c0_28, %c128], %20 {strides = array<i32>} : memref<64x1152xbf16, #tpu.memory_space<vmem>>, vector<64x64xbf16>,
    %c1_29 = arith.constant 1 : index
    %c0_30 = arith.constant 0 : index
    %c0_31 = arith.constant 0 : index
    %22 = vector.load %arg7[%c1_29, %c0_30, %c0_31] : memref<10x10x64xf32, #tpu.memory_space<vmem>>, vector<8x8x64xf32>
    %23 = vector.shape_cast %22 : vector<8x8x64xf32> to vector<64x64xf32>
    %24 = arith.truncf %23 : vector<64x64xf32> to vector<64x64xbf16>
    %c0_32 = arith.constant 0 : index
    %c192 = arith.constant 192 : index
    %25 = vector.load %arg9[%c0_32, %c192] : memref<64x1152xbf16, #tpu.memory_space<vmem>>, vector<64x64xbf16>
    tpu.vector_store %arg9[%c0_32, %c192], %24 {strides = array<i32>} : memref<64x1152xbf16, #tpu.memory_space<vmem>>, vector<64x64xbf16>,
    %c1_33 = arith.constant 1 : index
    %c1_34 = arith.constant 1 : index
    %c0_35 = arith.constant 0 : index
    %26 = vector.load %arg7[%c1_33, %c1_34, %c0_35] : memref<10x10x64xf32, #tpu.memory_space<vmem>>, vector<8x8x64xf32>
    %27 = vector.shape_cast %26 : vector<8x8x64xf32> to vector<64x64xf32>
    %28 = arith.truncf %27 : vector<64x64xf32> to vector<64x64xbf16>
    %c0_36 = arith.constant 0 : index
    %c256 = arith.constant 256 : index
    %29 = vector.load %arg9[%c0_36, %c256] : memref<64x1152xbf16, #tpu.memory_space<vmem>>, vector<64x64xbf16>
    tpu.vector_store %arg9[%c0_36, %c256], %28 {strides = array<i32>} : memref<64x1152xbf16, #tpu.memory_space<vmem>>, vector<64x64xbf16>,
    %c1_37 = arith.constant 1 : index
    %c2_38 = arith.constant 2 : index
    %c0_39 = arith.constant 0 : index
    %30 = vector.load %arg7[%c1_37, %c2_38, %c0_39] : memref<10x10x64xf32, #tpu.memory_space<vmem>>, vector<8x8x64xf32>
    %31 = vector.shape_cast %30 : vector<8x8x64xf32> to vector<64x64xf32>
    %32 = arith.truncf %31 : vector<64x64xf32> to vector<64x64xbf16>
    %c0_40 = arith.constant 0 : index
    %c320 = arith.constant 320 : index
    %33 = vector.load %arg9[%c0_40, %c320] : memref<64x1152xbf16, #tpu.memory_space<vmem>>, vector<64x64xbf16>
    tpu.vector_store %arg9[%c0_40, %c320], %32 {strides = array<i32>} : memref<64x1152xbf16, #tpu.memory_space<vmem>>, vector<64x64xbf16>,
    %c2_41 = arith.constant 2 : index
    %c0_42 = arith.constant 0 : index
    %c0_43 = arith.constant 0 : index
    %34 = vector.load %arg7[%c2_41, %c0_42, %c0_43] : memref<10x10x64xf32, #tpu.memory_space<vmem>>, vector<8x8x64xf32>
    %35 = vector.shape_cast %34 : vector<8x8x64xf32> to vector<64x64xf32>
    %36 = arith.truncf %35 : vector<64x64xf32> to vector<64x64xbf16>
    %c0_44 = arith.constant 0 : index
    %c384 = arith.constant 384 : index
    %37 = vector.load %arg9[%c0_44, %c384] : memref<64x1152xbf16, #tpu.memory_space<vmem>>, vector<64x64xbf16>
    tpu.vector_store %arg9[%c0_44, %c384], %36 {strides = array<i32>} : memref<64x1152xbf16, #tpu.memory_space<vmem>>, vector<64x64xbf16>,
    %c2_45 = arith.constant 2 : index
    %c1_46 = arith.constant 1 : index
    %c0_47 = arith.constant 0 : index
    %38 = vector.load %arg7[%c2_45, %c1_46, %c0_47] : memref<10x10x64xf32, #tpu.memory_space<vmem>>, vector<8x8x64xf32>
    %39 = vector.shape_cast %38 : vector<8x8x64xf32> to vector<64x64xf32>
    %40 = arith.truncf %39 : vector<64x64xf32> to vector<64x64xbf16>
    %c0_48 = arith.constant 0 : index
    %c448 = arith.constant 448 : index
    %41 = vector.load %arg9[%c0_48, %c448] : memref<64x1152xbf16, #tpu.memory_space<vmem>>, vector<64x64xbf16>
    tpu.vector_store %arg9[%c0_48, %c448], %40 {strides = array<i32>} : memref<64x1152xbf16, #tpu.memory_space<vmem>>, vector<64x64xbf16>,
    %c2_49 = arith.constant 2 : index
    %c2_50 = arith.constant 2 : index
    %c0_51 = arith.constant 0 : index
    %42 = vector.load %arg7[%c2_49, %c2_50, %c0_51] : memref<10x10x64xf32, #tpu.memory_space<vmem>>, vector<8x8x64xf32>
    %43 = vector.shape_cast %42 : vector<8x8x64xf32> to vector<64x64xf32>
    %44 = arith.truncf %43 : vector<64x64xf32> to vector<64x64xbf16>
    %c0_52 = arith.constant 0 : index
    %c512 = arith.constant 512 : index
    %45 = vector.load %arg9[%c0_52, %c512] : memref<64x1152xbf16, #tpu.memory_space<vmem>>, vector<64x64xbf16>
    tpu.vector_store %arg9[%c0_52, %c512], %44 {strides = array<i32>} : memref<64x1152xbf16, #tpu.memory_space<vmem>>, vector<64x64xbf16>,
    %c0_53 = arith.constant 0 : index
    %c0_54 = arith.constant 0 : index
    %46 = vector.load %arg9[%c0_53, %c0_54] : memref<64x1152xbf16, #tpu.memory_space<vmem>>, vector<64x576xbf16>
    %c0_55 = arith.constant 0 : index
    %c0_56 = arith.constant 0 : index
    %47 = vector.load %arg2[%c0_55, %c0_56] : memref<576x128xbf16, #tpu.memory_space<vmem>>, vector<576x128xbf16>
    %cst_57 = arith.constant dense<0.000000e+00> : vector<64x128xf32>
    %48 = tpu.matmul %46, %47, %cst_57 {dimension_numbers = #tpu.dot_dimension_numbers<[1], [0], [0], [1], [0, 0, 1, 1], [], []>} : vector<64x576xbf16>, vector<576x128xbf16>, vector<64x128xf32> -> vector<64x128xf32>
    %c0_58 = arith.constant 0 : index
    %c0_59 = arith.constant 0 : index
    %49 = vector.load %arg3[%c0_58, %c0_59] : memref<1x128xf32, #tpu.memory_space<vmem>>, vector<1x128xf32>
    %50 = vector.broadcast %49 : vector<1x128xf32> to vector<64x128xf32>
    %51 = arith.addf %48, %50 : vector<64x128xf32>
    %cst_60 = arith.constant 0.000000e+00 : f32
    %52 = vector.broadcast %cst_60 : f32 to vector<64x128xf32>
    %53 = arith.maximumf %51, %52 : vector<64x128xf32>
    %cst_61 = arith.constant 0.000000e+00 : f32
    %54 = vector.broadcast %cst_61 : f32 to vector<1x10x128xf32>
    %c0_62 = arith.constant 0 : index
    %c0_63 = arith.constant 0 : index
    %c0_64 = arith.constant 0 : index
    %55 = vector.load %arg8[%c0_62, %c0_63, %c0_64] : memref<10x10x128xf32, #tpu.memory_space<vmem>>, vector<1x10x128xf32>
    tpu.vector_store %arg8[%c0_62, %c0_63, %c0_64], %54 {strides = array<i32>} : memref<10x10x128xf32, #tpu.memory_space<vmem>>, vector<1x10x128xf32>,
    %c9_65 = arith.constant 9 : index
    %c0_66 = arith.constant 0 : index
    %c0_67 = arith.constant 0 : index
    %56 = vector.load %arg8[%c9_65, %c0_66, %c0_67] : memref<10x10x128xf32, #tpu.memory_space<vmem>>, vector<1x10x128xf32>
    tpu.vector_store %arg8[%c9_65, %c0_66, %c0_67], %54 {strides = array<i32>} : memref<10x10x128xf32, #tpu.memory_space<vmem>>, vector<1x10x128xf32>,
    %cst_68 = arith.constant 0.000000e+00 : f32
    %57 = vector.broadcast %cst_68 : f32 to vector<10x1x128xf32>
    %c0_69 = arith.constant 0 : index
    %c0_70 = arith.constant 0 : index
    %c0_71 = arith.constant 0 : index
    %58 = vector.load %arg8[%c0_69, %c0_70, %c0_71] : memref<10x10x128xf32, #tpu.memory_space<vmem>>, vector<10x1x128xf32>
    tpu.vector_store %arg8[%c0_69, %c0_70, %c0_71], %57 {strides = array<i32>} : memref<10x10x128xf32, #tpu.memory_space<vmem>>, vector<10x1x128xf32>,
    %c0_72 = arith.constant 0 : index
    %c9_73 = arith.constant 9 : index
    %c0_74 = arith.constant 0 : index
    %59 = vector.load %arg8[%c0_72, %c9_73, %c0_74] : memref<10x10x128xf32, #tpu.memory_space<vmem>>, vector<10x1x128xf32>
    tpu.vector_store %arg8[%c0_72, %c9_73, %c0_74], %57 {strides = array<i32>} : memref<10x10x128xf32, #tpu.memory_space<vmem>>, vector<10x1x128xf32>,
    %60 = vector.shape_cast %53 : vector<64x128xf32> to vector<8x8x128xf32>
    %c1_75 = arith.constant 1 : index
    %c1_76 = arith.constant 1 : index
    %c0_77 = arith.constant 0 : index
    %61 = vector.load %arg8[%c1_75, %c1_76, %c0_77] : memref<10x10x128xf32, #tpu.memory_space<vmem>>, vector<8x8x128xf32>
    tpu.vector_store %arg8[%c1_75, %c1_76, %c0_77], %60 {strides = array<i32>} : memref<10x10x128xf32, #tpu.memory_space<vmem>>, vector<8x8x128xf32>,
    %c0_78 = arith.constant 0 : index
    %c0_79 = arith.constant 0 : index
    %c0_80 = arith.constant 0 : index
    %62 = vector.load %arg8[%c0_78, %c0_79, %c0_80] : memref<10x10x128xf32, #tpu.memory_space<vmem>>, vector<8x8x128xf32>
    %63 = vector.shape_cast %62 : vector<8x8x128xf32> to vector<64x128xf32>
    %64 = arith.truncf %63 : vector<64x128xf32> to vector<64x128xbf16>
    %c0_81 = arith.constant 0 : index
    %c0_82 = arith.constant 0 : index
    %65 = vector.load %arg9[%c0_81, %c0_82] : memref<64x1152xbf16, #tpu.memory_space<vmem>>, vector<64x128xbf16>
    tpu.vector_store %arg9[%c0_81, %c0_82], %64 {strides = array<i32>} : memref<64x1152xbf16, #tpu.memory_space<vmem>>, vector<64x128xbf16>,
    %c0_83 = arith.constant 0 : index
    %c1_84 = arith.constant 1 : index
    %c0_85 = arith.constant 0 : index
    %66 = vector.load %arg8[%c0_83, %c1_84, %c0_85] : memref<10x10x128xf32, #tpu.memory_space<vmem>>, vector<8x8x128xf32>
    %67 = vector.shape_cast %66 : vector<8x8x128xf32> to vector<64x128xf32>
    %68 = arith.truncf %67 : vector<64x128xf32> to vector<64x128xbf16>
    %c0_86 = arith.constant 0 : index
    %c128_87 = arith.constant 128 : index
    %69 = vector.load %arg9[%c0_86, %c128_87] : memref<64x1152xbf16, #tpu.memory_space<vmem>>, vector<64x128xbf16>
    tpu.vector_store %arg9[%c0_86, %c128_87], %68 {strides = array<i32>} : memref<64x1152xbf16, #tpu.memory_space<vmem>>, vector<64x128xbf16>,
    %c0_88 = arith.constant 0 : index
    %c2_89 = arith.constant 2 : index
    %c0_90 = arith.constant 0 : index
    %70 = vector.load %arg8[%c0_88, %c2_89, %c0_90] : memref<10x10x128xf32, #tpu.memory_space<vmem>>, vector<8x8x128xf32>
    %71 = vector.shape_cast %70 : vector<8x8x128xf32> to vector<64x128xf32>
    %72 = arith.truncf %71 : vector<64x128xf32> to vector<64x128xbf16>
    %c0_91 = arith.constant 0 : index
    %c256_92 = arith.constant 256 : index
    %73 = vector.load %arg9[%c0_91, %c256_92] : memref<64x1152xbf16, #tpu.memory_space<vmem>>, vector<64x128xbf16>
    tpu.vector_store %arg9[%c0_91, %c256_92], %72 {strides = array<i32>} : memref<64x1152xbf16, #tpu.memory_space<vmem>>, vector<64x128xbf16>,
    %c1_93 = arith.constant 1 : index
    %c0_94 = arith.constant 0 : index
    %c0_95 = arith.constant 0 : index
    %74 = vector.load %arg8[%c1_93, %c0_94, %c0_95] : memref<10x10x128xf32, #tpu.memory_space<vmem>>, vector<8x8x128xf32>
    %75 = vector.shape_cast %74 : vector<8x8x128xf32> to vector<64x128xf32>
    %76 = arith.truncf %75 : vector<64x128xf32> to vector<64x128xbf16>
    %c0_96 = arith.constant 0 : index
    %c384_97 = arith.constant 384 : index
    %77 = vector.load %arg9[%c0_96, %c384_97] : memref<64x1152xbf16, #tpu.memory_space<vmem>>, vector<64x128xbf16>
    tpu.vector_store %arg9[%c0_96, %c384_97], %76 {strides = array<i32>} : memref<64x1152xbf16, #tpu.memory_space<vmem>>, vector<64x128xbf16>,
    %c1_98 = arith.constant 1 : index
    %c1_99 = arith.constant 1 : index
    %c0_100 = arith.constant 0 : index
    %78 = vector.load %arg8[%c1_98, %c1_99, %c0_100] : memref<10x10x128xf32, #tpu.memory_space<vmem>>, vector<8x8x128xf32>
    %79 = vector.shape_cast %78 : vector<8x8x128xf32> to vector<64x128xf32>
    %80 = arith.truncf %79 : vector<64x128xf32> to vector<64x128xbf16>
    %c0_101 = arith.constant 0 : index
    %c512_102 = arith.constant 512 : index
    %81 = vector.load %arg9[%c0_101, %c512_102] : memref<64x1152xbf16, #tpu.memory_space<vmem>>, vector<64x128xbf16>
    tpu.vector_store %arg9[%c0_101, %c512_102], %80 {strides = array<i32>} : memref<64x1152xbf16, #tpu.memory_space<vmem>>, vector<64x128xbf16>,
    %c1_103 = arith.constant 1 : index
    %c2_104 = arith.constant 2 : index
    %c0_105 = arith.constant 0 : index
    %82 = vector.load %arg8[%c1_103, %c2_104, %c0_105] : memref<10x10x128xf32, #tpu.memory_space<vmem>>, vector<8x8x128xf32>
    %83 = vector.shape_cast %82 : vector<8x8x128xf32> to vector<64x128xf32>
    %84 = arith.truncf %83 : vector<64x128xf32> to vector<64x128xbf16>
    %c0_106 = arith.constant 0 : index
    %c640 = arith.constant 640 : index
    %85 = vector.load %arg9[%c0_106, %c640] : memref<64x1152xbf16, #tpu.memory_space<vmem>>, vector<64x128xbf16>
    tpu.vector_store %arg9[%c0_106, %c640], %84 {strides = array<i32>} : memref<64x1152xbf16, #tpu.memory_space<vmem>>, vector<64x128xbf16>,
    %c2_107 = arith.constant 2 : index
    %c0_108 = arith.constant 0 : index
    %c0_109 = arith.constant 0 : index
    %86 = vector.load %arg8[%c2_107, %c0_108, %c0_109] : memref<10x10x128xf32, #tpu.memory_space<vmem>>, vector<8x8x128xf32>
    %87 = vector.shape_cast %86 : vector<8x8x128xf32> to vector<64x128xf32>
    %88 = arith.truncf %87 : vector<64x128xf32> to vector<64x128xbf16>
    %c0_110 = arith.constant 0 : index
    %c768 = arith.constant 768 : index
    %89 = vector.load %arg9[%c0_110, %c768] : memref<64x1152xbf16, #tpu.memory_space<vmem>>, vector<64x128xbf16>
    tpu.vector_store %arg9[%c0_110, %c768], %88 {strides = array<i32>} : memref<64x1152xbf16, #tpu.memory_space<vmem>>, vector<64x128xbf16>,
    %c2_111 = arith.constant 2 : index
    %c1_112 = arith.constant 1 : index
    %c0_113 = arith.constant 0 : index
    %90 = vector.load %arg8[%c2_111, %c1_112, %c0_113] : memref<10x10x128xf32, #tpu.memory_space<vmem>>, vector<8x8x128xf32>
    %91 = vector.shape_cast %90 : vector<8x8x128xf32> to vector<64x128xf32>
    %92 = arith.truncf %91 : vector<64x128xf32> to vector<64x128xbf16>
    %c0_114 = arith.constant 0 : index
    %c896 = arith.constant 896 : index
    %93 = vector.load %arg9[%c0_114, %c896] : memref<64x1152xbf16, #tpu.memory_space<vmem>>, vector<64x128xbf16>
    tpu.vector_store %arg9[%c0_114, %c896], %92 {strides = array<i32>} : memref<64x1152xbf16, #tpu.memory_space<vmem>>, vector<64x128xbf16>,
    %c2_115 = arith.constant 2 : index
    %c2_116 = arith.constant 2 : index
    %c0_117 = arith.constant 0 : index
    %94 = vector.load %arg8[%c2_115, %c2_116, %c0_117] : memref<10x10x128xf32, #tpu.memory_space<vmem>>, vector<8x8x128xf32>
    %95 = vector.shape_cast %94 : vector<8x8x128xf32> to vector<64x128xf32>
    %96 = arith.truncf %95 : vector<64x128xf32> to vector<64x128xbf16>
    %c0_118 = arith.constant 0 : index
    %c1024 = arith.constant 1024 : index
    %97 = vector.load %arg9[%c0_118, %c1024] : memref<64x1152xbf16, #tpu.memory_space<vmem>>, vector<64x128xbf16>
    tpu.vector_store %arg9[%c0_118, %c1024], %96 {strides = array<i32>} : memref<64x1152xbf16, #tpu.memory_space<vmem>>, vector<64x128xbf16>,
    %c0_119 = arith.constant 0 : index
    %c0_120 = arith.constant 0 : index
    %98 = vector.load %arg9[%c0_119, %c0_120] : memref<64x1152xbf16, #tpu.memory_space<vmem>>, vector<64x1152xbf16>
    %c0_121 = arith.constant 0 : index
    %c0_122 = arith.constant 0 : index
    %99 = vector.load %arg4[%c0_121, %c0_122] : memref<1152x128xbf16, #tpu.memory_space<vmem>>, vector<1152x128xbf16>
    %cst_123 = arith.constant dense<0.000000e+00> : vector<64x128xf32>
    %100 = tpu.matmul %98, %99, %cst_123 {dimension_numbers = #tpu.dot_dimension_numbers<[1], [0], [0], [1], [0, 0, 1, 1], [], []>} : vector<64x1152xbf16>, vector<1152x128xbf16>, vector<64x128xf32> -> vector<64x128xf32>
    %c0_124 = arith.constant 0 : index
    %c0_125 = arith.constant 0 : index
    %101 = vector.load %arg5[%c0_124, %c0_125] : memref<1x128xf32, #tpu.memory_space<vmem>>, vector<1x128xf32>
    %102 = vector.broadcast %101 : vector<1x128xf32> to vector<64x128xf32>
    %103 = arith.addf %100, %102 : vector<64x128xf32>
    %cst_126 = arith.constant 0.000000e+00 : f32
    %104 = vector.broadcast %cst_126 : f32 to vector<64x128xf32>
    %105 = arith.maximumf %103, %104 : vector<64x128xf32>
    %106 = vector.shape_cast %105 : vector<64x128xf32> to vector<1x64x128xf32>
    %c0_127 = arith.constant 0 : index
    %c0_128 = arith.constant 0 : index
    %c0_129 = arith.constant 0 : index
    %107 = vector.load %arg6[%c0_127, %c0_128, %c0_129] : memref<1x64x128xf32, #tpu.memory_space<vmem>>, vector<1x64x128xf32>
    tpu.vector_store %arg6[%c0_127, %c0_128, %c0_129], %106 {strides = array<i32>} : memref<1x64x128xf32, #tpu.memory_space<vmem>>, vector<1x64x128xf32>,
    return
  }
  func.func @transform_0(%arg0: i32) -> (i32, i32, i32, i32) {
    %c0_i32 = arith.constant 0 : i32
    %c0_i32_0 = arith.constant 0 : i32
    %c0_i32_1 = arith.constant 0 : i32
    %c0_i32_2 = arith.constant 0 : i32
    return %arg0, %c0_i32, %c0_i32_0, %c0_i32_1 : i32, i32, i32, i32
  }
  func.func @transform_1(%arg0: i32) -> (i32, i32) {
    %c0_i32 = arith.constant 0 : i32
    %c0_i32_0 = arith.constant 0 : i32
    %c0_i32_1 = arith.constant 0 : i32
    return %c0_i32, %c0_i32_0 : i32, i32
  }
  func.func @transform_2(%arg0: i32) -> (i32, i32) {
    %c0_i32 = arith.constant 0 : i32
    %c0_i32_0 = arith.constant 0 : i32
    %c0_i32_1 = arith.constant 0 : i32
    return %c0_i32, %c0_i32_0 : i32, i32
  }
  func.func @transform_3(%arg0: i32) -> (i32, i32) {
    %c0_i32 = arith.constant 0 : i32
    %c0_i32_0 = arith.constant 0 : i32
    %c0_i32_1 = arith.constant 0 : i32
    return %c0_i32, %c0_i32_0 : i32, i32
  }
  func.func @transform_4(%arg0: i32) -> (i32, i32) {
    %c0_i32 = arith.constant 0 : i32
    %c0_i32_0 = arith.constant 0 : i32
    %c0_i32_1 = arith.constant 0 : i32
    return %c0_i32, %c0_i32_0 : i32, i32
  }
  func.func @transform_5(%arg0: i32) -> (i32, i32, i32) {
    %c0_i32 = arith.constant 0 : i32
    %c0_i32_0 = arith.constant 0 : i32
    %c0_i32_1 = arith.constant 0 : i32
    return %arg0, %c0_i32, %c0_i32_0 : i32, i32, i32
  }
}

module attributes {stable_mosaic.version = 11 : i64} {
  func.func @kernel(%arg0: i32, %arg1: i32, %arg2: memref<1x64x128xf32, #tpu.memory_space<vmem>>, %arg3: memref<1x128x128xf32, #tpu.memory_space<vmem>>, %arg4: memref<128x128xf32, #tpu.memory_space<vmem>>) attributes {dimension_semantics = [#tpu.dimension_semantics<parallel>, #tpu.dimension_semantics<arbitrary>], iteration_bounds = array<i64: 4, 1>, scalar_prefetch = 0 : i64, scratch_operands = 1 : i64, tpu.core_type = #tpu.core_type<tc>, window_params = [{transform_indices = @transform_0, window_bounds = array<i64: 1, 64, 128>}, {transform_indices = @transform_1, window_bounds = array<i64: 1, 128, 128>}]} {
    %c0_i32 = arith.constant 0 : i32
    %0 = arith.cmpi eq, %arg1, %c0_i32 : i32
    %1 = arith.extui %0 : i1 to i32
    %c0_i32_0 = arith.constant 0 : i32
    %2 = arith.cmpi ne, %1, %c0_i32_0 : i32
    scf.if %2 {
      %cst_9 = arith.constant 0.000000e+00 : f32
      %13 = vector.broadcast %cst_9 : f32 to vector<128x128xf32>
      %c0_10 = arith.constant 0 : index
      %c0_11 = arith.constant 0 : index
      %14 = vector.load %arg4[%c0_10, %c0_11] : memref<128x128xf32, #tpu.memory_space<vmem>>, vector<128x128xf32>
      tpu.vector_store %arg4[%c0_10, %c0_11], %13 {strides = array<i32>} : memref<128x128xf32, #tpu.memory_space<vmem>>, vector<128x128xf32>,
    } else {
    }
    %c0 = arith.constant 0 : index
    %c0_1 = arith.constant 0 : index
    %c0_2 = arith.constant 0 : index
    %3 = vector.load %arg2[%c0, %c0_1, %c0_2] : memref<1x64x128xf32, #tpu.memory_space<vmem>>, vector<1x64x128xf32>
    %4 = vector.shape_cast %3 : vector<1x64x128xf32> to vector<64x128xf32>
    %5 = arith.truncf %4 : vector<64x128xf32> to vector<64x128xbf16>
    %c0_3 = arith.constant 0 : index
    %c0_4 = arith.constant 0 : index
    %6 = vector.load %arg4[%c0_3, %c0_4] : memref<128x128xf32, #tpu.memory_space<vmem>>, vector<128x128xf32>
    %cst = arith.constant dense<0.000000e+00> : vector<128x128xf32>
    %7 = tpu.matmul %5, %5, %cst {dimension_numbers = #tpu.dot_dimension_numbers<[0], [0], [1], [1], [0, 1, 1, 1], [], []>} : vector<64x128xbf16>, vector<64x128xbf16>, vector<128x128xf32> -> vector<128x128xf32>
    %8 = arith.addf %6, %7 : vector<128x128xf32>
    %c0_5 = arith.constant 0 : index
    %c0_6 = arith.constant 0 : index
    %9 = vector.load %arg4[%c0_5, %c0_6] : memref<128x128xf32, #tpu.memory_space<vmem>>, vector<128x128xf32>
    tpu.vector_store %arg4[%c0_5, %c0_6], %8 {strides = array<i32>} : memref<128x128xf32, #tpu.memory_space<vmem>>, vector<128x128xf32>,
    %c0_i32_7 = arith.constant 0 : i32
    %10 = arith.cmpi eq, %arg1, %c0_i32_7 : i32
    %11 = arith.extui %10 : i1 to i32
    %c0_i32_8 = arith.constant 0 : i32
    %12 = arith.cmpi ne, %11, %c0_i32_8 : i32
    scf.if %12 {
      %c0_9 = arith.constant 0 : index
      %c0_10 = arith.constant 0 : index
      %13 = vector.load %arg4[%c0_9, %c0_10] : memref<128x128xf32, #tpu.memory_space<vmem>>, vector<128x128xf32>
      %cst_11 = arith.constant 1.22070313E-4 : f32
      %14 = vector.broadcast %cst_11 : f32 to vector<128x128xf32>
      %15 = arith.mulf %13, %14 : vector<128x128xf32>
      %16 = vector.shape_cast %15 : vector<128x128xf32> to vector<1x128x128xf32>
      %c0_12 = arith.constant 0 : index
      %c0_13 = arith.constant 0 : index
      %c0_14 = arith.constant 0 : index
      %17 = vector.load %arg3[%c0_12, %c0_13, %c0_14] : memref<1x128x128xf32, #tpu.memory_space<vmem>>, vector<1x128x128xf32>
      tpu.vector_store %arg3[%c0_12, %c0_13, %c0_14], %16 {strides = array<i32>} : memref<1x128x128xf32, #tpu.memory_space<vmem>>, vector<1x128x128xf32>,
    } else {
    }
    return
  }
  func.func @transform_0(%arg0: i32, %arg1: i32) -> (i32, i32, i32) {
    %c0_i32 = arith.constant 0 : i32
    %c0_i32_0 = arith.constant 0 : i32
    return %arg0, %arg1, %c0_i32 : i32, i32, i32
  }
  func.func @transform_1(%arg0: i32, %arg1: i32) -> (i32, i32, i32) {
    %c0_i32 = arith.constant 0 : i32
    %c0_i32_0 = arith.constant 0 : i32
    %c0_i32_1 = arith.constant 0 : i32
    return %arg0, %c0_i32, %c0_i32_0 : i32, i32, i32
  }
}

module attributes {stable_mosaic.version = 11 : i64} {
  func.func @kernel(%arg0: i32, %arg1: i32, %arg2: memref<1x128x128xf32, #tpu.memory_space<vmem>>, %arg3: memref<1x128x128xf32, #tpu.memory_space<vmem>>, %arg4: memref<1x1x1xf32, #tpu.memory_space<vmem>>) attributes {dimension_semantics = [#tpu.dimension_semantics<parallel>, #tpu.dimension_semantics<arbitrary>], iteration_bounds = array<i64: 2, 1>, scalar_prefetch = 0 : i64, scratch_operands = 0 : i64, tpu.core_type = #tpu.core_type<tc>, window_params = [{transform_indices = @transform_0, window_bounds = array<i64: 1, 128, 128>}, {transform_indices = @transform_1, window_bounds = array<i64: 1, 128, 128>}, {transform_indices = @transform_2, window_bounds = array<i64: 1, 1, 1>}]} {
    %c0_i32 = arith.constant 0 : i32
    %0 = arith.cmpi eq, %arg1, %c0_i32 : i32
    %1 = arith.extui %0 : i1 to i32
    %c0_i32_0 = arith.constant 0 : i32
    %2 = arith.cmpi ne, %1, %c0_i32_0 : i32
    scf.if %2 {
      %cst_12 = arith.constant 0.000000e+00 : f32
      %15 = vector.broadcast %cst_12 : f32 to vector<1x1x1xf32>
      %c0_13 = arith.constant 0 : index
      %c0_14 = arith.constant 0 : index
      %c0_15 = arith.constant 0 : index
      %16 = vector.load %arg4[%c0_13, %c0_14, %c0_15] : memref<1x1x1xf32, #tpu.memory_space<vmem>>, vector<1x1x1xf32>
      tpu.vector_store %arg4[%c0_13, %c0_14, %c0_15], %15 {strides = array<i32>} : memref<1x1x1xf32, #tpu.memory_space<vmem>>, vector<1x1x1xf32>,
    } else {
    }
    %c0 = arith.constant 0 : index
    %c0_1 = arith.constant 0 : index
    %c0_2 = arith.constant 0 : index
    %3 = vector.load %arg2[%c0, %c0_1, %c0_2] : memref<1x128x128xf32, #tpu.memory_space<vmem>>, vector<1x128x128xf32>
    %c0_3 = arith.constant 0 : index
    %c0_4 = arith.constant 0 : index
    %c0_5 = arith.constant 0 : index
    %4 = vector.load %arg3[%c0_3, %c0_4, %c0_5] : memref<1x128x128xf32, #tpu.memory_space<vmem>>, vector<1x128x128xf32>
    %5 = arith.subf %3, %4 : vector<1x128x128xf32>
    %c0_6 = arith.constant 0 : index
    %c0_7 = arith.constant 0 : index
    %c0_8 = arith.constant 0 : index
    %6 = vector.load %arg4[%c0_6, %c0_7, %c0_8] : memref<1x1x1xf32, #tpu.memory_space<vmem>>, vector<1x1x1xf32>
    %7 = arith.mulf %5, %5 : vector<1x128x128xf32>
    %8 = vector.shape_cast %7 : vector<1x128x128xf32> to vector<1x1x128x128xf32>
    %cst = arith.constant dense<0.000000e+00> : vector<1xf32>
    %9 = vector.multi_reduction <add>, %8, %cst [1, 2, 3] : vector<1x1x128x128xf32> to vector<1xf32>
    %10 = vector.shape_cast %9 : vector<1xf32> to vector<1x1x1x1xf32>
    %11 = vector.extract %10[0, 0, 0, 0] : f32 from vector<1x1x1x1xf32>
    %12 = vector.broadcast %11 : f32 to vector<1x1x1xf32>
    %13 = arith.addf %6, %12 : vector<1x1x1xf32>
    %c0_9 = arith.constant 0 : index
    %c0_10 = arith.constant 0 : index
    %c0_11 = arith.constant 0 : index
    %14 = vector.load %arg4[%c0_9, %c0_10, %c0_11] : memref<1x1x1xf32, #tpu.memory_space<vmem>>, vector<1x1x1xf32>
    tpu.vector_store %arg4[%c0_9, %c0_10, %c0_11], %13 {strides = array<i32>} : memref<1x1x1xf32, #tpu.memory_space<vmem>>, vector<1x1x1xf32>,
    return
  }
  func.func @transform_0(%arg0: i32, %arg1: i32) -> (i32, i32, i32) {
    %c0_i32 = arith.constant 0 : i32
    %c0_i32_0 = arith.constant 0 : i32
    return %arg0, %arg1, %c0_i32 : i32, i32, i32
  }
  func.func @transform_1(%arg0: i32, %arg1: i32) -> (i32, i32, i32) {
    %c2_i32 = arith.constant 2 : i32
    %0 = arith.addi %arg0, %c2_i32 : i32
    %c0_i32 = arith.constant 0 : i32
    %c0_i32_0 = arith.constant 0 : i32
    return %0, %arg1, %c0_i32 : i32, i32, i32
  }
  func.func @transform_2(%arg0: i32, %arg1: i32) -> (i32, i32, i32) {
    %c0_i32 = arith.constant 0 : i32
    %c0_i32_0 = arith.constant 0 : i32
    %c0_i32_1 = arith.constant 0 : i32
    return %arg0, %c0_i32, %c0_i32_0 : i32, i32, i32
  }
}

</mosaic_0001>

<llo_original>
// kernel: combined_loss.9
$region0: #{combined_loss.9}
  #allocation0 [shape = 'u32[]', space=smem, size = 0x4, offset = 0x4, fixed_abs, tag = 'smem constant byte address 0x4 - core index']
  #allocation1 [shape = 'u32[144,128]{1,0:T(1,128)}', space=vmem, size = 0x12000, scoped, tag = 'internal scratch']
  #allocation2 [shape = 'f32[8,128]{1,0:T(8,128)}', space=vmem, size = 0x1000, scoped, tag = 'scratch operand']
  %s0 = inlined_call_operand.vmem [shape: f32[8,128], index: 0, kind: input, shape index: {}]
  %s1 = inlined_call_operand.vmem [shape: f32[8,128], index: 1, kind: input, shape index: {}]
  %s2 = inlined_call_operand.hbm [shape: f32[1,1,1], index: 2, kind: output, shape index: {}]
  %s3 = sld [smem:[#allocation0]]
  $region26: #{combined_loss.9} parent=0
    _
  %s5 = ssub.s32 1, %s3
  %s6 = scalar_select 0, %s5, %s3
  $region1: #{combined_loss.9} parent=0
    #allocation3 [shape = 'u8[512]{0}', space=vmem, size = 0x400, scoped, tag = 'output window, operand 0, single buffered']
    #allocation4 [shape = 's32[1]{0}', space=sflag, size = 0x4, scoped, tag = 'scoped memory for combined_loss.9']
    %7 = vsyncpa [#allocation4], 0
    // Predicated region
    $region2: #{combined_loss.9} parent=1 // pred_check
      _
    $region3: #{combined_loss.9} parent=1 // pred_check_branch
      %9 = sbr.rel (0) target = $region5
    $region4: #{combined_loss.9} parent=1 // pred_region
      %s10 = sadd.s32 0, 0
      %p11 = scmp.lt.s32.totalorder %s10, 0
      %s12 = scalar_select %p11, %s10, 0
      %s13 = smul.addr %s12, 8
      %s14 = scalar_lea.vmem %s0, %s13
      %s15 = sadd.s32 0, 0
    $region5: #{combined_loss.9} parent=1 // pred_fallthru
      _
    // Predicated region
    $region6: #{combined_loss.9} parent=1 // pred_check
      _
    $region7: #{combined_loss.9} parent=1 // pred_check_branch
      %17 = sbr.rel (0) target = $region9
    $region8: #{combined_loss.9} parent=1 // pred_region
      %s18 = sadd.s32 0, 0
      %p19 = scmp.lt.s32.totalorder %s18, 0
      %s20 = scalar_select %p19, %s18, 0
      %s21 = smul.addr %s20, 8
      %s22 = scalar_lea.vmem %s1, %s21
      %s23 = sadd.s32 0, 0
    $region9: #{combined_loss.9} parent=1 // pred_fallthru
      _
    %s24 = sadd.s32 0, 0
    %p25 = scmp.lt.s32.totalorder %s24, 0
    %s26 = scalar_select %p25, %s24, 0
    %s27 = smul.addr %s26, 8
    %s28 = scalar_lea.vmem %s0, %s27
    %s29 = sadd.s32 0, 0
    %p30 = scmp.lt.s32.totalorder %s29, 0
    %s31 = scalar_select %p30, %s29, 0
    %s32 = smul.addr %s31, 8
    %s33 = scalar_lea.vmem %s1, %s32
    %s34 = sadd.s32 0, 0
    %p35 = scmp.lt.s32.totalorder %s34, 0
    %s36 = scalar_select %p35, %s34, 0
    %s37 = smul.addr %s36, 8
    %s38 = scalar_lea.vmem %s0, %s37
    %s39 = sadd.s32 0, 0
    %s40 = sadd.s32 0, 0
    %p41 = scmp.lt.s32.totalorder %s40, 0
    %s42 = scalar_select %p41, %s40, 0
    %s43 = smul.addr %s42, 8
    %s44 = scalar_lea.vmem %s1, %s43
    %s45 = sadd.s32 0, 0
    %p46 = scmp.eq.s32.totalorder 0, 0
    // Predicated region
    $region10: #{combined_loss.9} parent=1 // pred_check
      %p47 = pneg %p46
    $region11: #{combined_loss.9} parent=1 // pred_check_branch
      %49 = sbr.rel (%p47) target = $region13
    $region12: #{combined_loss.9} parent=1 // pred_region
      %50 = vst [vmem:[#allocation2] sm:$0xff] 0.0
    $region13: #{combined_loss.9} parent=1 // pred_fallthru
      _
    %v51 = vld [vmem:[%s38] sm:$0xff]
    %v52 = vld [vmem:[%s44] sm:$0xff]
    %v53 = vsub.f32 %v51, %v52
    %v54 = vld [vmem:[#allocation2] sm:$0xff]
    %v55 = vmul.f32 %v53, %v53
    %v56 = vadd.f32 %v55, 0.0
    %v57 = vadd.f32 %v54, %v56
    %58 = vst [vmem:[#allocation2] sm:$0xff] %v57
    // Predicated region
    $region14: #{combined_loss.9} parent=1 // pred_check
      %p59 = pneg %p46
    $region15: #{combined_loss.9} parent=1 // pred_check_branch
      %61 = sbr.rel (%p59) target = $region17
    $region16: #{combined_loss.9} parent=1 // pred_region
      %v62 = vld [vmem:[#allocation2] sm:$0xff]
      %63 = vadd.xlane.f32.xlu0 %v62
      %v64 = vpop.xlane.xlu0 %63
      %v65 = vrot.slane %v64, 4
      %v66 = vadd.f32 %v64, %v65
      %v67 = vrot.slane %v66, 2
      %v68 = vadd.f32 %v66, %v67
      %v69 = vrot.slane %v68, 1
      %v70 = vadd.f32 %v68, %v69
      %s71 = vtos %v70
      %v72 = vstv %s71
      %vm73 = vcmask 0
      %74 = vst.msk [vmem:[#allocation3] sm:$0x1] %vm73, %v72
    $region17: #{combined_loss.9} parent=1 // pred_fallthru
      _
    // Predicated region
    $region18: #{combined_loss.9} parent=1 // pred_check
      _
    $region19: #{combined_loss.9} parent=1 // pred_check_branch
      %76 = sbr.rel (0) target = $region21
    $region20: #{combined_loss.9} parent=1 // pred_region
      %s78 = ssub.s32 16, 16
      %79 = vsyncadd [#allocation4], %s78
      %s81 = sshll.u32 [#allocation3], 4
      %s82 = int_to_ptr.vmem [resolvable:$true] %s81
      %84 = dma.vmem_to_hbm [thread:$0]  %s82, 16, %s2, [#allocation4]
    $region21: #{combined_loss.9} parent=1 // pred_fallthru
      _
    // Predicated region
    $region22: #{combined_loss.9} parent=1 // pred_check
      _
    $region23: #{combined_loss.9} parent=1 // pred_check_branch
      %86 = sbr.rel (0) target = $region25
    $region24: #{combined_loss.9} parent=1 // pred_region
      %87 = dma.done [#allocation4], 16
    $region25: #{combined_loss.9} parent=1 // pred_fallthru
      _
    %88 = vsyncpa [#allocation4], 1

// kernel: combined_loss.10
$region0: #{combined_loss.10}
  #allocation0 [shape = 'u32[]', space=smem, size = 0x4, offset = 0x4, fixed_abs, tag = 'smem constant byte address 0x4 - core index']
  #allocation1 [shape = 'u32[144,128]{1,0:T(1,128)}', space=vmem, size = 0x12000, scoped, tag = 'internal scratch']
  #allocation2 [shape = 'f32[80,16]{1,0:T(8,128)}', space=vmem, size = 0xa000, scoped, tag = 'scratch operand']
  #allocation3 [shape = 'f32[1,1]{1,0:T(1,128)}', space=vmem, size = 0x200, scoped, tag = 'scratch operand']
  %s0 = inlined_call_operand.vmem [shape: f32[2,16,16], index: 0, kind: input, shape index: {}]
  %s1 = inlined_call_operand.vmem [shape: f32[2,16,16], index: 1, kind: input, shape index: {}]
  %s2 = inlined_call_operand.vmem [shape: f32[16,6], index: 2, kind: input, shape index: {}]
  %s3 = inlined_call_operand.vmem [shape: f32[6,16], index: 3, kind: input, shape index: {}]
  %s4 = inlined_call_operand.vmem [shape: f32[2,1,1], index: 4, kind: output, shape index: {}]
  %s5 = sld [smem:[#allocation0]]
  $region57: #{combined_loss.10} parent=0
    _
  %s7 = ssub.s32 1, %s5
  %s8 = scalar_select 0, %s7, %s5
  loop: start=0, step=1, limit=4
  $region2: #{combined_loss.10} parent=0 // loop_pre_header
    _
  $region3: #{combined_loss.10} parent=0 // loop_header
    %s10 = sphi 0, %s14
    %p11 = scmp.ge.s32.totalorder %s10, 4
    %s17 = sphi 0, %s29
    %s18 = sphi 0, %s25
    %s19 = sphi 0, %s17
    %s20 = sphi 0, %s18
    %s21 = sphi 0, %s19
    %s22 = sphi 0, %s20
    %s34 = sphi 0, %s36
    %s37 = sphi 0, %s34
    %s38 = sphi 0, %s37
    %s54 = sphi 0, %s38
    %s62 = sphi 0, %s64
    %s65 = sphi 0, %s62
    %s66 = sphi 0, %s65
    %s82 = sphi 0, %s66
    %s86 = sphi 0, %s86
    %s88 = sphi 0, %s86
    %s89 = sphi 0, %s88
    %s103 = sphi 0, %s89
    %s107 = sphi 0, %s107
    %s109 = sphi 0, %s107
    %s110 = sphi 0, %s109
    %s124 = sphi 0, %s110
    %s130 = sphi 0, %s132
    %s133 = sphi 0, %s130
    %s134 = sphi 0, %s133
    %s150 = sphi 0, %s134
  $region4: #{combined_loss.10} parent=0 // loop_header_branch
    %13 = sbr.rel (%p11) target = $region8
  $region5: #{combined_loss.10} parent=0 // loop_body
    %s15 = ssub.s32 %s10, 1
    %s16 = ssub.s32 %s10, 2
    %s23 = sadd.s32 1, %s18
    %p24 = scmp.ge.s32.totalorder %s23, 1
    %s25 = scalar_select %p24, 0, %s23
    %s26 = sadd.s32 1, %s17
    %s27 = scalar_select %p24, %s26, %s17
    %p28 = scmp.ge.s32.totalorder %s27, 2
    %s29 = scalar_select %p28, 0, %s27
    %s30 = sadd.s32 %s17, %s18
    %s31 = sadd.s32 %s29, %s25
    %s32 = ssub.s32 %s30, %s31
    %p33 = scmp.eq.s32.totalorder %s32, 0
    %s35 = sadd.s32 %s34, 1
    %s36 = scalar_select %p33, %s34, %s35
    %p39 = pneg %p33
    %p40 = scmp.eq.s32.totalorder %s10, 1
    %p41 = por %p39, %p40
    %p42 = scmp.ne.s32.totalorder %s34, %s37
    %p43 = scmp.eq.s32.totalorder %s10, 0
    %p44 = por %p42, %p43
    %p45 = scmp.ne.s32.totalorder %s34, %s37
    %p46 = scmp.eq.s32.totalorder %s15, 1
    %p47 = por %p45, %p46
    %p48 = scmp.ne.s32.totalorder %s37, %s38
    %p49 = scmp.eq.s32.totalorder %s15, 0
    %p50 = por %p48, %p49
    %p51 = scmp.ne.s32.totalorder %s37, %s38
    %p52 = scmp.eq.s32.totalorder %s16, 1
    %p53 = por %p51, %p52
    %p55 = scmp.ne.s32.totalorder %s38, %s54
    %p56 = scmp.eq.s32.totalorder %s16, 0
    %p57 = por %p55, %p56
    %s58 = sadd.s32 %s17, %s18
    %s59 = sadd.s32 %s29, %s25
    %s60 = ssub.s32 %s58, %s59
    %p61 = scmp.eq.s32.totalorder %s60, 0
    %s63 = sadd.s32 %s62, 1
    %s64 = scalar_select %p61, %s62, %s63
    %p67 = pneg %p61
    %p68 = scmp.eq.s32.totalorder %s10, 1
    %p69 = por %p67, %p68
    %p70 = scmp.ne.s32.totalorder %s62, %s65
    %p71 = scmp.eq.s32.totalorder %s10, 0
    %p72 = por %p70, %p71
    %p73 = scmp.ne.s32.totalorder %s62, %s65
    %p74 = scmp.eq.s32.totalorder %s15, 1
    %p75 = por %p73, %p74
    %p76 = scmp.ne.s32.totalorder %s65, %s66
    %p77 = scmp.eq.s32.totalorder %s15, 0
    %p78 = por %p76, %p77
    %p79 = scmp.ne.s32.totalorder %s65, %s66
    %p80 = scmp.eq.s32.totalorder %s16, 1
    %p81 = por %p79, %p80
    %p83 = scmp.ne.s32.totalorder %s66, %s82
    %p84 = scmp.eq.s32.totalorder %s16, 0
    %p85 = por %p83, %p84
    %s87 = sadd.s32 %s86, 1
    %p90 = scmp.eq.s32.totalorder %s10, 1
    %p91 = scmp.ne.s32.totalorder %s86, %s88
    %p92 = scmp.eq.s32.totalorder %s10, 0
    %p93 = por %p91, %p92
    %p94 = scmp.ne.s32.totalorder %s86, %s88
    %p95 = scmp.eq.s32.totalorder %s15, 1
    %p96 = por %p94, %p95
    %p97 = scmp.ne.s32.totalorder %s88, %s89
    %p98 = scmp.eq.s32.totalorder %s15, 0
    %p99 = por %p97, %p98
    %p100 = scmp.ne.s32.totalorder %s88, %s89
    %p101 = scmp.eq.s32.totalorder %s16, 1
    %p102 = por %p100, %p101
    %p104 = scmp.ne.s32.totalorder %s89, %s103
    %p105 = scmp.eq.s32.totalorder %s16, 0
    %p106 = por %p104, %p105
    %s108 = sadd.s32 %s107, 1
    %p111 = scmp.eq.s32.totalorder %s10, 1
    %p112 = scmp.ne.s32.totalorder %s107, %s109
    %p113 = scmp.eq.s32.totalorder %s10, 0
    %p114 = por %p112, %p113
    %p115 = scmp.ne.s32.totalorder %s107, %s109
    %p116 = scmp.eq.s32.totalorder %s15, 1
    %p117 = por %p115, %p116
    %p118 = scmp.ne.s32.totalorder %s109, %s110
    %p119 = scmp.eq.s32.totalorder %s15, 0
    %p120 = por %p118, %p119
    %p121 = scmp.ne.s32.totalorder %s109, %s110
    %p122 = scmp.eq.s32.totalorder %s16, 1
    %p123 = por %p121, %p122
    %p125 = scmp.ne.s32.totalorder %s110, %s124
    %p126 = scmp.eq.s32.totalorder %s16, 0
    %p127 = por %p125, %p126
    %s128 = ssub.s32 %s17, %s29
    %p129 = scmp.eq.s32.totalorder %s128, 0
    %s131 = sadd.s32 %s130, 1
    %s132 = scalar_select %p129, %s130, %s131
    %p135 = pneg %p129
    %p136 = scmp.eq.s32.totalorder %s10, 1
    %p137 = por %p135, %p136
    %p138 = scmp.ne.s32.totalorder %s130, %s133
    %p139 = scmp.eq.s32.totalorder %s10, 0
    %p140 = por %p138, %p139
    %p141 = scmp.ne.s32.totalorder %s130, %s133
    %p142 = scmp.eq.s32.totalorder %s15, 1
    %p143 = por %p141, %p142
    %p144 = scmp.ne.s32.totalorder %s133, %s134
    %p145 = scmp.eq.s32.totalorder %s15, 0
    %p146 = por %p144, %p145
    %p147 = scmp.ne.s32.totalorder %s133, %s134
    %p148 = scmp.eq.s32.totalorder %s16, 1
    %p149 = por %p147, %p148
    %p151 = scmp.ne.s32.totalorder %s134, %s150
    %p152 = scmp.eq.s32.totalorder %s16, 0
    %p153 = por %p151, %p152
    %p154 = scmp.le.s32.totalorder 1, %s10
    %p155 = scmp.lt.s32.totalorder %s10, 3
    %p156 = pnand %p154, %p155
    %p157 = pneg %p156
    // Predicated region
    $region9: #{combined_loss.10} parent=5 // pred_check
      _
    $region10: #{combined_loss.10} parent=5 // pred_check_branch
      %159 = sbr.rel (%p156) target = $region12
    $region11: #{combined_loss.10} parent=5 // pred_region
      %s160 = ssub.s32 %s10, 1
      // Predicated region
      $region13: #{combined_loss.10} parent=11 // pred_check
        %p161 = pneg %p99
      $region14: #{combined_loss.10} parent=11 // pred_check_branch
        %163 = sbr.rel (%p161) target = $region16
      $region15: #{combined_loss.10} parent=11 // pred_region
        _
      $region16: #{combined_loss.10} parent=11 // pred_fallthru
        _
      // Predicated region
      $region17: #{combined_loss.10} parent=11 // pred_check
        %p164 = pneg %p120
      $region18: #{combined_loss.10} parent=11 // pred_check_branch
        %166 = sbr.rel (%p164) target = $region20
      $region19: #{combined_loss.10} parent=11 // pred_region
        _
      $region20: #{combined_loss.10} parent=11 // pred_fallthru
        _
    $region12: #{combined_loss.10} parent=5 // pred_fallthru
      _
    %p167 = scmp.lt.s32.totalorder %s10, 2
    // Predicated region
    $region21: #{combined_loss.10} parent=5 // pred_check
      %p168 = pneg %p167
    $region22: #{combined_loss.10} parent=5 // pred_check_branch
      %170 = sbr.rel (%p168) target = $region24
    $region23: #{combined_loss.10} parent=5 // pred_region
      // Predicated region
      $region25: #{combined_loss.10} parent=23 // pred_check
        %p171 = pneg %p44
      $region26: #{combined_loss.10} parent=23 // pred_check_branch
        %173 = sbr.rel (%p171) target = $region28
      $region27: #{combined_loss.10} parent=23 // pred_region
        %s174 = sadd.s32 %s17, %s18
        %p175 = scmp.lt.s32.totalorder %s174, 1
        %s176 = scalar_select %p175, %s174, 1
        %s177 = smul.addr %s176, 2
        %s178 = smul.addr %s177, 8
        %s179 = scalar_lea.vmem %s0, %s178
        %s180 = sadd.s32 %s17, %s18
      $region28: #{combined_loss.10} parent=23 // pred_fallthru
        _
      // Predicated region
      $region29: #{combined_loss.10} parent=23 // pred_check
        %p181 = pneg %p72
      $region30: #{combined_loss.10} parent=23 // pred_check_branch
        %183 = sbr.rel (%p181) target = $region32
      $region31: #{combined_loss.10} parent=23 // pred_region
        %s184 = sadd.s32 %s17, %s18
        %p185 = scmp.lt.s32.totalorder %s184, 1
        %s186 = scalar_select %p185, %s184, 1
        %s187 = smul.addr %s186, 2
        %s188 = smul.addr %s187, 8
        %s189 = scalar_lea.vmem %s1, %s188
        %s190 = sadd.s32 %s17, %s18
      $region32: #{combined_loss.10} parent=23 // pred_fallthru
        _
    $region24: #{combined_loss.10} parent=5 // pred_fallthru
      _
    %p191 = scmp.le.s32.totalorder 1, %s10
    %p192 = scmp.lt.s32.totalorder %s10, 3
    %p193 = pnand %p191, %p192
    %p194 = pneg %p193
    // Predicated region
    $region33: #{combined_loss.10} parent=5 // pred_check
      _
    $region34: #{combined_loss.10} parent=5 // pred_check_branch
      %196 = sbr.rel (%p193) target = $region36
    $region35: #{combined_loss.10} parent=5 // pred_region
      %s197 = ssub.s32 %s10, 1
      %s198 = sadd.s32 %s19, %s20
      %p199 = scmp.lt.s32.totalorder %s198, 1
      %s200 = scalar_select %p199, %s198, 1
      %s201 = smul.addr %s200, 2
      %s202 = smul.addr %s201, 8
      %s203 = scalar_lea.vmem %s0, %s202
      %p204 = pneg %p50
      %p205 = pneg %p47
      %s206 = sadd.s32 %s19, %s20
      %p207 = scmp.lt.s32.totalorder %s206, 1
      %s208 = scalar_select %p207, %s206, 1
      %s209 = smul.addr %s208, 2
      %s210 = smul.addr %s209, 8
      %s211 = scalar_lea.vmem %s1, %s210
      %p212 = pneg %p78
      %p213 = pneg %p75
      %p214 = pneg %p99
      %p215 = pneg %p96
      %p216 = pneg %p120
      %p217 = pneg %p117
      %p218 = pneg %p146
      %p219 = pneg %p143
      %p220 = scmp.lt.s32.totalorder %s19, 1
      %s221 = scalar_select %p220, %s19, 1
      %s222 = scalar_lea.vmem %s4, %s221
      %s223 = sadd.s32 %s19, %s20
      %p224 = scmp.lt.s32.totalorder %s223, 1
      %s225 = scalar_select %p224, %s223, 1
      %s226 = smul.addr %s225, 2
      %s227 = smul.addr %s226, 8
      %s228 = scalar_lea.vmem %s0, %s227
      %s229 = sadd.s32 %s19, %s20
      %s230 = sadd.s32 %s19, %s20
      %p231 = scmp.lt.s32.totalorder %s230, 1
      %s232 = scalar_select %p231, %s230, 1
      %s233 = smul.addr %s232, 2
      %s234 = smul.addr %s233, 8
      %s235 = scalar_lea.vmem %s1, %s234
      %s236 = sadd.s32 %s19, %s20
      %p237 = scmp.lt.s32.totalorder %s19, 1
      %s238 = scalar_select %p237, %s19, 1
      %s239 = scalar_lea.vmem %s4, %s238
      %p240 = scmp.eq.s32.totalorder %s20, 0
      // Predicated region
      $region37: #{combined_loss.10} parent=35 // pred_check
        %p241 = pneg %p240
      $region38: #{combined_loss.10} parent=35 // pred_check_branch
        %243 = sbr.rel (%p241) target = $region40
      $region39: #{combined_loss.10} parent=35 // pred_region
        %vm244 = vcmask 0
        %245 = vst.msk [vmem:[#allocation3] sm:$0x1] %vm244, 0.0
      $region40: #{combined_loss.10} parent=35 // pred_fallthru
        _
      %v246 = vld [vmem:[%s228] sm:$0xff]
      %v247 = vld [vmem:[%s228 + $0x8] sm:$0xff]
      %v248 = vld [vmem:[%s235] sm:$0xff]
      %v249 = vld [vmem:[%s235 + $0x8] sm:$0xff]
      %vm250 = vcmask 130048
      %251 = vst.msk [vmem:[#allocation2] sm:$0xff] %vm250, %v246
      %252 = vst.msk [vmem:[#allocation2 + $0x8] sm:$0xff] %vm250, %v247
      %253 = vst.msk [vmem:[#allocation2 + $0x10] sm:$0xff] %vm250, %v248
      %254 = vst.msk [vmem:[#allocation2 + $0x18] sm:$0xff] %vm250, %v249
      %v255 = vmul.f32 %v246, %v246
      %v256 = vmul.f32 %v247, %v247
      %257 = vst.msk [vmem:[#allocation2 + $0x20] sm:$0xff] %vm250, %v255
      %258 = vst.msk [vmem:[#allocation2 + $0x28] sm:$0xff] %vm250, %v256
      %v259 = vmul.f32 %v248, %v248
      %v260 = vmul.f32 %v249, %v249
      %261 = vst.msk [vmem:[#allocation2 + $0x30] sm:$0xff] %vm250, %v259
      %262 = vst.msk [vmem:[#allocation2 + $0x38] sm:$0xff] %vm250, %v260
      %v263 = vmul.f32 %v246, %v248
      %v264 = vmul.f32 %v247, %v249
      %265 = vst.msk [vmem:[#allocation2 + $0x40] sm:$0xff] %vm250, %v263
      %266 = vst.msk [vmem:[#allocation2 + $0x48] sm:$0xff] %vm250, %v264
      %v267 = vld [vmem:[#allocation2] sm:$0xff]
      %v268 = vld [vmem:[#allocation2 + $0x8] sm:$0xff]
      %v269 = vld [vmem:[#allocation2 + $0x10] sm:$0xff]
      %v270 = vld [vmem:[#allocation2 + $0x18] sm:$0xff]
      %v271 = vld [vmem:[#allocation2 + $0x20] sm:$0xff]
      %v272 = vld [vmem:[#allocation2 + $0x28] sm:$0xff]
      %v273 = vld [vmem:[#allocation2 + $0x30] sm:$0xff]
      %v274 = vld [vmem:[#allocation2 + $0x38] sm:$0xff]
      %v275 = vld [vmem:[#allocation2 + $0x40] sm:$0xff]
      %v276 = vld [vmem:[#allocation2 + $0x48] sm:$0xff]
      %v277 = vld [vmem:[%s2] sm:$0xff]
      %v278 = vld [vmem:[%s2 + $0x8] sm:$0xff]
      %v280 = vsel %vm250, %v267, 0
      %v283 = vsel %vm250, %v268, 0
      %v286 = vsel %vm250, %v269, 0
      %v289 = vsel %vm250, %v270, 0
      %v292 = vsel %vm250, %v271, 0
      %v295 = vsel %vm250, %v272, 0
      %v298 = vsel %vm250, %v273, 0
      %v301 = vsel %vm250, %v274, 0
      %v304 = vsel %vm250, %v275, 0
      %v307 = vsel %vm250, %v276, 0
      %309 = vmatprep.subr.mxu0 0.0
      %310 = vmatpush1.msra.mxu0 0.0
      %311 = vmatprep.subr.mxu0 0.0
      %312 = vmatpush1.msra.mxu0 0.0
      %313 = vmatprep.subr.mxu0 0.0
      %314 = vmatpush1.msra.mxu0 0.0
      %315 = vmatprep.subr.mxu0 0.0
      %316 = vmatpush1.msra.mxu0 0.0
      %317 = vmatprep.subr.mxu0 0.0
      %318 = vmatpush1.msra.mxu0 0.0
      %319 = vmatprep.subr.mxu0 0.0
      %320 = vmatpush1.msra.mxu0 0.0
      %321 = vmatprep.subr.mxu0 0.0
      %322 = vmatpush1.msra.mxu0 0.0
      %323 = vmatprep.subr.mxu0 0.0
      %324 = vmatpush1.msra.mxu0 0.0
      %325 = vmatprep.subr.mxu0 0.0
      %326 = vmatpush1.msra.mxu0 0.0
      %327 = vmatprep.subr.mxu0 0.0
      %328 = vmatpush1.msra.mxu0 0.0
      %329 = vmatprep.subr.mxu0 0.0
      %330 = vmatpush1.msra.mxu0 0.0
      %331 = vmatprep.subr.mxu0 0.0
      %332 = vmatpush1.msra.mxu0 0.0
      %333 = vmatprep.subr.mxu0 0.0
      %334 = vmatpush1.msra.mxu0 0.0
      %335 = vmatprep.subr.mxu0 0.0
      %336 = vmatpush1.msra.mxu0 0.0
      %337 = vmatprep.subr.mxu0 0.0
      %338 = vmatpush1.msra.mxu0 %v278
      %339 = vmatprep.subr.mxu0 0.0
      %340 = vmatpush1.msra.mxu0 %v277
      %341 = vmatprep.subr.mxu0 0.0
      %342 = vmatpush2.msra.mxu0 0.0
      %343 = vmatprep.subr.mxu0 0.0
      %344 = vmatpush2.msra.mxu0 0.0
      %345 = vmatprep.subr.mxu0 0.0
      %346 = vmatpush2.msra.mxu0 0.0
      %347 = vmatprep.subr.mxu0 0.0
      %348 = vmatpush2.msra.mxu0 0.0
      %349 = vmatprep.subr.mxu0 0.0
      %350 = vmatpush2.msra.mxu0 0.0
      %351 = vmatprep.subr.mxu0 0.0
      %352 = vmatpush2.msra.mxu0 0.0
      %353 = vmatprep.subr.mxu0 0.0
      %354 = vmatpush2.msra.mxu0 0.0
      %355 = vmatprep.subr.mxu0 0.0
      %356 = vmatpush2.msra.mxu0 0.0
      %357 = vmatprep.subr.mxu0 0.0
      %358 = vmatpush2.msra.mxu0 0.0
      %359 = vmatprep.subr.mxu0 0.0
      %360 = vmatpush2.msra.mxu0 0.0
      %361 = vmatprep.subr.mxu0 0.0
      %362 = vmatpush2.msra.mxu0 0.0
      %363 = vmatprep.subr.mxu0 0.0
      %364 = vmatpush2.msra.mxu0 0.0
      %365 = vmatprep.subr.mxu0 0.0
      %366 = vmatpush2.msra.mxu0 0.0
      %367 = vmatprep.subr.mxu0 0.0
      %368 = vmatpush2.msra.mxu0 0.0
      %369 = vmatprep.subr.mxu0 0.0
      %370 = vmatpush2.msra.mxu0 0.0
      %371 = vmatprep.subr.mxu0 0.0
      %372 = vmatpush2.msra.mxu0 0.0
      %373 = vmatprep.mubr.f32.mxu0 0.0
      %374 = vmatmul.mubr.f32.gmra.mxu0 %v280
      %v375 = vpop.f32.mrf.mxu0
      %v376 = vadd.f32 0.0, %v375
      %v377 = vpop.f32.mrf.mxu0
      %378 = vmatprep.mubr.f32.mxu0 0.0
      %379 = vmatmul.mubr.f32.gmra.mxu0 %v283
      %v380 = vpop.f32.mrf.mxu0
      %v381 = vadd.f32 0.0, %v380
      %v382 = vpop.f32.mrf.mxu0
      %383 = vmatprep.mubr.f32.mxu0 0.0
      %384 = vmatmul.mubr.f32.gmra.mxu0 %v286
      %v385 = vpop.f32.mrf.mxu0
      %v386 = vadd.f32 0.0, %v385
      %v387 = vpop.f32.mrf.mxu0
      %388 = vmatprep.mubr.f32.mxu0 0.0
      %389 = vmatmul.mubr.f32.gmra.mxu0 %v289
      %v390 = vpop.f32.mrf.mxu0
      %v391 = vadd.f32 0.0, %v390
      %v392 = vpop.f32.mrf.mxu0
      %393 = vmatprep.mubr.f32.mxu0 0.0
      %394 = vmatmul.mubr.f32.gmra.mxu0 %v292
      %v395 = vpop.f32.mrf.mxu0
      %v396 = vadd.f32 0.0, %v395
      %v397 = vpop.f32.mrf.mxu0
      %398 = vmatprep.mubr.f32.mxu0 0.0
      %399 = vmatmul.mubr.f32.gmra.mxu0 %v295
      %v400 = vpop.f32.mrf.mxu0
      %v401 = vadd.f32 0.0, %v400
      %v402 = vpop.f32.mrf.mxu0
      %403 = vmatprep.mubr.f32.mxu0 0.0
      %404 = vmatmul.mubr.f32.gmra.mxu0 %v298
      %v405 = vpop.f32.mrf.mxu0
      %v406 = vadd.f32 0.0, %v405
      %v407 = vpop.f32.mrf.mxu0
      %408 = vmatprep.mubr.f32.mxu0 0.0
      %409 = vmatmul.mubr.f32.gmra.mxu0 %v301
      %v410 = vpop.f32.mrf.mxu0
      %v411 = vadd.f32 0.0, %v410
      %v412 = vpop.f32.mrf.mxu0
      %413 = vmatprep.mubr.f32.mxu0 0.0
      %414 = vmatmul.mubr.f32.gmra.mxu0 %v304
      %v415 = vpop.f32.mrf.mxu0
      %v416 = vadd.f32 0.0, %v415
      %v417 = vpop.f32.mrf.mxu0
      %418 = vmatprep.mubr.f32.mxu0 0.0
      %419 = vmatmul.mubr.f32.gmra.mxu0 %v307
      %v420 = vpop.f32.mrf.mxu0
      %v421 = vadd.f32 0.0, %v420
      %v422 = vpop.f32.mrf.mxu0
      %423 = vdwg.mxu0
      %v424 = vld [vmem:[%s3] sm:$0x3f]
      %v426 = vsel %vm250, %v424, 0
      %428 = vmatprep.subr.mxu0 0.0
      %429 = vmatpush1.msra.mxu0 0.0
      %430 = vmatprep.subr.mxu0 0.0
      %431 = vmatpush1.msra.mxu0 0.0
      %432 = vmatprep.subr.mxu0 0.0
      %433 = vmatpush1.msra.mxu0 0.0
      %434 = vmatprep.subr.mxu0 0.0
      %435 = vmatpush1.msra.mxu0 0.0
      %436 = vmatprep.subr.mxu0 0.0
      %437 = vmatpush1.msra.mxu0 0.0
      %438 = vmatprep.subr.mxu0 0.0
      %439 = vmatpush1.msra.mxu0 0.0
      %440 = vmatprep.subr.mxu0 0.0
      %441 = vmatpush1.msra.mxu0 0.0
      %442 = vmatprep.subr.mxu0 0.0
      %443 = vmatpush1.msra.mxu0 0.0
      %444 = vmatprep.subr.mxu0 0.0
      %445 = vmatpush1.msra.mxu0 0.0
      %446 = vmatprep.subr.mxu0 0.0
      %447 = vmatpush1.msra.mxu0 0.0
      %448 = vmatprep.subr.mxu0 0.0
      %449 = vmatpush1.msra.mxu0 0.0
      %450 = vmatprep.subr.mxu0 0.0
      %451 = vmatpush1.msra.mxu0 0.0
      %452 = vmatprep.subr.mxu0 0.0
      %453 = vmatpush1.msra.mxu0 0.0
      %454 = vmatprep.subr.mxu0 0.0
      %455 = vmatpush1.msra.mxu0 0.0
      %456 = vmatprep.subr.mxu0 0.0
      %457 = vmatpush1.msra.mxu0 %v381
      %458 = vmatprep.subr.mxu0 0.0
      %459 = vmatpush1.msra.mxu0 %v376
      %460 = vmatprep.subr.mxu0 0.0
      %461 = vmatpush2.msra.mxu0 0.0
      %462 = vmatprep.subr.mxu0 0.0
      %463 = vmatpush2.msra.mxu0 0.0
      %464 = vmatprep.subr.mxu0 0.0
      %465 = vmatpush2.msra.mxu0 0.0
      %466 = vmatprep.subr.mxu0 0.0
      %467 = vmatpush2.msra.mxu0 0.0
      %468 = vmatprep.subr.mxu0 0.0
      %469 = vmatpush2.msra.mxu0 0.0
      %470 = vmatprep.subr.mxu0 0.0
      %471 = vmatpush2.msra.mxu0 0.0
      %472 = vmatprep.subr.mxu0 0.0
      %473 = vmatpush2.msra.mxu0 0.0
      %474 = vmatprep.subr.mxu0 0.0
      %475 = vmatpush2.msra.mxu0 0.0
      %476 = vmatprep.subr.mxu0 0.0
      %477 = vmatpush2.msra.mxu0 0.0
      %478 = vmatprep.subr.mxu0 0.0
      %479 = vmatpush2.msra.mxu0 0.0
      %480 = vmatprep.subr.mxu0 0.0
      %481 = vmatpush2.msra.mxu0 0.0
      %482 = vmatprep.subr.mxu0 0.0
      %483 = vmatpush2.msra.mxu0 0.0
      %484 = vmatprep.subr.mxu0 0.0
      %485 = vmatpush2.msra.mxu0 0.0
      %486 = vmatprep.subr.mxu0 0.0
      %487 = vmatpush2.msra.mxu0 0.0
      %488 = vmatprep.subr.mxu0 0.0
      %489 = vmatpush2.msra.mxu0 0.0
      %490 = vmatprep.subr.mxu0 0.0
      %491 = vmatpush2.msra.mxu0 0.0
      %492 = vmatprep.mubr.f32.mxu0 0.0
      %493 = vmatmul.mubr.f32.gmra.mxu0 %v426
      %v494 = vpop.f32.mrf.mxu0
      %v495 = vadd.f32 0.0, %v494
      %v496 = vpop.f32.mrf.mxu0
      %497 = vdwg.mxu0
      %498 = vmatprep.subr.mxu0 0.0
      %499 = vmatpush1.msra.mxu0 0.0
      %500 = vmatprep.subr.mxu0 0.0
      %501 = vmatpush1.msra.mxu0 0.0
      %502 = vmatprep.subr.mxu0 0.0
      %503 = vmatpush1.msra.mxu0 0.0
      %504 = vmatprep.subr.mxu0 0.0
      %505 = vmatpush1.msra.mxu0 0.0
      %506 = vmatprep.subr.mxu0 0.0
      %507 = vmatpush1.msra.mxu0 0.0
      %508 = vmatprep.subr.mxu0 0.0
      %509 = vmatpush1.msra.mxu0 0.0
      %510 = vmatprep.subr.mxu0 0.0
      %511 = vmatpush1.msra.mxu0 0.0
      %512 = vmatprep.subr.mxu0 0.0
      %513 = vmatpush1.msra.mxu0 0.0
      %514 = vmatprep.subr.mxu0 0.0
      %515 = vmatpush1.msra.mxu0 0.0
      %516 = vmatprep.subr.mxu0 0.0
      %517 = vmatpush1.msra.mxu0 0.0
      %518 = vmatprep.subr.mxu0 0.0
      %519 = vmatpush1.msra.mxu0 0.0
      %520 = vmatprep.subr.mxu0 0.0
      %521 = vmatpush1.msra.mxu0 0.0
      %522 = vmatprep.subr.mxu0 0.0
      %523 = vmatpush1.msra.mxu0 0.0
      %524 = vmatprep.subr.mxu0 0.0
      %525 = vmatpush1.msra.mxu0 0.0
      %526 = vmatprep.subr.mxu0 0.0
      %527 = vmatpush1.msra.mxu0 %v391
      %528 = vmatprep.subr.mxu0 0.0
      %529 = vmatpush1.msra.mxu0 %v386
      %530 = vmatprep.subr.mxu0 0.0
      %531 = vmatpush2.msra.mxu0 0.0
      %532 = vmatprep.subr.mxu0 0.0
      %533 = vmatpush2.msra.mxu0 0.0
      %534 = vmatprep.subr.mxu0 0.0
      %535 = vmatpush2.msra.mxu0 0.0
      %536 = vmatprep.subr.mxu0 0.0
      %537 = vmatpush2.msra.mxu0 0.0
      %538 = vmatprep.subr.mxu0 0.0
      %539 = vmatpush2.msra.mxu0 0.0
      %540 = vmatprep.subr.mxu0 0.0
      %541 = vmatpush2.msra.mxu0 0.0
      %542 = vmatprep.subr.mxu0 0.0
      %543 = vmatpush2.msra.mxu0 0.0
      %544 = vmatprep.subr.mxu0 0.0
      %545 = vmatpush2.msra.mxu0 0.0
      %546 = vmatprep.subr.mxu0 0.0
      %547 = vmatpush2.msra.mxu0 0.0
      %548 = vmatprep.subr.mxu0 0.0
      %549 = vmatpush2.msra.mxu0 0.0
      %550 = vmatprep.subr.mxu0 0.0
      %551 = vmatpush2.msra.mxu0 0.0
      %552 = vmatprep.subr.mxu0 0.0
      %553 = vmatpush2.msra.mxu0 0.0
      %554 = vmatprep.subr.mxu0 0.0
      %555 = vmatpush2.msra.mxu0 0.0
      %556 = vmatprep.subr.mxu0 0.0
      %557 = vmatpush2.msra.mxu0 0.0
      %558 = vmatprep.subr.mxu0 0.0
      %559 = vmatpush2.msra.mxu0 0.0
      %560 = vmatprep.subr.mxu0 0.0
      %561 = vmatpush2.msra.mxu0 0.0
      %562 = vmatprep.mubr.f32.mxu0 0.0
      %563 = vmatmul.mubr.f32.gmra.mxu0 %v426
      %v564 = vpop.f32.mrf.mxu0
      %v565 = vadd.f32 0.0, %v564
      %v566 = vpop.f32.mrf.mxu0
      %567 = vdwg.mxu0
      %568 = vmatprep.subr.mxu0 0.0
      %569 = vmatpush1.msra.mxu0 0.0
      %570 = vmatprep.subr.mxu0 0.0
      %571 = vmatpush1.msra.mxu0 0.0
      %572 = vmatprep.subr.mxu0 0.0
      %573 = vmatpush1.msra.mxu0 0.0
      %574 = vmatprep.subr.mxu0 0.0
      %575 = vmatpush1.msra.mxu0 0.0
      %576 = vmatprep.subr.mxu0 0.0
      %577 = vmatpush1.msra.mxu0 0.0
      %578 = vmatprep.subr.mxu0 0.0
      %579 = vmatpush1.msra.mxu0 0.0
      %580 = vmatprep.subr.mxu0 0.0
      %581 = vmatpush1.msra.mxu0 0.0
      %582 = vmatprep.subr.mxu0 0.0
      %583 = vmatpush1.msra.mxu0 0.0
      %584 = vmatprep.subr.mxu0 0.0
      %585 = vmatpush1.msra.mxu0 0.0
      %586 = vmatprep.subr.mxu0 0.0
      %587 = vmatpush1.msra.mxu0 0.0
      %588 = vmatprep.subr.mxu0 0.0
      %589 = vmatpush1.msra.mxu0 0.0
      %590 = vmatprep.subr.mxu0 0.0
      %591 = vmatpush1.msra.mxu0 0.0
      %592 = vmatprep.subr.mxu0 0.0
      %593 = vmatpush1.msra.mxu0 0.0
      %594 = vmatprep.subr.mxu0 0.0
      %595 = vmatpush1.msra.mxu0 0.0
      %596 = vmatprep.subr.mxu0 0.0
      %597 = vmatpush1.msra.mxu0 %v401
      %598 = vmatprep.subr.mxu0 0.0
      %599 = vmatpush1.msra.mxu0 %v396
      %600 = vmatprep.subr.mxu0 0.0
      %601 = vmatpush2.msra.mxu0 0.0
      %602 = vmatprep.subr.mxu0 0.0
      %603 = vmatpush2.msra.mxu0 0.0
      %604 = vmatprep.subr.mxu0 0.0
      %605 = vmatpush2.msra.mxu0 0.0
      %606 = vmatprep.subr.mxu0 0.0
      %607 = vmatpush2.msra.mxu0 0.0
      %608 = vmatprep.subr.mxu0 0.0
      %609 = vmatpush2.msra.mxu0 0.0
      %610 = vmatprep.subr.mxu0 0.0
      %611 = vmatpush2.msra.mxu0 0.0
      %612 = vmatprep.subr.mxu0 0.0
      %613 = vmatpush2.msra.mxu0 0.0
      %614 = vmatprep.subr.mxu0 0.0
      %615 = vmatpush2.msra.mxu0 0.0
      %616 = vmatprep.subr.mxu0 0.0
      %617 = vmatpush2.msra.mxu0 0.0
      %618 = vmatprep.subr.mxu0 0.0
      %619 = vmatpush2.msra.mxu0 0.0
      %620 = vmatprep.subr.mxu0 0.0
      %621 = vmatpush2.msra.mxu0 0.0
      %622 = vmatprep.subr.mxu0 0.0
      %623 = vmatpush2.msra.mxu0 0.0
      %624 = vmatprep.subr.mxu0 0.0
      %625 = vmatpush2.msra.mxu0 0.0
      %626 = vmatprep.subr.mxu0 0.0
      %627 = vmatpush2.msra.mxu0 0.0
      %628 = vmatprep.subr.mxu0 0.0
      %629 = vmatpush2.msra.mxu0 0.0
      %630 = vmatprep.subr.mxu0 0.0
      %631 = vmatpush2.msra.mxu0 0.0
      %632 = vmatprep.mubr.f32.mxu0 0.0
      %633 = vmatmul.mubr.f32.gmra.mxu0 %v426
      %v634 = vpop.f32.mrf.mxu0
      %v635 = vadd.f32 0.0, %v634
      %v636 = vpop.f32.mrf.mxu0
      %637 = vdwg.mxu0
      %638 = vmatprep.subr.mxu0 0.0
      %639 = vmatpush1.msra.mxu0 0.0
      %640 = vmatprep.subr.mxu0 0.0
      %641 = vmatpush1.msra.mxu0 0.0
      %642 = vmatprep.subr.mxu0 0.0
      %643 = vmatpush1.msra.mxu0 0.0
      %644 = vmatprep.subr.mxu0 0.0
      %645 = vmatpush1.msra.mxu0 0.0
      %646 = vmatprep.subr.mxu0 0.0
      %647 = vmatpush1.msra.mxu0 0.0
      %648 = vmatprep.subr.mxu0 0.0
      %649 = vmatpush1.msra.mxu0 0.0
      %650 = vmatprep.subr.mxu0 0.0
      %651 = vmatpush1.msra.mxu0 0.0
      %652 = vmatprep.subr.mxu0 0.0
      %653 = vmatpush1.msra.mxu0 0.0
      %654 = vmatprep.subr.mxu0 0.0
      %655 = vmatpush1.msra.mxu0 0.0
      %656 = vmatprep.subr.mxu0 0.0
      %657 = vmatpush1.msra.mxu0 0.0
      %658 = vmatprep.subr.mxu0 0.0
      %659 = vmatpush1.msra.mxu0 0.0
      %660 = vmatprep.subr.mxu0 0.0
      %661 = vmatpush1.msra.mxu0 0.0
      %662 = vmatprep.subr.mxu0 0.0
      %663 = vmatpush1.msra.mxu0 0.0
      %664 = vmatprep.subr.mxu0 0.0
      %665 = vmatpush1.msra.mxu0 0.0
      %666 = vmatprep.subr.mxu0 0.0
      %667 = vmatpush1.msra.mxu0 %v411
      %668 = vmatprep.subr.mxu0 0.0
      %669 = vmatpush1.msra.mxu0 %v406
      %670 = vmatprep.subr.mxu0 0.0
      %671 = vmatpush2.msra.mxu0 0.0
      %672 = vmatprep.subr.mxu0 0.0
      %673 = vmatpush2.msra.mxu0 0.0
      %674 = vmatprep.subr.mxu0 0.0
      %675 = vmatpush2.msra.mxu0 0.0
      %676 = vmatprep.subr.mxu0 0.0
      %677 = vmatpush2.msra.mxu0 0.0
      %678 = vmatprep.subr.mxu0 0.0
      %679 = vmatpush2.msra.mxu0 0.0
      %680 = vmatprep.subr.mxu0 0.0
      %681 = vmatpush2.msra.mxu0 0.0
      %682 = vmatprep.subr.mxu0 0.0
      %683 = vmatpush2.msra.mxu0 0.0
      %684 = vmatprep.subr.mxu0 0.0
      %685 = vmatpush2.msra.mxu0 0.0
      %686 = vmatprep.subr.mxu0 0.0
      %687 = vmatpush2.msra.mxu0 0.0
      %688 = vmatprep.subr.mxu0 0.0
      %689 = vmatpush2.msra.mxu0 0.0
      %690 = vmatprep.subr.mxu0 0.0
      %691 = vmatpush2.msra.mxu0 0.0
      %692 = vmatprep.subr.mxu0 0.0
      %693 = vmatpush2.msra.mxu0 0.0
      %694 = vmatprep.subr.mxu0 0.0
      %695 = vmatpush2.msra.mxu0 0.0
      %696 = vmatprep.subr.mxu0 0.0
      %697 = vmatpush2.msra.mxu0 0.0
      %698 = vmatprep.subr.mxu0 0.0
      %699 = vmatpush2.msra.mxu0 0.0
      %700 = vmatprep.subr.mxu0 0.0
      %701 = vmatpush2.msra.mxu0 0.0
      %702 = vmatprep.mubr.f32.mxu0 0.0
      %703 = vmatmul.mubr.f32.gmra.mxu0 %v426
      %v704 = vpop.f32.mrf.mxu0
      %v705 = vadd.f32 0.0, %v704
      %v706 = vpop.f32.mrf.mxu0
      %707 = vdwg.mxu0
      %708 = vmatprep.subr.mxu0 0.0
      %709 = vmatpush1.msra.mxu0 0.0
      %710 = vmatprep.subr.mxu0 0.0
      %711 = vmatpush1.msra.mxu0 0.0
      %712 = vmatprep.subr.mxu0 0.0
      %713 = vmatpush1.msra.mxu0 0.0
      %714 = vmatprep.subr.mxu0 0.0
      %715 = vmatpush1.msra.mxu0 0.0
      %716 = vmatprep.subr.mxu0 0.0
      %717 = vmatpush1.msra.mxu0 0.0
      %718 = vmatprep.subr.mxu0 0.0
      %719 = vmatpush1.msra.mxu0 0.0
      %720 = vmatprep.subr.mxu0 0.0
      %721 = vmatpush1.msra.mxu0 0.0
      %722 = vmatprep.subr.mxu0 0.0
      %723 = vmatpush1.msra.mxu0 0.0
      %724 = vmatprep.subr.mxu0 0.0
      %725 = vmatpush1.msra.mxu0 0.0
      %726 = vmatprep.subr.mxu0 0.0
      %727 = vmatpush1.msra.mxu0 0.0
      %728 = vmatprep.subr.mxu0 0.0
      %729 = vmatpush1.msra.mxu0 0.0
      %730 = vmatprep.subr.mxu0 0.0
      %731 = vmatpush1.msra.mxu0 0.0
      %732 = vmatprep.subr.mxu0 0.0
      %733 = vmatpush1.msra.mxu0 0.0
      %734 = vmatprep.subr.mxu0 0.0
      %735 = vmatpush1.msra.mxu0 0.0
      %736 = vmatprep.subr.mxu0 0.0
      %737 = vmatpush1.msra.mxu0 %v421
      %738 = vmatprep.subr.mxu0 0.0
      %739 = vmatpush1.msra.mxu0 %v416
      %740 = vmatprep.subr.mxu0 0.0
      %741 = vmatpush2.msra.mxu0 0.0
      %742 = vmatprep.subr.mxu0 0.0
      %743 = vmatpush2.msra.mxu0 0.0
      %744 = vmatprep.subr.mxu0 0.0
      %745 = vmatpush2.msra.mxu0 0.0
      %746 = vmatprep.subr.mxu0 0.0
      %747 = vmatpush2.msra.mxu0 0.0
      %748 = vmatprep.subr.mxu0 0.0
      %749 = vmatpush2.msra.mxu0 0.0
      %750 = vmatprep.subr.mxu0 0.0
      %751 = vmatpush2.msra.mxu0 0.0
      %752 = vmatprep.subr.mxu0 0.0
      %753 = vmatpush2.msra.mxu0 0.0
      %754 = vmatprep.subr.mxu0 0.0
      %755 = vmatpush2.msra.mxu0 0.0
      %756 = vmatprep.subr.mxu0 0.0
      %757 = vmatpush2.msra.mxu0 0.0
      %758 = vmatprep.subr.mxu0 0.0
      %759 = vmatpush2.msra.mxu0 0.0
      %760 = vmatprep.subr.mxu0 0.0
      %761 = vmatpush2.msra.mxu0 0.0
      %762 = vmatprep.subr.mxu0 0.0
      %763 = vmatpush2.msra.mxu0 0.0
      %764 = vmatprep.subr.mxu0 0.0
      %765 = vmatpush2.msra.mxu0 0.0
      %766 = vmatprep.subr.mxu0 0.0
      %767 = vmatpush2.msra.mxu0 0.0
      %768 = vmatprep.subr.mxu0 0.0
      %769 = vmatpush2.msra.mxu0 0.0
      %770 = vmatprep.subr.mxu0 0.0
      %771 = vmatpush2.msra.mxu0 0.0
      %772 = vmatprep.mubr.f32.mxu0 0.0
      %773 = vmatmul.mubr.f32.gmra.mxu0 %v426
      %v774 = vpop.f32.mrf.mxu0
      %v775 = vadd.f32 0.0, %v774
      %v776 = vpop.f32.mrf.mxu0
      %777 = vdwg.mxu0
      %v778 = vmul.f32 %v495, %v495
      %v779 = vmul.f32 %v565, %v565
      %v780 = vmul.f32 %v495, %v565
      %v781 = vsub.f32 %v635, %v778
      %v782 = vsub.f32 %v705, %v779
      %v783 = vsub.f32 %v775, %v780
      %v784 = vmul.f32 %v783, 2.0
      %v785 = vadd.f32 %v784, 0.0009
      %v786 = vadd.f32 %v781, %v782
      %v787 = vadd.f32 %v786, 0.0009
      %v788 = vrcp.pop %v787
      %v789 = vmul.f32 %v785, %v788
      %v790 = vmul.f32 %v780, 2.0
      %v791 = vadd.f32 %v790, 0.0001
      %v792 = vadd.f32 %v778, %v779
      %v793 = vadd.f32 %v792, 0.0001
      %v794 = vrcp.pop %v793
      %v795 = vmul.f32 %v791, %v794
      %v796 = vmul.f32 %v795, %v789
      %v797 = vld [vmem:[#allocation3] sm:$0x1]
      %vm798 = vcmask 46080
      %v799 = vsel %vm798, %v796, 0.0
      %800 = vadd.xlane.f32.xlu0 %v799
      %v801 = vpop.xlane.xlu0 %800
      %v802 = vrot.slane %v801, 4
      %v803 = vadd.f32 %v801, %v802
      %v804 = vrot.slane %v803, 2
      %v805 = vadd.f32 %v803, %v804
      %v806 = vrot.slane %v805, 1
      %v807 = vadd.f32 %v805, %v806
      %s808 = vtos %v807
      %v809 = vstv %s808
      %v810 = vadd.f32 %v797, %v809
      %vm811 = vcmask 0
      %812 = vst.msk [vmem:[#allocation3] sm:$0x1] %vm811, %v810
      // Predicated region
      $region41: #{combined_loss.10} parent=35 // pred_check
        %p813 = pneg %p240
      $region42: #{combined_loss.10} parent=35 // pred_check_branch
        %815 = sbr.rel (%p813) target = $region44
      $region43: #{combined_loss.10} parent=35 // pred_region
        %v816 = vld [vmem:[#allocation3] sm:$0x1]
        %817 = vst.msk [vmem:[%s239] sm:$0x1] %vm811, %v816
      $region44: #{combined_loss.10} parent=35 // pred_fallthru
        _
      %p818 = scmp.lt.s32.totalorder %s19, 1
      %s819 = scalar_select %p818, %s19, 1
      %s820 = scalar_lea.vmem %s4, %s819
      // Predicated region
      $region45: #{combined_loss.10} parent=35 // pred_check
        %p821 = pneg %p143
      $region46: #{combined_loss.10} parent=35 // pred_check_branch
        %823 = sbr.rel (%p821) target = $region48
      $region47: #{combined_loss.10} parent=35 // pred_region
        _
      $region48: #{combined_loss.10} parent=35 // pred_fallthru
        _
    $region36: #{combined_loss.10} parent=5 // pred_fallthru
      _
    %p824 = scmp.le.s32.totalorder 2, %s10
    // Predicated region
    $region49: #{combined_loss.10} parent=5 // pred_check
      %p825 = pneg %p824
    $region50: #{combined_loss.10} parent=5 // pred_check_branch
      %827 = sbr.rel (%p825) target = $region52
    $region51: #{combined_loss.10} parent=5 // pred_region
      %s828 = ssub.s32 %s10, 2
      // Predicated region
      $region53: #{combined_loss.10} parent=51 // pred_check
        %p829 = pneg %p149
      $region54: #{combined_loss.10} parent=51 // pred_check_branch
        %831 = sbr.rel (%p829) target = $region56
      $region55: #{combined_loss.10} parent=51 // pred_region
        %p832 = scmp.lt.s32.totalorder %s21, 1
        %s833 = scalar_select %p832, %s21, 1
        %s834 = scalar_lea.vmem %s4, %s833
      $region56: #{combined_loss.10} parent=51 // pred_fallthru
        _
    $region52: #{combined_loss.10} parent=5 // pred_fallthru
      _
  $region6: #{combined_loss.10} parent=0 // loop_footer
    %s14 = sadd.s32 1, %s10
  $region7: #{combined_loss.10} parent=0 // loop_footer_branch
    %9 = sbr.rel target = $region3
  $region8: #{combined_loss.10} parent=0 // loop_exit
    _

// kernel: combined_loss.13
$region0: #{combined_loss.13}
  #allocation0 [shape = 'u32[]', space=smem, size = 0x4, offset = 0x4, fixed_abs, tag = 'smem constant byte address 0x4 - core index']
  #allocation1 [shape = 'u32[144,128]{1,0:T(1,128)}', space=vmem, size = 0x12000, scoped, tag = 'internal scratch']
  %s0 = inlined_call_operand.vmem [shape: f32[4,256,64], index: 0, kind: input, shape index: {}, may-alias: {0,1}]
  %s1 = inlined_call_operand.vmem [shape: f32[4,256,64], index: 1, kind: input, shape index: {}, may-alias: {0,1}]
  %s2 = inlined_call_operand.vmem [shape: f32[2,1,1], index: 2, kind: output, shape index: {}]
  %s3 = sld [smem:[#allocation0]]
  $region45: #{combined_loss.13} parent=0
    _
  %s5 = ssub.s32 1, %s3
  %s6 = scalar_select 0, %s5, %s3
  loop: start=0, step=1, limit=4
  $region2: #{combined_loss.13} parent=0 // loop_pre_header
    _
  $region3: #{combined_loss.13} parent=0 // loop_header
    %s8 = sphi 0, %s12
    %p9 = scmp.ge.s32.totalorder %s8, 4
    %s15 = sphi 0, %s27
    %s16 = sphi 0, %s23
    %s17 = sphi 0, %s15
    %s18 = sphi 0, %s16
    %s19 = sphi 0, %s17
    %s20 = sphi 0, %s18
    %s32 = sphi 0, %s34
    %s35 = sphi 0, %s32
    %s36 = sphi 0, %s35
    %s52 = sphi 0, %s36
    %s62 = sphi 0, %s64
    %s65 = sphi 0, %s62
    %s66 = sphi 0, %s65
    %s82 = sphi 0, %s66
    %s88 = sphi 0, %s90
    %s91 = sphi 0, %s88
    %s92 = sphi 0, %s91
    %s108 = sphi 0, %s92
  $region4: #{combined_loss.13} parent=0 // loop_header_branch
    %11 = sbr.rel (%p9) target = $region8
  $region5: #{combined_loss.13} parent=0 // loop_body
    %s13 = ssub.s32 %s8, 1
    %s14 = ssub.s32 %s8, 2
    %s21 = sadd.s32 1, %s16
    %p22 = scmp.ge.s32.totalorder %s21, 1
    %s23 = scalar_select %p22, 0, %s21
    %s24 = sadd.s32 1, %s15
    %s25 = scalar_select %p22, %s24, %s15
    %p26 = scmp.ge.s32.totalorder %s25, 2
    %s27 = scalar_select %p26, 0, %s25
    %s28 = ssub.s32 %s15, %s27
    %s29 = ssub.s32 %s16, %s23
    %s30 = sor.u32 %s28, %s29
    %p31 = scmp.eq.s32.totalorder %s30, 0
    %s33 = sadd.s32 %s32, 1
    %s34 = scalar_select %p31, %s32, %s33
    %p37 = pneg %p31
    %p38 = scmp.eq.s32.totalorder %s8, 1
    %p39 = por %p37, %p38
    %p40 = scmp.ne.s32.totalorder %s32, %s35
    %p41 = scmp.eq.s32.totalorder %s8, 0
    %p42 = por %p40, %p41
    %p43 = scmp.ne.s32.totalorder %s32, %s35
    %p44 = scmp.eq.s32.totalorder %s13, 1
    %p45 = por %p43, %p44
    %p46 = scmp.ne.s32.totalorder %s35, %s36
    %p47 = scmp.eq.s32.totalorder %s13, 0
    %p48 = por %p46, %p47
    %p49 = scmp.ne.s32.totalorder %s35, %s36
    %p50 = scmp.eq.s32.totalorder %s14, 1
    %p51 = por %p49, %p50
    %p53 = scmp.ne.s32.totalorder %s36, %s52
    %p54 = scmp.eq.s32.totalorder %s14, 0
    %p55 = por %p53, %p54
    %s56 = sadd.s32 %s15, 2
    %s57 = sadd.s32 %s27, 2
    %s58 = ssub.s32 %s56, %s57
    %s59 = ssub.s32 %s16, %s23
    %s60 = sor.u32 %s58, %s59
    %p61 = scmp.eq.s32.totalorder %s60, 0
    %s63 = sadd.s32 %s62, 1
    %s64 = scalar_select %p61, %s62, %s63
    %p67 = pneg %p61
    %p68 = scmp.eq.s32.totalorder %s8, 1
    %p69 = por %p67, %p68
    %p70 = scmp.ne.s32.totalorder %s62, %s65
    %p71 = scmp.eq.s32.totalorder %s8, 0
    %p72 = por %p70, %p71
    %p73 = scmp.ne.s32.totalorder %s62, %s65
    %p74 = scmp.eq.s32.totalorder %s13, 1
    %p75 = por %p73, %p74
    %p76 = scmp.ne.s32.totalorder %s65, %s66
    %p77 = scmp.eq.s32.totalorder %s13, 0
    %p78 = por %p76, %p77
    %p79 = scmp.ne.s32.totalorder %s65, %s66
    %p80 = scmp.eq.s32.totalorder %s14, 1
    %p81 = por %p79, %p80
    %p83 = scmp.ne.s32.totalorder %s66, %s82
    %p84 = scmp.eq.s32.totalorder %s14, 0
    %p85 = por %p83, %p84
    %s86 = ssub.s32 %s15, %s27
    %p87 = scmp.eq.s32.totalorder %s86, 0
    %s89 = sadd.s32 %s88, 1
    %s90 = scalar_select %p87, %s88, %s89
    %p93 = pneg %p87
    %p94 = scmp.eq.s32.totalorder %s8, 1
    %p95 = por %p93, %p94
    %p96 = scmp.ne.s32.totalorder %s88, %s91
    %p97 = scmp.eq.s32.totalorder %s8, 0
    %p98 = por %p96, %p97
    %p99 = scmp.ne.s32.totalorder %s88, %s91
    %p100 = scmp.eq.s32.totalorder %s13, 1
    %p101 = por %p99, %p100
    %p102 = scmp.ne.s32.totalorder %s91, %s92
    %p103 = scmp.eq.s32.totalorder %s13, 0
    %p104 = por %p102, %p103
    %p105 = scmp.ne.s32.totalorder %s91, %s92
    %p106 = scmp.eq.s32.totalorder %s14, 1
    %p107 = por %p105, %p106
    %p109 = scmp.ne.s32.totalorder %s92, %s108
    %p110 = scmp.eq.s32.totalorder %s14, 0
    %p111 = por %p109, %p110
    %p112 = scmp.le.s32.totalorder 1, %s8
    %p113 = scmp.lt.s32.totalorder %s8, 3
    %p114 = pnand %p112, %p113
    %p115 = pneg %p114
    // Predicated region
    $region9: #{combined_loss.13} parent=5 // pred_check
      _
    $region10: #{combined_loss.13} parent=5 // pred_check_branch
      %117 = sbr.rel (%p114) target = $region12
    $region11: #{combined_loss.13} parent=5 // pred_region
      %s118 = ssub.s32 %s8, 1
    $region12: #{combined_loss.13} parent=5 // pred_fallthru
      _
    %p119 = scmp.lt.s32.totalorder %s8, 2
    // Predicated region
    $region13: #{combined_loss.13} parent=5 // pred_check
      %p120 = pneg %p119
    $region14: #{combined_loss.13} parent=5 // pred_check_branch
      %122 = sbr.rel (%p120) target = $region16
    $region15: #{combined_loss.13} parent=5 // pred_region
      // Predicated region
      $region17: #{combined_loss.13} parent=15 // pred_check
        %p123 = pneg %p42
      $region18: #{combined_loss.13} parent=15 // pred_check_branch
        %125 = sbr.rel (%p123) target = $region20
      $region19: #{combined_loss.13} parent=15 // pred_region
        %s126 = smul.u32 32, %s16
        %p127 = scmp.lt.s32.totalorder %s15, 3
        %s128 = scalar_select %p127, %s15, 3
        %p129 = scmp.lt.s32.totalorder %s126, 31
        %s130 = scalar_select %p129, %s126, 31
        %s131 = smul.addr %s128, 32
        %s132 = sadd.s32 %s130, %s131
        %s133 = smul.addr %s132, 8
        %s134 = scalar_lea.vmem %s0, %s133
        %s135 = smul.u32 32, %s16
      $region20: #{combined_loss.13} parent=15 // pred_fallthru
        _
      // Predicated region
      $region21: #{combined_loss.13} parent=15 // pred_check
        %p136 = pneg %p72
      $region22: #{combined_loss.13} parent=15 // pred_check_branch
        %138 = sbr.rel (%p136) target = $region24
      $region23: #{combined_loss.13} parent=15 // pred_region
        %s139 = sadd.s32 %s15, 2
        %s140 = smul.u32 32, %s16
        %p141 = scmp.lt.s32.totalorder %s139, 3
        %s142 = scalar_select %p141, %s139, 3
        %p143 = scmp.lt.s32.totalorder %s140, 31
        %s144 = scalar_select %p143, %s140, 31
        %s145 = smul.addr %s142, 32
        %s146 = sadd.s32 %s144, %s145
        %s147 = smul.addr %s146, 8
        %s148 = scalar_lea.vmem %s1, %s147
        %s149 = sadd.s32 %s15, 2
        %s150 = smul.u32 32, %s16
      $region24: #{combined_loss.13} parent=15 // pred_fallthru
        _
    $region16: #{combined_loss.13} parent=5 // pred_fallthru
      _
    %p151 = scmp.le.s32.totalorder 1, %s8
    %p152 = scmp.lt.s32.totalorder %s8, 3
    %p153 = pnand %p151, %p152
    %p154 = pneg %p153
    // Predicated region
    $region25: #{combined_loss.13} parent=5 // pred_check
      _
    $region26: #{combined_loss.13} parent=5 // pred_check_branch
      %156 = sbr.rel (%p153) target = $region28
    $region27: #{combined_loss.13} parent=5 // pred_region
      %s157 = ssub.s32 %s8, 1
      %s158 = smul.u32 32, %s18
      %p159 = scmp.lt.s32.totalorder %s17, 3
      %s160 = scalar_select %p159, %s17, 3
      %p161 = scmp.lt.s32.totalorder %s158, 31
      %s162 = scalar_select %p161, %s158, 31
      %s163 = smul.addr %s160, 32
      %s164 = sadd.s32 %s162, %s163
      %s165 = smul.addr %s164, 8
      %s166 = scalar_lea.vmem %s0, %s165
      %p167 = pneg %p48
      %p168 = pneg %p45
      %s169 = sadd.s32 %s17, 2
      %s170 = smul.u32 32, %s18
      %p171 = scmp.lt.s32.totalorder %s169, 3
      %s172 = scalar_select %p171, %s169, 3
      %p173 = scmp.lt.s32.totalorder %s170, 31
      %s174 = scalar_select %p173, %s170, 31
      %s175 = smul.addr %s172, 32
      %s176 = sadd.s32 %s174, %s175
      %s177 = smul.addr %s176, 8
      %s178 = scalar_lea.vmem %s1, %s177
      %p179 = pneg %p78
      %p180 = pneg %p75
      %p181 = pneg %p104
      %p182 = pneg %p101
      %p183 = scmp.lt.s32.totalorder %s17, 1
      %s184 = scalar_select %p183, %s17, 1
      %s185 = scalar_lea.vmem %s2, %s184
      %s186 = smul.u32 32, %s18
      %p187 = scmp.lt.s32.totalorder %s17, 3
      %s188 = scalar_select %p187, %s17, 3
      %p189 = scmp.lt.s32.totalorder %s186, 31
      %s190 = scalar_select %p189, %s186, 31
      %s191 = smul.addr %s188, 32
      %s192 = sadd.s32 %s190, %s191
      %s193 = smul.addr %s192, 8
      %s194 = scalar_lea.vmem %s0, %s193
      %s195 = smul.u32 32, %s18
      %s196 = sadd.s32 %s17, 2
      %s197 = smul.u32 32, %s18
      %p198 = scmp.lt.s32.totalorder %s196, 3
      %s199 = scalar_select %p198, %s196, 3
      %p200 = scmp.lt.s32.totalorder %s197, 31
      %s201 = scalar_select %p200, %s197, 31
      %s202 = smul.addr %s199, 32
      %s203 = sadd.s32 %s201, %s202
      %s204 = smul.addr %s203, 8
      %s205 = scalar_lea.vmem %s1, %s204
      %s206 = sadd.s32 %s17, 2
      %s207 = smul.u32 32, %s18
      %p208 = scmp.lt.s32.totalorder %s17, 1
      %s209 = scalar_select %p208, %s17, 1
      %s210 = scalar_lea.vmem %s2, %s209
      %p211 = scmp.eq.s32.totalorder %s18, 0
      // Predicated region
      $region29: #{combined_loss.13} parent=27 // pred_check
        %p212 = pneg %p211
      $region30: #{combined_loss.13} parent=27 // pred_check_branch
        %214 = sbr.rel (%p212) target = $region32
      $region31: #{combined_loss.13} parent=27 // pred_region
        %vm215 = vcmask 0
        %216 = vst.msk [vmem:[%s210] sm:$0x1] %vm215, 0.0
      $region32: #{combined_loss.13} parent=27 // pred_fallthru
        _
      %v217 = vld [vmem:[%s194] sm:$0xff]
      %v218 = vld [vmem:[%s194 + $0x8] sm:$0xff]
      %v219 = vld [vmem:[%s194 + $0x10] sm:$0xff]
      %v220 = vld [vmem:[%s194 + $0x18] sm:$0xff]
      %v221 = vld [vmem:[%s194 + $0x20] sm:$0xff]
      %v222 = vld [vmem:[%s194 + $0x28] sm:$0xff]
      %v223 = vld [vmem:[%s194 + $0x30] sm:$0xff]
      %v224 = vld [vmem:[%s194 + $0x38] sm:$0xff]
      %v225 = vld [vmem:[%s194 + $0x40] sm:$0xff]
      %v226 = vld [vmem:[%s194 + $0x48] sm:$0xff]
      %v227 = vld [vmem:[%s194 + $0x50] sm:$0xff]
      %v228 = vld [vmem:[%s194 + $0x58] sm:$0xff]
      %v229 = vld [vmem:[%s194 + $0x60] sm:$0xff]
      %v230 = vld [vmem:[%s194 + $0x68] sm:$0xff]
      %v231 = vld [vmem:[%s194 + $0x70] sm:$0xff]
      %v232 = vld [vmem:[%s194 + $0x78] sm:$0xff]
      %v233 = vld [vmem:[%s194 + $0x80] sm:$0xff]
      %v234 = vld [vmem:[%s194 + $0x88] sm:$0xff]
      %v235 = vld [vmem:[%s194 + $0x90] sm:$0xff]
      %v236 = vld [vmem:[%s194 + $0x98] sm:$0xff]
      %v237 = vld [vmem:[%s194 + $0xa0] sm:$0xff]
      %v238 = vld [vmem:[%s194 + $0xa8] sm:$0xff]
      %v239 = vld [vmem:[%s194 + $0xb0] sm:$0xff]
      %v240 = vld [vmem:[%s194 + $0xb8] sm:$0xff]
      %v241 = vld [vmem:[%s194 + $0xc0] sm:$0xff]
      %v242 = vld [vmem:[%s194 + $0xc8] sm:$0xff]
      %v243 = vld [vmem:[%s194 + $0xd0] sm:$0xff]
      %v244 = vld [vmem:[%s194 + $0xd8] sm:$0xff]
      %v245 = vld [vmem:[%s194 + $0xe0] sm:$0xff]
      %v246 = vld [vmem:[%s194 + $0xe8] sm:$0xff]
      %v247 = vld [vmem:[%s194 + $0xf0] sm:$0xff]
      %v248 = vld [vmem:[%s194 + $0xf8] sm:$0xff]
      %v249 = vld [vmem:[%s205] sm:$0xff]
      %v250 = vld [vmem:[%s205 + $0x8] sm:$0xff]
      %v251 = vld [vmem:[%s205 + $0x10] sm:$0xff]
      %v252 = vld [vmem:[%s205 + $0x18] sm:$0xff]
      %v253 = vld [vmem:[%s205 + $0x20] sm:$0xff]
      %v254 = vld [vmem:[%s205 + $0x28] sm:$0xff]
      %v255 = vld [vmem:[%s205 + $0x30] sm:$0xff]
      %v256 = vld [vmem:[%s205 + $0x38] sm:$0xff]
      %v257 = vld [vmem:[%s205 + $0x40] sm:$0xff]
      %v258 = vld [vmem:[%s205 + $0x48] sm:$0xff]
      %v259 = vld [vmem:[%s205 + $0x50] sm:$0xff]
      %v260 = vld [vmem:[%s205 + $0x58] sm:$0xff]
      %v261 = vld [vmem:[%s205 + $0x60] sm:$0xff]
      %v262 = vld [vmem:[%s205 + $0x68] sm:$0xff]
      %v263 = vld [vmem:[%s205 + $0x70] sm:$0xff]
      %v264 = vld [vmem:[%s205 + $0x78] sm:$0xff]
      %v265 = vld [vmem:[%s205 + $0x80] sm:$0xff]
      %v266 = vld [vmem:[%s205 + $0x88] sm:$0xff]
      %v267 = vld [vmem:[%s205 + $0x90] sm:$0xff]
      %v268 = vld [vmem:[%s205 + $0x98] sm:$0xff]
      %v269 = vld [vmem:[%s205 + $0xa0] sm:$0xff]
      %v270 = vld [vmem:[%s205 + $0xa8] sm:$0xff]
      %v271 = vld [vmem:[%s205 + $0xb0] sm:$0xff]
      %v272 = vld [vmem:[%s205 + $0xb8] sm:$0xff]
      %v273 = vld [vmem:[%s205 + $0xc0] sm:$0xff]
      %v274 = vld [vmem:[%s205 + $0xc8] sm:$0xff]
      %v275 = vld [vmem:[%s205 + $0xd0] sm:$0xff]
      %v276 = vld [vmem:[%s205 + $0xd8] sm:$0xff]
      %v277 = vld [vmem:[%s205 + $0xe0] sm:$0xff]
      %v278 = vld [vmem:[%s205 + $0xe8] sm:$0xff]
      %v279 = vld [vmem:[%s205 + $0xf0] sm:$0xff]
      %v280 = vld [vmem:[%s205 + $0xf8] sm:$0xff]
      %v281 = vsub.f32 %v217, %v249
      %v282 = vsub.f32 %v218, %v250
      %v283 = vsub.f32 %v219, %v251
      %v284 = vsub.f32 %v220, %v252
      %v285 = vsub.f32 %v221, %v253
      %v286 = vsub.f32 %v222, %v254
      %v287 = vsub.f32 %v223, %v255
      %v288 = vsub.f32 %v224, %v256
      %v289 = vsub.f32 %v225, %v257
      %v290 = vsub.f32 %v226, %v258
      %v291 = vsub.f32 %v227, %v259
      %v292 = vsub.f32 %v228, %v260
      %v293 = vsub.f32 %v229, %v261
      %v294 = vsub.f32 %v230, %v262
      %v295 = vsub.f32 %v231, %v263
      %v296 = vsub.f32 %v232, %v264
      %v297 = vsub.f32 %v233, %v265
      %v298 = vsub.f32 %v234, %v266
      %v299 = vsub.f32 %v235, %v267
      %v300 = vsub.f32 %v236, %v268
      %v301 = vsub.f32 %v237, %v269
      %v302 = vsub.f32 %v238, %v270
      %v303 = vsub.f32 %v239, %v271
      %v304 = vsub.f32 %v240, %v272
      %v305 = vsub.f32 %v241, %v273
      %v306 = vsub.f32 %v242, %v274
      %v307 = vsub.f32 %v243, %v275
      %v308 = vsub.f32 %v244, %v276
      %v309 = vsub.f32 %v245, %v277
      %v310 = vsub.f32 %v246, %v278
      %v311 = vsub.f32 %v247, %v279
      %v312 = vsub.f32 %v248, %v280
      %v313 = vld [vmem:[%s210] sm:$0x1]
      %v314 = vmul.f32 %v281, %v281
      %v315 = vmul.f32 %v282, %v282
      %v316 = vmul.f32 %v283, %v283
      %v317 = vmul.f32 %v284, %v284
      %v318 = vmul.f32 %v285, %v285
      %v319 = vmul.f32 %v286, %v286
      %v320 = vmul.f32 %v287, %v287
      %v321 = vmul.f32 %v288, %v288
      %v322 = vmul.f32 %v289, %v289
      %v323 = vmul.f32 %v290, %v290
      %v324 = vmul.f32 %v291, %v291
      %v325 = vmul.f32 %v292, %v292
      %v326 = vmul.f32 %v293, %v293
      %v327 = vmul.f32 %v294, %v294
      %v328 = vmul.f32 %v295, %v295
      %v329 = vmul.f32 %v296, %v296
      %v330 = vmul.f32 %v297, %v297
      %v331 = vmul.f32 %v298, %v298
      %v332 = vmul.f32 %v299, %v299
      %v333 = vmul.f32 %v300, %v300
      %v334 = vmul.f32 %v301, %v301
      %v335 = vmul.f32 %v302, %v302
      %v336 = vmul.f32 %v303, %v303
      %v337 = vmul.f32 %v304, %v304
      %v338 = vmul.f32 %v305, %v305
      %v339 = vmul.f32 %v306, %v306
      %v340 = vmul.f32 %v307, %v307
      %v341 = vmul.f32 %v308, %v308
      %v342 = vmul.f32 %v309, %v309
      %v343 = vmul.f32 %v310, %v310
      %v344 = vmul.f32 %v311, %v311
      %v345 = vmul.f32 %v312, %v312
      %vm346 = vcmask 523264
      %v347 = vsel %vm346, %v314, 0.0
      %v348 = vsel %vm346, %v315, 0.0
      %v349 = vadd.f32 %v347, %v348
      %v350 = vsel %vm346, %v316, 0.0
      %v351 = vadd.f32 %v349, %v350
      %v352 = vsel %vm346, %v317, 0.0
      %v353 = vadd.f32 %v351, %v352
      %v354 = vsel %vm346, %v318, 0.0
      %v355 = vadd.f32 %v353, %v354
      %v356 = vsel %vm346, %v319, 0.0
      %v357 = vadd.f32 %v355, %v356
      %v358 = vsel %vm346, %v320, 0.0
      %v359 = vadd.f32 %v357, %v358
      %v360 = vsel %vm346, %v321, 0.0
      %v361 = vadd.f32 %v359, %v360
      %v362 = vsel %vm346, %v322, 0.0
      %v363 = vadd.f32 %v361, %v362
      %v364 = vsel %vm346, %v323, 0.0
      %v365 = vadd.f32 %v363, %v364
      %v366 = vsel %vm346, %v324, 0.0
      %v367 = vadd.f32 %v365, %v366
      %v368 = vsel %vm346, %v325, 0.0
      %v369 = vadd.f32 %v367, %v368
      %v370 = vsel %vm346, %v326, 0.0
      %v371 = vadd.f32 %v369, %v370
      %v372 = vsel %vm346, %v327, 0.0
      %v373 = vadd.f32 %v371, %v372
      %v374 = vsel %vm346, %v328, 0.0
      %v375 = vadd.f32 %v373, %v374
      %v376 = vsel %vm346, %v329, 0.0
      %v377 = vadd.f32 %v375, %v376
      %v378 = vsel %vm346, %v330, 0.0
      %v379 = vadd.f32 %v377, %v378
      %v380 = vsel %vm346, %v331, 0.0
      %v381 = vadd.f32 %v379, %v380
      %v382 = vsel %vm346, %v332, 0.0
      %v383 = vadd.f32 %v381, %v382
      %v384 = vsel %vm346, %v333, 0.0
      %v385 = vadd.f32 %v383, %v384
      %v386 = vsel %vm346, %v334, 0.0
      %v387 = vadd.f32 %v385, %v386
      %v388 = vsel %vm346, %v335, 0.0
      %v389 = vadd.f32 %v387, %v388
      %v390 = vsel %vm346, %v336, 0.0
      %v391 = vadd.f32 %v389, %v390
      %v392 = vsel %vm346, %v337, 0.0
      %v393 = vadd.f32 %v391, %v392
      %v394 = vsel %vm346, %v338, 0.0
      %v395 = vadd.f32 %v393, %v394
      %v396 = vsel %vm346, %v339, 0.0
      %v397 = vadd.f32 %v395, %v396
      %v398 = vsel %vm346, %v340, 0.0
      %v399 = vadd.f32 %v397, %v398
      %v400 = vsel %vm346, %v341, 0.0
      %v401 = vadd.f32 %v399, %v400
      %v402 = vsel %vm346, %v342, 0.0
      %v403 = vadd.f32 %v401, %v402
      %v404 = vsel %vm346, %v343, 0.0
      %v405 = vadd.f32 %v403, %v404
      %v406 = vsel %vm346, %v344, 0.0
      %v407 = vadd.f32 %v405, %v406
      %v408 = vsel %vm346, %v345, 0.0
      %v409 = vadd.f32 %v407, %v408
      %410 = vadd.xlane.f32.xlu0 %v409
      %v411 = vpop.xlane.xlu0 %410
      %v412 = vrot.slane %v411, 4
      %v413 = vadd.f32 %v411, %v412
      %v414 = vrot.slane %v413, 2
      %v415 = vadd.f32 %v413, %v414
      %v416 = vrot.slane %v415, 1
      %v417 = vadd.f32 %v415, %v416
      %s418 = vtos %v417
      %v419 = vstv %s418
      %v420 = vadd.f32 %v313, %v419
      %vm421 = vcmask 0
      %422 = vst.msk [vmem:[%s210] sm:$0x1] %vm421, %v420
      %p423 = scmp.lt.s32.totalorder %s17, 1
      %s424 = scalar_select %p423, %s17, 1
      %s425 = scalar_lea.vmem %s2, %s424
      // Predicated region
      $region33: #{combined_loss.13} parent=27 // pred_check
        %p426 = pneg %p101
      $region34: #{combined_loss.13} parent=27 // pred_check_branch
        %428 = sbr.rel (%p426) target = $region36
      $region35: #{combined_loss.13} parent=27 // pred_region
        _
      $region36: #{combined_loss.13} parent=27 // pred_fallthru
        _
    $region28: #{combined_loss.13} parent=5 // pred_fallthru
      _
    %p429 = scmp.le.s32.totalorder 2, %s8
    // Predicated region
    $region37: #{combined_loss.13} parent=5 // pred_check
      %p430 = pneg %p429
    $region38: #{combined_loss.13} parent=5 // pred_check_branch
      %432 = sbr.rel (%p430) target = $region40
    $region39: #{combined_loss.13} parent=5 // pred_region
      %s433 = ssub.s32 %s8, 2
      // Predicated region
      $region41: #{combined_loss.13} parent=39 // pred_check
        %p434 = pneg %p107
      $region42: #{combined_loss.13} parent=39 // pred_check_branch
        %436 = sbr.rel (%p434) target = $region44
      $region43: #{combined_loss.13} parent=39 // pred_region
        %p437 = scmp.lt.s32.totalorder %s19, 1
        %s438 = scalar_select %p437, %s19, 1
        %s439 = scalar_lea.vmem %s2, %s438
      $region44: #{combined_loss.13} parent=39 // pred_fallthru
        _
    $region40: #{combined_loss.13} parent=5 // pred_fallthru
      _
  $region6: #{combined_loss.13} parent=0 // loop_footer
    %s12 = sadd.s32 1, %s8
  $region7: #{combined_loss.13} parent=0 // loop_footer_branch
    %7 = sbr.rel target = $region3
  $region8: #{combined_loss.13} parent=0 // loop_exit
    _

// kernel: combined_loss.16
$region0: #{combined_loss.16}
  #allocation0 [shape = 'u32[]', space=smem, size = 0x4, offset = 0x4, fixed_abs, tag = 'smem constant byte address 0x4 - core index']
  #allocation1 [shape = 'u32[144,128]{1,0:T(1,128)}', space=vmem, size = 0x12000, scoped, tag = 'internal scratch']
  %s0 = inlined_call_operand.vmem [shape: f32[4,64,64], index: 0, kind: input, shape index: {}, may-alias: {0,1}]
  %s1 = inlined_call_operand.vmem [shape: f32[4,64,64], index: 1, kind: input, shape index: {}, may-alias: {0,1}]
  %s2 = inlined_call_operand.vmem [shape: f32[2,1,1], index: 2, kind: output, shape index: {}]
  %s3 = sld [smem:[#allocation0]]
  $region45: #{combined_loss.16} parent=0
    _
  %s5 = ssub.s32 1, %s3
  %s6 = scalar_select 0, %s5, %s3
  loop: start=0, step=1, limit=4
  $region2: #{combined_loss.16} parent=0 // loop_pre_header
    _
  $region3: #{combined_loss.16} parent=0 // loop_header
    %s8 = sphi 0, %s12
    %p9 = scmp.ge.s32.totalorder %s8, 4
    %s15 = sphi 0, %s27
    %s16 = sphi 0, %s23
    %s17 = sphi 0, %s15
    %s18 = sphi 0, %s16
    %s19 = sphi 0, %s17
    %s20 = sphi 0, %s18
    %s32 = sphi 0, %s34
    %s35 = sphi 0, %s32
    %s36 = sphi 0, %s35
    %s52 = sphi 0, %s36
    %s62 = sphi 0, %s64
    %s65 = sphi 0, %s62
    %s66 = sphi 0, %s65
    %s82 = sphi 0, %s66
    %s88 = sphi 0, %s90
    %s91 = sphi 0, %s88
    %s92 = sphi 0, %s91
    %s108 = sphi 0, %s92
  $region4: #{combined_loss.16} parent=0 // loop_header_branch
    %11 = sbr.rel (%p9) target = $region8
  $region5: #{combined_loss.16} parent=0 // loop_body
    %s13 = ssub.s32 %s8, 1
    %s14 = ssub.s32 %s8, 2
    %s21 = sadd.s32 1, %s16
    %p22 = scmp.ge.s32.totalorder %s21, 1
    %s23 = scalar_select %p22, 0, %s21
    %s24 = sadd.s32 1, %s15
    %s25 = scalar_select %p22, %s24, %s15
    %p26 = scmp.ge.s32.totalorder %s25, 2
    %s27 = scalar_select %p26, 0, %s25
    %s28 = ssub.s32 %s15, %s27
    %s29 = ssub.s32 %s16, %s23
    %s30 = sor.u32 %s28, %s29
    %p31 = scmp.eq.s32.totalorder %s30, 0
    %s33 = sadd.s32 %s32, 1
    %s34 = scalar_select %p31, %s32, %s33
    %p37 = pneg %p31
    %p38 = scmp.eq.s32.totalorder %s8, 1
    %p39 = por %p37, %p38
    %p40 = scmp.ne.s32.totalorder %s32, %s35
    %p41 = scmp.eq.s32.totalorder %s8, 0
    %p42 = por %p40, %p41
    %p43 = scmp.ne.s32.totalorder %s32, %s35
    %p44 = scmp.eq.s32.totalorder %s13, 1
    %p45 = por %p43, %p44
    %p46 = scmp.ne.s32.totalorder %s35, %s36
    %p47 = scmp.eq.s32.totalorder %s13, 0
    %p48 = por %p46, %p47
    %p49 = scmp.ne.s32.totalorder %s35, %s36
    %p50 = scmp.eq.s32.totalorder %s14, 1
    %p51 = por %p49, %p50
    %p53 = scmp.ne.s32.totalorder %s36, %s52
    %p54 = scmp.eq.s32.totalorder %s14, 0
    %p55 = por %p53, %p54
    %s56 = sadd.s32 %s15, 2
    %s57 = sadd.s32 %s27, 2
    %s58 = ssub.s32 %s56, %s57
    %s59 = ssub.s32 %s16, %s23
    %s60 = sor.u32 %s58, %s59
    %p61 = scmp.eq.s32.totalorder %s60, 0
    %s63 = sadd.s32 %s62, 1
    %s64 = scalar_select %p61, %s62, %s63
    %p67 = pneg %p61
    %p68 = scmp.eq.s32.totalorder %s8, 1
    %p69 = por %p67, %p68
    %p70 = scmp.ne.s32.totalorder %s62, %s65
    %p71 = scmp.eq.s32.totalorder %s8, 0
    %p72 = por %p70, %p71
    %p73 = scmp.ne.s32.totalorder %s62, %s65
    %p74 = scmp.eq.s32.totalorder %s13, 1
    %p75 = por %p73, %p74
    %p76 = scmp.ne.s32.totalorder %s65, %s66
    %p77 = scmp.eq.s32.totalorder %s13, 0
    %p78 = por %p76, %p77
    %p79 = scmp.ne.s32.totalorder %s65, %s66
    %p80 = scmp.eq.s32.totalorder %s14, 1
    %p81 = por %p79, %p80
    %p83 = scmp.ne.s32.totalorder %s66, %s82
    %p84 = scmp.eq.s32.totalorder %s14, 0
    %p85 = por %p83, %p84
    %s86 = ssub.s32 %s15, %s27
    %p87 = scmp.eq.s32.totalorder %s86, 0
    %s89 = sadd.s32 %s88, 1
    %s90 = scalar_select %p87, %s88, %s89
    %p93 = pneg %p87
    %p94 = scmp.eq.s32.totalorder %s8, 1
    %p95 = por %p93, %p94
    %p96 = scmp.ne.s32.totalorder %s88, %s91
    %p97 = scmp.eq.s32.totalorder %s8, 0
    %p98 = por %p96, %p97
    %p99 = scmp.ne.s32.totalorder %s88, %s91
    %p100 = scmp.eq.s32.totalorder %s13, 1
    %p101 = por %p99, %p100
    %p102 = scmp.ne.s32.totalorder %s91, %s92
    %p103 = scmp.eq.s32.totalorder %s13, 0
    %p104 = por %p102, %p103
    %p105 = scmp.ne.s32.totalorder %s91, %s92
    %p106 = scmp.eq.s32.totalorder %s14, 1
    %p107 = por %p105, %p106
    %p109 = scmp.ne.s32.totalorder %s92, %s108
    %p110 = scmp.eq.s32.totalorder %s14, 0
    %p111 = por %p109, %p110
    %p112 = scmp.le.s32.totalorder 1, %s8
    %p113 = scmp.lt.s32.totalorder %s8, 3
    %p114 = pnand %p112, %p113
    %p115 = pneg %p114
    // Predicated region
    $region9: #{combined_loss.16} parent=5 // pred_check
      _
    $region10: #{combined_loss.16} parent=5 // pred_check_branch
      %117 = sbr.rel (%p114) target = $region12
    $region11: #{combined_loss.16} parent=5 // pred_region
      %s118 = ssub.s32 %s8, 1
    $region12: #{combined_loss.16} parent=5 // pred_fallthru
      _
    %p119 = scmp.lt.s32.totalorder %s8, 2
    // Predicated region
    $region13: #{combined_loss.16} parent=5 // pred_check
      %p120 = pneg %p119
    $region14: #{combined_loss.16} parent=5 // pred_check_branch
      %122 = sbr.rel (%p120) target = $region16
    $region15: #{combined_loss.16} parent=5 // pred_region
      // Predicated region
      $region17: #{combined_loss.16} parent=15 // pred_check
        %p123 = pneg %p42
      $region18: #{combined_loss.16} parent=15 // pred_check_branch
        %125 = sbr.rel (%p123) target = $region20
      $region19: #{combined_loss.16} parent=15 // pred_region
        %s126 = smul.u32 8, %s16
        %p127 = scmp.lt.s32.totalorder %s15, 3
        %s128 = scalar_select %p127, %s15, 3
        %p129 = scmp.lt.s32.totalorder %s126, 7
        %s130 = scalar_select %p129, %s126, 7
        %s131 = smul.addr %s128, 8
        %s132 = sadd.s32 %s130, %s131
        %s133 = smul.addr %s132, 8
        %s134 = scalar_lea.vmem %s0, %s133
        %s135 = smul.u32 8, %s16
      $region20: #{combined_loss.16} parent=15 // pred_fallthru
        _
      // Predicated region
      $region21: #{combined_loss.16} parent=15 // pred_check
        %p136 = pneg %p72
      $region22: #{combined_loss.16} parent=15 // pred_check_branch
        %138 = sbr.rel (%p136) target = $region24
      $region23: #{combined_loss.16} parent=15 // pred_region
        %s139 = sadd.s32 %s15, 2
        %s140 = smul.u32 8, %s16
        %p141 = scmp.lt.s32.totalorder %s139, 3
        %s142 = scalar_select %p141, %s139, 3
        %p143 = scmp.lt.s32.totalorder %s140, 7
        %s144 = scalar_select %p143, %s140, 7
        %s145 = smul.addr %s142, 8
        %s146 = sadd.s32 %s144, %s145
        %s147 = smul.addr %s146, 8
        %s148 = scalar_lea.vmem %s1, %s147
        %s149 = sadd.s32 %s15, 2
        %s150 = smul.u32 8, %s16
      $region24: #{combined_loss.16} parent=15 // pred_fallthru
        _
    $region16: #{combined_loss.16} parent=5 // pred_fallthru
      _
    %p151 = scmp.le.s32.totalorder 1, %s8
    %p152 = scmp.lt.s32.totalorder %s8, 3
    %p153 = pnand %p151, %p152
    %p154 = pneg %p153
    // Predicated region
    $region25: #{combined_loss.16} parent=5 // pred_check
      _
    $region26: #{combined_loss.16} parent=5 // pred_check_branch
      %156 = sbr.rel (%p153) target = $region28
    $region27: #{combined_loss.16} parent=5 // pred_region
      %s157 = ssub.s32 %s8, 1
      %s158 = smul.u32 8, %s18
      %p159 = scmp.lt.s32.totalorder %s17, 3
      %s160 = scalar_select %p159, %s17, 3
      %p161 = scmp.lt.s32.totalorder %s158, 7
      %s162 = scalar_select %p161, %s158, 7
      %s163 = smul.addr %s160, 8
      %s164 = sadd.s32 %s162, %s163
      %s165 = smul.addr %s164, 8
      %s166 = scalar_lea.vmem %s0, %s165
      %p167 = pneg %p48
      %p168 = pneg %p45
      %s169 = sadd.s32 %s17, 2
      %s170 = smul.u32 8, %s18
      %p171 = scmp.lt.s32.totalorder %s169, 3
      %s172 = scalar_select %p171, %s169, 3
      %p173 = scmp.lt.s32.totalorder %s170, 7
      %s174 = scalar_select %p173, %s170, 7
      %s175 = smul.addr %s172, 8
      %s176 = sadd.s32 %s174, %s175
      %s177 = smul.addr %s176, 8
      %s178 = scalar_lea.vmem %s1, %s177
      %p179 = pneg %p78
      %p180 = pneg %p75
      %p181 = pneg %p104
      %p182 = pneg %p101
      %p183 = scmp.lt.s32.totalorder %s17, 1
      %s184 = scalar_select %p183, %s17, 1
      %s185 = scalar_lea.vmem %s2, %s184
      %s186 = smul.u32 8, %s18
      %p187 = scmp.lt.s32.totalorder %s17, 3
      %s188 = scalar_select %p187, %s17, 3
      %p189 = scmp.lt.s32.totalorder %s186, 7
      %s190 = scalar_select %p189, %s186, 7
      %s191 = smul.addr %s188, 8
      %s192 = sadd.s32 %s190, %s191
      %s193 = smul.addr %s192, 8
      %s194 = scalar_lea.vmem %s0, %s193
      %s195 = smul.u32 8, %s18
      %s196 = sadd.s32 %s17, 2
      %s197 = smul.u32 8, %s18
      %p198 = scmp.lt.s32.totalorder %s196, 3
      %s199 = scalar_select %p198, %s196, 3
      %p200 = scmp.lt.s32.totalorder %s197, 7
      %s201 = scalar_select %p200, %s197, 7
      %s202 = smul.addr %s199, 8
      %s203 = sadd.s32 %s201, %s202
      %s204 = smul.addr %s203, 8
      %s205 = scalar_lea.vmem %s1, %s204
      %s206 = sadd.s32 %s17, 2
      %s207 = smul.u32 8, %s18
      %p208 = scmp.lt.s32.totalorder %s17, 1
      %s209 = scalar_select %p208, %s17, 1
      %s210 = scalar_lea.vmem %s2, %s209
      %p211 = scmp.eq.s32.totalorder %s18, 0
      // Predicated region
      $region29: #{combined_loss.16} parent=27 // pred_check
        %p212 = pneg %p211
      $region30: #{combined_loss.16} parent=27 // pred_check_branch
        %214 = sbr.rel (%p212) target = $region32
      $region31: #{combined_loss.16} parent=27 // pred_region
        %vm215 = vcmask 0
        %216 = vst.msk [vmem:[%s210] sm:$0x1] %vm215, 0.0
      $region32: #{combined_loss.16} parent=27 // pred_fallthru
        _
      %v217 = vld [vmem:[%s194] sm:$0xff]
      %v218 = vld [vmem:[%s194 + $0x8] sm:$0xff]
      %v219 = vld [vmem:[%s194 + $0x10] sm:$0xff]
      %v220 = vld [vmem:[%s194 + $0x18] sm:$0xff]
      %v221 = vld [vmem:[%s194 + $0x20] sm:$0xff]
      %v222 = vld [vmem:[%s194 + $0x28] sm:$0xff]
      %v223 = vld [vmem:[%s194 + $0x30] sm:$0xff]
      %v224 = vld [vmem:[%s194 + $0x38] sm:$0xff]
      %v225 = vld [vmem:[%s205] sm:$0xff]
      %v226 = vld [vmem:[%s205 + $0x8] sm:$0xff]
      %v227 = vld [vmem:[%s205 + $0x10] sm:$0xff]
      %v228 = vld [vmem:[%s205 + $0x18] sm:$0xff]
      %v229 = vld [vmem:[%s205 + $0x20] sm:$0xff]
      %v230 = vld [vmem:[%s205 + $0x28] sm:$0xff]
      %v231 = vld [vmem:[%s205 + $0x30] sm:$0xff]
      %v232 = vld [vmem:[%s205 + $0x38] sm:$0xff]
      %v233 = vsub.f32 %v217, %v225
      %v234 = vsub.f32 %v218, %v226
      %v235 = vsub.f32 %v219, %v227
      %v236 = vsub.f32 %v220, %v228
      %v237 = vsub.f32 %v221, %v229
      %v238 = vsub.f32 %v222, %v230
      %v239 = vsub.f32 %v223, %v231
      %v240 = vsub.f32 %v224, %v232
      %v241 = vld [vmem:[%s210] sm:$0x1]
      %v242 = vmul.f32 %v233, %v233
      %v243 = vmul.f32 %v234, %v234
      %v244 = vmul.f32 %v235, %v235
      %v245 = vmul.f32 %v236, %v236
      %v246 = vmul.f32 %v237, %v237
      %v247 = vmul.f32 %v238, %v238
      %v248 = vmul.f32 %v239, %v239
      %v249 = vmul.f32 %v240, %v240
      %vm250 = vcmask 523264
      %v251 = vsel %vm250, %v242, 0.0
      %v252 = vsel %vm250, %v243, 0.0
      %v253 = vadd.f32 %v251, %v252
      %v254 = vsel %vm250, %v244, 0.0
      %v255 = vadd.f32 %v253, %v254
      %v256 = vsel %vm250, %v245, 0.0
      %v257 = vadd.f32 %v255, %v256
      %v258 = vsel %vm250, %v246, 0.0
      %v259 = vadd.f32 %v257, %v258
      %v260 = vsel %vm250, %v247, 0.0
      %v261 = vadd.f32 %v259, %v260
      %v262 = vsel %vm250, %v248, 0.0
      %v263 = vadd.f32 %v261, %v262
      %v264 = vsel %vm250, %v249, 0.0
      %v265 = vadd.f32 %v263, %v264
      %266 = vadd.xlane.f32.xlu0 %v265
      %v267 = vpop.xlane.xlu0 %266
      %v268 = vrot.slane %v267, 4
      %v269 = vadd.f32 %v267, %v268
      %v270 = vrot.slane %v269, 2
      %v271 = vadd.f32 %v269, %v270
      %v272 = vrot.slane %v271, 1
      %v273 = vadd.f32 %v271, %v272
      %s274 = vtos %v273
      %v275 = vstv %s274
      %v276 = vadd.f32 %v241, %v275
      %vm277 = vcmask 0
      %278 = vst.msk [vmem:[%s210] sm:$0x1] %vm277, %v276
      %p279 = scmp.lt.s32.totalorder %s17, 1
      %s280 = scalar_select %p279, %s17, 1
      %s281 = scalar_lea.vmem %s2, %s280
      // Predicated region
      $region33: #{combined_loss.16} parent=27 // pred_check
        %p282 = pneg %p101
      $region34: #{combined_loss.16} parent=27 // pred_check_branch
        %284 = sbr.rel (%p282) target = $region36
      $region35: #{combined_loss.16} parent=27 // pred_region
        _
      $region36: #{combined_loss.16} parent=27 // pred_fallthru
        _
    $region28: #{combined_loss.16} parent=5 // pred_fallthru
      _
    %p285 = scmp.le.s32.totalorder 2, %s8
    // Predicated region
    $region37: #{combined_loss.16} parent=5 // pred_check
      %p286 = pneg %p285
    $region38: #{combined_loss.16} parent=5 // pred_check_branch
      %288 = sbr.rel (%p286) target = $region40
    $region39: #{combined_loss.16} parent=5 // pred_region
      %s289 = ssub.s32 %s8, 2
      // Predicated region
      $region41: #{combined_loss.16} parent=39 // pred_check
        %p290 = pneg %p107
      $region42: #{combined_loss.16} parent=39 // pred_check_branch
        %292 = sbr.rel (%p290) target = $region44
      $region43: #{combined_loss.16} parent=39 // pred_region
        %p293 = scmp.lt.s32.totalorder %s19, 1
        %s294 = scalar_select %p293, %s19, 1
        %s295 = scalar_lea.vmem %s2, %s294
      $region44: #{combined_loss.16} parent=39 // pred_fallthru
        _
    $region40: #{combined_loss.16} parent=5 // pred_fallthru
      _
  $region6: #{combined_loss.16} parent=0 // loop_footer
    %s12 = sadd.s32 1, %s8
  $region7: #{combined_loss.16} parent=0 // loop_footer_branch
    %7 = sbr.rel target = $region3
  $region8: #{combined_loss.16} parent=0 // loop_exit
    _

// kernel: combined_loss.14
$region0: #{combined_loss.14}
  #allocation0 [shape = 'u32[]', space=smem, size = 0x4, offset = 0x4, fixed_abs, tag = 'smem constant byte address 0x4 - core index']
  #allocation1 [shape = 'u32[144,128]{1,0:T(1,128)}', space=vmem, size = 0x12000, scoped, tag = 'internal scratch']
  #allocation2 [shape = 'f32[64,64]{1,0:T(8,128)}', space=vmem, size = 0x8000, scoped, tag = 'scratch operand']
  %s0 = inlined_call_operand.vmem [shape: f32[4,256,64], index: 0, kind: input, shape index: {}]
  %s1 = inlined_call_operand.vmem [shape: f32[4,64,64], index: 1, kind: output, shape index: {}]
  %s2 = sld [smem:[#allocation0]]
  $region45: #{combined_loss.14} parent=0
    _
  %s4 = ssub.s32 1, %s2
  %s5 = scalar_select 0, %s4, %s2
  loop: start=0, step=1, limit=6
  $region2: #{combined_loss.14} parent=0 // loop_pre_header
    _
  $region3: #{combined_loss.14} parent=0 // loop_header
    %s7 = sphi 0, %s11
    %p8 = scmp.ge.s32.totalorder %s7, 6
    %s14 = sphi 0, %s26
    %s15 = sphi 0, %s22
    %s16 = sphi 0, %s14
    %s17 = sphi 0, %s15
    %s18 = sphi 0, %s16
    %s19 = sphi 0, %s17
    %s31 = sphi 0, %s33
    %s34 = sphi 0, %s31
    %s35 = sphi 0, %s34
    %s51 = sphi 0, %s35
    %s57 = sphi 0, %s59
    %s60 = sphi 0, %s57
    %s61 = sphi 0, %s60
    %s77 = sphi 0, %s61
  $region4: #{combined_loss.14} parent=0 // loop_header_branch
    %10 = sbr.rel (%p8) target = $region8
  $region5: #{combined_loss.14} parent=0 // loop_body
    %s12 = ssub.s32 %s7, 1
    %s13 = ssub.s32 %s7, 2
    %s20 = sadd.s32 1, %s15
    %p21 = scmp.ge.s32.totalorder %s20, 1
    %s22 = scalar_select %p21, 0, %s20
    %s23 = sadd.s32 1, %s14
    %s24 = scalar_select %p21, %s23, %s14
    %p25 = scmp.ge.s32.totalorder %s24, 4
    %s26 = scalar_select %p25, 0, %s24
    %s27 = ssub.s32 %s14, %s26
    %s28 = ssub.s32 %s15, %s22
    %s29 = sor.u32 %s27, %s28
    %p30 = scmp.eq.s32.totalorder %s29, 0
    %s32 = sadd.s32 %s31, 1
    %s33 = scalar_select %p30, %s31, %s32
    %p36 = pneg %p30
    %p37 = scmp.eq.s32.totalorder %s7, 3
    %p38 = por %p36, %p37
    %p39 = scmp.ne.s32.totalorder %s31, %s34
    %p40 = scmp.eq.s32.totalorder %s7, 0
    %p41 = por %p39, %p40
    %p42 = scmp.ne.s32.totalorder %s31, %s34
    %p43 = scmp.eq.s32.totalorder %s12, 3
    %p44 = por %p42, %p43
    %p45 = scmp.ne.s32.totalorder %s34, %s35
    %p46 = scmp.eq.s32.totalorder %s12, 0
    %p47 = por %p45, %p46
    %p48 = scmp.ne.s32.totalorder %s34, %s35
    %p49 = scmp.eq.s32.totalorder %s13, 3
    %p50 = por %p48, %p49
    %p52 = scmp.ne.s32.totalorder %s35, %s51
    %p53 = scmp.eq.s32.totalorder %s13, 0
    %p54 = por %p52, %p53
    %s55 = ssub.s32 %s14, %s26
    %p56 = scmp.eq.s32.totalorder %s55, 0
    %s58 = sadd.s32 %s57, 1
    %s59 = scalar_select %p56, %s57, %s58
    %p62 = pneg %p56
    %p63 = scmp.eq.s32.totalorder %s7, 3
    %p64 = por %p62, %p63
    %p65 = scmp.ne.s32.totalorder %s57, %s60
    %p66 = scmp.eq.s32.totalorder %s7, 0
    %p67 = por %p65, %p66
    %p68 = scmp.ne.s32.totalorder %s57, %s60
    %p69 = scmp.eq.s32.totalorder %s12, 3
    %p70 = por %p68, %p69
    %p71 = scmp.ne.s32.totalorder %s60, %s61
    %p72 = scmp.eq.s32.totalorder %s12, 0
    %p73 = por %p71, %p72
    %p74 = scmp.ne.s32.totalorder %s60, %s61
    %p75 = scmp.eq.s32.totalorder %s13, 3
    %p76 = por %p74, %p75
    %p78 = scmp.ne.s32.totalorder %s61, %s77
    %p79 = scmp.eq.s32.totalorder %s13, 0
    %p80 = por %p78, %p79
    %p81 = scmp.le.s32.totalorder 1, %s7
    %p82 = scmp.lt.s32.totalorder %s7, 5
    %p83 = pnand %p81, %p82
    %p84 = pneg %p83
    // Predicated region
    $region9: #{combined_loss.14} parent=5 // pred_check
      _
    $region10: #{combined_loss.14} parent=5 // pred_check_branch
      %86 = sbr.rel (%p83) target = $region12
    $region11: #{combined_loss.14} parent=5 // pred_region
      %s87 = ssub.s32 %s7, 1
    $region12: #{combined_loss.14} parent=5 // pred_fallthru
      _
    %p88 = scmp.lt.s32.totalorder %s7, 4
    // Predicated region
    $region13: #{combined_loss.14} parent=5 // pred_check
      %p89 = pneg %p88
    $region14: #{combined_loss.14} parent=5 // pred_check_branch
      %91 = sbr.rel (%p89) target = $region16
    $region15: #{combined_loss.14} parent=5 // pred_region
      // Predicated region
      $region17: #{combined_loss.14} parent=15 // pred_check
        %p92 = pneg %p41
      $region18: #{combined_loss.14} parent=15 // pred_check_branch
        %94 = sbr.rel (%p92) target = $region20
      $region19: #{combined_loss.14} parent=15 // pred_region
        %s95 = smul.u32 32, %s15
        %p96 = scmp.lt.s32.totalorder %s14, 3
        %s97 = scalar_select %p96, %s14, 3
        %p98 = scmp.lt.s32.totalorder %s95, 31
        %s99 = scalar_select %p98, %s95, 31
        %s100 = smul.addr %s97, 32
        %s101 = sadd.s32 %s99, %s100
        %s102 = smul.addr %s101, 8
        %s103 = scalar_lea.vmem %s0, %s102
        %s104 = smul.u32 32, %s15
      $region20: #{combined_loss.14} parent=15 // pred_fallthru
        _
    $region16: #{combined_loss.14} parent=5 // pred_fallthru
      _
    %p105 = scmp.le.s32.totalorder 1, %s7
    %p106 = scmp.lt.s32.totalorder %s7, 5
    %p107 = pnand %p105, %p106
    %p108 = pneg %p107
    // Predicated region
    $region21: #{combined_loss.14} parent=5 // pred_check
      _
    $region22: #{combined_loss.14} parent=5 // pred_check_branch
      %110 = sbr.rel (%p107) target = $region24
    $region23: #{combined_loss.14} parent=5 // pred_region
      %s111 = ssub.s32 %s7, 1
      %s112 = smul.u32 32, %s17
      %p113 = scmp.lt.s32.totalorder %s16, 3
      %s114 = scalar_select %p113, %s16, 3
      %p115 = scmp.lt.s32.totalorder %s112, 31
      %s116 = scalar_select %p115, %s112, 31
      %s117 = smul.addr %s114, 32
      %s118 = sadd.s32 %s116, %s117
      %s119 = smul.addr %s118, 8
      %s120 = scalar_lea.vmem %s0, %s119
      %p121 = pneg %p47
      %p122 = pneg %p44
      %p123 = pneg %p73
      %p124 = pneg %p70
      %p125 = scmp.lt.s32.totalorder %s16, 3
      %s126 = scalar_select %p125, %s16, 3
      %s127 = smul.addr %s126, 8
      %s128 = smul.addr %s127, 8
      %s129 = scalar_lea.vmem %s1, %s128
      %s130 = smul.u32 32, %s17
      %p131 = scmp.lt.s32.totalorder %s16, 3
      %s132 = scalar_select %p131, %s16, 3
      %p133 = scmp.lt.s32.totalorder %s130, 31
      %s134 = scalar_select %p133, %s130, 31
      %s135 = smul.addr %s132, 32
      %s136 = sadd.s32 %s134, %s135
      %s137 = smul.addr %s136, 8
      %s138 = scalar_lea.vmem %s0, %s137
      %s139 = smul.u32 32, %s17
      %p140 = scmp.lt.s32.totalorder %s16, 3
      %s141 = scalar_select %p140, %s16, 3
      %s142 = smul.addr %s141, 8
      %s143 = smul.addr %s142, 8
      %s144 = scalar_lea.vmem %s1, %s143
      %p146 = scmp.eq.s32.totalorder %s17, 0
      // Predicated region
      $region25: #{combined_loss.14} parent=23 // pred_check
        %p147 = pneg %p146
      $region26: #{combined_loss.14} parent=23 // pred_check_branch
        %149 = sbr.rel (%p147) target = $region28
      $region27: #{combined_loss.14} parent=23 // pred_region
        %vm150 = vcmask 523264
        %151 = vst.msk [vmem:[#allocation2] sm:$0xff] %vm150, 0.0
        %152 = vst.msk [vmem:[#allocation2 + $0x8] sm:$0xff] %vm150, 0.0
        %153 = vst.msk [vmem:[#allocation2 + $0x10] sm:$0xff] %vm150, 0.0
        %154 = vst.msk [vmem:[#allocation2 + $0x18] sm:$0xff] %vm150, 0.0
        %155 = vst.msk [vmem:[#allocation2 + $0x20] sm:$0xff] %vm150, 0.0
        %156 = vst.msk [vmem:[#allocation2 + $0x28] sm:$0xff] %vm150, 0.0
        %157 = vst.msk [vmem:[#allocation2 + $0x30] sm:$0xff] %vm150, 0.0
        %158 = vst.msk [vmem:[#allocation2 + $0x38] sm:$0xff] %vm150, 0.0
      $region28: #{combined_loss.14} parent=23 // pred_fallthru
        _
      %v159 = vld [vmem:[%s138] sm:$0xff]
      %v160 = vld [vmem:[%s138 + $0x8] sm:$0xff]
      %v161 = vld [vmem:[%s138 + $0x10] sm:$0xff]
      %v162 = vld [vmem:[%s138 + $0x18] sm:$0xff]
      %v163 = vld [vmem:[%s138 + $0x20] sm:$0xff]
      %v164 = vld [vmem:[%s138 + $0x28] sm:$0xff]
      %v165 = vld [vmem:[%s138 + $0x30] sm:$0xff]
      %v166 = vld [vmem:[%s138 + $0x38] sm:$0xff]
      %v167 = vld [vmem:[%s138 + $0x40] sm:$0xff]
      %v168 = vld [vmem:[%s138 + $0x48] sm:$0xff]
      %v169 = vld [vmem:[%s138 + $0x50] sm:$0xff]
      %v170 = vld [vmem:[%s138 + $0x58] sm:$0xff]
      %v171 = vld [vmem:[%s138 + $0x60] sm:$0xff]
      %v172 = vld [vmem:[%s138 + $0x68] sm:$0xff]
      %v173 = vld [vmem:[%s138 + $0x70] sm:$0xff]
      %v174 = vld [vmem:[%s138 + $0x78] sm:$0xff]
      %v175 = vld [vmem:[%s138 + $0x80] sm:$0xff]
      %v176 = vld [vmem:[%s138 + $0x88] sm:$0xff]
      %v177 = vld [vmem:[%s138 + $0x90] sm:$0xff]
      %v178 = vld [vmem:[%s138 + $0x98] sm:$0xff]
      %v179 = vld [vmem:[%s138 + $0xa0] sm:$0xff]
      %v180 = vld [vmem:[%s138 + $0xa8] sm:$0xff]
      %v181 = vld [vmem:[%s138 + $0xb0] sm:$0xff]
      %v182 = vld [vmem:[%s138 + $0xb8] sm:$0xff]
      %v183 = vld [vmem:[%s138 + $0xc0] sm:$0xff]
      %v184 = vld [vmem:[%s138 + $0xc8] sm:$0xff]
      %v185 = vld [vmem:[%s138 + $0xd0] sm:$0xff]
      %v186 = vld [vmem:[%s138 + $0xd8] sm:$0xff]
      %v187 = vld [vmem:[%s138 + $0xe0] sm:$0xff]
      %v188 = vld [vmem:[%s138 + $0xe8] sm:$0xff]
      %v189 = vld [vmem:[%s138 + $0xf0] sm:$0xff]
      %v190 = vld [vmem:[%s138 + $0xf8] sm:$0xff]
      %v191 = vpack.c.bf16 %v160, %v159
      %v192 = vpack.c.bf16 %v162, %v161
      %v193 = vpack.c.bf16 %v164, %v163
      %v194 = vpack.c.bf16 %v166, %v165
      %v195 = vpack.c.bf16 %v168, %v167
      %v196 = vpack.c.bf16 %v170, %v169
      %v197 = vpack.c.bf16 %v172, %v171
      %v198 = vpack.c.bf16 %v174, %v173
      %v199 = vpack.c.bf16 %v176, %v175
      %v200 = vpack.c.bf16 %v178, %v177
      %v201 = vpack.c.bf16 %v180, %v179
      %v202 = vpack.c.bf16 %v182, %v181
      %v203 = vpack.c.bf16 %v184, %v183
      %v204 = vpack.c.bf16 %v186, %v185
      %v205 = vpack.c.bf16 %v188, %v187
      %v206 = vpack.c.bf16 %v190, %v189
      %v207 = vld [vmem:[#allocation2] sm:$0xff]
      %v208 = vld [vmem:[#allocation2 + $0x8] sm:$0xff]
      %v209 = vld [vmem:[#allocation2 + $0x10] sm:$0xff]
      %v210 = vld [vmem:[#allocation2 + $0x18] sm:$0xff]
      %v211 = vld [vmem:[#allocation2 + $0x20] sm:$0xff]
      %v212 = vld [vmem:[#allocation2 + $0x28] sm:$0xff]
      %v213 = vld [vmem:[#allocation2 + $0x30] sm:$0xff]
      %v214 = vld [vmem:[#allocation2 + $0x38] sm:$0xff]
      %215 = vxpose.xlu0.c.b16.start [1/8] %v191, 128
      %216 = vxpose.xlu0.c.b16.cont [2/8] %v192, 128
      %217 = vxpose.xlu0.c.b16.cont [3/8] %v193, 128
      %218 = vxpose.xlu0.c.b16.cont [4/8] %v194, 128
      %219 = vxpose.xlu0.c.b16.cont [5/8] %v195, 128
      %220 = vxpose.xlu0.c.b16.cont [6/8] %v196, 128
      %221 = vxpose.xlu0.c.b16.cont [7/8] %v197, 128
      %222 = vxpose.xlu0.c.b16.end [8/8] %v198, 128
      %v223 = vpop.trf.xlu0
      %v224 = vpop.trf.xlu0
      %v225 = vpop.trf.xlu0
      %v226 = vpop.trf.xlu0
      %v227 = vpop.trf.xlu0
      %v228 = vpop.trf.xlu0
      %v229 = vpop.trf.xlu0
      %v230 = vpop.trf.xlu0
      %231 = vxpose.xlu0.c.b16.start [1/8] %v199, 128
      %232 = vxpose.xlu0.c.b16.cont [2/8] %v200, 128
      %233 = vxpose.xlu0.c.b16.cont [3/8] %v201, 128
      %234 = vxpose.xlu0.c.b16.cont [4/8] %v202, 128
      %235 = vxpose.xlu0.c.b16.cont [5/8] %v203, 128
      %236 = vxpose.xlu0.c.b16.cont [6/8] %v204, 128
      %237 = vxpose.xlu0.c.b16.cont [7/8] %v205, 128
      %238 = vxpose.xlu0.c.b16.end [8/8] %v206, 128
      %v239 = vpop.trf.xlu0
      %v240 = vpop.trf.xlu0
      %v241 = vpop.trf.xlu0
      %v242 = vpop.trf.xlu0
      %v243 = vpop.trf.xlu0
      %v244 = vpop.trf.xlu0
      %v245 = vpop.trf.xlu0
      %v246 = vpop.trf.xlu0
      %247 = vmatprep.subr.bf16.mxu0 0
      %248 = vmatpush1.bf16.msra.mxu0 %v198
      %249 = vmatprep.subr.bf16.mxu0 0
      %250 = vmatpush1.bf16.msra.mxu0 %v197
      %251 = vmatprep.subr.bf16.mxu0 0
      %252 = vmatpush1.bf16.msra.mxu0 %v196
      %253 = vmatprep.subr.bf16.mxu0 0
      %254 = vmatpush1.bf16.msra.mxu0 %v195
      %255 = vmatprep.subr.bf16.mxu0 0
      %256 = vmatpush1.bf16.msra.mxu0 %v194
      %257 = vmatprep.subr.bf16.mxu0 0
      %258 = vmatpush1.bf16.msra.mxu0 %v193
      %259 = vmatprep.subr.bf16.mxu0 0
      %260 = vmatpush1.bf16.msra.mxu0 %v192
      %261 = vmatprep.subr.bf16.mxu0 0
      %262 = vmatpush1.bf16.msra.mxu0 %v191
      %263 = vmatprep.subr.bf16.mxu0 0
      %264 = vmatpush2.bf16.msra.mxu0 %v206
      %265 = vmatprep.subr.bf16.mxu0 0
      %266 = vmatpush2.bf16.msra.mxu0 %v205
      %267 = vmatprep.subr.bf16.mxu0 0
      %268 = vmatpush2.bf16.msra.mxu0 %v204
      %269 = vmatprep.subr.bf16.mxu0 0
      %270 = vmatpush2.bf16.msra.mxu0 %v203
      %271 = vmatprep.subr.bf16.mxu0 0
      %272 = vmatpush2.bf16.msra.mxu0 %v202
      %273 = vmatprep.subr.bf16.mxu0 0
      %274 = vmatpush2.bf16.msra.mxu0 %v201
      %275 = vmatprep.subr.bf16.mxu0 0
      %276 = vmatpush2.bf16.msra.mxu0 %v200
      %277 = vmatprep.subr.bf16.mxu0 0
      %278 = vmatpush2.bf16.msra.mxu0 %v199
      %279 = vmatprep.mubr.bf16.mxu0 %v239
      %280 = vmatmul.mubr.bf16.gmra.mxu0 %v223
      %v281 = vpop.f32.mrf.mxu0
      %v282 = vadd.f32 0.0, %v281
      %v283 = vpop.f32.mrf.mxu0
      %v284 = vpop.f32.mrf.mxu0
      %v285 = vadd.f32 0.0, %v284
      %v286 = vpop.f32.mrf.mxu0
      %287 = vmatprep.mubr.bf16.mxu0 %v240
      %288 = vmatmul.mubr.bf16.gmra.mxu0 %v224
      %v289 = vpop.f32.mrf.mxu0
      %v290 = vadd.f32 0.0, %v289
      %v291 = vpop.f32.mrf.mxu0
      %v292 = vpop.f32.mrf.mxu0
      %v293 = vadd.f32 0.0, %v292
      %v294 = vpop.f32.mrf.mxu0
      %295 = vmatprep.mubr.bf16.mxu0 %v241
      %296 = vmatmul.mubr.bf16.gmra.mxu0 %v225
      %v297 = vpop.f32.mrf.mxu0
      %v298 = vadd.f32 0.0, %v297
      %v299 = vpop.f32.mrf.mxu0
      %v300 = vpop.f32.mrf.mxu0
      %v301 = vadd.f32 0.0, %v300
      %v302 = vpop.f32.mrf.mxu0
      %303 = vmatprep.mubr.bf16.mxu0 %v242
      %304 = vmatmul.mubr.bf16.gmra.mxu0 %v226
      %v305 = vpop.f32.mrf.mxu0
      %v306 = vadd.f32 0.0, %v305
      %v307 = vpop.f32.mrf.mxu0
      %v308 = vpop.f32.mrf.mxu0
      %v309 = vadd.f32 0.0, %v308
      %v310 = vpop.f32.mrf.mxu0
      %311 = vdwg.mxu0
      %v312 = vadd.f32 %v207, %v282
      %v313 = vadd.f32 %v208, %v285
      %v314 = vadd.f32 %v209, %v290
      %v315 = vadd.f32 %v210, %v293
      %v316 = vadd.f32 %v211, %v298
      %v317 = vadd.f32 %v212, %v301
      %v318 = vadd.f32 %v213, %v306
      %v319 = vadd.f32 %v214, %v309
      %vm320 = vcmask 523264
      %321 = vst.msk [vmem:[#allocation2] sm:$0xff] %vm320, %v312
      %322 = vst.msk [vmem:[#allocation2 + $0x8] sm:$0xff] %vm320, %v313
      %323 = vst.msk [vmem:[#allocation2 + $0x10] sm:$0xff] %vm320, %v314
      %324 = vst.msk [vmem:[#allocation2 + $0x18] sm:$0xff] %vm320, %v315
      %325 = vst.msk [vmem:[#allocation2 + $0x20] sm:$0xff] %vm320, %v316
      %326 = vst.msk [vmem:[#allocation2 + $0x28] sm:$0xff] %vm320, %v317
      %327 = vst.msk [vmem:[#allocation2 + $0x30] sm:$0xff] %vm320, %v318
      %328 = vst.msk [vmem:[#allocation2 + $0x38] sm:$0xff] %vm320, %v319
      // Predicated region
      $region29: #{combined_loss.14} parent=23 // pred_check
        %p329 = pneg %p146
      $region30: #{combined_loss.14} parent=23 // pred_check_branch
        %331 = sbr.rel (%p329) target = $region32
      $region31: #{combined_loss.14} parent=23 // pred_region
        %v332 = vld [vmem:[#allocation2] sm:$0xff]
        %v333 = vld [vmem:[#allocation2 + $0x8] sm:$0xff]
        %v334 = vld [vmem:[#allocation2 + $0x10] sm:$0xff]
        %v335 = vld [vmem:[#allocation2 + $0x18] sm:$0xff]
        %v336 = vld [vmem:[#allocation2 + $0x20] sm:$0xff]
        %v337 = vld [vmem:[#allocation2 + $0x28] sm:$0xff]
        %v338 = vld [vmem:[#allocation2 + $0x30] sm:$0xff]
        %v339 = vld [vmem:[#allocation2 + $0x38] sm:$0xff]
        %v340 = vmul.f32 %v332, 6.1035156e-05
        %v341 = vmul.f32 %v333, 6.1035156e-05
        %v342 = vmul.f32 %v334, 6.1035156e-05
        %v343 = vmul.f32 %v335, 6.1035156e-05
        %v344 = vmul.f32 %v336, 6.1035156e-05
        %v345 = vmul.f32 %v337, 6.1035156e-05
        %v346 = vmul.f32 %v338, 6.1035156e-05
        %v347 = vmul.f32 %v339, 6.1035156e-05
        %348 = vst.msk [vmem:[%s144] sm:$0xff] %vm320, %v340
        %349 = vst.msk [vmem:[%s144 + $0x8] sm:$0xff] %vm320, %v341
        %350 = vst.msk [vmem:[%s144 + $0x10] sm:$0xff] %vm320, %v342
        %351 = vst.msk [vmem:[%s144 + $0x18] sm:$0xff] %vm320, %v343
        %352 = vst.msk [vmem:[%s144 + $0x20] sm:$0xff] %vm320, %v344
        %353 = vst.msk [vmem:[%s144 + $0x28] sm:$0xff] %vm320, %v345
        %354 = vst.msk [vmem:[%s144 + $0x30] sm:$0xff] %vm320, %v346
        %355 = vst.msk [vmem:[%s144 + $0x38] sm:$0xff] %vm320, %v347
      $region32: #{combined_loss.14} parent=23 // pred_fallthru
        _
      %p356 = scmp.lt.s32.totalorder %s16, 3
      %s357 = scalar_select %p356, %s16, 3
      %s358 = smul.addr %s357, 8
      %s359 = smul.addr %s358, 8
      %s360 = scalar_lea.vmem %s1, %s359
      // Predicated region
      $region33: #{combined_loss.14} parent=23 // pred_check
        %p361 = pneg %p70
      $region34: #{combined_loss.14} parent=23 // pred_check_branch
        %363 = sbr.rel (%p361) target = $region36
      $region35: #{combined_loss.14} parent=23 // pred_region
        _
      $region36: #{combined_loss.14} parent=23 // pred_fallthru
        _
    $region24: #{combined_loss.14} parent=5 // pred_fallthru
      _
    %p364 = scmp.le.s32.totalorder 2, %s7
    // Predicated region
    $region37: #{combined_loss.14} parent=5 // pred_check
      %p365 = pneg %p364
    $region38: #{combined_loss.14} parent=5 // pred_check_branch
      %367 = sbr.rel (%p365) target = $region40
    $region39: #{combined_loss.14} parent=5 // pred_region
      %s368 = ssub.s32 %s7, 2
      // Predicated region
      $region41: #{combined_loss.14} parent=39 // pred_check
        %p369 = pneg %p76
      $region42: #{combined_loss.14} parent=39 // pred_check_branch
        %371 = sbr.rel (%p369) target = $region44
      $region43: #{combined_loss.14} parent=39 // pred_region
        %p372 = scmp.lt.s32.totalorder %s18, 3
        %s373 = scalar_select %p372, %s18, 3
        %s374 = smul.addr %s373, 8
        %s375 = smul.addr %s374, 8
        %s376 = scalar_lea.vmem %s1, %s375
      $region44: #{combined_loss.14} parent=39 // pred_fallthru
        _
    $region40: #{combined_loss.14} parent=5 // pred_fallthru
      _
  $region6: #{combined_loss.14} parent=0 // loop_footer
    %s11 = sadd.s32 1, %s7
  $region7: #{combined_loss.14} parent=0 // loop_footer_branch
    %6 = sbr.rel target = $region3
  $region8: #{combined_loss.14} parent=0 // loop_exit
    _

// kernel: combined_loss.15
$region0: #{combined_loss.15}
  #allocation0 [shape = 'u32[]', space=smem, size = 0x4, offset = 0x4, fixed_abs, tag = 'smem constant byte address 0x4 - core index']
  #allocation1 [shape = 'u32[144,128]{1,0:T(1,128)}', space=vmem, size = 0x12000, scoped, tag = 'internal scratch']
  #allocation2 [shape = 'f32[128,128]{1,0:T(8,128)}', space=vmem, size = 0x10000, scoped, tag = 'scratch operand']
  %s0 = inlined_call_operand.vmem [shape: f32[4,64,128], index: 0, kind: input, shape index: {}]
  %s1 = inlined_call_operand.vmem [shape: f32[4,128,128], index: 1, kind: output, shape index: {}]
  %s2 = sld [smem:[#allocation0]]
  $region45: #{combined_loss.15} parent=0
    _
  %s4 = ssub.s32 1, %s2
  %s5 = scalar_select 0, %s4, %s2
  loop: start=0, step=1, limit=6
  $region2: #{combined_loss.15} parent=0 // loop_pre_header
    _
  $region3: #{combined_loss.15} parent=0 // loop_header
    %s7 = sphi 0, %s11
    %p8 = scmp.ge.s32.totalorder %s7, 6
    %s14 = sphi 0, %s26
    %s15 = sphi 0, %s22
    %s16 = sphi 0, %s14
    %s17 = sphi 0, %s15
    %s18 = sphi 0, %s16
    %s19 = sphi 0, %s17
    %s31 = sphi 0, %s33
    %s34 = sphi 0, %s31
    %s35 = sphi 0, %s34
    %s51 = sphi 0, %s35
    %s57 = sphi 0, %s59
    %s60 = sphi 0, %s57
    %s61 = sphi 0, %s60
    %s77 = sphi 0, %s61
  $region4: #{combined_loss.15} parent=0 // loop_header_branch
    %10 = sbr.rel (%p8) target = $region8
  $region5: #{combined_loss.15} parent=0 // loop_body
    %s12 = ssub.s32 %s7, 1
    %s13 = ssub.s32 %s7, 2
    %s20 = sadd.s32 1, %s15
    %p21 = scmp.ge.s32.totalorder %s20, 1
    %s22 = scalar_select %p21, 0, %s20
    %s23 = sadd.s32 1, %s14
    %s24 = scalar_select %p21, %s23, %s14
    %p25 = scmp.ge.s32.totalorder %s24, 4
    %s26 = scalar_select %p25, 0, %s24
    %s27 = ssub.s32 %s14, %s26
    %s28 = ssub.s32 %s15, %s22
    %s29 = sor.u32 %s27, %s28
    %p30 = scmp.eq.s32.totalorder %s29, 0
    %s32 = sadd.s32 %s31, 1
    %s33 = scalar_select %p30, %s31, %s32
    %p36 = pneg %p30
    %p37 = scmp.eq.s32.totalorder %s7, 3
    %p38 = por %p36, %p37
    %p39 = scmp.ne.s32.totalorder %s31, %s34
    %p40 = scmp.eq.s32.totalorder %s7, 0
    %p41 = por %p39, %p40
    %p42 = scmp.ne.s32.totalorder %s31, %s34
    %p43 = scmp.eq.s32.totalorder %s12, 3
    %p44 = por %p42, %p43
    %p45 = scmp.ne.s32.totalorder %s34, %s35
    %p46 = scmp.eq.s32.totalorder %s12, 0
    %p47 = por %p45, %p46
    %p48 = scmp.ne.s32.totalorder %s34, %s35
    %p49 = scmp.eq.s32.totalorder %s13, 3
    %p50 = por %p48, %p49
    %p52 = scmp.ne.s32.totalorder %s35, %s51
    %p53 = scmp.eq.s32.totalorder %s13, 0
    %p54 = por %p52, %p53
    %s55 = ssub.s32 %s14, %s26
    %p56 = scmp.eq.s32.totalorder %s55, 0
    %s58 = sadd.s32 %s57, 1
    %s59 = scalar_select %p56, %s57, %s58
    %p62 = pneg %p56
    %p63 = scmp.eq.s32.totalorder %s7, 3
    %p64 = por %p62, %p63
    %p65 = scmp.ne.s32.totalorder %s57, %s60
    %p66 = scmp.eq.s32.totalorder %s7, 0
    %p67 = por %p65, %p66
    %p68 = scmp.ne.s32.totalorder %s57, %s60
    %p69 = scmp.eq.s32.totalorder %s12, 3
    %p70 = por %p68, %p69
    %p71 = scmp.ne.s32.totalorder %s60, %s61
    %p72 = scmp.eq.s32.totalorder %s12, 0
    %p73 = por %p71, %p72
    %p74 = scmp.ne.s32.totalorder %s60, %s61
    %p75 = scmp.eq.s32.totalorder %s13, 3
    %p76 = por %p74, %p75
    %p78 = scmp.ne.s32.totalorder %s61, %s77
    %p79 = scmp.eq.s32.totalorder %s13, 0
    %p80 = por %p78, %p79
    %p81 = scmp.le.s32.totalorder 1, %s7
    %p82 = scmp.lt.s32.totalorder %s7, 5
    %p83 = pnand %p81, %p82
    %p84 = pneg %p83
    // Predicated region
    $region9: #{combined_loss.15} parent=5 // pred_check
      _
    $region10: #{combined_loss.15} parent=5 // pred_check_branch
      %86 = sbr.rel (%p83) target = $region12
    $region11: #{combined_loss.15} parent=5 // pred_region
      %s87 = ssub.s32 %s7, 1
    $region12: #{combined_loss.15} parent=5 // pred_fallthru
      _
    %p88 = scmp.lt.s32.totalorder %s7, 4
    // Predicated region
    $region13: #{combined_loss.15} parent=5 // pred_check
      %p89 = pneg %p88
    $region14: #{combined_loss.15} parent=5 // pred_check_branch
      %91 = sbr.rel (%p89) target = $region16
    $region15: #{combined_loss.15} parent=5 // pred_region
      // Predicated region
      $region17: #{combined_loss.15} parent=15 // pred_check
        %p92 = pneg %p41
      $region18: #{combined_loss.15} parent=15 // pred_check_branch
        %94 = sbr.rel (%p92) target = $region20
      $region19: #{combined_loss.15} parent=15 // pred_region
        %s95 = smul.u32 8, %s15
        %p96 = scmp.lt.s32.totalorder %s14, 3
        %s97 = scalar_select %p96, %s14, 3
        %p98 = scmp.lt.s32.totalorder %s95, 7
        %s99 = scalar_select %p98, %s95, 7
        %s100 = smul.addr %s97, 8
        %s101 = sadd.s32 %s99, %s100
        %s102 = smul.addr %s101, 8
        %s103 = scalar_lea.vmem %s0, %s102
        %s104 = smul.u32 8, %s15
      $region20: #{combined_loss.15} parent=15 // pred_fallthru
        _
    $region16: #{combined_loss.15} parent=5 // pred_fallthru
      _
    %p105 = scmp.le.s32.totalorder 1, %s7
    %p106 = scmp.lt.s32.totalorder %s7, 5
    %p107 = pnand %p105, %p106
    %p108 = pneg %p107
    // Predicated region
    $region21: #{combined_loss.15} parent=5 // pred_check
      _
    $region22: #{combined_loss.15} parent=5 // pred_check_branch
      %110 = sbr.rel (%p107) target = $region24
    $region23: #{combined_loss.15} parent=5 // pred_region
      %s111 = ssub.s32 %s7, 1
      %s112 = smul.u32 8, %s17
      %p113 = scmp.lt.s32.totalorder %s16, 3
      %s114 = scalar_select %p113, %s16, 3
      %p115 = scmp.lt.s32.totalorder %s112, 7
      %s116 = scalar_select %p115, %s112, 7
      %s117 = smul.addr %s114, 8
      %s118 = sadd.s32 %s116, %s117
      %s119 = smul.addr %s118, 8
      %s120 = scalar_lea.vmem %s0, %s119
      %p121 = pneg %p47
      %p122 = pneg %p44
      %p123 = pneg %p73
      %p124 = pneg %p70
      %p125 = scmp.lt.s32.totalorder %s16, 3
      %s126 = scalar_select %p125, %s16, 3
      %s127 = smul.addr %s126, 16
      %s128 = smul.addr %s127, 8
      %s129 = scalar_lea.vmem %s1, %s128
      %s130 = smul.u32 8, %s17
      %p131 = scmp.lt.s32.totalorder %s16, 3
      %s132 = scalar_select %p131, %s16, 3
      %p133 = scmp.lt.s32.totalorder %s130, 7
      %s134 = scalar_select %p133, %s130, 7
      %s135 = smul.addr %s132, 8
      %s136 = sadd.s32 %s134, %s135
      %s137 = smul.addr %s136, 8
      %s138 = scalar_lea.vmem %s0, %s137
      %s139 = smul.u32 8, %s17
      %p140 = scmp.lt.s32.totalorder %s16, 3
      %s141 = scalar_select %p140, %s16, 3
      %s142 = smul.addr %s141, 16
      %s143 = smul.addr %s142, 8
      %s144 = scalar_lea.vmem %s1, %s143
      %p146 = scmp.eq.s32.totalorder %s17, 0
      // Predicated region
      $region25: #{combined_loss.15} parent=23 // pred_check
        %p147 = pneg %p146
      $region26: #{combined_loss.15} parent=23 // pred_check_branch
        %149 = sbr.rel (%p147) target = $region28
      $region27: #{combined_loss.15} parent=23 // pred_region
        %150 = vst [vmem:[#allocation2] sm:$0xff] 0.0
        %151 = vst [vmem:[#allocation2 + $0x8] sm:$0xff] 0.0
        %152 = vst [vmem:[#allocation2 + $0x10] sm:$0xff] 0.0
        %153 = vst [vmem:[#allocation2 + $0x18] sm:$0xff] 0.0
        %154 = vst [vmem:[#allocation2 + $0x20] sm:$0xff] 0.0
        %155 = vst [vmem:[#allocation2 + $0x28] sm:$0xff] 0.0
        %156 = vst [vmem:[#allocation2 + $0x30] sm:$0xff] 0.0
        %157 = vst [vmem:[#allocation2 + $0x38] sm:$0xff] 0.0
        %158 = vst [vmem:[#allocation2 + $0x40] sm:$0xff] 0.0
        %159 = vst [vmem:[#allocation2 + $0x48] sm:$0xff] 0.0
        %160 = vst [vmem:[#allocation2 + $0x50] sm:$0xff] 0.0
        %161 = vst [vmem:[#allocation2 + $0x58] sm:$0xff] 0.0
        %162 = vst [vmem:[#allocation2 + $0x60] sm:$0xff] 0.0
        %163 = vst [vmem:[#allocation2 + $0x68] sm:$0xff] 0.0
        %164 = vst [vmem:[#allocation2 + $0x70] sm:$0xff] 0.0
        %165 = vst [vmem:[#allocation2 + $0x78] sm:$0xff] 0.0
      $region28: #{combined_loss.15} parent=23 // pred_fallthru
        _
      %v166 = vld [vmem:[%s138] sm:$0xff]
      %v167 = vld [vmem:[%s138 + $0x8] sm:$0xff]
      %v168 = vld [vmem:[%s138 + $0x10] sm:$0xff]
      %v169 = vld [vmem:[%s138 + $0x18] sm:$0xff]
      %v170 = vld [vmem:[%s138 + $0x20] sm:$0xff]
      %v171 = vld [vmem:[%s138 + $0x28] sm:$0xff]
      %v172 = vld [vmem:[%s138 + $0x30] sm:$0xff]
      %v173 = vld [vmem:[%s138 + $0x38] sm:$0xff]
      %v174 = vpack.c.bf16 %v167, %v166
      %v175 = vpack.c.bf16 %v169, %v168
      %v176 = vpack.c.bf16 %v171, %v170
      %v177 = vpack.c.bf16 %v173, %v172
      %v178 = vld [vmem:[#allocation2] sm:$0xff]
      %v179 = vld [vmem:[#allocation2 + $0x8] sm:$0xff]
      %v180 = vld [vmem:[#allocation2 + $0x10] sm:$0xff]
      %v181 = vld [vmem:[#allocation2 + $0x18] sm:$0xff]
      %v182 = vld [vmem:[#allocation2 + $0x20] sm:$0xff]
      %v183 = vld [vmem:[#allocation2 + $0x28] sm:$0xff]
      %v184 = vld [vmem:[#allocation2 + $0x30] sm:$0xff]
      %v185 = vld [vmem:[#allocation2 + $0x38] sm:$0xff]
      %v186 = vld [vmem:[#allocation2 + $0x40] sm:$0xff]
      %v187 = vld [vmem:[#allocation2 + $0x48] sm:$0xff]
      %v188 = vld [vmem:[#allocation2 + $0x50] sm:$0xff]
      %v189 = vld [vmem:[#allocation2 + $0x58] sm:$0xff]
      %v190 = vld [vmem:[#allocation2 + $0x60] sm:$0xff]
      %v191 = vld [vmem:[#allocation2 + $0x68] sm:$0xff]
      %v192 = vld [vmem:[#allocation2 + $0x70] sm:$0xff]
      %v193 = vld [vmem:[#allocation2 + $0x78] sm:$0xff]
      %194 = vxpose.xlu0.c.b16.start [1/8] %v174, 128
      %195 = vxpose.xlu0.c.b16.cont [2/8] %v175, 128
      %196 = vxpose.xlu0.c.b16.cont [3/8] %v176, 128
      %197 = vxpose.xlu0.c.b16.cont [4/8] %v177, 128
      %198 = vxpose.xlu0.c.b16.cont [5/8] 0, 128
      %199 = vxpose.xlu0.c.b16.cont [6/8] 0, 128
      %200 = vxpose.xlu0.c.b16.cont [7/8] 0, 128
      %201 = vxpose.xlu0.c.b16.end [8/8] 0, 128
      %v202 = vpop.trf.xlu0
      %v203 = vpop.trf.xlu0
      %v204 = vpop.trf.xlu0
      %v205 = vpop.trf.xlu0
      %v206 = vpop.trf.xlu0
      %v207 = vpop.trf.xlu0
      %v208 = vpop.trf.xlu0
      %v209 = vpop.trf.xlu0
      %vm210 = vcmask 523264
      %v212 = vsel %vm210, %v202, 0
      %v215 = vsel %vm210, %v203, 0
      %v218 = vsel %vm210, %v204, 0
      %v221 = vsel %vm210, %v205, 0
      %v224 = vsel %vm210, %v206, 0
      %v227 = vsel %vm210, %v207, 0
      %v230 = vsel %vm210, %v208, 0
      %v233 = vsel %vm210, %v209, 0
      %235 = vmatprep.subr.bf16.mxu0 0
      %236 = vmatpush1.bf16.msra.mxu0 0
      %237 = vmatprep.subr.bf16.mxu0 0
      %238 = vmatpush1.bf16.msra.mxu0 0
      %239 = vmatprep.subr.bf16.mxu0 0
      %240 = vmatpush1.bf16.msra.mxu0 0
      %241 = vmatprep.subr.bf16.mxu0 0
      %242 = vmatpush1.bf16.msra.mxu0 0
      %243 = vmatprep.subr.bf16.mxu0 0
      %244 = vmatpush1.bf16.msra.mxu0 %v177
      %245 = vmatprep.subr.bf16.mxu0 0
      %246 = vmatpush1.bf16.msra.mxu0 %v176
      %247 = vmatprep.subr.bf16.mxu0 0
      %248 = vmatpush1.bf16.msra.mxu0 %v175
      %249 = vmatprep.subr.bf16.mxu0 0
      %250 = vmatpush1.bf16.msra.mxu0 %v174
      %251 = vmatprep.subr.bf16.mxu0 0
      %252 = vmatpush2.bf16.msra.mxu0 0
      %253 = vmatprep.subr.bf16.mxu0 0
      %254 = vmatpush2.bf16.msra.mxu0 0
      %255 = vmatprep.subr.bf16.mxu0 0
      %256 = vmatpush2.bf16.msra.mxu0 0
      %257 = vmatprep.subr.bf16.mxu0 0
      %258 = vmatpush2.bf16.msra.mxu0 0
      %259 = vmatprep.subr.bf16.mxu0 0
      %260 = vmatpush2.bf16.msra.mxu0 0
      %261 = vmatprep.subr.bf16.mxu0 0
      %262 = vmatpush2.bf16.msra.mxu0 0
      %263 = vmatprep.subr.bf16.mxu0 0
      %264 = vmatpush2.bf16.msra.mxu0 0
      %265 = vmatprep.subr.bf16.mxu0 0
      %266 = vmatpush2.bf16.msra.mxu0 0
      %267 = vmatprep.mubr.bf16.mxu0 0
      %268 = vmatmul.mubr.bf16.gmra.mxu0 %v212
      %v269 = vpop.f32.mrf.mxu0
      %v270 = vadd.f32 0.0, %v269
      %v271 = vpop.f32.mrf.mxu0
      %v272 = vpop.f32.mrf.mxu0
      %v273 = vadd.f32 0.0, %v272
      %v274 = vpop.f32.mrf.mxu0
      %275 = vmatprep.mubr.bf16.mxu0 0
      %276 = vmatmul.mubr.bf16.gmra.mxu0 %v215
      %v277 = vpop.f32.mrf.mxu0
      %v278 = vadd.f32 0.0, %v277
      %v279 = vpop.f32.mrf.mxu0
      %v280 = vpop.f32.mrf.mxu0
      %v281 = vadd.f32 0.0, %v280
      %v282 = vpop.f32.mrf.mxu0
      %283 = vmatprep.mubr.bf16.mxu0 0
      %284 = vmatmul.mubr.bf16.gmra.mxu0 %v218
      %v285 = vpop.f32.mrf.mxu0
      %v286 = vadd.f32 0.0, %v285
      %v287 = vpop.f32.mrf.mxu0
      %v288 = vpop.f32.mrf.mxu0
      %v289 = vadd.f32 0.0, %v288
      %v290 = vpop.f32.mrf.mxu0
      %291 = vmatprep.mubr.bf16.mxu0 0
      %292 = vmatmul.mubr.bf16.gmra.mxu0 %v221
      %v293 = vpop.f32.mrf.mxu0
      %v294 = vadd.f32 0.0, %v293
      %v295 = vpop.f32.mrf.mxu0
      %v296 = vpop.f32.mrf.mxu0
      %v297 = vadd.f32 0.0, %v296
      %v298 = vpop.f32.mrf.mxu0
      %299 = vmatprep.mubr.bf16.mxu0 0
      %300 = vmatmul.mubr.bf16.gmra.mxu0 %v224
      %v301 = vpop.f32.mrf.mxu0
      %v302 = vadd.f32 0.0, %v301
      %v303 = vpop.f32.mrf.mxu0
      %v304 = vpop.f32.mrf.mxu0
      %v305 = vadd.f32 0.0, %v304
      %v306 = vpop.f32.mrf.mxu0
      %307 = vmatprep.mubr.bf16.mxu0 0
      %308 = vmatmul.mubr.bf16.gmra.mxu0 %v227
      %v309 = vpop.f32.mrf.mxu0
      %v310 = vadd.f32 0.0, %v309
      %v311 = vpop.f32.mrf.mxu0
      %v312 = vpop.f32.mrf.mxu0
      %v313 = vadd.f32 0.0, %v312
      %v314 = vpop.f32.mrf.mxu0
      %315 = vmatprep.mubr.bf16.mxu0 0
      %316 = vmatmul.mubr.bf16.gmra.mxu0 %v230
      %v317 = vpop.f32.mrf.mxu0
      %v318 = vadd.f32 0.0, %v317
      %v319 = vpop.f32.mrf.mxu0
      %v320 = vpop.f32.mrf.mxu0
      %v321 = vadd.f32 0.0, %v320
      %v322 = vpop.f32.mrf.mxu0
      %323 = vmatprep.mubr.bf16.mxu0 0
      %324 = vmatmul.mubr.bf16.gmra.mxu0 %v233
      %v325 = vpop.f32.mrf.mxu0
      %v326 = vadd.f32 0.0, %v325
      %v327 = vpop.f32.mrf.mxu0
      %v328 = vpop.f32.mrf.mxu0
      %v329 = vadd.f32 0.0, %v328
      %v330 = vpop.f32.mrf.mxu0
      %331 = vdwg.mxu0
      %v332 = vadd.f32 %v178, %v270
      %v333 = vadd.f32 %v179, %v273
      %v334 = vadd.f32 %v180, %v278
      %v335 = vadd.f32 %v181, %v281
      %v336 = vadd.f32 %v182, %v286
      %v337 = vadd.f32 %v183, %v289
      %v338 = vadd.f32 %v184, %v294
      %v339 = vadd.f32 %v185, %v297
      %v340 = vadd.f32 %v186, %v302
      %v341 = vadd.f32 %v187, %v305
      %v342 = vadd.f32 %v188, %v310
      %v343 = vadd.f32 %v189, %v313
      %v344 = vadd.f32 %v190, %v318
      %v345 = vadd.f32 %v191, %v321
      %v346 = vadd.f32 %v192, %v326
      %v347 = vadd.f32 %v193, %v329
      %348 = vst [vmem:[#allocation2] sm:$0xff] %v332
      %349 = vst [vmem:[#allocation2 + $0x8] sm:$0xff] %v333
      %350 = vst [vmem:[#allocation2 + $0x10] sm:$0xff] %v334
      %351 = vst [vmem:[#allocation2 + $0x18] sm:$0xff] %v335
      %352 = vst [vmem:[#allocation2 + $0x20] sm:$0xff] %v336
      %353 = vst [vmem:[#allocation2 + $0x28] sm:$0xff] %v337
      %354 = vst [vmem:[#allocation2 + $0x30] sm:$0xff] %v338
      %355 = vst [vmem:[#allocation2 + $0x38] sm:$0xff] %v339
      %356 = vst [vmem:[#allocation2 + $0x40] sm:$0xff] %v340
      %357 = vst [vmem:[#allocation2 + $0x48] sm:$0xff] %v341
      %358 = vst [vmem:[#allocation2 + $0x50] sm:$0xff] %v342
      %359 = vst [vmem:[#allocation2 + $0x58] sm:$0xff] %v343
      %360 = vst [vmem:[#allocation2 + $0x60] sm:$0xff] %v344
      %361 = vst [vmem:[#allocation2 + $0x68] sm:$0xff] %v345
      %362 = vst [vmem:[#allocation2 + $0x70] sm:$0xff] %v346
      %363 = vst [vmem:[#allocation2 + $0x78] sm:$0xff] %v347
      // Predicated region
      $region29: #{combined_loss.15} parent=23 // pred_check
        %p364 = pneg %p146
      $region30: #{combined_loss.15} parent=23 // pred_check_branch
        %366 = sbr.rel (%p364) target = $region32
      $region31: #{combined_loss.15} parent=23 // pred_region
        %v367 = vld [vmem:[#allocation2] sm:$0xff]
        %v368 = vld [vmem:[#allocation2 + $0x8] sm:$0xff]
        %v369 = vld [vmem:[#allocation2 + $0x10] sm:$0xff]
        %v370 = vld [vmem:[#allocation2 + $0x18] sm:$0xff]
        %v371 = vld [vmem:[#allocation2 + $0x20] sm:$0xff]
        %v372 = vld [vmem:[#allocation2 + $0x28] sm:$0xff]
        %v373 = vld [vmem:[#allocation2 + $0x30] sm:$0xff]
        %v374 = vld [vmem:[#allocation2 + $0x38] sm:$0xff]
        %v375 = vld [vmem:[#allocation2 + $0x40] sm:$0xff]
        %v376 = vld [vmem:[#allocation2 + $0x48] sm:$0xff]
        %v377 = vld [vmem:[#allocation2 + $0x50] sm:$0xff]
        %v378 = vld [vmem:[#allocation2 + $0x58] sm:$0xff]
        %v379 = vld [vmem:[#allocation2 + $0x60] sm:$0xff]
        %v380 = vld [vmem:[#allocation2 + $0x68] sm:$0xff]
        %v381 = vld [vmem:[#allocation2 + $0x70] sm:$0xff]
        %v382 = vld [vmem:[#allocation2 + $0x78] sm:$0xff]
        %v383 = vmul.f32 %v367, 0.00012207031
        %v384 = vmul.f32 %v368, 0.00012207031
        %v385 = vmul.f32 %v369, 0.00012207031
        %v386 = vmul.f32 %v370, 0.00012207031
        %v387 = vmul.f32 %v371, 0.00012207031
        %v388 = vmul.f32 %v372, 0.00012207031
        %v389 = vmul.f32 %v373, 0.00012207031
        %v390 = vmul.f32 %v374, 0.00012207031
        %v391 = vmul.f32 %v375, 0.00012207031
        %v392 = vmul.f32 %v376, 0.00012207031
        %v393 = vmul.f32 %v377, 0.00012207031
        %v394 = vmul.f32 %v378, 0.00012207031
        %v395 = vmul.f32 %v379, 0.00012207031
        %v396 = vmul.f32 %v380, 0.00012207031
        %v397 = vmul.f32 %v381, 0.00012207031
        %v398 = vmul.f32 %v382, 0.00012207031
        %399 = vst [vmem:[%s144] sm:$0xff] %v383
        %400 = vst [vmem:[%s144 + $0x8] sm:$0xff] %v384
        %401 = vst [vmem:[%s144 + $0x10] sm:$0xff] %v385
        %402 = vst [vmem:[%s144 + $0x18] sm:$0xff] %v386
        %403 = vst [vmem:[%s144 + $0x20] sm:$0xff] %v387
        %404 = vst [vmem:[%s144 + $0x28] sm:$0xff] %v388
        %405 = vst [vmem:[%s144 + $0x30] sm:$0xff] %v389
        %406 = vst [vmem:[%s144 + $0x38] sm:$0xff] %v390
        %407 = vst [vmem:[%s144 + $0x40] sm:$0xff] %v391
        %408 = vst [vmem:[%s144 + $0x48] sm:$0xff] %v392
        %409 = vst [vmem:[%s144 + $0x50] sm:$0xff] %v393
        %410 = vst [vmem:[%s144 + $0x58] sm:$0xff] %v394
        %411 = vst [vmem:[%s144 + $0x60] sm:$0xff] %v395
        %412 = vst [vmem:[%s144 + $0x68] sm:$0xff] %v396
        %413 = vst [vmem:[%s144 + $0x70] sm:$0xff] %v397
        %414 = vst [vmem:[%s144 + $0x78] sm:$0xff] %v398
      $region32: #{combined_loss.15} parent=23 // pred_fallthru
        _
      %p415 = scmp.lt.s32.totalorder %s16, 3
      %s416 = scalar_select %p415, %s16, 3
      %s417 = smul.addr %s416, 16
      %s418 = smul.addr %s417, 8
      %s419 = scalar_lea.vmem %s1, %s418
      // Predicated region
      $region33: #{combined_loss.15} parent=23 // pred_check
        %p420 = pneg %p70
      $region34: #{combined_loss.15} parent=23 // pred_check_branch
        %422 = sbr.rel (%p420) target = $region36
      $region35: #{combined_loss.15} parent=23 // pred_region
        _
      $region36: #{combined_loss.15} parent=23 // pred_fallthru
        _
    $region24: #{combined_loss.15} parent=5 // pred_fallthru
      _
    %p423 = scmp.le.s32.totalorder 2, %s7
    // Predicated region
    $region37: #{combined_loss.15} parent=5 // pred_check
      %p424 = pneg %p423
    $region38: #{combined_loss.15} parent=5 // pred_check_branch
      %426 = sbr.rel (%p424) target = $region40
    $region39: #{combined_loss.15} parent=5 // pred_region
      %s427 = ssub.s32 %s7, 2
      // Predicated region
      $region41: #{combined_loss.15} parent=39 // pred_check
        %p428 = pneg %p76
      $region42: #{combined_loss.15} parent=39 // pred_check_branch
        %430 = sbr.rel (%p428) target = $region44
      $region43: #{combined_loss.15} parent=39 // pred_region
        %p431 = scmp.lt.s32.totalorder %s18, 3
        %s432 = scalar_select %p431, %s18, 3
        %s433 = smul.addr %s432, 16
        %s434 = smul.addr %s433, 8
        %s435 = scalar_lea.vmem %s1, %s434
      $region44: #{combined_loss.15} parent=39 // pred_fallthru
        _
    $region40: #{combined_loss.15} parent=5 // pred_fallthru
      _
  $region6: #{combined_loss.15} parent=0 // loop_footer
    %s11 = sadd.s32 1, %s7
  $region7: #{combined_loss.15} parent=0 // loop_footer_branch
    %6 = sbr.rel target = $region3
  $region8: #{combined_loss.15} parent=0 // loop_exit
    _

// kernel: combined_loss.17
$region0: #{combined_loss.17}
  #allocation0 [shape = 'u32[]', space=smem, size = 0x4, offset = 0x4, fixed_abs, tag = 'smem constant byte address 0x4 - core index']
  #allocation1 [shape = 'u32[144,128]{1,0:T(1,128)}', space=vmem, size = 0x12000, scoped, tag = 'internal scratch']
  %s0 = inlined_call_operand.vmem [shape: f32[4,128,128], index: 0, kind: input, shape index: {}, may-alias: {0,1}]
  %s1 = inlined_call_operand.vmem [shape: f32[4,128,128], index: 1, kind: input, shape index: {}, may-alias: {0,1}]
  %s2 = inlined_call_operand.vmem [shape: f32[2,1,1], index: 2, kind: output, shape index: {}]
  %s3 = sld [smem:[#allocation0]]
  $region45: #{combined_loss.17} parent=0
    _
  %s5 = ssub.s32 1, %s3
  %s6 = scalar_select 0, %s5, %s3
  loop: start=0, step=1, limit=4
  $region2: #{combined_loss.17} parent=0 // loop_pre_header
    _
  $region3: #{combined_loss.17} parent=0 // loop_header
    %s8 = sphi 0, %s12
    %p9 = scmp.ge.s32.totalorder %s8, 4
    %s15 = sphi 0, %s27
    %s16 = sphi 0, %s23
    %s17 = sphi 0, %s15
    %s18 = sphi 0, %s16
    %s19 = sphi 0, %s17
    %s20 = sphi 0, %s18
    %s32 = sphi 0, %s34
    %s35 = sphi 0, %s32
    %s36 = sphi 0, %s35
    %s52 = sphi 0, %s36
    %s62 = sphi 0, %s64
    %s65 = sphi 0, %s62
    %s66 = sphi 0, %s65
    %s82 = sphi 0, %s66
    %s88 = sphi 0, %s90
    %s91 = sphi 0, %s88
    %s92 = sphi 0, %s91
    %s108 = sphi 0, %s92
  $region4: #{combined_loss.17} parent=0 // loop_header_branch
    %11 = sbr.rel (%p9) target = $region8
  $region5: #{combined_loss.17} parent=0 // loop_body
    %s13 = ssub.s32 %s8, 1
    %s14 = ssub.s32 %s8, 2
    %s21 = sadd.s32 1, %s16
    %p22 = scmp.ge.s32.totalorder %s21, 1
    %s23 = scalar_select %p22, 0, %s21
    %s24 = sadd.s32 1, %s15
    %s25 = scalar_select %p22, %s24, %s15
    %p26 = scmp.ge.s32.totalorder %s25, 2
    %s27 = scalar_select %p26, 0, %s25
    %s28 = ssub.s32 %s15, %s27
    %s29 = ssub.s32 %s16, %s23
    %s30 = sor.u32 %s28, %s29
    %p31 = scmp.eq.s32.totalorder %s30, 0
    %s33 = sadd.s32 %s32, 1
    %s34 = scalar_select %p31, %s32, %s33
    %p37 = pneg %p31
    %p38 = scmp.eq.s32.totalorder %s8, 1
    %p39 = por %p37, %p38
    %p40 = scmp.ne.s32.totalorder %s32, %s35
    %p41 = scmp.eq.s32.totalorder %s8, 0
    %p42 = por %p40, %p41
    %p43 = scmp.ne.s32.totalorder %s32, %s35
    %p44 = scmp.eq.s32.totalorder %s13, 1
    %p45 = por %p43, %p44
    %p46 = scmp.ne.s32.totalorder %s35, %s36
    %p47 = scmp.eq.s32.totalorder %s13, 0
    %p48 = por %p46, %p47
    %p49 = scmp.ne.s32.totalorder %s35, %s36
    %p50 = scmp.eq.s32.totalorder %s14, 1
    %p51 = por %p49, %p50
    %p53 = scmp.ne.s32.totalorder %s36, %s52
    %p54 = scmp.eq.s32.totalorder %s14, 0
    %p55 = por %p53, %p54
    %s56 = sadd.s32 %s15, 2
    %s57 = sadd.s32 %s27, 2
    %s58 = ssub.s32 %s56, %s57
    %s59 = ssub.s32 %s16, %s23
    %s60 = sor.u32 %s58, %s59
    %p61 = scmp.eq.s32.totalorder %s60, 0
    %s63 = sadd.s32 %s62, 1
    %s64 = scalar_select %p61, %s62, %s63
    %p67 = pneg %p61
    %p68 = scmp.eq.s32.totalorder %s8, 1
    %p69 = por %p67, %p68
    %p70 = scmp.ne.s32.totalorder %s62, %s65
    %p71 = scmp.eq.s32.totalorder %s8, 0
    %p72 = por %p70, %p71
    %p73 = scmp.ne.s32.totalorder %s62, %s65
    %p74 = scmp.eq.s32.totalorder %s13, 1
    %p75 = por %p73, %p74
    %p76 = scmp.ne.s32.totalorder %s65, %s66
    %p77 = scmp.eq.s32.totalorder %s13, 0
    %p78 = por %p76, %p77
    %p79 = scmp.ne.s32.totalorder %s65, %s66
    %p80 = scmp.eq.s32.totalorder %s14, 1
    %p81 = por %p79, %p80
    %p83 = scmp.ne.s32.totalorder %s66, %s82
    %p84 = scmp.eq.s32.totalorder %s14, 0
    %p85 = por %p83, %p84
    %s86 = ssub.s32 %s15, %s27
    %p87 = scmp.eq.s32.totalorder %s86, 0
    %s89 = sadd.s32 %s88, 1
    %s90 = scalar_select %p87, %s88, %s89
    %p93 = pneg %p87
    %p94 = scmp.eq.s32.totalorder %s8, 1
    %p95 = por %p93, %p94
    %p96 = scmp.ne.s32.totalorder %s88, %s91
    %p97 = scmp.eq.s32.totalorder %s8, 0
    %p98 = por %p96, %p97
    %p99 = scmp.ne.s32.totalorder %s88, %s91
    %p100 = scmp.eq.s32.totalorder %s13, 1
    %p101 = por %p99, %p100
    %p102 = scmp.ne.s32.totalorder %s91, %s92
    %p103 = scmp.eq.s32.totalorder %s13, 0
    %p104 = por %p102, %p103
    %p105 = scmp.ne.s32.totalorder %s91, %s92
    %p106 = scmp.eq.s32.totalorder %s14, 1
    %p107 = por %p105, %p106
    %p109 = scmp.ne.s32.totalorder %s92, %s108
    %p110 = scmp.eq.s32.totalorder %s14, 0
    %p111 = por %p109, %p110
    %p112 = scmp.le.s32.totalorder 1, %s8
    %p113 = scmp.lt.s32.totalorder %s8, 3
    %p114 = pnand %p112, %p113
    %p115 = pneg %p114
    // Predicated region
    $region9: #{combined_loss.17} parent=5 // pred_check
      _
    $region10: #{combined_loss.17} parent=5 // pred_check_branch
      %117 = sbr.rel (%p114) target = $region12
    $region11: #{combined_loss.17} parent=5 // pred_region
      %s118 = ssub.s32 %s8, 1
    $region12: #{combined_loss.17} parent=5 // pred_fallthru
      _
    %p119 = scmp.lt.s32.totalorder %s8, 2
    // Predicated region
    $region13: #{combined_loss.17} parent=5 // pred_check
      %p120 = pneg %p119
    $region14: #{combined_loss.17} parent=5 // pred_check_branch
      %122 = sbr.rel (%p120) target = $region16
    $region15: #{combined_loss.17} parent=5 // pred_region
      // Predicated region
      $region17: #{combined_loss.17} parent=15 // pred_check
        %p123 = pneg %p42
      $region18: #{combined_loss.17} parent=15 // pred_check_branch
        %125 = sbr.rel (%p123) target = $region20
      $region19: #{combined_loss.17} parent=15 // pred_region
        %s126 = smul.u32 16, %s16
        %p127 = scmp.lt.s32.totalorder %s15, 3
        %s128 = scalar_select %p127, %s15, 3
        %p129 = scmp.lt.s32.totalorder %s126, 15
        %s130 = scalar_select %p129, %s126, 15
        %s131 = smul.addr %s128, 16
        %s132 = sadd.s32 %s130, %s131
        %s133 = smul.addr %s132, 8
        %s134 = scalar_lea.vmem %s0, %s133
        %s135 = smul.u32 16, %s16
      $region20: #{combined_loss.17} parent=15 // pred_fallthru
        _
      // Predicated region
      $region21: #{combined_loss.17} parent=15 // pred_check
        %p136 = pneg %p72
      $region22: #{combined_loss.17} parent=15 // pred_check_branch
        %138 = sbr.rel (%p136) target = $region24
      $region23: #{combined_loss.17} parent=15 // pred_region
        %s139 = sadd.s32 %s15, 2
        %s140 = smul.u32 16, %s16
        %p141 = scmp.lt.s32.totalorder %s139, 3
        %s142 = scalar_select %p141, %s139, 3
        %p143 = scmp.lt.s32.totalorder %s140, 15
        %s144 = scalar_select %p143, %s140, 15
        %s145 = smul.addr %s142, 16
        %s146 = sadd.s32 %s144, %s145
        %s147 = smul.addr %s146, 8
        %s148 = scalar_lea.vmem %s1, %s147
        %s149 = sadd.s32 %s15, 2
        %s150 = smul.u32 16, %s16
      $region24: #{combined_loss.17} parent=15 // pred_fallthru
        _
    $region16: #{combined_loss.17} parent=5 // pred_fallthru
      _
    %p151 = scmp.le.s32.totalorder 1, %s8
    %p152 = scmp.lt.s32.totalorder %s8, 3
    %p153 = pnand %p151, %p152
    %p154 = pneg %p153
    // Predicated region
    $region25: #{combined_loss.17} parent=5 // pred_check
      _
    $region26: #{combined_loss.17} parent=5 // pred_check_branch
      %156 = sbr.rel (%p153) target = $region28
    $region27: #{combined_loss.17} parent=5 // pred_region
      %s157 = ssub.s32 %s8, 1
      %s158 = smul.u32 16, %s18
      %p159 = scmp.lt.s32.totalorder %s17, 3
      %s160 = scalar_select %p159, %s17, 3
      %p161 = scmp.lt.s32.totalorder %s158, 15
      %s162 = scalar_select %p161, %s158, 15
      %s163 = smul.addr %s160, 16
      %s164 = sadd.s32 %s162, %s163
      %s165 = smul.addr %s164, 8
      %s166 = scalar_lea.vmem %s0, %s165
      %p167 = pneg %p48
      %p168 = pneg %p45
      %s169 = sadd.s32 %s17, 2
      %s170 = smul.u32 16, %s18
      %p171 = scmp.lt.s32.totalorder %s169, 3
      %s172 = scalar_select %p171, %s169, 3
      %p173 = scmp.lt.s32.totalorder %s170, 15
      %s174 = scalar_select %p173, %s170, 15
      %s175 = smul.addr %s172, 16
      %s176 = sadd.s32 %s174, %s175
      %s177 = smul.addr %s176, 8
      %s178 = scalar_lea.vmem %s1, %s177
      %p179 = pneg %p78
      %p180 = pneg %p75
      %p181 = pneg %p104
      %p182 = pneg %p101
      %p183 = scmp.lt.s32.totalorder %s17, 1
      %s184 = scalar_select %p183, %s17, 1
      %s185 = scalar_lea.vmem %s2, %s184
      %s186 = smul.u32 16, %s18
      %p187 = scmp.lt.s32.totalorder %s17, 3
      %s188 = scalar_select %p187, %s17, 3
      %p189 = scmp.lt.s32.totalorder %s186, 15
      %s190 = scalar_select %p189, %s186, 15
      %s191 = smul.addr %s188, 16
      %s192 = sadd.s32 %s190, %s191
      %s193 = smul.addr %s192, 8
      %s194 = scalar_lea.vmem %s0, %s193
      %s195 = smul.u32 16, %s18
      %s196 = sadd.s32 %s17, 2
      %s197 = smul.u32 16, %s18
      %p198 = scmp.lt.s32.totalorder %s196, 3
      %s199 = scalar_select %p198, %s196, 3
      %p200 = scmp.lt.s32.totalorder %s197, 15
      %s201 = scalar_select %p200, %s197, 15
      %s202 = smul.addr %s199, 16
      %s203 = sadd.s32 %s201, %s202
      %s204 = smul.addr %s203, 8
      %s205 = scalar_lea.vmem %s1, %s204
      %s206 = sadd.s32 %s17, 2
      %s207 = smul.u32 16, %s18
      %p208 = scmp.lt.s32.totalorder %s17, 1
      %s209 = scalar_select %p208, %s17, 1
      %s210 = scalar_lea.vmem %s2, %s209
      %p211 = scmp.eq.s32.totalorder %s18, 0
      // Predicated region
      $region29: #{combined_loss.17} parent=27 // pred_check
        %p212 = pneg %p211
      $region30: #{combined_loss.17} parent=27 // pred_check_branch
        %214 = sbr.rel (%p212) target = $region32
      $region31: #{combined_loss.17} parent=27 // pred_region
        %vm215 = vcmask 0
        %216 = vst.msk [vmem:[%s210] sm:$0x1] %vm215, 0.0
      $region32: #{combined_loss.17} parent=27 // pred_fallthru
        _
      %v217 = vld [vmem:[%s194] sm:$0xff]
      %v218 = vld [vmem:[%s194 + $0x8] sm:$0xff]
      %v219 = vld [vmem:[%s194 + $0x10] sm:$0xff]
      %v220 = vld [vmem:[%s194 + $0x18] sm:$0xff]
      %v221 = vld [vmem:[%s194 + $0x20] sm:$0xff]
      %v222 = vld [vmem:[%s194 + $0x28] sm:$0xff]
      %v223 = vld [vmem:[%s194 + $0x30] sm:$0xff]
      %v224 = vld [vmem:[%s194 + $0x38] sm:$0xff]
      %v225 = vld [vmem:[%s194 + $0x40] sm:$0xff]
      %v226 = vld [vmem:[%s194 + $0x48] sm:$0xff]
      %v227 = vld [vmem:[%s194 + $0x50] sm:$0xff]
      %v228 = vld [vmem:[%s194 + $0x58] sm:$0xff]
      %v229 = vld [vmem:[%s194 + $0x60] sm:$0xff]
      %v230 = vld [vmem:[%s194 + $0x68] sm:$0xff]
      %v231 = vld [vmem:[%s194 + $0x70] sm:$0xff]
      %v232 = vld [vmem:[%s194 + $0x78] sm:$0xff]
      %v233 = vld [vmem:[%s205] sm:$0xff]
      %v234 = vld [vmem:[%s205 + $0x8] sm:$0xff]
      %v235 = vld [vmem:[%s205 + $0x10] sm:$0xff]
      %v236 = vld [vmem:[%s205 + $0x18] sm:$0xff]
      %v237 = vld [vmem:[%s205 + $0x20] sm:$0xff]
      %v238 = vld [vmem:[%s205 + $0x28] sm:$0xff]
      %v239 = vld [vmem:[%s205 + $0x30] sm:$0xff]
      %v240 = vld [vmem:[%s205 + $0x38] sm:$0xff]
      %v241 = vld [vmem:[%s205 + $0x40] sm:$0xff]
      %v242 = vld [vmem:[%s205 + $0x48] sm:$0xff]
      %v243 = vld [vmem:[%s205 + $0x50] sm:$0xff]
      %v244 = vld [vmem:[%s205 + $0x58] sm:$0xff]
      %v245 = vld [vmem:[%s205 + $0x60] sm:$0xff]
      %v246 = vld [vmem:[%s205 + $0x68] sm:$0xff]
      %v247 = vld [vmem:[%s205 + $0x70] sm:$0xff]
      %v248 = vld [vmem:[%s205 + $0x78] sm:$0xff]
      %v249 = vsub.f32 %v217, %v233
      %v250 = vsub.f32 %v218, %v234
      %v251 = vsub.f32 %v219, %v235
      %v252 = vsub.f32 %v220, %v236
      %v253 = vsub.f32 %v221, %v237
      %v254 = vsub.f32 %v222, %v238
      %v255 = vsub.f32 %v223, %v239
      %v256 = vsub.f32 %v224, %v240
      %v257 = vsub.f32 %v225, %v241
      %v258 = vsub.f32 %v226, %v242
      %v259 = vsub.f32 %v227, %v243
      %v260 = vsub.f32 %v228, %v244
      %v261 = vsub.f32 %v229, %v245
      %v262 = vsub.f32 %v230, %v246
      %v263 = vsub.f32 %v231, %v247
      %v264 = vsub.f32 %v232, %v248
      %v265 = vld [vmem:[%s210] sm:$0x1]
      %v266 = vmul.f32 %v249, %v249
      %v267 = vmul.f32 %v250, %v250
      %v268 = vmul.f32 %v251, %v251
      %v269 = vmul.f32 %v252, %v252
      %v270 = vmul.f32 %v253, %v253
      %v271 = vmul.f32 %v254, %v254
      %v272 = vmul.f32 %v255, %v255
      %v273 = vmul.f32 %v256, %v256
      %v274 = vmul.f32 %v257, %v257
      %v275 = vmul.f32 %v258, %v258
      %v276 = vmul.f32 %v259, %v259
      %v277 = vmul.f32 %v260, %v260
      %v278 = vmul.f32 %v261, %v261
      %v279 = vmul.f32 %v262, %v262
      %v280 = vmul.f32 %v263, %v263
      %v281 = vmul.f32 %v264, %v264
      %v282 = vadd.f32 %v266, %v267
      %v283 = vadd.f32 %v282, %v268
      %v284 = vadd.f32 %v283, %v269
      %v285 = vadd.f32 %v284, %v270
      %v286 = vadd.f32 %v285, %v271
      %v287 = vadd.f32 %v286, %v272
      %v288 = vadd.f32 %v287, %v273
      %v289 = vadd.f32 %v288, %v274
      %v290 = vadd.f32 %v289, %v275
      %v291 = vadd.f32 %v290, %v276
      %v292 = vadd.f32 %v291, %v277
      %v293 = vadd.f32 %v292, %v278
      %v294 = vadd.f32 %v293, %v279
      %v295 = vadd.f32 %v294, %v280
      %v296 = vadd.f32 %v295, %v281
      %297 = vadd.xlane.f32.xlu0 %v296
      %v298 = vpop.xlane.xlu0 %297
      %v299 = vrot.slane %v298, 4
      %v300 = vadd.f32 %v298, %v299
      %v301 = vrot.slane %v300, 2
      %v302 = vadd.f32 %v300, %v301
      %v303 = vrot.slane %v302, 1
      %v304 = vadd.f32 %v302, %v303
      %s305 = vtos %v304
      %v306 = vstv %s305
      %v307 = vadd.f32 %v265, %v306
      %vm308 = vcmask 0
      %309 = vst.msk [vmem:[%s210] sm:$0x1] %vm308, %v307
      %p310 = scmp.lt.s32.totalorder %s17, 1
      %s311 = scalar_select %p310, %s17, 1
      %s312 = scalar_lea.vmem %s2, %s311
      // Predicated region
      $region33: #{combined_loss.17} parent=27 // pred_check
        %p313 = pneg %p101
      $region34: #{combined_loss.17} parent=27 // pred_check_branch
        %315 = sbr.rel (%p313) target = $region36
      $region35: #{combined_loss.17} parent=27 // pred_region
        _
      $region36: #{combined_loss.17} parent=27 // pred_fallthru
        _
    $region28: #{combined_loss.17} parent=5 // pred_fallthru
      _
    %p316 = scmp.le.s32.totalorder 2, %s8
    // Predicated region
    $region37: #{combined_loss.17} parent=5 // pred_check
      %p317 = pneg %p316
    $region38: #{combined_loss.17} parent=5 // pred_check_branch
      %319 = sbr.rel (%p317) target = $region40
    $region39: #{combined_loss.17} parent=5 // pred_region
      %s320 = ssub.s32 %s8, 2
      // Predicated region
      $region41: #{combined_loss.17} parent=39 // pred_check
        %p321 = pneg %p107
      $region42: #{combined_loss.17} parent=39 // pred_check_branch
        %323 = sbr.rel (%p321) target = $region44
      $region43: #{combined_loss.17} parent=39 // pred_region
        %p324 = scmp.lt.s32.totalorder %s19, 1
        %s325 = scalar_select %p324, %s19, 1
        %s326 = scalar_lea.vmem %s2, %s325
      $region44: #{combined_loss.17} parent=39 // pred_fallthru
        _
    $region40: #{combined_loss.17} parent=5 // pred_fallthru
      _
  $region6: #{combined_loss.17} parent=0 // loop_footer
    %s12 = sadd.s32 1, %s8
  $region7: #{combined_loss.17} parent=0 // loop_footer_branch
    %7 = sbr.rel target = $region3
  $region8: #{combined_loss.17} parent=0 // loop_exit
    _

// kernel: combined_loss.11
$region0: #{combined_loss.11}
  #allocation0 [shape = 'u32[]', space=smem, size = 0x4, offset = 0x4, fixed_abs, tag = 'smem constant byte address 0x4 - core index']
  #allocation1 [shape = 'u32[144,128]{1,0:T(1,128)}', space=vmem, size = 0x12000, scoped, tag = 'internal scratch']
  #allocation2 [shape = 'f32[18,18,64]{2,1,0:T(8,128)}', space=vmem, size = 0x36000, scoped, tag = 'scratch operand']
  #allocation3 [shape = 'bf16[256,576]{1,0:T(8,128)(2,1)}', space=vmem, size = 0x50000, scoped, tag = 'scratch operand']
  %s0 = inlined_call_operand.vmem [shape: bf16[4,256,9], index: 0, kind: input, shape index: {}]
  %s1 = inlined_call_operand.vmem [shape: bf16[9,64], index: 1, kind: input, shape index: {}]
  %s2 = inlined_call_operand.vmem [shape: f32[1,64], index: 2, kind: input, shape index: {}]
  %s3 = inlined_call_operand.vmem [shape: bf16[576,64], index: 3, kind: input, shape index: {}]
  %s4 = inlined_call_operand.vmem [shape: f32[1,64], index: 4, kind: input, shape index: {}]
  %s5 = inlined_call_operand.vmem [shape: f32[4,256,64], index: 5, kind: output, shape index: {}]
  %s6 = sld [smem:[#allocation0]]
  $region53: #{combined_loss.11} parent=0
    _
  %s8 = ssub.s32 1, %s6
  %s9 = scalar_select 0, %s8, %s6
  loop: start=0, step=1, limit=6
  $region2: #{combined_loss.11} parent=0 // loop_pre_header
    _
  $region3: #{combined_loss.11} parent=0 // loop_header
    %s11 = sphi 0, %s15
    %p12 = scmp.ge.s32.totalorder %s11, 6
    %s21 = sphi 0, %s23
    %s24 = sphi 0, %s21
    %s25 = sphi 0, %s24
    %s41 = sphi 0, %s25
    %s45 = sphi 0, %s45
    %s47 = sphi 0, %s45
    %s48 = sphi 0, %s47
    %s62 = sphi 0, %s48
    %s66 = sphi 0, %s66
    %s68 = sphi 0, %s66
    %s69 = sphi 0, %s68
    %s83 = sphi 0, %s69
    %s87 = sphi 0, %s87
    %s89 = sphi 0, %s87
    %s90 = sphi 0, %s89
    %s104 = sphi 0, %s90
    %s108 = sphi 0, %s108
    %s110 = sphi 0, %s108
    %s111 = sphi 0, %s110
    %s125 = sphi 0, %s111
    %s131 = sphi 0, %s133
    %s134 = sphi 0, %s131
    %s135 = sphi 0, %s134
    %s151 = sphi 0, %s135
  $region4: #{combined_loss.11} parent=0 // loop_header_branch
    %14 = sbr.rel (%p12) target = $region8
  $region5: #{combined_loss.11} parent=0 // loop_body
    %s16 = ssub.s32 %s11, 1
    %s17 = ssub.s32 %s11, 2
    %s18 = sadd.s32 %s11, 1
    %s19 = ssub.s32 %s11, %s18
    %p20 = scmp.eq.s32.totalorder %s19, 0
    %s22 = sadd.s32 %s21, 1
    %s23 = scalar_select %p20, %s21, %s22
    %p26 = pneg %p20
    %p27 = scmp.eq.s32.totalorder %s11, 3
    %p28 = por %p26, %p27
    %p29 = scmp.ne.s32.totalorder %s21, %s24
    %p30 = scmp.eq.s32.totalorder %s11, 0
    %p31 = por %p29, %p30
    %p32 = scmp.ne.s32.totalorder %s21, %s24
    %p33 = scmp.eq.s32.totalorder %s16, 3
    %p34 = por %p32, %p33
    %p35 = scmp.ne.s32.totalorder %s24, %s25
    %p36 = scmp.eq.s32.totalorder %s16, 0
    %p37 = por %p35, %p36
    %p38 = scmp.ne.s32.totalorder %s24, %s25
    %p39 = scmp.eq.s32.totalorder %s17, 3
    %p40 = por %p38, %p39
    %p42 = scmp.ne.s32.totalorder %s25, %s41
    %p43 = scmp.eq.s32.totalorder %s17, 0
    %p44 = por %p42, %p43
    %s46 = sadd.s32 %s45, 1
    %p49 = scmp.eq.s32.totalorder %s11, 3
    %p50 = scmp.ne.s32.totalorder %s45, %s47
    %p51 = scmp.eq.s32.totalorder %s11, 0
    %p52 = por %p50, %p51
    %p53 = scmp.ne.s32.totalorder %s45, %s47
    %p54 = scmp.eq.s32.totalorder %s16, 3
    %p55 = por %p53, %p54
    %p56 = scmp.ne.s32.totalorder %s47, %s48
    %p57 = scmp.eq.s32.totalorder %s16, 0
    %p58 = por %p56, %p57
    %p59 = scmp.ne.s32.totalorder %s47, %s48
    %p60 = scmp.eq.s32.totalorder %s17, 3
    %p61 = por %p59, %p60
    %p63 = scmp.ne.s32.totalorder %s48, %s62
    %p64 = scmp.eq.s32.totalorder %s17, 0
    %p65 = por %p63, %p64
    %s67 = sadd.s32 %s66, 1
    %p70 = scmp.eq.s32.totalorder %s11, 3
    %p71 = scmp.ne.s32.totalorder %s66, %s68
    %p72 = scmp.eq.s32.totalorder %s11, 0
    %p73 = por %p71, %p72
    %p74 = scmp.ne.s32.totalorder %s66, %s68
    %p75 = scmp.eq.s32.totalorder %s16, 3
    %p76 = por %p74, %p75
    %p77 = scmp.ne.s32.totalorder %s68, %s69
    %p78 = scmp.eq.s32.totalorder %s16, 0
    %p79 = por %p77, %p78
    %p80 = scmp.ne.s32.totalorder %s68, %s69
    %p81 = scmp.eq.s32.totalorder %s17, 3
    %p82 = por %p80, %p81
    %p84 = scmp.ne.s32.totalorder %s69, %s83
    %p85 = scmp.eq.s32.totalorder %s17, 0
    %p86 = por %p84, %p85
    %s88 = sadd.s32 %s87, 1
    %p91 = scmp.eq.s32.totalorder %s11, 3
    %p92 = scmp.ne.s32.totalorder %s87, %s89
    %p93 = scmp.eq.s32.totalorder %s11, 0
    %p94 = por %p92, %p93
    %p95 = scmp.ne.s32.totalorder %s87, %s89
    %p96 = scmp.eq.s32.totalorder %s16, 3
    %p97 = por %p95, %p96
    %p98 = scmp.ne.s32.totalorder %s89, %s90
    %p99 = scmp.eq.s32.totalorder %s16, 0
    %p100 = por %p98, %p99
    %p101 = scmp.ne.s32.totalorder %s89, %s90
    %p102 = scmp.eq.s32.totalorder %s17, 3
    %p103 = por %p101, %p102
    %p105 = scmp.ne.s32.totalorder %s90, %s104
    %p106 = scmp.eq.s32.totalorder %s17, 0
    %p107 = por %p105, %p106
    %s109 = sadd.s32 %s108, 1
    %p112 = scmp.eq.s32.totalorder %s11, 3
    %p113 = scmp.ne.s32.totalorder %s108, %s110
    %p114 = scmp.eq.s32.totalorder %s11, 0
    %p115 = por %p113, %p114
    %p116 = scmp.ne.s32.totalorder %s108, %s110
    %p117 = scmp.eq.s32.totalorder %s16, 3
    %p118 = por %p116, %p117
    %p119 = scmp.ne.s32.totalorder %s110, %s111
    %p120 = scmp.eq.s32.totalorder %s16, 0
    %p121 = por %p119, %p120
    %p122 = scmp.ne.s32.totalorder %s110, %s111
    %p123 = scmp.eq.s32.totalorder %s17, 3
    %p124 = por %p122, %p123
    %p126 = scmp.ne.s32.totalorder %s111, %s125
    %p127 = scmp.eq.s32.totalorder %s17, 0
    %p128 = por %p126, %p127
    %s129 = ssub.s32 %s11, %s18
    %p130 = scmp.eq.s32.totalorder %s129, 0
    %s132 = sadd.s32 %s131, 1
    %s133 = scalar_select %p130, %s131, %s132
    %p136 = pneg %p130
    %p137 = scmp.eq.s32.totalorder %s11, 3
    %p138 = por %p136, %p137
    %p139 = scmp.ne.s32.totalorder %s131, %s134
    %p140 = scmp.eq.s32.totalorder %s11, 0
    %p141 = por %p139, %p140
    %p142 = scmp.ne.s32.totalorder %s131, %s134
    %p143 = scmp.eq.s32.totalorder %s16, 3
    %p144 = por %p142, %p143
    %p145 = scmp.ne.s32.totalorder %s134, %s135
    %p146 = scmp.eq.s32.totalorder %s16, 0
    %p147 = por %p145, %p146
    %p148 = scmp.ne.s32.totalorder %s134, %s135
    %p149 = scmp.eq.s32.totalorder %s17, 3
    %p150 = por %p148, %p149
    %p152 = scmp.ne.s32.totalorder %s135, %s151
    %p153 = scmp.eq.s32.totalorder %s17, 0
    %p154 = por %p152, %p153
    %p155 = scmp.le.s32.totalorder 1, %s11
    %p156 = scmp.lt.s32.totalorder %s11, 5
    %p157 = pnand %p155, %p156
    %p158 = pneg %p157
    // Predicated region
    $region9: #{combined_loss.11} parent=5 // pred_check
      _
    $region10: #{combined_loss.11} parent=5 // pred_check_branch
      %160 = sbr.rel (%p157) target = $region12
    $region11: #{combined_loss.11} parent=5 // pred_region
      %s161 = ssub.s32 %s11, 1
      // Predicated region
      $region13: #{combined_loss.11} parent=11 // pred_check
        %p162 = pneg %p58
      $region14: #{combined_loss.11} parent=11 // pred_check_branch
        %164 = sbr.rel (%p162) target = $region16
      $region15: #{combined_loss.11} parent=11 // pred_region
        _
      $region16: #{combined_loss.11} parent=11 // pred_fallthru
        _
      // Predicated region
      $region17: #{combined_loss.11} parent=11 // pred_check
        %p165 = pneg %p79
      $region18: #{combined_loss.11} parent=11 // pred_check_branch
        %167 = sbr.rel (%p165) target = $region20
      $region19: #{combined_loss.11} parent=11 // pred_region
        _
      $region20: #{combined_loss.11} parent=11 // pred_fallthru
        _
      // Predicated region
      $region21: #{combined_loss.11} parent=11 // pred_check
        %p168 = pneg %p100
      $region22: #{combined_loss.11} parent=11 // pred_check_branch
        %170 = sbr.rel (%p168) target = $region24
      $region23: #{combined_loss.11} parent=11 // pred_region
        _
      $region24: #{combined_loss.11} parent=11 // pred_fallthru
        _
      // Predicated region
      $region25: #{combined_loss.11} parent=11 // pred_check
        %p171 = pneg %p121
      $region26: #{combined_loss.11} parent=11 // pred_check_branch
        %173 = sbr.rel (%p171) target = $region28
      $region27: #{combined_loss.11} parent=11 // pred_region
        _
      $region28: #{combined_loss.11} parent=11 // pred_fallthru
        _
    $region12: #{combined_loss.11} parent=5 // pred_fallthru
      _
    %p174 = scmp.lt.s32.totalorder %s11, 4
    // Predicated region
    $region29: #{combined_loss.11} parent=5 // pred_check
      %p175 = pneg %p174
    $region30: #{combined_loss.11} parent=5 // pred_check_branch
      %177 = sbr.rel (%p175) target = $region32
    $region31: #{combined_loss.11} parent=5 // pred_region
      // Predicated region
      $region33: #{combined_loss.11} parent=31 // pred_check
        %p178 = pneg %p31
      $region34: #{combined_loss.11} parent=31 // pred_check_branch
        %180 = sbr.rel (%p178) target = $region36
      $region35: #{combined_loss.11} parent=31 // pred_region
        %p181 = scmp.lt.s32.totalorder %s11, 3
        %s182 = scalar_select %p181, %s11, 3
        %s183 = smul.addr %s182, 32
        %s184 = smul.addr %s183, 4
        %s185 = scalar_lea.vmem %s0, %s184
      $region36: #{combined_loss.11} parent=31 // pred_fallthru
        _
    $region32: #{combined_loss.11} parent=5 // pred_fallthru
      _
    %p186 = scmp.le.s32.totalorder 1, %s11
    %p187 = scmp.lt.s32.totalorder %s11, 5
    %p188 = pnand %p186, %p187
    %p189 = pneg %p188
    // Predicated region
    $region37: #{combined_loss.11} parent=5 // pred_check
      _
    $region38: #{combined_loss.11} parent=5 // pred_check_branch
      %191 = sbr.rel (%p188) target = $region40
    $region39: #{combined_loss.11} parent=5 // pred_region
      %s192 = ssub.s32 %s11, 1
      %p193 = scmp.lt.s32.totalorder %s16, 3
      %s194 = scalar_select %p193, %s16, 3
      %s195 = smul.addr %s194, 32
      %s196 = smul.addr %s195, 4
      %s197 = scalar_lea.vmem %s0, %s196
      %p198 = pneg %p37
      %p199 = pneg %p34
      %p200 = pneg %p58
      %p201 = pneg %p55
      %p202 = pneg %p79
      %p203 = pneg %p76
      %p204 = pneg %p100
      %p205 = pneg %p97
      %p206 = pneg %p121
      %p207 = pneg %p118
      %p208 = pneg %p147
      %p209 = pneg %p144
      %p210 = scmp.lt.s32.totalorder %s16, 3
      %s211 = scalar_select %p210, %s16, 3
      %s212 = smul.addr %s211, 32
      %s213 = smul.addr %s212, 8
      %s214 = scalar_lea.vmem %s5, %s213
      %p215 = scmp.lt.s32.totalorder %s16, 3
      %s216 = scalar_select %p215, %s16, 3
      %s217 = smul.addr %s216, 32
      %s218 = smul.addr %s217, 4
      %s219 = scalar_lea.vmem %s0, %s218
      %p220 = scmp.lt.s32.totalorder %s16, 3
      %s221 = scalar_select %p220, %s16, 3
      %s222 = smul.addr %s221, 32
      %s223 = smul.addr %s222, 8
      %s224 = scalar_lea.vmem %s5, %s223
      %v226 = vld [vmem:[%s219] sm:$0xf]
      %v227 = vld [vmem:[%s219 + $0x4] sm:$0xf]
      %v228 = vld [vmem:[%s219 + $0x8] sm:$0xf]
      %v229 = vld [vmem:[%s219 + $0xc] sm:$0xf]
      %v230 = vld [vmem:[%s219 + $0x10] sm:$0xf]
      %v231 = vld [vmem:[%s219 + $0x14] sm:$0xf]
      %v232 = vld [vmem:[%s219 + $0x18] sm:$0xf]
      %v233 = vld [vmem:[%s219 + $0x1c] sm:$0xf]
      %v234 = vld [vmem:[%s219 + $0x20] sm:$0xf]
      %v235 = vld [vmem:[%s219 + $0x24] sm:$0xf]
      %v236 = vld [vmem:[%s219 + $0x28] sm:$0xf]
      %v237 = vld [vmem:[%s219 + $0x2c] sm:$0xf]
      %v238 = vld [vmem:[%s219 + $0x30] sm:$0xf]
      %v239 = vld [vmem:[%s219 + $0x34] sm:$0xf]
      %v240 = vld [vmem:[%s219 + $0x38] sm:$0xf]
      %v241 = vld [vmem:[%s219 + $0x3c] sm:$0xf]
      %v242 = vld [vmem:[%s219 + $0x40] sm:$0xf]
      %v243 = vld [vmem:[%s219 + $0x44] sm:$0xf]
      %v244 = vld [vmem:[%s219 + $0x48] sm:$0xf]
      %v245 = vld [vmem:[%s219 + $0x4c] sm:$0xf]
      %v246 = vld [vmem:[%s219 + $0x50] sm:$0xf]
      %v247 = vld [vmem:[%s219 + $0x54] sm:$0xf]
      %v248 = vld [vmem:[%s219 + $0x58] sm:$0xf]
      %v249 = vld [vmem:[%s219 + $0x5c] sm:$0xf]
      %v250 = vld [vmem:[%s219 + $0x60] sm:$0xf]
      %v251 = vld [vmem:[%s219 + $0x64] sm:$0xf]
      %v252 = vld [vmem:[%s219 + $0x68] sm:$0xf]
      %v253 = vld [vmem:[%s219 + $0x6c] sm:$0xf]
      %v254 = vld [vmem:[%s219 + $0x70] sm:$0xf]
      %v255 = vld [vmem:[%s219 + $0x74] sm:$0xf]
      %v256 = vld [vmem:[%s219 + $0x78] sm:$0xf]
      %v257 = vld [vmem:[%s219 + $0x7c] sm:$0xf]
      %v258 = vld [vmem:[%s1] sm:$0xf]
      %v259 = vld [vmem:[%s1 + $0x4] sm:$0x1]
      %v260 = vld [vmem:[%s2] sm:$0x1]
      %v262 = vlaneseq
      %v263 = vshrl.u32 %v262, 7
      %v264 = vsub.s32 0, %v263
      %v265 = vrot.slane %v260, %v264
      %v299 = vunpack.c.l.b16 %v226
      %v300 = vunpack.c.l.b16 %v227
      %v301 = vunpack.c.l.b16 %v228
      %v302 = vunpack.c.l.b16 %v229
      %v303 = vunpack.c.l.b16 %v230
      %v304 = vunpack.c.l.b16 %v231
      %v305 = vunpack.c.l.b16 %v232
      %v306 = vunpack.c.l.b16 %v233
      %v307 = vunpack.c.l.b16 %v234
      %v308 = vunpack.c.l.b16 %v235
      %v309 = vunpack.c.l.b16 %v236
      %v310 = vunpack.c.l.b16 %v237
      %v311 = vunpack.c.l.b16 %v238
      %v312 = vunpack.c.l.b16 %v239
      %v313 = vunpack.c.l.b16 %v240
      %v314 = vunpack.c.l.b16 %v241
      %v315 = vunpack.c.l.b16 %v242
      %v316 = vunpack.c.l.b16 %v243
      %v317 = vunpack.c.l.b16 %v244
      %v318 = vunpack.c.l.b16 %v245
      %v319 = vunpack.c.l.b16 %v246
      %v320 = vunpack.c.l.b16 %v247
      %v321 = vunpack.c.l.b16 %v248
      %v322 = vunpack.c.l.b16 %v249
      %v323 = vunpack.c.l.b16 %v250
      %v324 = vunpack.c.l.b16 %v251
      %v325 = vunpack.c.l.b16 %v252
      %v326 = vunpack.c.l.b16 %v253
      %v327 = vunpack.c.l.b16 %v254
      %v328 = vunpack.c.l.b16 %v255
      %v329 = vunpack.c.l.b16 %v256
      %v330 = vunpack.c.l.b16 %v257
      %v331 = vpack.c.b16 %v300, %v299
      %v332 = vpack.c.b16 %v302, %v301
      %v333 = vpack.c.b16 %v304, %v303
      %v334 = vpack.c.b16 %v306, %v305
      %v335 = vpack.c.b16 %v308, %v307
      %v336 = vpack.c.b16 %v310, %v309
      %v337 = vpack.c.b16 %v312, %v311
      %v338 = vpack.c.b16 %v314, %v313
      %v339 = vpack.c.b16 %v316, %v315
      %v340 = vpack.c.b16 %v318, %v317
      %v341 = vpack.c.b16 %v320, %v319
      %v342 = vpack.c.b16 %v322, %v321
      %v343 = vpack.c.b16 %v324, %v323
      %v344 = vpack.c.b16 %v326, %v325
      %v345 = vpack.c.b16 %v328, %v327
      %v346 = vpack.c.b16 %v330, %v329
      %v349 = vunpack.c.l.b16 %v258
      %v350 = vunpack.c.l.b16 %v259
      %v351 = vpack.c.b16 %v350, %v349
      %vm352 = vcmask 72704
      %v354 = vsel %vm352, %v331, 0
      %v357 = vsel %vm352, %v332, 0
      %v360 = vsel %vm352, %v333, 0
      %v363 = vsel %vm352, %v334, 0
      %v366 = vsel %vm352, %v335, 0
      %v369 = vsel %vm352, %v336, 0
      %v372 = vsel %vm352, %v337, 0
      %v375 = vsel %vm352, %v338, 0
      %v378 = vsel %vm352, %v339, 0
      %v381 = vsel %vm352, %v340, 0
      %v384 = vsel %vm352, %v341, 0
      %v387 = vsel %vm352, %v342, 0
      %v390 = vsel %vm352, %v343, 0
      %v393 = vsel %vm352, %v344, 0
      %v396 = vsel %vm352, %v345, 0
      %v399 = vsel %vm352, %v346, 0
      %vm401 = vcmask 1043456
      %vm402 = vcmask 1044480
      %v403 = vsel %vm401, 4294967295, 65535
      %v404 = vsel %vm402, %v403, 0
      %v406 = vand.u32 %v351, %v404
      %408 = vmatprep.subr.bf16.mxu0 0
      %409 = vmatpush1.bf16.msra.mxu0 0
      %410 = vmatprep.subr.bf16.mxu0 0
      %411 = vmatpush1.bf16.msra.mxu0 0
      %412 = vmatprep.subr.bf16.mxu0 0
      %413 = vmatpush1.bf16.msra.mxu0 0
      %414 = vmatprep.subr.bf16.mxu0 0
      %415 = vmatpush1.bf16.msra.mxu0 0
      %416 = vmatprep.subr.bf16.mxu0 0
      %417 = vmatpush1.bf16.msra.mxu0 0
      %418 = vmatprep.subr.bf16.mxu0 0
      %419 = vmatpush1.bf16.msra.mxu0 0
      %420 = vmatprep.subr.bf16.mxu0 0
      %421 = vmatpush1.bf16.msra.mxu0 0
      %422 = vmatprep.subr.bf16.mxu0 0
      %423 = vmatpush1.bf16.msra.mxu0 %v406
      %424 = vmatprep.subr.bf16.mxu0 0
      %425 = vmatpush2.bf16.msra.mxu0 0
      %426 = vmatprep.subr.bf16.mxu0 0
      %427 = vmatpush2.bf16.msra.mxu0 0
      %428 = vmatprep.subr.bf16.mxu0 0
      %429 = vmatpush2.bf16.msra.mxu0 0
      %430 = vmatprep.subr.bf16.mxu0 0
      %431 = vmatpush2.bf16.msra.mxu0 0
      %432 = vmatprep.subr.bf16.mxu0 0
      %433 = vmatpush2.bf16.msra.mxu0 0
      %434 = vmatprep.subr.bf16.mxu0 0
      %435 = vmatpush2.bf16.msra.mxu0 0
      %436 = vmatprep.subr.bf16.mxu0 0
      %437 = vmatpush2.bf16.msra.mxu0 0
      %438 = vmatprep.subr.bf16.mxu0 0
      %439 = vmatpush2.bf16.msra.mxu0 0
      %440 = vmatprep.mubr.bf16.mxu0 0
      %441 = vmatmul.mubr.bf16.gmra.mxu0 %v354
      %v442 = vpop.f32.mrf.mxu0
      %v443 = vadd.f32 %v265, %v442
      %v444 = vpop.f32.mrf.mxu0
      %v445 = vpop.f32.mrf.mxu0
      %v446 = vadd.f32 %v265, %v445
      %v447 = vpop.f32.mrf.mxu0
      %448 = vmatprep.mubr.bf16.mxu0 0
      %449 = vmatmul.mubr.bf16.gmra.mxu0 %v357
      %v450 = vpop.f32.mrf.mxu0
      %v451 = vadd.f32 %v265, %v450
      %v452 = vpop.f32.mrf.mxu0
      %v453 = vpop.f32.mrf.mxu0
      %v454 = vadd.f32 %v265, %v453
      %v455 = vpop.f32.mrf.mxu0
      %456 = vmatprep.mubr.bf16.mxu0 0
      %457 = vmatmul.mubr.bf16.gmra.mxu0 %v360
      %v458 = vpop.f32.mrf.mxu0
      %v459 = vadd.f32 %v265, %v458
      %v460 = vpop.f32.mrf.mxu0
      %v461 = vpop.f32.mrf.mxu0
      %v462 = vadd.f32 %v265, %v461
      %v463 = vpop.f32.mrf.mxu0
      %464 = vmatprep.mubr.bf16.mxu0 0
      %465 = vmatmul.mubr.bf16.gmra.mxu0 %v363
      %v466 = vpop.f32.mrf.mxu0
      %v467 = vadd.f32 %v265, %v466
      %v468 = vpop.f32.mrf.mxu0
      %v469 = vpop.f32.mrf.mxu0
      %v470 = vadd.f32 %v265, %v469
      %v471 = vpop.f32.mrf.mxu0
      %472 = vmatprep.mubr.bf16.mxu0 0
      %473 = vmatmul.mubr.bf16.gmra.mxu0 %v366
      %v474 = vpop.f32.mrf.mxu0
      %v475 = vadd.f32 %v265, %v474
      %v476 = vpop.f32.mrf.mxu0
      %v477 = vpop.f32.mrf.mxu0
      %v478 = vadd.f32 %v265, %v477
      %v479 = vpop.f32.mrf.mxu0
      %480 = vmatprep.mubr.bf16.mxu0 0
      %481 = vmatmul.mubr.bf16.gmra.mxu0 %v369
      %v482 = vpop.f32.mrf.mxu0
      %v483 = vadd.f32 %v265, %v482
      %v484 = vpop.f32.mrf.mxu0
      %v485 = vpop.f32.mrf.mxu0
      %v486 = vadd.f32 %v265, %v485
      %v487 = vpop.f32.mrf.mxu0
      %488 = vmatprep.mubr.bf16.mxu0 0
      %489 = vmatmul.mubr.bf16.gmra.mxu0 %v372
      %v490 = vpop.f32.mrf.mxu0
      %v491 = vadd.f32 %v265, %v490
      %v492 = vpop.f32.mrf.mxu0
      %v493 = vpop.f32.mrf.mxu0
      %v494 = vadd.f32 %v265, %v493
      %v495 = vpop.f32.mrf.mxu0
      %496 = vmatprep.mubr.bf16.mxu0 0
      %497 = vmatmul.mubr.bf16.gmra.mxu0 %v375
      %v498 = vpop.f32.mrf.mxu0
      %v499 = vadd.f32 %v265, %v498
      %v500 = vpop.f32.mrf.mxu0
      %v501 = vpop.f32.mrf.mxu0
      %v502 = vadd.f32 %v265, %v501
      %v503 = vpop.f32.mrf.mxu0
      %504 = vmatprep.mubr.bf16.mxu0 0
      %505 = vmatmul.mubr.bf16.gmra.mxu0 %v378
      %v506 = vpop.f32.mrf.mxu0
      %v507 = vadd.f32 %v265, %v506
      %v508 = vpop.f32.mrf.mxu0
      %v509 = vpop.f32.mrf.mxu0
      %v510 = vadd.f32 %v265, %v509
      %v511 = vpop.f32.mrf.mxu0
      %512 = vmatprep.mubr.bf16.mxu0 0
      %513 = vmatmul.mubr.bf16.gmra.mxu0 %v381
      %v514 = vpop.f32.mrf.mxu0
      %v515 = vadd.f32 %v265, %v514
      %v516 = vpop.f32.mrf.mxu0
      %v517 = vpop.f32.mrf.mxu0
      %v518 = vadd.f32 %v265, %v517
      %v519 = vpop.f32.mrf.mxu0
      %520 = vmatprep.mubr.bf16.mxu0 0
      %521 = vmatmul.mubr.bf16.gmra.mxu0 %v384
      %v522 = vpop.f32.mrf.mxu0
      %v523 = vadd.f32 %v265, %v522
      %v524 = vpop.f32.mrf.mxu0
      %v525 = vpop.f32.mrf.mxu0
      %v526 = vadd.f32 %v265, %v525
      %v527 = vpop.f32.mrf.mxu0
      %528 = vmatprep.mubr.bf16.mxu0 0
      %529 = vmatmul.mubr.bf16.gmra.mxu0 %v387
      %v530 = vpop.f32.mrf.mxu0
      %v531 = vadd.f32 %v265, %v530
      %v532 = vpop.f32.mrf.mxu0
      %v533 = vpop.f32.mrf.mxu0
      %v534 = vadd.f32 %v265, %v533
      %v535 = vpop.f32.mrf.mxu0
      %536 = vmatprep.mubr.bf16.mxu0 0
      %537 = vmatmul.mubr.bf16.gmra.mxu0 %v390
      %v538 = vpop.f32.mrf.mxu0
      %v539 = vadd.f32 %v265, %v538
      %v540 = vpop.f32.mrf.mxu0
      %v541 = vpop.f32.mrf.mxu0
      %v542 = vadd.f32 %v265, %v541
      %v543 = vpop.f32.mrf.mxu0
      %544 = vmatprep.mubr.bf16.mxu0 0
      %545 = vmatmul.mubr.bf16.gmra.mxu0 %v393
      %v546 = vpop.f32.mrf.mxu0
      %v547 = vadd.f32 %v265, %v546
      %v548 = vpop.f32.mrf.mxu0
      %v549 = vpop.f32.mrf.mxu0
      %v550 = vadd.f32 %v265, %v549
      %v551 = vpop.f32.mrf.mxu0
      %552 = vmatprep.mubr.bf16.mxu0 0
      %553 = vmatmul.mubr.bf16.gmra.mxu0 %v396
      %v554 = vpop.f32.mrf.mxu0
      %v555 = vadd.f32 %v265, %v554
      %v556 = vpop.f32.mrf.mxu0
      %v557 = vpop.f32.mrf.mxu0
      %v558 = vadd.f32 %v265, %v557
      %v559 = vpop.f32.mrf.mxu0
      %560 = vmatprep.mubr.bf16.mxu0 0
      %561 = vmatmul.mubr.bf16.gmra.mxu0 %v399
      %v562 = vpop.f32.mrf.mxu0
      %v563 = vadd.f32 %v265, %v562
      %v564 = vpop.f32.mrf.mxu0
      %v565 = vpop.f32.mrf.mxu0
      %v566 = vadd.f32 %v265, %v565
      %v567 = vpop.f32.mrf.mxu0
      %568 = vdwg.mxu0
      %v569 = vmax.f32 %v443, 0.0
      %v570 = vmax.f32 %v446, 0.0
      %v571 = vmax.f32 %v451, 0.0
      %v572 = vmax.f32 %v454, 0.0
      %v573 = vmax.f32 %v459, 0.0
      %v574 = vmax.f32 %v462, 0.0
      %v575 = vmax.f32 %v467, 0.0
      %v576 = vmax.f32 %v470, 0.0
      %v577 = vmax.f32 %v475, 0.0
      %v578 = vmax.f32 %v478, 0.0
      %v579 = vmax.f32 %v483, 0.0
      %v580 = vmax.f32 %v486, 0.0
      %v581 = vmax.f32 %v491, 0.0
      %v582 = vmax.f32 %v494, 0.0
      %v583 = vmax.f32 %v499, 0.0
      %v584 = vmax.f32 %v502, 0.0
      %v585 = vmax.f32 %v507, 0.0
      %v586 = vmax.f32 %v510, 0.0
      %v587 = vmax.f32 %v515, 0.0
      %v588 = vmax.f32 %v518, 0.0
      %v589 = vmax.f32 %v523, 0.0
      %v590 = vmax.f32 %v526, 0.0
      %v591 = vmax.f32 %v531, 0.0
      %v592 = vmax.f32 %v534, 0.0
      %v593 = vmax.f32 %v539, 0.0
      %v594 = vmax.f32 %v542, 0.0
      %v595 = vmax.f32 %v547, 0.0
      %v596 = vmax.f32 %v550, 0.0
      %v597 = vmax.f32 %v555, 0.0
      %v598 = vmax.f32 %v558, 0.0
      %v599 = vmax.f32 %v563, 0.0
      %v600 = vmax.f32 %v566, 0.0
      %vm601 = vcmask 523264
      %602 = vst.msk [vmem:[#allocation2] sm:$0xff] %vm601, 0.0
      %603 = vst.msk [vmem:[#allocation2 + $0x8] sm:$0xff] %vm601, 0.0
      %vm604 = vcmask 517120
      %605 = vst.msk [vmem:[#allocation2 + $0x10] sm:$0x3] %vm604, 0.0
      %s606 = scalar_lea.vmem [#allocation2], 408
      %607 = vst.msk [vmem:[%s606] sm:$0xff] %vm601, 0.0
      %608 = vst.msk [vmem:[%s606 + $0x8] sm:$0xff] %vm601, 0.0
      %609 = vst.msk [vmem:[%s606 + $0x10] sm:$0x3] %vm604, 0.0
      %vm610 = vcmask 516096
      %611 = vst.msk [vmem:[#allocation2] sm:$0x1] %vm610, 0.0
      %612 = vst.msk [vmem:[#allocation2 + $0x18] sm:$0x1] %vm610, 0.0
      %613 = vst.msk [vmem:[#allocation2 + $0x30] sm:$0x1] %vm610, 0.0
      %614 = vst.msk [vmem:[#allocation2 + $0x48] sm:$0x1] %vm610, 0.0
      %615 = vst.msk [vmem:[#allocation2 + $0x60] sm:$0x1] %vm610, 0.0
      %616 = vst.msk [vmem:[#allocation2 + $0x78] sm:$0x1] %vm610, 0.0
      %617 = vst.msk [vmem:[#allocation2 + $0x90] sm:$0x1] %vm610, 0.0
      %618 = vst.msk [vmem:[#allocation2 + $0xa8] sm:$0x1] %vm610, 0.0
      %619 = vst.msk [vmem:[#allocation2 + $0xc0] sm:$0x1] %vm610, 0.0
      %620 = vst.msk [vmem:[#allocation2 + $0xd8] sm:$0x1] %vm610, 0.0
      %621 = vst.msk [vmem:[#allocation2 + $0xf0] sm:$0x1] %vm610, 0.0
      %622 = vst.msk [vmem:[#allocation2 + $0x108] sm:$0x1] %vm610, 0.0
      %623 = vst.msk [vmem:[#allocation2 + $0x120] sm:$0x1] %vm610, 0.0
      %624 = vst.msk [vmem:[#allocation2 + $0x138] sm:$0x1] %vm610, 0.0
      %625 = vst.msk [vmem:[#allocation2 + $0x150] sm:$0x1] %vm610, 0.0
      %626 = vst.msk [vmem:[#allocation2 + $0x168] sm:$0x1] %vm610, 0.0
      %627 = vst.msk [vmem:[#allocation2 + $0x180] sm:$0x1] %vm610, 0.0
      %628 = vst.msk [vmem:[#allocation2 + $0x198] sm:$0x1] %vm610, 0.0
      %629 = vst.msk [vmem:[#allocation2 + $0x11] sm:$0x1] %vm610, 0.0
      %630 = vst.msk [vmem:[#allocation2 + $0x29] sm:$0x1] %vm610, 0.0
      %631 = vst.msk [vmem:[#allocation2 + $0x41] sm:$0x1] %vm610, 0.0
      %632 = vst.msk [vmem:[#allocation2 + $0x59] sm:$0x1] %vm610, 0.0
      %633 = vst.msk [vmem:[#allocation2 + $0x71] sm:$0x1] %vm610, 0.0
      %634 = vst.msk [vmem:[#allocation2 + $0x89] sm:$0x1] %vm610, 0.0
      %635 = vst.msk [vmem:[#allocation2 + $0xa1] sm:$0x1] %vm610, 0.0
      %636 = vst.msk [vmem:[#allocation2 + $0xb9] sm:$0x1] %vm610, 0.0
      %637 = vst.msk [vmem:[#allocation2 + $0xd1] sm:$0x1] %vm610, 0.0
      %638 = vst.msk [vmem:[#allocation2 + $0xe9] sm:$0x1] %vm610, 0.0
      %639 = vst.msk [vmem:[#allocation2 + $0x101] sm:$0x1] %vm610, 0.0
      %640 = vst.msk [vmem:[#allocation2 + $0x119] sm:$0x1] %vm610, 0.0
      %641 = vst.msk [vmem:[#allocation2 + $0x131] sm:$0x1] %vm610, 0.0
      %642 = vst.msk [vmem:[#allocation2 + $0x149] sm:$0x1] %vm610, 0.0
      %643 = vst.msk [vmem:[#allocation2 + $0x161] sm:$0x1] %vm610, 0.0
      %644 = vst.msk [vmem:[#allocation2 + $0x179] sm:$0x1] %vm610, 0.0
      %645 = vst.msk [vmem:[#allocation2 + $0x191] sm:$0x1] %vm610, 0.0
      %646 = vst.msk [vmem:[#allocation2 + $0x1a9] sm:$0x1] %vm610, 0.0
      %s647 = scalar_lea.vmem [#allocation2], 24
      %648 = vst.msk [vmem:[%s647 + $0x1] sm:$0xff] %vm601, %v569
      %649 = vst.msk [vmem:[%s647 + $0x9] sm:$0xff] %vm601, %v570
      %650 = vst.msk [vmem:[%s647 + $0x19] sm:$0xff] %vm601, %v571
      %651 = vst.msk [vmem:[%s647 + $0x21] sm:$0xff] %vm601, %v572
      %652 = vst.msk [vmem:[%s647 + $0x31] sm:$0xff] %vm601, %v573
      %653 = vst.msk [vmem:[%s647 + $0x39] sm:$0xff] %vm601, %v574
      %654 = vst.msk [vmem:[%s647 + $0x49] sm:$0xff] %vm601, %v575
      %655 = vst.msk [vmem:[%s647 + $0x51] sm:$0xff] %vm601, %v576
      %656 = vst.msk [vmem:[%s647 + $0x61] sm:$0xff] %vm601, %v577
      %657 = vst.msk [vmem:[%s647 + $0x69] sm:$0xff] %vm601, %v578
      %658 = vst.msk [vmem:[%s647 + $0x79] sm:$0xff] %vm601, %v579
      %659 = vst.msk [vmem:[%s647 + $0x81] sm:$0xff] %vm601, %v580
      %660 = vst.msk [vmem:[%s647 + $0x91] sm:$0xff] %vm601, %v581
      %661 = vst.msk [vmem:[%s647 + $0x99] sm:$0xff] %vm601, %v582
      %662 = vst.msk [vmem:[%s647 + $0xa9] sm:$0xff] %vm601, %v583
      %663 = vst.msk [vmem:[%s647 + $0xb1] sm:$0xff] %vm601, %v584
      %664 = vst.msk [vmem:[%s647 + $0xc1] sm:$0xff] %vm601, %v585
      %665 = vst.msk [vmem:[%s647 + $0xc9] sm:$0xff] %vm601, %v586
      %666 = vst.msk [vmem:[%s647 + $0xd9] sm:$0xff] %vm601, %v587
      %667 = vst.msk [vmem:[%s647 + $0xe1] sm:$0xff] %vm601, %v588
      %668 = vst.msk [vmem:[%s647 + $0xf1] sm:$0xff] %vm601, %v589
      %669 = vst.msk [vmem:[%s647 + $0xf9] sm:$0xff] %vm601, %v590
      %670 = vst.msk [vmem:[%s647 + $0x109] sm:$0xff] %vm601, %v591
      %671 = vst.msk [vmem:[%s647 + $0x111] sm:$0xff] %vm601, %v592
      %672 = vst.msk [vmem:[%s647 + $0x121] sm:$0xff] %vm601, %v593
      %673 = vst.msk [vmem:[%s647 + $0x129] sm:$0xff] %vm601, %v594
      %674 = vst.msk [vmem:[%s647 + $0x139] sm:$0xff] %vm601, %v595
      %675 = vst.msk [vmem:[%s647 + $0x141] sm:$0xff] %vm601, %v596
      %676 = vst.msk [vmem:[%s647 + $0x151] sm:$0xff] %vm601, %v597
      %677 = vst.msk [vmem:[%s647 + $0x159] sm:$0xff] %vm601, %v598
      %678 = vst.msk [vmem:[%s647 + $0x169] sm:$0xff] %vm601, %v599
      %679 = vst.msk [vmem:[%s647 + $0x171] sm:$0xff] %vm601, %v600
      %v680 = vld [vmem:[#allocation2] sm:$0xff]
      %v681 = vld [vmem:[#allocation2 + $0x8] sm:$0xff]
      %v682 = vld [vmem:[#allocation2 + $0x18] sm:$0xff]
      %v683 = vld [vmem:[#allocation2 + $0x20] sm:$0xff]
      %v684 = vld [vmem:[#allocation2 + $0x30] sm:$0xff]
      %v685 = vld [vmem:[#allocation2 + $0x38] sm:$0xff]
      %v686 = vld [vmem:[#allocation2 + $0x48] sm:$0xff]
      %v687 = vld [vmem:[#allocation2 + $0x50] sm:$0xff]
      %v688 = vld [vmem:[#allocation2 + $0x60] sm:$0xff]
      %v689 = vld [vmem:[#allocation2 + $0x68] sm:$0xff]
      %v690 = vld [vmem:[#allocation2 + $0x78] sm:$0xff]
      %v691 = vld [vmem:[#allocation2 + $0x80] sm:$0xff]
      %v692 = vld [vmem:[#allocation2 + $0x90] sm:$0xff]
      %v693 = vld [vmem:[#allocation2 + $0x98] sm:$0xff]
      %v694 = vld [vmem:[#allocation2 + $0xa8] sm:$0xff]
      %v695 = vld [vmem:[#allocation2 + $0xb0] sm:$0xff]
      %v696 = vld [vmem:[#allocation2 + $0xc0] sm:$0xff]
      %v697 = vld [vmem:[#allocation2 + $0xc8] sm:$0xff]
      %v698 = vld [vmem:[#allocation2 + $0xd8] sm:$0xff]
      %v699 = vld [vmem:[#allocation2 + $0xe0] sm:$0xff]
      %v700 = vld [vmem:[#allocation2 + $0xf0] sm:$0xff]
      %v701 = vld [vmem:[#allocation2 + $0xf8] sm:$0xff]
      %v702 = vld [vmem:[#allocation2 + $0x108] sm:$0xff]
      %v703 = vld [vmem:[#allocation2 + $0x110] sm:$0xff]
      %v704 = vld [vmem:[#allocation2 + $0x120] sm:$0xff]
      %v705 = vld [vmem:[#allocation2 + $0x128] sm:$0xff]
      %v706 = vld [vmem:[#allocation2 + $0x138] sm:$0xff]
      %v707 = vld [vmem:[#allocation2 + $0x140] sm:$0xff]
      %v708 = vld [vmem:[#allocation2 + $0x150] sm:$0xff]
      %v709 = vld [vmem:[#allocation2 + $0x158] sm:$0xff]
      %v710 = vld [vmem:[#allocation2 + $0x168] sm:$0xff]
      %v711 = vld [vmem:[#allocation2 + $0x170] sm:$0xff]
      %v712 = vpack.c.bf16 %v681, %v680
      %v713 = vpack.c.bf16 %v683, %v682
      %v714 = vpack.c.bf16 %v685, %v684
      %v715 = vpack.c.bf16 %v687, %v686
      %v716 = vpack.c.bf16 %v689, %v688
      %v717 = vpack.c.bf16 %v691, %v690
      %v718 = vpack.c.bf16 %v693, %v692
      %v719 = vpack.c.bf16 %v695, %v694
      %v720 = vpack.c.bf16 %v697, %v696
      %v721 = vpack.c.bf16 %v699, %v698
      %v722 = vpack.c.bf16 %v701, %v700
      %v723 = vpack.c.bf16 %v703, %v702
      %v724 = vpack.c.bf16 %v705, %v704
      %v725 = vpack.c.bf16 %v707, %v706
      %v726 = vpack.c.bf16 %v709, %v708
      %v727 = vpack.c.bf16 %v711, %v710
      %v744 = vunpack.c.l.b16 %v712
      %v745 = vunpack.c.h.b16 %v712
      %v746 = vunpack.c.l.b16 %v713
      %v747 = vunpack.c.h.b16 %v713
      %v748 = vunpack.c.l.b16 %v714
      %v749 = vunpack.c.h.b16 %v714
      %v750 = vunpack.c.l.b16 %v715
      %v751 = vunpack.c.h.b16 %v715
      %v752 = vunpack.c.l.b16 %v716
      %v753 = vunpack.c.h.b16 %v716
      %v754 = vunpack.c.l.b16 %v717
      %v755 = vunpack.c.h.b16 %v717
      %v756 = vunpack.c.l.b16 %v718
      %v757 = vunpack.c.h.b16 %v718
      %v758 = vunpack.c.l.b16 %v719
      %v759 = vunpack.c.h.b16 %v719
      %v760 = vunpack.c.l.b16 %v720
      %v761 = vunpack.c.h.b16 %v720
      %v762 = vunpack.c.l.b16 %v721
      %v763 = vunpack.c.h.b16 %v721
      %v764 = vunpack.c.l.b16 %v722
      %v765 = vunpack.c.h.b16 %v722
      %v766 = vunpack.c.l.b16 %v723
      %v767 = vunpack.c.h.b16 %v723
      %v768 = vunpack.c.l.b16 %v724
      %v769 = vunpack.c.h.b16 %v724
      %v770 = vunpack.c.l.b16 %v725
      %v771 = vunpack.c.h.b16 %v725
      %v772 = vunpack.c.l.b16 %v726
      %v773 = vunpack.c.h.b16 %v726
      %v774 = vunpack.c.l.b16 %v727
      %v775 = vunpack.c.h.b16 %v727
      %v776 = vpack.c.b16 %v744, %v744
      %v777 = vpack.c.b16 %v745, %v745
      %v778 = vpack.c.b16 %v746, %v746
      %v779 = vpack.c.b16 %v747, %v747
      %v780 = vpack.c.b16 %v748, %v748
      %v781 = vpack.c.b16 %v749, %v749
      %v782 = vpack.c.b16 %v750, %v750
      %v783 = vpack.c.b16 %v751, %v751
      %v784 = vpack.c.b16 %v752, %v752
      %v785 = vpack.c.b16 %v753, %v753
      %v786 = vpack.c.b16 %v754, %v754
      %v787 = vpack.c.b16 %v755, %v755
      %v788 = vpack.c.b16 %v756, %v756
      %v789 = vpack.c.b16 %v757, %v757
      %v790 = vpack.c.b16 %v758, %v758
      %v791 = vpack.c.b16 %v759, %v759
      %v792 = vpack.c.b16 %v760, %v760
      %v793 = vpack.c.b16 %v761, %v761
      %v794 = vpack.c.b16 %v762, %v762
      %v795 = vpack.c.b16 %v763, %v763
      %v796 = vpack.c.b16 %v764, %v764
      %v797 = vpack.c.b16 %v765, %v765
      %v798 = vpack.c.b16 %v766, %v766
      %v799 = vpack.c.b16 %v767, %v767
      %v800 = vpack.c.b16 %v768, %v768
      %v801 = vpack.c.b16 %v769, %v769
      %v802 = vpack.c.b16 %v770, %v770
      %v803 = vpack.c.b16 %v771, %v771
      %v804 = vpack.c.b16 %v772, %v772
      %v805 = vpack.c.b16 %v773, %v773
      %v806 = vpack.c.b16 %v774, %v774
      %v807 = vpack.c.b16 %v775, %v775
      %vm840 = vcmask 519168
      %841 = vst.msk [vmem:[#allocation3] sm:$0xf] %vm840, %v776
      %842 = vst.msk [vmem:[#allocation3 + $0x14] sm:$0xf] %vm840, %v777
      %843 = vst.msk [vmem:[#allocation3 + $0x28] sm:$0xf] %vm840, %v778
      %844 = vst.msk [vmem:[#allocation3 + $0x3c] sm:$0xf] %vm840, %v779
      %845 = vst.msk [vmem:[#allocation3 + $0x50] sm:$0xf] %vm840, %v780
      %846 = vst.msk [vmem:[#allocation3 + $0x64] sm:$0xf] %vm840, %v781
      %847 = vst.msk [vmem:[#allocation3 + $0x78] sm:$0xf] %vm840, %v782
      %848 = vst.msk [vmem:[#allocation3 + $0x8c] sm:$0xf] %vm840, %v783
      %849 = vst.msk [vmem:[#allocation3 + $0xa0] sm:$0xf] %vm840, %v784
      %850 = vst.msk [vmem:[#allocation3 + $0xb4] sm:$0xf] %vm840, %v785
      %851 = vst.msk [vmem:[#allocation3 + $0xc8] sm:$0xf] %vm840, %v786
      %852 = vst.msk [vmem:[#allocation3 + $0xdc] sm:$0xf] %vm840, %v787
      %853 = vst.msk [vmem:[#allocation3 + $0xf0] sm:$0xf] %vm840, %v788
      %854 = vst.msk [vmem:[#allocation3 + $0x104] sm:$0xf] %vm840, %v789
      %855 = vst.msk [vmem:[#allocation3 + $0x118] sm:$0xf] %vm840, %v790
      %856 = vst.msk [vmem:[#allocation3 + $0x12c] sm:$0xf] %vm840, %v791
      %857 = vst.msk [vmem:[#allocation3 + $0x140] sm:$0xf] %vm840, %v792
      %858 = vst.msk [vmem:[#allocation3 + $0x154] sm:$0xf] %vm840, %v793
      %859 = vst.msk [vmem:[#allocation3 + $0x168] sm:$0xf] %vm840, %v794
      %860 = vst.msk [vmem:[#allocation3 + $0x17c] sm:$0xf] %vm840, %v795
      %861 = vst.msk [vmem:[#allocation3 + $0x190] sm:$0xf] %vm840, %v796
      %862 = vst.msk [vmem:[#allocation3 + $0x1a4] sm:$0xf] %vm840, %v797
      %863 = vst.msk [vmem:[#allocation3 + $0x1b8] sm:$0xf] %vm840, %v798
      %864 = vst.msk [vmem:[#allocation3 + $0x1cc] sm:$0xf] %vm840, %v799
      %865 = vst.msk [vmem:[#allocation3 + $0x1e0] sm:$0xf] %vm840, %v800
      %866 = vst.msk [vmem:[#allocation3 + $0x1f4] sm:$0xf] %vm840, %v801
      %867 = vst.msk [vmem:[#allocation3 + $0x208] sm:$0xf] %vm840, %v802
      %868 = vst.msk [vmem:[#allocation3 + $0x21c] sm:$0xf] %vm840, %v803
      %869 = vst.msk [vmem:[#allocation3 + $0x230] sm:$0xf] %vm840, %v804
      %870 = vst.msk [vmem:[#allocation3 + $0x244] sm:$0xf] %vm840, %v805
      %871 = vst.msk [vmem:[#allocation3 + $0x258] sm:$0xf] %vm840, %v806
      %872 = vst.msk [vmem:[#allocation3 + $0x26c] sm:$0xf] %vm840, %v807
      %v873 = vld [vmem:[#allocation2 + $0x1] sm:$0xff]
      %v874 = vld [vmem:[#allocation2 + $0x9] sm:$0xff]
      %v875 = vld [vmem:[#allocation2 + $0x19] sm:$0xff]
      %v876 = vld [vmem:[#allocation2 + $0x21] sm:$0xff]
      %v877 = vld [vmem:[#allocation2 + $0x31] sm:$0xff]
      %v878 = vld [vmem:[#allocation2 + $0x39] sm:$0xff]
      %v879 = vld [vmem:[#allocation2 + $0x49] sm:$0xff]
      %v880 = vld [vmem:[#allocation2 + $0x51] sm:$0xff]
      %v881 = vld [vmem:[#allocation2 + $0x61] sm:$0xff]
      %v882 = vld [vmem:[#allocation2 + $0x69] sm:$0xff]
      %v883 = vld [vmem:[#allocation2 + $0x79] sm:$0xff]
      %v884 = vld [vmem:[#allocation2 + $0x81] sm:$0xff]
      %v885 = vld [vmem:[#allocation2 + $0x91] sm:$0xff]
      %v886 = vld [vmem:[#allocation2 + $0x99] sm:$0xff]
      %v887 = vld [vmem:[#allocation2 + $0xa9] sm:$0xff]
      %v888 = vld [vmem:[#allocation2 + $0xb1] sm:$0xff]
      %v889 = vld [vmem:[#allocation2 + $0xc1] sm:$0xff]
      %v890 = vld [vmem:[#allocation2 + $0xc9] sm:$0xff]
      %v891 = vld [vmem:[#allocation2 + $0xd9] sm:$0xff]
      %v892 = vld [vmem:[#allocation2 + $0xe1] sm:$0xff]
      %v893 = vld [vmem:[#allocation2 + $0xf1] sm:$0xff]
      %v894 = vld [vmem:[#allocation2 + $0xf9] sm:$0xff]
      %v895 = vld [vmem:[#allocation2 + $0x109] sm:$0xff]
      %v896 = vld [vmem:[#allocation2 + $0x111] sm:$0xff]
      %v897 = vld [vmem:[#allocation2 + $0x121] sm:$0xff]
      %v898 = vld [vmem:[#allocation2 + $0x129] sm:$0xff]
      %v899 = vld [vmem:[#allocation2 + $0x139] sm:$0xff]
      %v900 = vld [vmem:[#allocation2 + $0x141] sm:$0xff]
      %v901 = vld [vmem:[#allocation2 + $0x151] sm:$0xff]
      %v902 = vld [vmem:[#allocation2 + $0x159] sm:$0xff]
      %v903 = vld [vmem:[#allocation2 + $0x169] sm:$0xff]
      %v904 = vld [vmem:[#allocation2 + $0x171] sm:$0xff]
      %v905 = vpack.c.bf16 %v874, %v873
      %v906 = vpack.c.bf16 %v876, %v875
      %v907 = vpack.c.bf16 %v878, %v877
      %v908 = vpack.c.bf16 %v880, %v879
      %v909 = vpack.c.bf16 %v882, %v881
      %v910 = vpack.c.bf16 %v884, %v883
      %v911 = vpack.c.bf16 %v886, %v885
      %v912 = vpack.c.bf16 %v888, %v887
      %v913 = vpack.c.bf16 %v890, %v889
      %v914 = vpack.c.bf16 %v892, %v891
      %v915 = vpack.c.bf16 %v894, %v893
      %v916 = vpack.c.bf16 %v896, %v895
      %v917 = vpack.c.bf16 %v898, %v897
      %v918 = vpack.c.bf16 %v900, %v899
      %v919 = vpack.c.bf16 %v902, %v901
      %v920 = vpack.c.bf16 %v904, %v903
      %v937 = vunpack.c.l.b16 %v905
      %v938 = vunpack.c.h.b16 %v905
      %v939 = vunpack.c.l.b16 %v906
      %v940 = vunpack.c.h.b16 %v906
      %v941 = vunpack.c.l.b16 %v907
      %v942 = vunpack.c.h.b16 %v907
      %v943 = vunpack.c.l.b16 %v908
      %v944 = vunpack.c.h.b16 %v908
      %v945 = vunpack.c.l.b16 %v909
      %v946 = vunpack.c.h.b16 %v909
      %v947 = vunpack.c.l.b16 %v910
      %v948 = vunpack.c.h.b16 %v910
      %v949 = vunpack.c.l.b16 %v911
      %v950 = vunpack.c.h.b16 %v911
      %v951 = vunpack.c.l.b16 %v912
      %v952 = vunpack.c.h.b16 %v912
      %v953 = vunpack.c.l.b16 %v913
      %v954 = vunpack.c.h.b16 %v913
      %v955 = vunpack.c.l.b16 %v914
      %v956 = vunpack.c.h.b16 %v914
      %v957 = vunpack.c.l.b16 %v915
      %v958 = vunpack.c.h.b16 %v915
      %v959 = vunpack.c.l.b16 %v916
      %v960 = vunpack.c.h.b16 %v916
      %v961 = vunpack.c.l.b16 %v917
      %v962 = vunpack.c.h.b16 %v917
      %v963 = vunpack.c.l.b16 %v918
      %v964 = vunpack.c.h.b16 %v918
      %v965 = vunpack.c.l.b16 %v919
      %v966 = vunpack.c.h.b16 %v919
      %v967 = vunpack.c.l.b16 %v920
      %v968 = vunpack.c.h.b16 %v920
      %v969 = vpack.c.b16 %v937, %v937
      %v970 = vpack.c.b16 %v938, %v938
      %v971 = vpack.c.b16 %v939, %v939
      %v972 = vpack.c.b16 %v940, %v940
      %v973 = vpack.c.b16 %v941, %v941
      %v974 = vpack.c.b16 %v942, %v942
      %v975 = vpack.c.b16 %v943, %v943
      %v976 = vpack.c.b16 %v944, %v944
      %v977 = vpack.c.b16 %v945, %v945
      %v978 = vpack.c.b16 %v946, %v946
      %v979 = vpack.c.b16 %v947, %v947
      %v980 = vpack.c.b16 %v948, %v948
      %v981 = vpack.c.b16 %v949, %v949
      %v982 = vpack.c.b16 %v950, %v950
      %v983 = vpack.c.b16 %v951, %v951
      %v984 = vpack.c.b16 %v952, %v952
      %v985 = vpack.c.b16 %v953, %v953
      %v986 = vpack.c.b16 %v954, %v954
      %v987 = vpack.c.b16 %v955, %v955
      %v988 = vpack.c.b16 %v956, %v956
      %v989 = vpack.c.b16 %v957, %v957
      %v990 = vpack.c.b16 %v958, %v958
      %v991 = vpack.c.b16 %v959, %v959
      %v992 = vpack.c.b16 %v960, %v960
      %v993 = vpack.c.b16 %v961, %v961
      %v994 = vpack.c.b16 %v962, %v962
      %v995 = vpack.c.b16 %v963, %v963
      %v996 = vpack.c.b16 %v964, %v964
      %v997 = vpack.c.b16 %v965, %v965
      %v998 = vpack.c.b16 %v966, %v966
      %v999 = vpack.c.b16 %v967, %v967
      %v1000 = vpack.c.b16 %v968, %v968
      %1001 = vrot.lane.b32.xlu0 %v969, 64
      %v1002 = vpop.permute.xlu0 %1001
      %1003 = vrot.lane.b32.xlu0 %v970, 64
      %v1004 = vpop.permute.xlu0 %1003
      %1005 = vrot.lane.b32.xlu0 %v971, 64
      %v1006 = vpop.permute.xlu0 %1005
      %1007 = vrot.lane.b32.xlu0 %v972, 64
      %v1008 = vpop.permute.xlu0 %1007
      %1009 = vrot.lane.b32.xlu0 %v973, 64
      %v1010 = vpop.permute.xlu0 %1009
      %1011 = vrot.lane.b32.xlu0 %v974, 64
      %v1012 = vpop.permute.xlu0 %1011
      %1013 = vrot.lane.b32.xlu0 %v975, 64
      %v1014 = vpop.permute.xlu0 %1013
      %1015 = vrot.lane.b32.xlu0 %v976, 64
      %v1016 = vpop.permute.xlu0 %1015
      %1017 = vrot.lane.b32.xlu0 %v977, 64
      %v1018 = vpop.permute.xlu0 %1017
      %1019 = vrot.lane.b32.xlu0 %v978, 64
      %v1020 = vpop.permute.xlu0 %1019
      %1021 = vrot.lane.b32.xlu0 %v979, 64
      %v1022 = vpop.permute.xlu0 %1021
      %1023 = vrot.lane.b32.xlu0 %v980, 64
      %v1024 = vpop.permute.xlu0 %1023
      %1025 = vrot.lane.b32.xlu0 %v981, 64
      %v1026 = vpop.permute.xlu0 %1025
      %1027 = vrot.lane.b32.xlu0 %v982, 64
      %v1028 = vpop.permute.xlu0 %1027
      %1029 = vrot.lane.b32.xlu0 %v983, 64
      %v1030 = vpop.permute.xlu0 %1029
      %1031 = vrot.lane.b32.xlu0 %v984, 64
      %v1032 = vpop.permute.xlu0 %1031
      %1033 = vrot.lane.b32.xlu0 %v985, 64
      %v1034 = vpop.permute.xlu0 %1033
      %1035 = vrot.lane.b32.xlu0 %v986, 64
      %v1036 = vpop.permute.xlu0 %1035
      %1037 = vrot.lane.b32.xlu0 %v987, 64
      %v1038 = vpop.permute.xlu0 %1037
      %1039 = vrot.lane.b32.xlu0 %v988, 64
      %v1040 = vpop.permute.xlu0 %1039
      %1041 = vrot.lane.b32.xlu0 %v989, 64
      %v1042 = vpop.permute.xlu0 %1041
      %1043 = vrot.lane.b32.xlu0 %v990, 64
      %v1044 = vpop.permute.xlu0 %1043
      %1045 = vrot.lane.b32.xlu0 %v991, 64
      %v1046 = vpop.permute.xlu0 %1045
      %1047 = vrot.lane.b32.xlu0 %v992, 64
      %v1048 = vpop.permute.xlu0 %1047
      %1049 = vrot.lane.b32.xlu0 %v993, 64
      %v1050 = vpop.permute.xlu0 %1049
      %1051 = vrot.lane.b32.xlu0 %v994, 64
      %v1052 = vpop.permute.xlu0 %1051
      %1053 = vrot.lane.b32.xlu0 %v995, 64
      %v1054 = vpop.permute.xlu0 %1053
      %1055 = vrot.lane.b32.xlu0 %v996, 64
      %v1056 = vpop.permute.xlu0 %1055
      %1057 = vrot.lane.b32.xlu0 %v997, 64
      %v1058 = vpop.permute.xlu0 %1057
      %1059 = vrot.lane.b32.xlu0 %v998, 64
      %v1060 = vpop.permute.xlu0 %1059
      %1061 = vrot.lane.b32.xlu0 %v999, 64
      %v1062 = vpop.permute.xlu0 %1061
      %1063 = vrot.lane.b32.xlu0 %v1000, 64
      %v1064 = vpop.permute.xlu0 %1063
      %vm1097 = vcmask 1043968
      %1098 = vst.msk [vmem:[#allocation3] sm:$0xf] %vm1097, %v1002
      %1099 = vst.msk [vmem:[#allocation3 + $0x14] sm:$0xf] %vm1097, %v1004
      %1100 = vst.msk [vmem:[#allocation3 + $0x28] sm:$0xf] %vm1097, %v1006
      %1101 = vst.msk [vmem:[#allocation3 + $0x3c] sm:$0xf] %vm1097, %v1008
      %1102 = vst.msk [vmem:[#allocation3 + $0x50] sm:$0xf] %vm1097, %v1010
      %1103 = vst.msk [vmem:[#allocation3 + $0x64] sm:$0xf] %vm1097, %v1012
      %1104 = vst.msk [vmem:[#allocation3 + $0x78] sm:$0xf] %vm1097, %v1014
      %1105 = vst.msk [vmem:[#allocation3 + $0x8c] sm:$0xf] %vm1097, %v1016
      %1106 = vst.msk [vmem:[#allocation3 + $0xa0] sm:$0xf] %vm1097, %v1018
      %1107 = vst.msk [vmem:[#allocation3 + $0xb4] sm:$0xf] %vm1097, %v1020
      %1108 = vst.msk [vmem:[#allocation3 + $0xc8] sm:$0xf] %vm1097, %v1022
      %1109 = vst.msk [vmem:[#allocation3 + $0xdc] sm:$0xf] %vm1097, %v1024
      %1110 = vst.msk [vmem:[#allocation3 + $0xf0] sm:$0xf] %vm1097, %v1026
      %1111 = vst.msk [vmem:[#allocation3 + $0x104] sm:$0xf] %vm1097, %v1028
      %1112 = vst.msk [vmem:[#allocation3 + $0x118] sm:$0xf] %vm1097, %v1030
      %1113 = vst.msk [vmem:[#allocation3 + $0x12c] sm:$0xf] %vm1097, %v1032
      %1114 = vst.msk [vmem:[#allocation3 + $0x140] sm:$0xf] %vm1097, %v1034
      %1115 = vst.msk [vmem:[#allocation3 + $0x154] sm:$0xf] %vm1097, %v1036
      %1116 = vst.msk [vmem:[#allocation3 + $0x168] sm:$0xf] %vm1097, %v1038
      %1117 = vst.msk [vmem:[#allocation3 + $0x17c] sm:$0xf] %vm1097, %v1040
      %1118 = vst.msk [vmem:[#allocation3 + $0x190] sm:$0xf] %vm1097, %v1042
      %1119 = vst.msk [vmem:[#allocation3 + $0x1a4] sm:$0xf] %vm1097, %v1044
      %1120 = vst.msk [vmem:[#allocation3 + $0x1b8] sm:$0xf] %vm1097, %v1046
      %1121 = vst.msk [vmem:[#allocation3 + $0x1cc] sm:$0xf] %vm1097, %v1048
      %1122 = vst.msk [vmem:[#allocation3 + $0x1e0] sm:$0xf] %vm1097, %v1050
      %1123 = vst.msk [vmem:[#allocation3 + $0x1f4] sm:$0xf] %vm1097, %v1052
      %1124 = vst.msk [vmem:[#allocation3 + $0x208] sm:$0xf] %vm1097, %v1054
      %1125 = vst.msk [vmem:[#allocation3 + $0x21c] sm:$0xf] %vm1097, %v1056
      %1126 = vst.msk [vmem:[#allocation3 + $0x230] sm:$0xf] %vm1097, %v1058
      %1127 = vst.msk [vmem:[#allocation3 + $0x244] sm:$0xf] %vm1097, %v1060
      %1128 = vst.msk [vmem:[#allocation3 + $0x258] sm:$0xf] %vm1097, %v1062
      %1129 = vst.msk [vmem:[#allocation3 + $0x26c] sm:$0xf] %vm1097, %v1064
      %v1130 = vld [vmem:[#allocation2 + $0x2] sm:$0xff]
      %v1131 = vld [vmem:[#allocation2 + $0xa] sm:$0xff]
      %v1132 = vld [vmem:[#allocation2 + $0x1a] sm:$0xff]
      %v1133 = vld [vmem:[#allocation2 + $0x22] sm:$0xff]
      %v1134 = vld [vmem:[#allocation2 + $0x32] sm:$0xff]
      %v1135 = vld [vmem:[#allocation2 + $0x3a] sm:$0xff]
      %v1136 = vld [vmem:[#allocation2 + $0x4a] sm:$0xff]
      %v1137 = vld [vmem:[#allocation2 + $0x52] sm:$0xff]
      %v1138 = vld [vmem:[#allocation2 + $0x62] sm:$0xff]
      %v1139 = vld [vmem:[#allocation2 + $0x6a] sm:$0xff]
      %v1140 = vld [vmem:[#allocation2 + $0x7a] sm:$0xff]
      %v1141 = vld [vmem:[#allocation2 + $0x82] sm:$0xff]
      %v1142 = vld [vmem:[#allocation2 + $0x92] sm:$0xff]
      %v1143 = vld [vmem:[#allocation2 + $0x9a] sm:$0xff]
      %v1144 = vld [vmem:[#allocation2 + $0xaa] sm:$0xff]
      %v1145 = vld [vmem:[#allocation2 + $0xb2] sm:$0xff]
      %v1146 = vld [vmem:[#allocation2 + $0xc2] sm:$0xff]
      %v1147 = vld [vmem:[#allocation2 + $0xca] sm:$0xff]
      %v1148 = vld [vmem:[#allocation2 + $0xda] sm:$0xff]
      %v1149 = vld [vmem:[#allocation2 + $0xe2] sm:$0xff]
      %v1150 = vld [vmem:[#allocation2 + $0xf2] sm:$0xff]
      %v1151 = vld [vmem:[#allocation2 + $0xfa] sm:$0xff]
      %v1152 = vld [vmem:[#allocation2 + $0x10a] sm:$0xff]
      %v1153 = vld [vmem:[#allocation2 + $0x112] sm:$0xff]
      %v1154 = vld [vmem:[#allocation2 + $0x122] sm:$0xff]
      %v1155 = vld [vmem:[#allocation2 + $0x12a] sm:$0xff]
      %v1156 = vld [vmem:[#allocation2 + $0x13a] sm:$0xff]
      %v1157 = vld [vmem:[#allocation2 + $0x142] sm:$0xff]
      %v1158 = vld [vmem:[#allocation2 + $0x152] sm:$0xff]
      %v1159 = vld [vmem:[#allocation2 + $0x15a] sm:$0xff]
      %v1160 = vld [vmem:[#allocation2 + $0x16a] sm:$0xff]
      %v1161 = vld [vmem:[#allocation2 + $0x172] sm:$0xff]
      %v1162 = vpack.c.bf16 %v1131, %v1130
      %v1163 = vpack.c.bf16 %v1133, %v1132
      %v1164 = vpack.c.bf16 %v1135, %v1134
      %v1165 = vpack.c.bf16 %v1137, %v1136
      %v1166 = vpack.c.bf16 %v1139, %v1138
      %v1167 = vpack.c.bf16 %v1141, %v1140
      %v1168 = vpack.c.bf16 %v1143, %v1142
      %v1169 = vpack.c.bf16 %v1145, %v1144
      %v1170 = vpack.c.bf16 %v1147, %v1146
      %v1171 = vpack.c.bf16 %v1149, %v1148
      %v1172 = vpack.c.bf16 %v1151, %v1150
      %v1173 = vpack.c.bf16 %v1153, %v1152
      %v1174 = vpack.c.bf16 %v1155, %v1154
      %v1175 = vpack.c.bf16 %v1157, %v1156
      %v1176 = vpack.c.bf16 %v1159, %v1158
      %v1177 = vpack.c.bf16 %v1161, %v1160
      %v1194 = vunpack.c.l.b16 %v1162
      %v1195 = vunpack.c.h.b16 %v1162
      %v1196 = vunpack.c.l.b16 %v1163
      %v1197 = vunpack.c.h.b16 %v1163
      %v1198 = vunpack.c.l.b16 %v1164
      %v1199 = vunpack.c.h.b16 %v1164
      %v1200 = vunpack.c.l.b16 %v1165
      %v1201 = vunpack.c.h.b16 %v1165
      %v1202 = vunpack.c.l.b16 %v1166
      %v1203 = vunpack.c.h.b16 %v1166
      %v1204 = vunpack.c.l.b16 %v1167
      %v1205 = vunpack.c.h.b16 %v1167
      %v1206 = vunpack.c.l.b16 %v1168
      %v1207 = vunpack.c.h.b16 %v1168
      %v1208 = vunpack.c.l.b16 %v1169
      %v1209 = vunpack.c.h.b16 %v1169
      %v1210 = vunpack.c.l.b16 %v1170
      %v1211 = vunpack.c.h.b16 %v1170
      %v1212 = vunpack.c.l.b16 %v1171
      %v1213 = vunpack.c.h.b16 %v1171
      %v1214 = vunpack.c.l.b16 %v1172
      %v1215 = vunpack.c.h.b16 %v1172
      %v1216 = vunpack.c.l.b16 %v1173
      %v1217 = vunpack.c.h.b16 %v1173
      %v1218 = vunpack.c.l.b16 %v1174
      %v1219 = vunpack.c.h.b16 %v1174
      %v1220 = vunpack.c.l.b16 %v1175
      %v1221 = vunpack.c.h.b16 %v1175
      %v1222 = vunpack.c.l.b16 %v1176
      %v1223 = vunpack.c.h.b16 %v1176
      %v1224 = vunpack.c.l.b16 %v1177
      %v1225 = vunpack.c.h.b16 %v1177
      %v1226 = vpack.c.b16 %v1194, %v1194
      %v1227 = vpack.c.b16 %v1195, %v1195
      %v1228 = vpack.c.b16 %v1196, %v1196
      %v1229 = vpack.c.b16 %v1197, %v1197
      %v1230 = vpack.c.b16 %v1198, %v1198
      %v1231 = vpack.c.b16 %v1199, %v1199
      %v1232 = vpack.c.b16 %v1200, %v1200
      %v1233 = vpack.c.b16 %v1201, %v1201
      %v1234 = vpack.c.b16 %v1202, %v1202
      %v1235 = vpack.c.b16 %v1203, %v1203
      %v1236 = vpack.c.b16 %v1204, %v1204
      %v1237 = vpack.c.b16 %v1205, %v1205
      %v1238 = vpack.c.b16 %v1206, %v1206
      %v1239 = vpack.c.b16 %v1207, %v1207
      %v1240 = vpack.c.b16 %v1208, %v1208
      %v1241 = vpack.c.b16 %v1209, %v1209
      %v1242 = vpack.c.b16 %v1210, %v1210
      %v1243 = vpack.c.b16 %v1211, %v1211
      %v1244 = vpack.c.b16 %v1212, %v1212
      %v1245 = vpack.c.b16 %v1213, %v1213
      %v1246 = vpack.c.b16 %v1214, %v1214
      %v1247 = vpack.c.b16 %v1215, %v1215
      %v1248 = vpack.c.b16 %v1216, %v1216
      %v1249 = vpack.c.b16 %v1217, %v1217
      %v1250 = vpack.c.b16 %v1218, %v1218
      %v1251 = vpack.c.b16 %v1219, %v1219
      %v1252 = vpack.c.b16 %v1220, %v1220
      %v1253 = vpack.c.b16 %v1221, %v1221
      %v1254 = vpack.c.b16 %v1222, %v1222
      %v1255 = vpack.c.b16 %v1223, %v1223
      %v1256 = vpack.c.b16 %v1224, %v1224
      %v1257 = vpack.c.b16 %v1225, %v1225
      %1290 = vst.msk [vmem:[#allocation3 + $0x4] sm:$0xf] %vm840, %v1226
      %1291 = vst.msk [vmem:[#allocation3 + $0x18] sm:$0xf] %vm840, %v1227
      %1292 = vst.msk [vmem:[#allocation3 + $0x2c] sm:$0xf] %vm840, %v1228
      %1293 = vst.msk [vmem:[#allocation3 + $0x40] sm:$0xf] %vm840, %v1229
      %1294 = vst.msk [vmem:[#allocation3 + $0x54] sm:$0xf] %vm840, %v1230
      %1295 = vst.msk [vmem:[#allocation3 + $0x68] sm:$0xf] %vm840, %v1231
      %1296 = vst.msk [vmem:[#allocation3 + $0x7c] sm:$0xf] %vm840, %v1232
      %1297 = vst.msk [vmem:[#allocation3 + $0x90] sm:$0xf] %vm840, %v1233
      %1298 = vst.msk [vmem:[#allocation3 + $0xa4] sm:$0xf] %vm840, %v1234
      %1299 = vst.msk [vmem:[#allocation3 + $0xb8] sm:$0xf] %vm840, %v1235
      %1300 = vst.msk [vmem:[#allocation3 + $0xcc] sm:$0xf] %vm840, %v1236
      %1301 = vst.msk [vmem:[#allocation3 + $0xe0] sm:$0xf] %vm840, %v1237
      %1302 = vst.msk [vmem:[#allocation3 + $0xf4] sm:$0xf] %vm840, %v1238
      %1303 = vst.msk [vmem:[#allocation3 + $0x108] sm:$0xf] %vm840, %v1239
      %1304 = vst.msk [vmem:[#allocation3 + $0x11c] sm:$0xf] %vm840, %v1240
      %1305 = vst.msk [vmem:[#allocation3 + $0x130] sm:$0xf] %vm840, %v1241
      %1306 = vst.msk [vmem:[#allocation3 + $0x144] sm:$0xf] %vm840, %v1242
      %1307 = vst.msk [vmem:[#allocation3 + $0x158] sm:$0xf] %vm840, %v1243
      %1308 = vst.msk [vmem:[#allocation3 + $0x16c] sm:$0xf] %vm840, %v1244
      %1309 = vst.msk [vmem:[#allocation3 + $0x180] sm:$0xf] %vm840, %v1245
      %1310 = vst.msk [vmem:[#allocation3 + $0x194] sm:$0xf] %vm840, %v1246
      %1311 = vst.msk [vmem:[#allocation3 + $0x1a8] sm:$0xf] %vm840, %v1247
      %1312 = vst.msk [vmem:[#allocation3 + $0x1bc] sm:$0xf] %vm840, %v1248
      %1313 = vst.msk [vmem:[#allocation3 + $0x1d0] sm:$0xf] %vm840, %v1249
      %1314 = vst.msk [vmem:[#allocation3 + $0x1e4] sm:$0xf] %vm840, %v1250
      %1315 = vst.msk [vmem:[#allocation3 + $0x1f8] sm:$0xf] %vm840, %v1251
      %1316 = vst.msk [vmem:[#allocation3 + $0x20c] sm:$0xf] %vm840, %v1252
      %1317 = vst.msk [vmem:[#allocation3 + $0x220] sm:$0xf] %vm840, %v1253
      %1318 = vst.msk [vmem:[#allocation3 + $0x234] sm:$0xf] %vm840, %v1254
      %1319 = vst.msk [vmem:[#allocation3 + $0x248] sm:$0xf] %vm840, %v1255
      %1320 = vst.msk [vmem:[#allocation3 + $0x25c] sm:$0xf] %vm840, %v1256
      %1321 = vst.msk [vmem:[#allocation3 + $0x270] sm:$0xf] %vm840, %v1257
      %v1322 = vld [vmem:[%s647] sm:$0xff]
      %v1323 = vld [vmem:[%s647 + $0x8] sm:$0xff]
      %v1324 = vld [vmem:[%s647 + $0x18] sm:$0xff]
      %v1325 = vld [vmem:[%s647 + $0x20] sm:$0xff]
      %v1326 = vld [vmem:[%s647 + $0x30] sm:$0xff]
      %v1327 = vld [vmem:[%s647 + $0x38] sm:$0xff]
      %v1328 = vld [vmem:[%s647 + $0x48] sm:$0xff]
      %v1329 = vld [vmem:[%s647 + $0x50] sm:$0xff]
      %v1330 = vld [vmem:[%s647 + $0x60] sm:$0xff]
      %v1331 = vld [vmem:[%s647 + $0x68] sm:$0xff]
      %v1332 = vld [vmem:[%s647 + $0x78] sm:$0xff]
      %v1333 = vld [vmem:[%s647 + $0x80] sm:$0xff]
      %v1334 = vld [vmem:[%s647 + $0x90] sm:$0xff]
      %v1335 = vld [vmem:[%s647 + $0x98] sm:$0xff]
      %v1336 = vld [vmem:[%s647 + $0xa8] sm:$0xff]
      %v1337 = vld [vmem:[%s647 + $0xb0] sm:$0xff]
      %v1338 = vld [vmem:[%s647 + $0xc0] sm:$0xff]
      %v1339 = vld [vmem:[%s647 + $0xc8] sm:$0xff]
      %v1340 = vld [vmem:[%s647 + $0xd8] sm:$0xff]
      %v1341 = vld [vmem:[%s647 + $0xe0] sm:$0xff]
      %v1342 = vld [vmem:[%s647 + $0xf0] sm:$0xff]
      %v1343 = vld [vmem:[%s647 + $0xf8] sm:$0xff]
      %v1344 = vld [vmem:[%s647 + $0x108] sm:$0xff]
      %v1345 = vld [vmem:[%s647 + $0x110] sm:$0xff]
      %v1346 = vld [vmem:[%s647 + $0x120] sm:$0xff]
      %v1347 = vld [vmem:[%s647 + $0x128] sm:$0xff]
      %v1348 = vld [vmem:[%s647 + $0x138] sm:$0xff]
      %v1349 = vld [vmem:[%s647 + $0x140] sm:$0xff]
      %v1350 = vld [vmem:[%s647 + $0x150] sm:$0xff]
      %v1351 = vld [vmem:[%s647 + $0x158] sm:$0xff]
      %v1352 = vld [vmem:[%s647 + $0x168] sm:$0xff]
      %v1353 = vld [vmem:[%s647 + $0x170] sm:$0xff]
      %v1354 = vpack.c.bf16 %v1323, %v1322
      %v1355 = vpack.c.bf16 %v1325, %v1324
      %v1356 = vpack.c.bf16 %v1327, %v1326
      %v1357 = vpack.c.bf16 %v1329, %v1328
      %v1358 = vpack.c.bf16 %v1331, %v1330
      %v1359 = vpack.c.bf16 %v1333, %v1332
      %v1360 = vpack.c.bf16 %v1335, %v1334
      %v1361 = vpack.c.bf16 %v1337, %v1336
      %v1362 = vpack.c.bf16 %v1339, %v1338
      %v1363 = vpack.c.bf16 %v1341, %v1340
      %v1364 = vpack.c.bf16 %v1343, %v1342
      %v1365 = vpack.c.bf16 %v1345, %v1344
      %v1366 = vpack.c.bf16 %v1347, %v1346
      %v1367 = vpack.c.bf16 %v1349, %v1348
      %v1368 = vpack.c.bf16 %v1351, %v1350
      %v1369 = vpack.c.bf16 %v1353, %v1352
      %v1386 = vunpack.c.l.b16 %v1354
      %v1387 = vunpack.c.h.b16 %v1354
      %v1388 = vunpack.c.l.b16 %v1355
      %v1389 = vunpack.c.h.b16 %v1355
      %v1390 = vunpack.c.l.b16 %v1356
      %v1391 = vunpack.c.h.b16 %v1356
      %v1392 = vunpack.c.l.b16 %v1357
      %v1393 = vunpack.c.h.b16 %v1357
      %v1394 = vunpack.c.l.b16 %v1358
      %v1395 = vunpack.c.h.b16 %v1358
      %v1396 = vunpack.c.l.b16 %v1359
      %v1397 = vunpack.c.h.b16 %v1359
      %v1398 = vunpack.c.l.b16 %v1360
      %v1399 = vunpack.c.h.b16 %v1360
      %v1400 = vunpack.c.l.b16 %v1361
      %v1401 = vunpack.c.h.b16 %v1361
      %v1402 = vunpack.c.l.b16 %v1362
      %v1403 = vunpack.c.h.b16 %v1362
      %v1404 = vunpack.c.l.b16 %v1363
      %v1405 = vunpack.c.h.b16 %v1363
      %v1406 = vunpack.c.l.b16 %v1364
      %v1407 = vunpack.c.h.b16 %v1364
      %v1408 = vunpack.c.l.b16 %v1365
      %v1409 = vunpack.c.h.b16 %v1365
      %v1410 = vunpack.c.l.b16 %v1366
      %v1411 = vunpack.c.h.b16 %v1366
      %v1412 = vunpack.c.l.b16 %v1367
      %v1413 = vunpack.c.h.b16 %v1367
      %v1414 = vunpack.c.l.b16 %v1368
      %v1415 = vunpack.c.h.b16 %v1368
      %v1416 = vunpack.c.l.b16 %v1369
      %v1417 = vunpack.c.h.b16 %v1369
      %v1418 = vpack.c.b16 %v1386, %v1386
      %v1419 = vpack.c.b16 %v1387, %v1387
      %v1420 = vpack.c.b16 %v1388, %v1388
      %v1421 = vpack.c.b16 %v1389, %v1389
      %v1422 = vpack.c.b16 %v1390, %v1390
      %v1423 = vpack.c.b16 %v1391, %v1391
      %v1424 = vpack.c.b16 %v1392, %v1392
      %v1425 = vpack.c.b16 %v1393, %v1393
      %v1426 = vpack.c.b16 %v1394, %v1394
      %v1427 = vpack.c.b16 %v1395, %v1395
      %v1428 = vpack.c.b16 %v1396, %v1396
      %v1429 = vpack.c.b16 %v1397, %v1397
      %v1430 = vpack.c.b16 %v1398, %v1398
      %v1431 = vpack.c.b16 %v1399, %v1399
      %v1432 = vpack.c.b16 %v1400, %v1400
      %v1433 = vpack.c.b16 %v1401, %v1401
      %v1434 = vpack.c.b16 %v1402, %v1402
      %v1435 = vpack.c.b16 %v1403, %v1403
      %v1436 = vpack.c.b16 %v1404, %v1404
      %v1437 = vpack.c.b16 %v1405, %v1405
      %v1438 = vpack.c.b16 %v1406, %v1406
      %v1439 = vpack.c.b16 %v1407, %v1407
      %v1440 = vpack.c.b16 %v1408, %v1408
      %v1441 = vpack.c.b16 %v1409, %v1409
      %v1442 = vpack.c.b16 %v1410, %v1410
      %v1443 = vpack.c.b16 %v1411, %v1411
      %v1444 = vpack.c.b16 %v1412, %v1412
      %v1445 = vpack.c.b16 %v1413, %v1413
      %v1446 = vpack.c.b16 %v1414, %v1414
      %v1447 = vpack.c.b16 %v1415, %v1415
      %v1448 = vpack.c.b16 %v1416, %v1416
      %v1449 = vpack.c.b16 %v1417, %v1417
      %1450 = vrot.lane.b32.xlu0 %v1418, 64
      %v1451 = vpop.permute.xlu0 %1450
      %1452 = vrot.lane.b32.xlu0 %v1419, 64
      %v1453 = vpop.permute.xlu0 %1452
      %1454 = vrot.lane.b32.xlu0 %v1420, 64
      %v1455 = vpop.permute.xlu0 %1454
      %1456 = vrot.lane.b32.xlu0 %v1421, 64
      %v1457 = vpop.permute.xlu0 %1456
      %1458 = vrot.lane.b32.xlu0 %v1422, 64
      %v1459 = vpop.permute.xlu0 %1458
      %1460 = vrot.lane.b32.xlu0 %v1423, 64
      %v1461 = vpop.permute.xlu0 %1460
      %1462 = vrot.lane.b32.xlu0 %v1424, 64
      %v1463 = vpop.permute.xlu0 %1462
      %1464 = vrot.lane.b32.xlu0 %v1425, 64
      %v1465 = vpop.permute.xlu0 %1464
      %1466 = vrot.lane.b32.xlu0 %v1426, 64
      %v1467 = vpop.permute.xlu0 %1466
      %1468 = vrot.lane.b32.xlu0 %v1427, 64
      %v1469 = vpop.permute.xlu0 %1468
      %1470 = vrot.lane.b32.xlu0 %v1428, 64
      %v1471 = vpop.permute.xlu0 %1470
      %1472 = vrot.lane.b32.xlu0 %v1429, 64
      %v1473 = vpop.permute.xlu0 %1472
      %1474 = vrot.lane.b32.xlu0 %v1430, 64
      %v1475 = vpop.permute.xlu0 %1474
      %1476 = vrot.lane.b32.xlu0 %v1431, 64
      %v1477 = vpop.permute.xlu0 %1476
      %1478 = vrot.lane.b32.xlu0 %v1432, 64
      %v1479 = vpop.permute.xlu0 %1478
      %1480 = vrot.lane.b32.xlu0 %v1433, 64
      %v1481 = vpop.permute.xlu0 %1480
      %1482 = vrot.lane.b32.xlu0 %v1434, 64
      %v1483 = vpop.permute.xlu0 %1482
      %1484 = vrot.lane.b32.xlu0 %v1435, 64
      %v1485 = vpop.permute.xlu0 %1484
      %1486 = vrot.lane.b32.xlu0 %v1436, 64
      %v1487 = vpop.permute.xlu0 %1486
      %1488 = vrot.lane.b32.xlu0 %v1437, 64
      %v1489 = vpop.permute.xlu0 %1488
      %1490 = vrot.lane.b32.xlu0 %v1438, 64
      %v1491 = vpop.permute.xlu0 %1490
      %1492 = vrot.lane.b32.xlu0 %v1439, 64
      %v1493 = vpop.permute.xlu0 %1492
      %1494 = vrot.lane.b32.xlu0 %v1440, 64
      %v1495 = vpop.permute.xlu0 %1494
      %1496 = vrot.lane.b32.xlu0 %v1441, 64
      %v1497 = vpop.permute.xlu0 %1496
      %1498 = vrot.lane.b32.xlu0 %v1442, 64
      %v1499 = vpop.permute.xlu0 %1498
      %1500 = vrot.lane.b32.xlu0 %v1443, 64
      %v1501 = vpop.permute.xlu0 %1500
      %1502 = vrot.lane.b32.xlu0 %v1444, 64
      %v1503 = vpop.permute.xlu0 %1502
      %1504 = vrot.lane.b32.xlu0 %v1445, 64
      %v1505 = vpop.permute.xlu0 %1504
      %1506 = vrot.lane.b32.xlu0 %v1446, 64
      %v1507 = vpop.permute.xlu0 %1506
      %1508 = vrot.lane.b32.xlu0 %v1447, 64
      %v1509 = vpop.permute.xlu0 %1508
      %1510 = vrot.lane.b32.xlu0 %v1448, 64
      %v1511 = vpop.permute.xlu0 %1510
      %1512 = vrot.lane.b32.xlu0 %v1449, 64
      %v1513 = vpop.permute.xlu0 %1512
      %1546 = vst.msk [vmem:[#allocation3 + $0x4] sm:$0xf] %vm1097, %v1451
      %1547 = vst.msk [vmem:[#allocation3 + $0x18] sm:$0xf] %vm1097, %v1453
      %1548 = vst.msk [vmem:[#allocation3 + $0x2c] sm:$0xf] %vm1097, %v1455
      %1549 = vst.msk [vmem:[#allocation3 + $0x40] sm:$0xf] %vm1097, %v1457
      %1550 = vst.msk [vmem:[#allocation3 + $0x54] sm:$0xf] %vm1097, %v1459
      %1551 = vst.msk [vmem:[#allocation3 + $0x68] sm:$0xf] %vm1097, %v1461
      %1552 = vst.msk [vmem:[#allocation3 + $0x7c] sm:$0xf] %vm1097, %v1463
      %1553 = vst.msk [vmem:[#allocation3 + $0x90] sm:$0xf] %vm1097, %v1465
      %1554 = vst.msk [vmem:[#allocation3 + $0xa4] sm:$0xf] %vm1097, %v1467
      %1555 = vst.msk [vmem:[#allocation3 + $0xb8] sm:$0xf] %vm1097, %v1469
      %1556 = vst.msk [vmem:[#allocation3 + $0xcc] sm:$0xf] %vm1097, %v1471
      %1557 = vst.msk [vmem:[#allocation3 + $0xe0] sm:$0xf] %vm1097, %v1473
      %1558 = vst.msk [vmem:[#allocation3 + $0xf4] sm:$0xf] %vm1097, %v1475
      %1559 = vst.msk [vmem:[#allocation3 + $0x108] sm:$0xf] %vm1097, %v1477
      %1560 = vst.msk [vmem:[#allocation3 + $0x11c] sm:$0xf] %vm1097, %v1479
      %1561 = vst.msk [vmem:[#allocation3 + $0x130] sm:$0xf] %vm1097, %v1481
      %1562 = vst.msk [vmem:[#allocation3 + $0x144] sm:$0xf] %vm1097, %v1483
      %1563 = vst.msk [vmem:[#allocation3 + $0x158] sm:$0xf] %vm1097, %v1485
      %1564 = vst.msk [vmem:[#allocation3 + $0x16c] sm:$0xf] %vm1097, %v1487
      %1565 = vst.msk [vmem:[#allocation3 + $0x180] sm:$0xf] %vm1097, %v1489
      %1566 = vst.msk [vmem:[#allocation3 + $0x194] sm:$0xf] %vm1097, %v1491
      %1567 = vst.msk [vmem:[#allocation3 + $0x1a8] sm:$0xf] %vm1097, %v1493
      %1568 = vst.msk [vmem:[#allocation3 + $0x1bc] sm:$0xf] %vm1097, %v1495
      %1569 = vst.msk [vmem:[#allocation3 + $0x1d0] sm:$0xf] %vm1097, %v1497
      %1570 = vst.msk [vmem:[#allocation3 + $0x1e4] sm:$0xf] %vm1097, %v1499
      %1571 = vst.msk [vmem:[#allocation3 + $0x1f8] sm:$0xf] %vm1097, %v1501
      %1572 = vst.msk [vmem:[#allocation3 + $0x20c] sm:$0xf] %vm1097, %v1503
      %1573 = vst.msk [vmem:[#allocation3 + $0x220] sm:$0xf] %vm1097, %v1505
      %1574 = vst.msk [vmem:[#allocation3 + $0x234] sm:$0xf] %vm1097, %v1507
      %1575 = vst.msk [vmem:[#allocation3 + $0x248] sm:$0xf] %vm1097, %v1509
      %1576 = vst.msk [vmem:[#allocation3 + $0x25c] sm:$0xf] %vm1097, %v1511
      %1577 = vst.msk [vmem:[#allocation3 + $0x270] sm:$0xf] %vm1097, %v1513
      %v1578 = vld [vmem:[%s647 + $0x1] sm:$0xff]
      %v1579 = vld [vmem:[%s647 + $0x9] sm:$0xff]
      %v1580 = vld [vmem:[%s647 + $0x19] sm:$0xff]
      %v1581 = vld [vmem:[%s647 + $0x21] sm:$0xff]
      %v1582 = vld [vmem:[%s647 + $0x31] sm:$0xff]
      %v1583 = vld [vmem:[%s647 + $0x39] sm:$0xff]
      %v1584 = vld [vmem:[%s647 + $0x49] sm:$0xff]
      %v1585 = vld [vmem:[%s647 + $0x51] sm:$0xff]
      %v1586 = vld [vmem:[%s647 + $0x61] sm:$0xff]
      %v1587 = vld [vmem:[%s647 + $0x69] sm:$0xff]
      %v1588 = vld [vmem:[%s647 + $0x79] sm:$0xff]
      %v1589 = vld [vmem:[%s647 + $0x81] sm:$0xff]
      %v1590 = vld [vmem:[%s647 + $0x91] sm:$0xff]
      %v1591 = vld [vmem:[%s647 + $0x99] sm:$0xff]
      %v1592 = vld [vmem:[%s647 + $0xa9] sm:$0xff]
      %v1593 = vld [vmem:[%s647 + $0xb1] sm:$0xff]
      %v1594 = vld [vmem:[%s647 + $0xc1] sm:$0xff]
      %v1595 = vld [vmem:[%s647 + $0xc9] sm:$0xff]
      %v1596 = vld [vmem:[%s647 + $0xd9] sm:$0xff]
      %v1597 = vld [vmem:[%s647 + $0xe1] sm:$0xff]
      %v1598 = vld [vmem:[%s647 + $0xf1] sm:$0xff]
      %v1599 = vld [vmem:[%s647 + $0xf9] sm:$0xff]
      %v1600 = vld [vmem:[%s647 + $0x109] sm:$0xff]
      %v1601 = vld [vmem:[%s647 + $0x111] sm:$0xff]
      %v1602 = vld [vmem:[%s647 + $0x121] sm:$0xff]
      %v1603 = vld [vmem:[%s647 + $0x129] sm:$0xff]
      %v1604 = vld [vmem:[%s647 + $0x139] sm:$0xff]
      %v1605 = vld [vmem:[%s647 + $0x141] sm:$0xff]
      %v1606 = vld [vmem:[%s647 + $0x151] sm:$0xff]
      %v1607 = vld [vmem:[%s647 + $0x159] sm:$0xff]
      %v1608 = vld [vmem:[%s647 + $0x169] sm:$0xff]
      %v1609 = vld [vmem:[%s647 + $0x171] sm:$0xff]
      %v1610 = vpack.c.bf16 %v1579, %v1578
      %v1611 = vpack.c.bf16 %v1581, %v1580
      %v1612 = vpack.c.bf16 %v1583, %v1582
      %v1613 = vpack.c.bf16 %v1585, %v1584
      %v1614 = vpack.c.bf16 %v1587, %v1586
      %v1615 = vpack.c.bf16 %v1589, %v1588
      %v1616 = vpack.c.bf16 %v1591, %v1590
      %v1617 = vpack.c.bf16 %v1593, %v1592
      %v1618 = vpack.c.bf16 %v1595, %v1594
      %v1619 = vpack.c.bf16 %v1597, %v1596
      %v1620 = vpack.c.bf16 %v1599, %v1598
      %v1621 = vpack.c.bf16 %v1601, %v1600
      %v1622 = vpack.c.bf16 %v1603, %v1602
      %v1623 = vpack.c.bf16 %v1605, %v1604
      %v1624 = vpack.c.bf16 %v1607, %v1606
      %v1625 = vpack.c.bf16 %v1609, %v1608
      %v1642 = vunpack.c.l.b16 %v1610
      %v1643 = vunpack.c.h.b16 %v1610
      %v1644 = vunpack.c.l.b16 %v1611
      %v1645 = vunpack.c.h.b16 %v1611
      %v1646 = vunpack.c.l.b16 %v1612
      %v1647 = vunpack.c.h.b16 %v1612
      %v1648 = vunpack.c.l.b16 %v1613
      %v1649 = vunpack.c.h.b16 %v1613
      %v1650 = vunpack.c.l.b16 %v1614
      %v1651 = vunpack.c.h.b16 %v1614
      %v1652 = vunpack.c.l.b16 %v1615
      %v1653 = vunpack.c.h.b16 %v1615
      %v1654 = vunpack.c.l.b16 %v1616
      %v1655 = vunpack.c.h.b16 %v1616
      %v1656 = vunpack.c.l.b16 %v1617
      %v1657 = vunpack.c.h.b16 %v1617
      %v1658 = vunpack.c.l.b16 %v1618
      %v1659 = vunpack.c.h.b16 %v1618
      %v1660 = vunpack.c.l.b16 %v1619
      %v1661 = vunpack.c.h.b16 %v1619
      %v1662 = vunpack.c.l.b16 %v1620
      %v1663 = vunpack.c.h.b16 %v1620
      %v1664 = vunpack.c.l.b16 %v1621
      %v1665 = vunpack.c.h.b16 %v1621
      %v1666 = vunpack.c.l.b16 %v1622
      %v1667 = vunpack.c.h.b16 %v1622
      %v1668 = vunpack.c.l.b16 %v1623
      %v1669 = vunpack.c.h.b16 %v1623
      %v1670 = vunpack.c.l.b16 %v1624
      %v1671 = vunpack.c.h.b16 %v1624
      %v1672 = vunpack.c.l.b16 %v1625
      %v1673 = vunpack.c.h.b16 %v1625
      %v1674 = vpack.c.b16 %v1642, %v1642
      %v1675 = vpack.c.b16 %v1643, %v1643
      %v1676 = vpack.c.b16 %v1644, %v1644
      %v1677 = vpack.c.b16 %v1645, %v1645
      %v1678 = vpack.c.b16 %v1646, %v1646
      %v1679 = vpack.c.b16 %v1647, %v1647
      %v1680 = vpack.c.b16 %v1648, %v1648
      %v1681 = vpack.c.b16 %v1649, %v1649
      %v1682 = vpack.c.b16 %v1650, %v1650
      %v1683 = vpack.c.b16 %v1651, %v1651
      %v1684 = vpack.c.b16 %v1652, %v1652
      %v1685 = vpack.c.b16 %v1653, %v1653
      %v1686 = vpack.c.b16 %v1654, %v1654
      %v1687 = vpack.c.b16 %v1655, %v1655
      %v1688 = vpack.c.b16 %v1656, %v1656
      %v1689 = vpack.c.b16 %v1657, %v1657
      %v1690 = vpack.c.b16 %v1658, %v1658
      %v1691 = vpack.c.b16 %v1659, %v1659
      %v1692 = vpack.c.b16 %v1660, %v1660
      %v1693 = vpack.c.b16 %v1661, %v1661
      %v1694 = vpack.c.b16 %v1662, %v1662
      %v1695 = vpack.c.b16 %v1663, %v1663
      %v1696 = vpack.c.b16 %v1664, %v1664
      %v1697 = vpack.c.b16 %v1665, %v1665
      %v1698 = vpack.c.b16 %v1666, %v1666
      %v1699 = vpack.c.b16 %v1667, %v1667
      %v1700 = vpack.c.b16 %v1668, %v1668
      %v1701 = vpack.c.b16 %v1669, %v1669
      %v1702 = vpack.c.b16 %v1670, %v1670
      %v1703 = vpack.c.b16 %v1671, %v1671
      %v1704 = vpack.c.b16 %v1672, %v1672
      %v1705 = vpack.c.b16 %v1673, %v1673
      %1738 = vst.msk [vmem:[#allocation3 + $0x8] sm:$0xf] %vm840, %v1674
      %1739 = vst.msk [vmem:[#allocation3 + $0x1c] sm:$0xf] %vm840, %v1675
      %1740 = vst.msk [vmem:[#allocation3 + $0x30] sm:$0xf] %vm840, %v1676
      %1741 = vst.msk [vmem:[#allocation3 + $0x44] sm:$0xf] %vm840, %v1677
      %1742 = vst.msk [vmem:[#allocation3 + $0x58] sm:$0xf] %vm840, %v1678
      %1743 = vst.msk [vmem:[#allocation3 + $0x6c] sm:$0xf] %vm840, %v1679
      %1744 = vst.msk [vmem:[#allocation3 + $0x80] sm:$0xf] %vm840, %v1680
      %1745 = vst.msk [vmem:[#allocation3 + $0x94] sm:$0xf] %vm840, %v1681
      %1746 = vst.msk [vmem:[#allocation3 + $0xa8] sm:$0xf] %vm840, %v1682
      %1747 = vst.msk [vmem:[#allocation3 + $0xbc] sm:$0xf] %vm840, %v1683
      %1748 = vst.msk [vmem:[#allocation3 + $0xd0] sm:$0xf] %vm840, %v1684
      %1749 = vst.msk [vmem:[#allocation3 + $0xe4] sm:$0xf] %vm840, %v1685
      %1750 = vst.msk [vmem:[#allocation3 + $0xf8] sm:$0xf] %vm840, %v1686
      %1751 = vst.msk [vmem:[#allocation3 + $0x10c] sm:$0xf] %vm840, %v1687
      %1752 = vst.msk [vmem:[#allocation3 + $0x120] sm:$0xf] %vm840, %v1688
      %1753 = vst.msk [vmem:[#allocation3 + $0x134] sm:$0xf] %vm840, %v1689
      %1754 = vst.msk [vmem:[#allocation3 + $0x148] sm:$0xf] %vm840, %v1690
      %1755 = vst.msk [vmem:[#allocation3 + $0x15c] sm:$0xf] %vm840, %v1691
      %1756 = vst.msk [vmem:[#allocation3 + $0x170] sm:$0xf] %vm840, %v1692
      %1757 = vst.msk [vmem:[#allocation3 + $0x184] sm:$0xf] %vm840, %v1693
      %1758 = vst.msk [vmem:[#allocation3 + $0x198] sm:$0xf] %vm840, %v1694
      %1759 = vst.msk [vmem:[#allocation3 + $0x1ac] sm:$0xf] %vm840, %v1695
      %1760 = vst.msk [vmem:[#allocation3 + $0x1c0] sm:$0xf] %vm840, %v1696
      %1761 = vst.msk [vmem:[#allocation3 + $0x1d4] sm:$0xf] %vm840, %v1697
      %1762 = vst.msk [vmem:[#allocation3 + $0x1e8] sm:$0xf] %vm840, %v1698
      %1763 = vst.msk [vmem:[#allocation3 + $0x1fc] sm:$0xf] %vm840, %v1699
      %1764 = vst.msk [vmem:[#allocation3 + $0x210] sm:$0xf] %vm840, %v1700
      %1765 = vst.msk [vmem:[#allocation3 + $0x224] sm:$0xf] %vm840, %v1701
      %1766 = vst.msk [vmem:[#allocation3 + $0x238] sm:$0xf] %vm840, %v1702
      %1767 = vst.msk [vmem:[#allocation3 + $0x24c] sm:$0xf] %vm840, %v1703
      %1768 = vst.msk [vmem:[#allocation3 + $0x260] sm:$0xf] %vm840, %v1704
      %1769 = vst.msk [vmem:[#allocation3 + $0x274] sm:$0xf] %vm840, %v1705
      %v1770 = vld [vmem:[%s647 + $0x2] sm:$0xff]
      %v1771 = vld [vmem:[%s647 + $0xa] sm:$0xff]
      %v1772 = vld [vmem:[%s647 + $0x1a] sm:$0xff]
      %v1773 = vld [vmem:[%s647 + $0x22] sm:$0xff]
      %v1774 = vld [vmem:[%s647 + $0x32] sm:$0xff]
      %v1775 = vld [vmem:[%s647 + $0x3a] sm:$0xff]
      %v1776 = vld [vmem:[%s647 + $0x4a] sm:$0xff]
      %v1777 = vld [vmem:[%s647 + $0x52] sm:$0xff]
      %v1778 = vld [vmem:[%s647 + $0x62] sm:$0xff]
      %v1779 = vld [vmem:[%s647 + $0x6a] sm:$0xff]
      %v1780 = vld [vmem:[%s647 + $0x7a] sm:$0xff]
      %v1781 = vld [vmem:[%s647 + $0x82] sm:$0xff]
      %v1782 = vld [vmem:[%s647 + $0x92] sm:$0xff]
      %v1783 = vld [vmem:[%s647 + $0x9a] sm:$0xff]
      %v1784 = vld [vmem:[%s647 + $0xaa] sm:$0xff]
      %v1785 = vld [vmem:[%s647 + $0xb2] sm:$0xff]
      %v1786 = vld [vmem:[%s647 + $0xc2] sm:$0xff]
      %v1787 = vld [vmem:[%s647 + $0xca] sm:$0xff]
      %v1788 = vld [vmem:[%s647 + $0xda] sm:$0xff]
      %v1789 = vld [vmem:[%s647 + $0xe2] sm:$0xff]
      %v1790 = vld [vmem:[%s647 + $0xf2] sm:$0xff]
      %v1791 = vld [vmem:[%s647 + $0xfa] sm:$0xff]
      %v1792 = vld [vmem:[%s647 + $0x10a] sm:$0xff]
      %v1793 = vld [vmem:[%s647 + $0x112] sm:$0xff]
      %v1794 = vld [vmem:[%s647 + $0x122] sm:$0xff]
      %v1795 = vld [vmem:[%s647 + $0x12a] sm:$0xff]
      %v1796 = vld [vmem:[%s647 + $0x13a] sm:$0xff]
      %v1797 = vld [vmem:[%s647 + $0x142] sm:$0xff]
      %v1798 = vld [vmem:[%s647 + $0x152] sm:$0xff]
      %v1799 = vld [vmem:[%s647 + $0x15a] sm:$0xff]
      %v1800 = vld [vmem:[%s647 + $0x16a] sm:$0xff]
      %v1801 = vld [vmem:[%s647 + $0x172] sm:$0xff]
      %v1802 = vpack.c.bf16 %v1771, %v1770
      %v1803 = vpack.c.bf16 %v1773, %v1772
      %v1804 = vpack.c.bf16 %v1775, %v1774
      %v1805 = vpack.c.bf16 %v1777, %v1776
      %v1806 = vpack.c.bf16 %v1779, %v1778
      %v1807 = vpack.c.bf16 %v1781, %v1780
      %v1808 = vpack.c.bf16 %v1783, %v1782
      %v1809 = vpack.c.bf16 %v1785, %v1784
      %v1810 = vpack.c.bf16 %v1787, %v1786
      %v1811 = vpack.c.bf16 %v1789, %v1788
      %v1812 = vpack.c.bf16 %v1791, %v1790
      %v1813 = vpack.c.bf16 %v1793, %v1792
      %v1814 = vpack.c.bf16 %v1795, %v1794
      %v1815 = vpack.c.bf16 %v1797, %v1796
      %v1816 = vpack.c.bf16 %v1799, %v1798
      %v1817 = vpack.c.bf16 %v1801, %v1800
      %v1834 = vunpack.c.l.b16 %v1802
      %v1835 = vunpack.c.h.b16 %v1802
      %v1836 = vunpack.c.l.b16 %v1803
      %v1837 = vunpack.c.h.b16 %v1803
      %v1838 = vunpack.c.l.b16 %v1804
      %v1839 = vunpack.c.h.b16 %v1804
      %v1840 = vunpack.c.l.b16 %v1805
      %v1841 = vunpack.c.h.b16 %v1805
      %v1842 = vunpack.c.l.b16 %v1806
      %v1843 = vunpack.c.h.b16 %v1806
      %v1844 = vunpack.c.l.b16 %v1807
      %v1845 = vunpack.c.h.b16 %v1807
      %v1846 = vunpack.c.l.b16 %v1808
      %v1847 = vunpack.c.h.b16 %v1808
      %v1848 = vunpack.c.l.b16 %v1809
      %v1849 = vunpack.c.h.b16 %v1809
      %v1850 = vunpack.c.l.b16 %v1810
      %v1851 = vunpack.c.h.b16 %v1810
      %v1852 = vunpack.c.l.b16 %v1811
      %v1853 = vunpack.c.h.b16 %v1811
      %v1854 = vunpack.c.l.b16 %v1812
      %v1855 = vunpack.c.h.b16 %v1812
      %v1856 = vunpack.c.l.b16 %v1813
      %v1857 = vunpack.c.h.b16 %v1813
      %v1858 = vunpack.c.l.b16 %v1814
      %v1859 = vunpack.c.h.b16 %v1814
      %v1860 = vunpack.c.l.b16 %v1815
      %v1861 = vunpack.c.h.b16 %v1815
      %v1862 = vunpack.c.l.b16 %v1816
      %v1863 = vunpack.c.h.b16 %v1816
      %v1864 = vunpack.c.l.b16 %v1817
      %v1865 = vunpack.c.h.b16 %v1817
      %v1866 = vpack.c.b16 %v1834, %v1834
      %v1867 = vpack.c.b16 %v1835, %v1835
      %v1868 = vpack.c.b16 %v1836, %v1836
      %v1869 = vpack.c.b16 %v1837, %v1837
      %v1870 = vpack.c.b16 %v1838, %v1838
      %v1871 = vpack.c.b16 %v1839, %v1839
      %v1872 = vpack.c.b16 %v1840, %v1840
      %v1873 = vpack.c.b16 %v1841, %v1841
      %v1874 = vpack.c.b16 %v1842, %v1842
      %v1875 = vpack.c.b16 %v1843, %v1843
      %v1876 = vpack.c.b16 %v1844, %v1844
      %v1877 = vpack.c.b16 %v1845, %v1845
      %v1878 = vpack.c.b16 %v1846, %v1846
      %v1879 = vpack.c.b16 %v1847, %v1847
      %v1880 = vpack.c.b16 %v1848, %v1848
      %v1881 = vpack.c.b16 %v1849, %v1849
      %v1882 = vpack.c.b16 %v1850, %v1850
      %v1883 = vpack.c.b16 %v1851, %v1851
      %v1884 = vpack.c.b16 %v1852, %v1852
      %v1885 = vpack.c.b16 %v1853, %v1853
      %v1886 = vpack.c.b16 %v1854, %v1854
      %v1887 = vpack.c.b16 %v1855, %v1855
      %v1888 = vpack.c.b16 %v1856, %v1856
      %v1889 = vpack.c.b16 %v1857, %v1857
      %v1890 = vpack.c.b16 %v1858, %v1858
      %v1891 = vpack.c.b16 %v1859, %v1859
      %v1892 = vpack.c.b16 %v1860, %v1860
      %v1893 = vpack.c.b16 %v1861, %v1861
      %v1894 = vpack.c.b16 %v1862, %v1862
      %v1895 = vpack.c.b16 %v1863, %v1863
      %v1896 = vpack.c.b16 %v1864, %v1864
      %v1897 = vpack.c.b16 %v1865, %v1865
      %1898 = vrot.lane.b32.xlu0 %v1866, 64
      %v1899 = vpop.permute.xlu0 %1898
      %1900 = vrot.lane.b32.xlu0 %v1867, 64
      %v1901 = vpop.permute.xlu0 %1900
      %1902 = vrot.lane.b32.xlu0 %v1868, 64
      %v1903 = vpop.permute.xlu0 %1902
      %1904 = vrot.lane.b32.xlu0 %v1869, 64
      %v1905 = vpop.permute.xlu0 %1904
      %1906 = vrot.lane.b32.xlu0 %v1870, 64
      %v1907 = vpop.permute.xlu0 %1906
      %1908 = vrot.lane.b32.xlu0 %v1871, 64
      %v1909 = vpop.permute.xlu0 %1908
      %1910 = vrot.lane.b32.xlu0 %v1872, 64
      %v1911 = vpop.permute.xlu0 %1910
      %1912 = vrot.lane.b32.xlu0 %v1873, 64
      %v1913 = vpop.permute.xlu0 %1912
      %1914 = vrot.lane.b32.xlu0 %v1874, 64
      %v1915 = vpop.permute.xlu0 %1914
      %1916 = vrot.lane.b32.xlu0 %v1875, 64
      %v1917 = vpop.permute.xlu0 %1916
      %1918 = vrot.lane.b32.xlu0 %v1876, 64
      %v1919 = vpop.permute.xlu0 %1918
      %1920 = vrot.lane.b32.xlu0 %v1877, 64
      %v1921 = vpop.permute.xlu0 %1920
      %1922 = vrot.lane.b32.xlu0 %v1878, 64
      %v1923 = vpop.permute.xlu0 %1922
      %1924 = vrot.lane.b32.xlu0 %v1879, 64
      %v1925 = vpop.permute.xlu0 %1924
      %1926 = vrot.lane.b32.xlu0 %v1880, 64
      %v1927 = vpop.permute.xlu0 %1926
      %1928 = vrot.lane.b32.xlu0 %v1881, 64
      %v1929 = vpop.permute.xlu0 %1928
      %1930 = vrot.lane.b32.xlu0 %v1882, 64
      %v1931 = vpop.permute.xlu0 %1930
      %1932 = vrot.lane.b32.xlu0 %v1883, 64
      %v1933 = vpop.permute.xlu0 %1932
      %1934 = vrot.lane.b32.xlu0 %v1884, 64
      %v1935 = vpop.permute.xlu0 %1934
      %1936 = vrot.lane.b32.xlu0 %v1885, 64
      %v1937 = vpop.permute.xlu0 %1936
      %1938 = vrot.lane.b32.xlu0 %v1886, 64
      %v1939 = vpop.permute.xlu0 %1938
      %1940 = vrot.lane.b32.xlu0 %v1887, 64
      %v1941 = vpop.permute.xlu0 %1940
      %1942 = vrot.lane.b32.xlu0 %v1888, 64
      %v1943 = vpop.permute.xlu0 %1942
      %1944 = vrot.lane.b32.xlu0 %v1889, 64
      %v1945 = vpop.permute.xlu0 %1944
      %1946 = vrot.lane.b32.xlu0 %v1890, 64
      %v1947 = vpop.permute.xlu0 %1946
      %1948 = vrot.lane.b32.xlu0 %v1891, 64
      %v1949 = vpop.permute.xlu0 %1948
      %1950 = vrot.lane.b32.xlu0 %v1892, 64
      %v1951 = vpop.permute.xlu0 %1950
      %1952 = vrot.lane.b32.xlu0 %v1893, 64
      %v1953 = vpop.permute.xlu0 %1952
      %1954 = vrot.lane.b32.xlu0 %v1894, 64
      %v1955 = vpop.permute.xlu0 %1954
      %1956 = vrot.lane.b32.xlu0 %v1895, 64
      %v1957 = vpop.permute.xlu0 %1956
      %1958 = vrot.lane.b32.xlu0 %v1896, 64
      %v1959 = vpop.permute.xlu0 %1958
      %1960 = vrot.lane.b32.xlu0 %v1897, 64
      %v1961 = vpop.permute.xlu0 %1960
      %1994 = vst.msk [vmem:[#allocation3 + $0x8] sm:$0xf] %vm1097, %v1899
      %1995 = vst.msk [vmem:[#allocation3 + $0x1c] sm:$0xf] %vm1097, %v1901
      %1996 = vst.msk [vmem:[#allocation3 + $0x30] sm:$0xf] %vm1097, %v1903
      %1997 = vst.msk [vmem:[#allocation3 + $0x44] sm:$0xf] %vm1097, %v1905
      %1998 = vst.msk [vmem:[#allocation3 + $0x58] sm:$0xf] %vm1097, %v1907
      %1999 = vst.msk [vmem:[#allocation3 + $0x6c] sm:$0xf] %vm1097, %v1909
      %2000 = vst.msk [vmem:[#allocation3 + $0x80] sm:$0xf] %vm1097, %v1911
      %2001 = vst.msk [vmem:[#allocation3 + $0x94] sm:$0xf] %vm1097, %v1913
      %2002 = vst.msk [vmem:[#allocation3 + $0xa8] sm:$0xf] %vm1097, %v1915
      %2003 = vst.msk [vmem:[#allocation3 + $0xbc] sm:$0xf] %vm1097, %v1917
      %2004 = vst.msk [vmem:[#allocation3 + $0xd0] sm:$0xf] %vm1097, %v1919
      %2005 = vst.msk [vmem:[#allocation3 + $0xe4] sm:$0xf] %vm1097, %v1921
      %2006 = vst.msk [vmem:[#allocation3 + $0xf8] sm:$0xf] %vm1097, %v1923
      %2007 = vst.msk [vmem:[#allocation3 + $0x10c] sm:$0xf] %vm1097, %v1925
      %2008 = vst.msk [vmem:[#allocation3 + $0x120] sm:$0xf] %vm1097, %v1927
      %2009 = vst.msk [vmem:[#allocation3 + $0x134] sm:$0xf] %vm1097, %v1929
      %2010 = vst.msk [vmem:[#allocation3 + $0x148] sm:$0xf] %vm1097, %v1931
      %2011 = vst.msk [vmem:[#allocation3 + $0x15c] sm:$0xf] %vm1097, %v1933
      %2012 = vst.msk [vmem:[#allocation3 + $0x170] sm:$0xf] %vm1097, %v1935
      %2013 = vst.msk [vmem:[#allocation3 + $0x184] sm:$0xf] %vm1097, %v1937
      %2014 = vst.msk [vmem:[#allocation3 + $0x198] sm:$0xf] %vm1097, %v1939
      %2015 = vst.msk [vmem:[#allocation3 + $0x1ac] sm:$0xf] %vm1097, %v1941
      %2016 = vst.msk [vmem:[#allocation3 + $0x1c0] sm:$0xf] %vm1097, %v1943
      %2017 = vst.msk [vmem:[#allocation3 + $0x1d4] sm:$0xf] %vm1097, %v1945
      %2018 = vst.msk [vmem:[#allocation3 + $0x1e8] sm:$0xf] %vm1097, %v1947
      %2019 = vst.msk [vmem:[#allocation3 + $0x1fc] sm:$0xf] %vm1097, %v1949
      %2020 = vst.msk [vmem:[#allocation3 + $0x210] sm:$0xf] %vm1097, %v1951
      %2021 = vst.msk [vmem:[#allocation3 + $0x224] sm:$0xf] %vm1097, %v1953
      %2022 = vst.msk [vmem:[#allocation3 + $0x238] sm:$0xf] %vm1097, %v1955
      %2023 = vst.msk [vmem:[#allocation3 + $0x24c] sm:$0xf] %vm1097, %v1957
      %2024 = vst.msk [vmem:[#allocation3 + $0x260] sm:$0xf] %vm1097, %v1959
      %2025 = vst.msk [vmem:[#allocation3 + $0x274] sm:$0xf] %vm1097, %v1961
      %s2026 = scalar_lea.vmem [#allocation2], 48
      %v2027 = vld [vmem:[%s2026] sm:$0xff]
      %v2028 = vld [vmem:[%s2026 + $0x8] sm:$0xff]
      %v2029 = vld [vmem:[%s2026 + $0x18] sm:$0xff]
      %v2030 = vld [vmem:[%s2026 + $0x20] sm:$0xff]
      %v2031 = vld [vmem:[%s2026 + $0x30] sm:$0xff]
      %v2032 = vld [vmem:[%s2026 + $0x38] sm:$0xff]
      %v2033 = vld [vmem:[%s2026 + $0x48] sm:$0xff]
      %v2034 = vld [vmem:[%s2026 + $0x50] sm:$0xff]
      %v2035 = vld [vmem:[%s2026 + $0x60] sm:$0xff]
      %v2036 = vld [vmem:[%s2026 + $0x68] sm:$0xff]
      %v2037 = vld [vmem:[%s2026 + $0x78] sm:$0xff]
      %v2038 = vld [vmem:[%s2026 + $0x80] sm:$0xff]
      %v2039 = vld [vmem:[%s2026 + $0x90] sm:$0xff]
      %v2040 = vld [vmem:[%s2026 + $0x98] sm:$0xff]
      %v2041 = vld [vmem:[%s2026 + $0xa8] sm:$0xff]
      %v2042 = vld [vmem:[%s2026 + $0xb0] sm:$0xff]
      %v2043 = vld [vmem:[%s2026 + $0xc0] sm:$0xff]
      %v2044 = vld [vmem:[%s2026 + $0xc8] sm:$0xff]
      %v2045 = vld [vmem:[%s2026 + $0xd8] sm:$0xff]
      %v2046 = vld [vmem:[%s2026 + $0xe0] sm:$0xff]
      %v2047 = vld [vmem:[%s2026 + $0xf0] sm:$0xff]
      %v2048 = vld [vmem:[%s2026 + $0xf8] sm:$0xff]
      %v2049 = vld [vmem:[%s2026 + $0x108] sm:$0xff]
      %v2050 = vld [vmem:[%s2026 + $0x110] sm:$0xff]
      %v2051 = vld [vmem:[%s2026 + $0x120] sm:$0xff]
      %v2052 = vld [vmem:[%s2026 + $0x128] sm:$0xff]
      %v2053 = vld [vmem:[%s2026 + $0x138] sm:$0xff]
      %v2054 = vld [vmem:[%s2026 + $0x140] sm:$0xff]
      %v2055 = vld [vmem:[%s2026 + $0x150] sm:$0xff]
      %v2056 = vld [vmem:[%s2026 + $0x158] sm:$0xff]
      %v2057 = vld [vmem:[%s2026 + $0x168] sm:$0xff]
      %v2058 = vld [vmem:[%s2026 + $0x170] sm:$0xff]
      %v2059 = vpack.c.bf16 %v2028, %v2027
      %v2060 = vpack.c.bf16 %v2030, %v2029
      %v2061 = vpack.c.bf16 %v2032, %v2031
      %v2062 = vpack.c.bf16 %v2034, %v2033
      %v2063 = vpack.c.bf16 %v2036, %v2035
      %v2064 = vpack.c.bf16 %v2038, %v2037
      %v2065 = vpack.c.bf16 %v2040, %v2039
      %v2066 = vpack.c.bf16 %v2042, %v2041
      %v2067 = vpack.c.bf16 %v2044, %v2043
      %v2068 = vpack.c.bf16 %v2046, %v2045
      %v2069 = vpack.c.bf16 %v2048, %v2047
      %v2070 = vpack.c.bf16 %v2050, %v2049
      %v2071 = vpack.c.bf16 %v2052, %v2051
      %v2072 = vpack.c.bf16 %v2054, %v2053
      %v2073 = vpack.c.bf16 %v2056, %v2055
      %v2074 = vpack.c.bf16 %v2058, %v2057
      %v2091 = vunpack.c.l.b16 %v2059
      %v2092 = vunpack.c.h.b16 %v2059
      %v2093 = vunpack.c.l.b16 %v2060
      %v2094 = vunpack.c.h.b16 %v2060
      %v2095 = vunpack.c.l.b16 %v2061
      %v2096 = vunpack.c.h.b16 %v2061
      %v2097 = vunpack.c.l.b16 %v2062
      %v2098 = vunpack.c.h.b16 %v2062
      %v2099 = vunpack.c.l.b16 %v2063
      %v2100 = vunpack.c.h.b16 %v2063
      %v2101 = vunpack.c.l.b16 %v2064
      %v2102 = vunpack.c.h.b16 %v2064
      %v2103 = vunpack.c.l.b16 %v2065
      %v2104 = vunpack.c.h.b16 %v2065
      %v2105 = vunpack.c.l.b16 %v2066
      %v2106 = vunpack.c.h.b16 %v2066
      %v2107 = vunpack.c.l.b16 %v2067
      %v2108 = vunpack.c.h.b16 %v2067
      %v2109 = vunpack.c.l.b16 %v2068
      %v2110 = vunpack.c.h.b16 %v2068
      %v2111 = vunpack.c.l.b16 %v2069
      %v2112 = vunpack.c.h.b16 %v2069
      %v2113 = vunpack.c.l.b16 %v2070
      %v2114 = vunpack.c.h.b16 %v2070
      %v2115 = vunpack.c.l.b16 %v2071
      %v2116 = vunpack.c.h.b16 %v2071
      %v2117 = vunpack.c.l.b16 %v2072
      %v2118 = vunpack.c.h.b16 %v2072
      %v2119 = vunpack.c.l.b16 %v2073
      %v2120 = vunpack.c.h.b16 %v2073
      %v2121 = vunpack.c.l.b16 %v2074
      %v2122 = vunpack.c.h.b16 %v2074
      %v2123 = vpack.c.b16 %v2091, %v2091
      %v2124 = vpack.c.b16 %v2092, %v2092
      %v2125 = vpack.c.b16 %v2093, %v2093
      %v2126 = vpack.c.b16 %v2094, %v2094
      %v2127 = vpack.c.b16 %v2095, %v2095
      %v2128 = vpack.c.b16 %v2096, %v2096
      %v2129 = vpack.c.b16 %v2097, %v2097
      %v2130 = vpack.c.b16 %v2098, %v2098
      %v2131 = vpack.c.b16 %v2099, %v2099
      %v2132 = vpack.c.b16 %v2100, %v2100
      %v2133 = vpack.c.b16 %v2101, %v2101
      %v2134 = vpack.c.b16 %v2102, %v2102
      %v2135 = vpack.c.b16 %v2103, %v2103
      %v2136 = vpack.c.b16 %v2104, %v2104
      %v2137 = vpack.c.b16 %v2105, %v2105
      %v2138 = vpack.c.b16 %v2106, %v2106
      %v2139 = vpack.c.b16 %v2107, %v2107
      %v2140 = vpack.c.b16 %v2108, %v2108
      %v2141 = vpack.c.b16 %v2109, %v2109
      %v2142 = vpack.c.b16 %v2110, %v2110
      %v2143 = vpack.c.b16 %v2111, %v2111
      %v2144 = vpack.c.b16 %v2112, %v2112
      %v2145 = vpack.c.b16 %v2113, %v2113
      %v2146 = vpack.c.b16 %v2114, %v2114
      %v2147 = vpack.c.b16 %v2115, %v2115
      %v2148 = vpack.c.b16 %v2116, %v2116
      %v2149 = vpack.c.b16 %v2117, %v2117
      %v2150 = vpack.c.b16 %v2118, %v2118
      %v2151 = vpack.c.b16 %v2119, %v2119
      %v2152 = vpack.c.b16 %v2120, %v2120
      %v2153 = vpack.c.b16 %v2121, %v2121
      %v2154 = vpack.c.b16 %v2122, %v2122
      %2187 = vst.msk [vmem:[#allocation3 + $0xc] sm:$0xf] %vm840, %v2123
      %2188 = vst.msk [vmem:[#allocation3 + $0x20] sm:$0xf] %vm840, %v2124
      %2189 = vst.msk [vmem:[#allocation3 + $0x34] sm:$0xf] %vm840, %v2125
      %2190 = vst.msk [vmem:[#allocation3 + $0x48] sm:$0xf] %vm840, %v2126
      %2191 = vst.msk [vmem:[#allocation3 + $0x5c] sm:$0xf] %vm840, %v2127
      %2192 = vst.msk [vmem:[#allocation3 + $0x70] sm:$0xf] %vm840, %v2128
      %2193 = vst.msk [vmem:[#allocation3 + $0x84] sm:$0xf] %vm840, %v2129
      %2194 = vst.msk [vmem:[#allocation3 + $0x98] sm:$0xf] %vm840, %v2130
      %2195 = vst.msk [vmem:[#allocation3 + $0xac] sm:$0xf] %vm840, %v2131
      %2196 = vst.msk [vmem:[#allocation3 + $0xc0] sm:$0xf] %vm840, %v2132
      %2197 = vst.msk [vmem:[#allocation3 + $0xd4] sm:$0xf] %vm840, %v2133
      %2198 = vst.msk [vmem:[#allocation3 + $0xe8] sm:$0xf] %vm840, %v2134
      %2199 = vst.msk [vmem:[#allocation3 + $0xfc] sm:$0xf] %vm840, %v2135
      %2200 = vst.msk [vmem:[#allocation3 + $0x110] sm:$0xf] %vm840, %v2136
      %2201 = vst.msk [vmem:[#allocation3 + $0x124] sm:$0xf] %vm840, %v2137
      %2202 = vst.msk [vmem:[#allocation3 + $0x138] sm:$0xf] %vm840, %v2138
      %2203 = vst.msk [vmem:[#allocation3 + $0x14c] sm:$0xf] %vm840, %v2139
      %2204 = vst.msk [vmem:[#allocation3 + $0x160] sm:$0xf] %vm840, %v2140
      %2205 = vst.msk [vmem:[#allocation3 + $0x174] sm:$0xf] %vm840, %v2141
      %2206 = vst.msk [vmem:[#allocation3 + $0x188] sm:$0xf] %vm840, %v2142
      %2207 = vst.msk [vmem:[#allocation3 + $0x19c] sm:$0xf] %vm840, %v2143
      %2208 = vst.msk [vmem:[#allocation3 + $0x1b0] sm:$0xf] %vm840, %v2144
      %2209 = vst.msk [vmem:[#allocation3 + $0x1c4] sm:$0xf] %vm840, %v2145
      %2210 = vst.msk [vmem:[#allocation3 + $0x1d8] sm:$0xf] %vm840, %v2146
      %2211 = vst.msk [vmem:[#allocation3 + $0x1ec] sm:$0xf] %vm840, %v2147
      %2212 = vst.msk [vmem:[#allocation3 + $0x200] sm:$0xf] %vm840, %v2148
      %2213 = vst.msk [vmem:[#allocation3 + $0x214] sm:$0xf] %vm840, %v2149
      %2214 = vst.msk [vmem:[#allocation3 + $0x228] sm:$0xf] %vm840, %v2150
      %2215 = vst.msk [vmem:[#allocation3 + $0x23c] sm:$0xf] %vm840, %v2151
      %2216 = vst.msk [vmem:[#allocation3 + $0x250] sm:$0xf] %vm840, %v2152
      %2217 = vst.msk [vmem:[#allocation3 + $0x264] sm:$0xf] %vm840, %v2153
      %2218 = vst.msk [vmem:[#allocation3 + $0x278] sm:$0xf] %vm840, %v2154
      %v2219 = vld [vmem:[%s2026 + $0x1] sm:$0xff]
      %v2220 = vld [vmem:[%s2026 + $0x9] sm:$0xff]
      %v2221 = vld [vmem:[%s2026 + $0x19] sm:$0xff]
      %v2222 = vld [vmem:[%s2026 + $0x21] sm:$0xff]
      %v2223 = vld [vmem:[%s2026 + $0x31] sm:$0xff]
      %v2224 = vld [vmem:[%s2026 + $0x39] sm:$0xff]
      %v2225 = vld [vmem:[%s2026 + $0x49] sm:$0xff]
      %v2226 = vld [vmem:[%s2026 + $0x51] sm:$0xff]
      %v2227 = vld [vmem:[%s2026 + $0x61] sm:$0xff]
      %v2228 = vld [vmem:[%s2026 + $0x69] sm:$0xff]
      %v2229 = vld [vmem:[%s2026 + $0x79] sm:$0xff]
      %v2230 = vld [vmem:[%s2026 + $0x81] sm:$0xff]
      %v2231 = vld [vmem:[%s2026 + $0x91] sm:$0xff]
      %v2232 = vld [vmem:[%s2026 + $0x99] sm:$0xff]
      %v2233 = vld [vmem:[%s2026 + $0xa9] sm:$0xff]
      %v2234 = vld [vmem:[%s2026 + $0xb1] sm:$0xff]
      %v2235 = vld [vmem:[%s2026 + $0xc1] sm:$0xff]
      %v2236 = vld [vmem:[%s2026 + $0xc9] sm:$0xff]
      %v2237 = vld [vmem:[%s2026 + $0xd9] sm:$0xff]
      %v2238 = vld [vmem:[%s2026 + $0xe1] sm:$0xff]
      %v2239 = vld [vmem:[%s2026 + $0xf1] sm:$0xff]
      %v2240 = vld [vmem:[%s2026 + $0xf9] sm:$0xff]
      %v2241 = vld [vmem:[%s2026 + $0x109] sm:$0xff]
      %v2242 = vld [vmem:[%s2026 + $0x111] sm:$0xff]
      %v2243 = vld [vmem:[%s2026 + $0x121] sm:$0xff]
      %v2244 = vld [vmem:[%s2026 + $0x129] sm:$0xff]
      %v2245 = vld [vmem:[%s2026 + $0x139] sm:$0xff]
      %v2246 = vld [vmem:[%s2026 + $0x141] sm:$0xff]
      %v2247 = vld [vmem:[%s2026 + $0x151] sm:$0xff]
      %v2248 = vld [vmem:[%s2026 + $0x159] sm:$0xff]
      %v2249 = vld [vmem:[%s2026 + $0x169] sm:$0xff]
      %v2250 = vld [vmem:[%s2026 + $0x171] sm:$0xff]
      %v2251 = vpack.c.bf16 %v2220, %v2219
      %v2252 = vpack.c.bf16 %v2222, %v2221
      %v2253 = vpack.c.bf16 %v2224, %v2223
      %v2254 = vpack.c.bf16 %v2226, %v2225
      %v2255 = vpack.c.bf16 %v2228, %v2227
      %v2256 = vpack.c.bf16 %v2230, %v2229
      %v2257 = vpack.c.bf16 %v2232, %v2231
      %v2258 = vpack.c.bf16 %v2234, %v2233
      %v2259 = vpack.c.bf16 %v2236, %v2235
      %v2260 = vpack.c.bf16 %v2238, %v2237
      %v2261 = vpack.c.bf16 %v2240, %v2239
      %v2262 = vpack.c.bf16 %v2242, %v2241
      %v2263 = vpack.c.bf16 %v2244, %v2243
      %v2264 = vpack.c.bf16 %v2246, %v2245
      %v2265 = vpack.c.bf16 %v2248, %v2247
      %v2266 = vpack.c.bf16 %v2250, %v2249
      %v2283 = vunpack.c.l.b16 %v2251
      %v2284 = vunpack.c.h.b16 %v2251
      %v2285 = vunpack.c.l.b16 %v2252
      %v2286 = vunpack.c.h.b16 %v2252
      %v2287 = vunpack.c.l.b16 %v2253
      %v2288 = vunpack.c.h.b16 %v2253
      %v2289 = vunpack.c.l.b16 %v2254
      %v2290 = vunpack.c.h.b16 %v2254
      %v2291 = vunpack.c.l.b16 %v2255
      %v2292 = vunpack.c.h.b16 %v2255
      %v2293 = vunpack.c.l.b16 %v2256
      %v2294 = vunpack.c.h.b16 %v2256
      %v2295 = vunpack.c.l.b16 %v2257
      %v2296 = vunpack.c.h.b16 %v2257
      %v2297 = vunpack.c.l.b16 %v2258
      %v2298 = vunpack.c.h.b16 %v2258
      %v2299 = vunpack.c.l.b16 %v2259
      %v2300 = vunpack.c.h.b16 %v2259
      %v2301 = vunpack.c.l.b16 %v2260
      %v2302 = vunpack.c.h.b16 %v2260
      %v2303 = vunpack.c.l.b16 %v2261
      %v2304 = vunpack.c.h.b16 %v2261
      %v2305 = vunpack.c.l.b16 %v2262
      %v2306 = vunpack.c.h.b16 %v2262
      %v2307 = vunpack.c.l.b16 %v2263
      %v2308 = vunpack.c.h.b16 %v2263
      %v2309 = vunpack.c.l.b16 %v2264
      %v2310 = vunpack.c.h.b16 %v2264
      %v2311 = vunpack.c.l.b16 %v2265
      %v2312 = vunpack.c.h.b16 %v2265
      %v2313 = vunpack.c.l.b16 %v2266
      %v2314 = vunpack.c.h.b16 %v2266
      %v2315 = vpack.c.b16 %v2283, %v2283
      %v2316 = vpack.c.b16 %v2284, %v2284
      %v2317 = vpack.c.b16 %v2285, %v2285
      %v2318 = vpack.c.b16 %v2286, %v2286
      %v2319 = vpack.c.b16 %v2287, %v2287
      %v2320 = vpack.c.b16 %v2288, %v2288
      %v2321 = vpack.c.b16 %v2289, %v2289
      %v2322 = vpack.c.b16 %v2290, %v2290
      %v2323 = vpack.c.b16 %v2291, %v2291
      %v2324 = vpack.c.b16 %v2292, %v2292
      %v2325 = vpack.c.b16 %v2293, %v2293
      %v2326 = vpack.c.b16 %v2294, %v2294
      %v2327 = vpack.c.b16 %v2295, %v2295
      %v2328 = vpack.c.b16 %v2296, %v2296
      %v2329 = vpack.c.b16 %v2297, %v2297
      %v2330 = vpack.c.b16 %v2298, %v2298
      %v2331 = vpack.c.b16 %v2299, %v2299
      %v2332 = vpack.c.b16 %v2300, %v2300
      %v2333 = vpack.c.b16 %v2301, %v2301
      %v2334 = vpack.c.b16 %v2302, %v2302
      %v2335 = vpack.c.b16 %v2303, %v2303
      %v2336 = vpack.c.b16 %v2304, %v2304
      %v2337 = vpack.c.b16 %v2305, %v2305
      %v2338 = vpack.c.b16 %v2306, %v2306
      %v2339 = vpack.c.b16 %v2307, %v2307
      %v2340 = vpack.c.b16 %v2308, %v2308
      %v2341 = vpack.c.b16 %v2309, %v2309
      %v2342 = vpack.c.b16 %v2310, %v2310
      %v2343 = vpack.c.b16 %v2311, %v2311
      %v2344 = vpack.c.b16 %v2312, %v2312
      %v2345 = vpack.c.b16 %v2313, %v2313
      %v2346 = vpack.c.b16 %v2314, %v2314
      %2347 = vrot.lane.b32.xlu0 %v2315, 64
      %v2348 = vpop.permute.xlu0 %2347
      %2349 = vrot.lane.b32.xlu0 %v2316, 64
      %v2350 = vpop.permute.xlu0 %2349
      %2351 = vrot.lane.b32.xlu0 %v2317, 64
      %v2352 = vpop.permute.xlu0 %2351
      %2353 = vrot.lane.b32.xlu0 %v2318, 64
      %v2354 = vpop.permute.xlu0 %2353
      %2355 = vrot.lane.b32.xlu0 %v2319, 64
      %v2356 = vpop.permute.xlu0 %2355
      %2357 = vrot.lane.b32.xlu0 %v2320, 64
      %v2358 = vpop.permute.xlu0 %2357
      %2359 = vrot.lane.b32.xlu0 %v2321, 64
      %v2360 = vpop.permute.xlu0 %2359
      %2361 = vrot.lane.b32.xlu0 %v2322, 64
      %v2362 = vpop.permute.xlu0 %2361
      %2363 = vrot.lane.b32.xlu0 %v2323, 64
      %v2364 = vpop.permute.xlu0 %2363
      %2365 = vrot.lane.b32.xlu0 %v2324, 64
      %v2366 = vpop.permute.xlu0 %2365
      %2367 = vrot.lane.b32.xlu0 %v2325, 64
      %v2368 = vpop.permute.xlu0 %2367
      %2369 = vrot.lane.b32.xlu0 %v2326, 64
      %v2370 = vpop.permute.xlu0 %2369
      %2371 = vrot.lane.b32.xlu0 %v2327, 64
      %v2372 = vpop.permute.xlu0 %2371
      %2373 = vrot.lane.b32.xlu0 %v2328, 64
      %v2374 = vpop.permute.xlu0 %2373
      %2375 = vrot.lane.b32.xlu0 %v2329, 64
      %v2376 = vpop.permute.xlu0 %2375
      %2377 = vrot.lane.b32.xlu0 %v2330, 64
      %v2378 = vpop.permute.xlu0 %2377
      %2379 = vrot.lane.b32.xlu0 %v2331, 64
      %v2380 = vpop.permute.xlu0 %2379
      %2381 = vrot.lane.b32.xlu0 %v2332, 64
      %v2382 = vpop.permute.xlu0 %2381
      %2383 = vrot.lane.b32.xlu0 %v2333, 64
      %v2384 = vpop.permute.xlu0 %2383
      %2385 = vrot.lane.b32.xlu0 %v2334, 64
      %v2386 = vpop.permute.xlu0 %2385
      %2387 = vrot.lane.b32.xlu0 %v2335, 64
      %v2388 = vpop.permute.xlu0 %2387
      %2389 = vrot.lane.b32.xlu0 %v2336, 64
      %v2390 = vpop.permute.xlu0 %2389
      %2391 = vrot.lane.b32.xlu0 %v2337, 64
      %v2392 = vpop.permute.xlu0 %2391
      %2393 = vrot.lane.b32.xlu0 %v2338, 64
      %v2394 = vpop.permute.xlu0 %2393
      %2395 = vrot.lane.b32.xlu0 %v2339, 64
      %v2396 = vpop.permute.xlu0 %2395
      %2397 = vrot.lane.b32.xlu0 %v2340, 64
      %v2398 = vpop.permute.xlu0 %2397
      %2399 = vrot.lane.b32.xlu0 %v2341, 64
      %v2400 = vpop.permute.xlu0 %2399
      %2401 = vrot.lane.b32.xlu0 %v2342, 64
      %v2402 = vpop.permute.xlu0 %2401
      %2403 = vrot.lane.b32.xlu0 %v2343, 64
      %v2404 = vpop.permute.xlu0 %2403
      %2405 = vrot.lane.b32.xlu0 %v2344, 64
      %v2406 = vpop.permute.xlu0 %2405
      %2407 = vrot.lane.b32.xlu0 %v2345, 64
      %v2408 = vpop.permute.xlu0 %2407
      %2409 = vrot.lane.b32.xlu0 %v2346, 64
      %v2410 = vpop.permute.xlu0 %2409
      %2443 = vst.msk [vmem:[#allocation3 + $0xc] sm:$0xf] %vm1097, %v2348
      %2444 = vst.msk [vmem:[#allocation3 + $0x20] sm:$0xf] %vm1097, %v2350
      %2445 = vst.msk [vmem:[#allocation3 + $0x34] sm:$0xf] %vm1097, %v2352
      %2446 = vst.msk [vmem:[#allocation3 + $0x48] sm:$0xf] %vm1097, %v2354
      %2447 = vst.msk [vmem:[#allocation3 + $0x5c] sm:$0xf] %vm1097, %v2356
      %2448 = vst.msk [vmem:[#allocation3 + $0x70] sm:$0xf] %vm1097, %v2358
      %2449 = vst.msk [vmem:[#allocation3 + $0x84] sm:$0xf] %vm1097, %v2360
      %2450 = vst.msk [vmem:[#allocation3 + $0x98] sm:$0xf] %vm1097, %v2362
      %2451 = vst.msk [vmem:[#allocation3 + $0xac] sm:$0xf] %vm1097, %v2364
      %2452 = vst.msk [vmem:[#allocation3 + $0xc0] sm:$0xf] %vm1097, %v2366
      %2453 = vst.msk [vmem:[#allocation3 + $0xd4] sm:$0xf] %vm1097, %v2368
      %2454 = vst.msk [vmem:[#allocation3 + $0xe8] sm:$0xf] %vm1097, %v2370
      %2455 = vst.msk [vmem:[#allocation3 + $0xfc] sm:$0xf] %vm1097, %v2372
      %2456 = vst.msk [vmem:[#allocation3 + $0x110] sm:$0xf] %vm1097, %v2374
      %2457 = vst.msk [vmem:[#allocation3 + $0x124] sm:$0xf] %vm1097, %v2376
      %2458 = vst.msk [vmem:[#allocation3 + $0x138] sm:$0xf] %vm1097, %v2378
      %2459 = vst.msk [vmem:[#allocation3 + $0x14c] sm:$0xf] %vm1097, %v2380
      %2460 = vst.msk [vmem:[#allocation3 + $0x160] sm:$0xf] %vm1097, %v2382
      %2461 = vst.msk [vmem:[#allocation3 + $0x174] sm:$0xf] %vm1097, %v2384
      %2462 = vst.msk [vmem:[#allocation3 + $0x188] sm:$0xf] %vm1097, %v2386
      %2463 = vst.msk [vmem:[#allocation3 + $0x19c] sm:$0xf] %vm1097, %v2388
      %2464 = vst.msk [vmem:[#allocation3 + $0x1b0] sm:$0xf] %vm1097, %v2390
      %2465 = vst.msk [vmem:[#allocation3 + $0x1c4] sm:$0xf] %vm1097, %v2392
      %2466 = vst.msk [vmem:[#allocation3 + $0x1d8] sm:$0xf] %vm1097, %v2394
      %2467 = vst.msk [vmem:[#allocation3 + $0x1ec] sm:$0xf] %vm1097, %v2396
      %2468 = vst.msk [vmem:[#allocation3 + $0x200] sm:$0xf] %vm1097, %v2398
      %2469 = vst.msk [vmem:[#allocation3 + $0x214] sm:$0xf] %vm1097, %v2400
      %2470 = vst.msk [vmem:[#allocation3 + $0x228] sm:$0xf] %vm1097, %v2402
      %2471 = vst.msk [vmem:[#allocation3 + $0x23c] sm:$0xf] %vm1097, %v2404
      %2472 = vst.msk [vmem:[#allocation3 + $0x250] sm:$0xf] %vm1097, %v2406
      %2473 = vst.msk [vmem:[#allocation3 + $0x264] sm:$0xf] %vm1097, %v2408
      %2474 = vst.msk [vmem:[#allocation3 + $0x278] sm:$0xf] %vm1097, %v2410
      %v2475 = vld [vmem:[%s2026 + $0x2] sm:$0xff]
      %v2476 = vld [vmem:[%s2026 + $0xa] sm:$0xff]
      %v2477 = vld [vmem:[%s2026 + $0x1a] sm:$0xff]
      %v2478 = vld [vmem:[%s2026 + $0x22] sm:$0xff]
      %v2479 = vld [vmem:[%s2026 + $0x32] sm:$0xff]
      %v2480 = vld [vmem:[%s2026 + $0x3a] sm:$0xff]
      %v2481 = vld [vmem:[%s2026 + $0x4a] sm:$0xff]
      %v2482 = vld [vmem:[%s2026 + $0x52] sm:$0xff]
      %v2483 = vld [vmem:[%s2026 + $0x62] sm:$0xff]
      %v2484 = vld [vmem:[%s2026 + $0x6a] sm:$0xff]
      %v2485 = vld [vmem:[%s2026 + $0x7a] sm:$0xff]
      %v2486 = vld [vmem:[%s2026 + $0x82] sm:$0xff]
      %v2487 = vld [vmem:[%s2026 + $0x92] sm:$0xff]
      %v2488 = vld [vmem:[%s2026 + $0x9a] sm:$0xff]
      %v2489 = vld [vmem:[%s2026 + $0xaa] sm:$0xff]
      %v2490 = vld [vmem:[%s2026 + $0xb2] sm:$0xff]
      %v2491 = vld [vmem:[%s2026 + $0xc2] sm:$0xff]
      %v2492 = vld [vmem:[%s2026 + $0xca] sm:$0xff]
      %v2493 = vld [vmem:[%s2026 + $0xda] sm:$0xff]
      %v2494 = vld [vmem:[%s2026 + $0xe2] sm:$0xff]
      %v2495 = vld [vmem:[%s2026 + $0xf2] sm:$0xff]
      %v2496 = vld [vmem:[%s2026 + $0xfa] sm:$0xff]
      %v2497 = vld [vmem:[%s2026 + $0x10a] sm:$0xff]
      %v2498 = vld [vmem:[%s2026 + $0x112] sm:$0xff]
      %v2499 = vld [vmem:[%s2026 + $0x122] sm:$0xff]
      %v2500 = vld [vmem:[%s2026 + $0x12a] sm:$0xff]
      %v2501 = vld [vmem:[%s2026 + $0x13a] sm:$0xff]
      %v2502 = vld [vmem:[%s2026 + $0x142] sm:$0xff]
      %v2503 = vld [vmem:[%s2026 + $0x152] sm:$0xff]
      %v2504 = vld [vmem:[%s2026 + $0x15a] sm:$0xff]
      %v2505 = vld [vmem:[%s2026 + $0x16a] sm:$0xff]
      %v2506 = vld [vmem:[%s2026 + $0x172] sm:$0xff]
      %v2507 = vpack.c.bf16 %v2476, %v2475
      %v2508 = vpack.c.bf16 %v2478, %v2477
      %v2509 = vpack.c.bf16 %v2480, %v2479
      %v2510 = vpack.c.bf16 %v2482, %v2481
      %v2511 = vpack.c.bf16 %v2484, %v2483
      %v2512 = vpack.c.bf16 %v2486, %v2485
      %v2513 = vpack.c.bf16 %v2488, %v2487
      %v2514 = vpack.c.bf16 %v2490, %v2489
      %v2515 = vpack.c.bf16 %v2492, %v2491
      %v2516 = vpack.c.bf16 %v2494, %v2493
      %v2517 = vpack.c.bf16 %v2496, %v2495
      %v2518 = vpack.c.bf16 %v2498, %v2497
      %v2519 = vpack.c.bf16 %v2500, %v2499
      %v2520 = vpack.c.bf16 %v2502, %v2501
      %v2521 = vpack.c.bf16 %v2504, %v2503
      %v2522 = vpack.c.bf16 %v2506, %v2505
      %v2539 = vunpack.c.l.b16 %v2507
      %v2540 = vunpack.c.h.b16 %v2507
      %v2541 = vunpack.c.l.b16 %v2508
      %v2542 = vunpack.c.h.b16 %v2508
      %v2543 = vunpack.c.l.b16 %v2509
      %v2544 = vunpack.c.h.b16 %v2509
      %v2545 = vunpack.c.l.b16 %v2510
      %v2546 = vunpack.c.h.b16 %v2510
      %v2547 = vunpack.c.l.b16 %v2511
      %v2548 = vunpack.c.h.b16 %v2511
      %v2549 = vunpack.c.l.b16 %v2512
      %v2550 = vunpack.c.h.b16 %v2512
      %v2551 = vunpack.c.l.b16 %v2513
      %v2552 = vunpack.c.h.b16 %v2513
      %v2553 = vunpack.c.l.b16 %v2514
      %v2554 = vunpack.c.h.b16 %v2514
      %v2555 = vunpack.c.l.b16 %v2515
      %v2556 = vunpack.c.h.b16 %v2515
      %v2557 = vunpack.c.l.b16 %v2516
      %v2558 = vunpack.c.h.b16 %v2516
      %v2559 = vunpack.c.l.b16 %v2517
      %v2560 = vunpack.c.h.b16 %v2517
      %v2561 = vunpack.c.l.b16 %v2518
      %v2562 = vunpack.c.h.b16 %v2518
      %v2563 = vunpack.c.l.b16 %v2519
      %v2564 = vunpack.c.h.b16 %v2519
      %v2565 = vunpack.c.l.b16 %v2520
      %v2566 = vunpack.c.h.b16 %v2520
      %v2567 = vunpack.c.l.b16 %v2521
      %v2568 = vunpack.c.h.b16 %v2521
      %v2569 = vunpack.c.l.b16 %v2522
      %v2570 = vunpack.c.h.b16 %v2522
      %v2571 = vpack.c.b16 %v2539, %v2539
      %v2572 = vpack.c.b16 %v2540, %v2540
      %v2573 = vpack.c.b16 %v2541, %v2541
      %v2574 = vpack.c.b16 %v2542, %v2542
      %v2575 = vpack.c.b16 %v2543, %v2543
      %v2576 = vpack.c.b16 %v2544, %v2544
      %v2577 = vpack.c.b16 %v2545, %v2545
      %v2578 = vpack.c.b16 %v2546, %v2546
      %v2579 = vpack.c.b16 %v2547, %v2547
      %v2580 = vpack.c.b16 %v2548, %v2548
      %v2581 = vpack.c.b16 %v2549, %v2549
      %v2582 = vpack.c.b16 %v2550, %v2550
      %v2583 = vpack.c.b16 %v2551, %v2551
      %v2584 = vpack.c.b16 %v2552, %v2552
      %v2585 = vpack.c.b16 %v2553, %v2553
      %v2586 = vpack.c.b16 %v2554, %v2554
      %v2587 = vpack.c.b16 %v2555, %v2555
      %v2588 = vpack.c.b16 %v2556, %v2556
      %v2589 = vpack.c.b16 %v2557, %v2557
      %v2590 = vpack.c.b16 %v2558, %v2558
      %v2591 = vpack.c.b16 %v2559, %v2559
      %v2592 = vpack.c.b16 %v2560, %v2560
      %v2593 = vpack.c.b16 %v2561, %v2561
      %v2594 = vpack.c.b16 %v2562, %v2562
      %v2595 = vpack.c.b16 %v2563, %v2563
      %v2596 = vpack.c.b16 %v2564, %v2564
      %v2597 = vpack.c.b16 %v2565, %v2565
      %v2598 = vpack.c.b16 %v2566, %v2566
      %v2599 = vpack.c.b16 %v2567, %v2567
      %v2600 = vpack.c.b16 %v2568, %v2568
      %v2601 = vpack.c.b16 %v2569, %v2569
      %v2602 = vpack.c.b16 %v2570, %v2570
      %2635 = vst.msk [vmem:[#allocation3 + $0x10] sm:$0xf] %vm840, %v2571
      %2636 = vst.msk [vmem:[#allocation3 + $0x24] sm:$0xf] %vm840, %v2572
      %2637 = vst.msk [vmem:[#allocation3 + $0x38] sm:$0xf] %vm840, %v2573
      %2638 = vst.msk [vmem:[#allocation3 + $0x4c] sm:$0xf] %vm840, %v2574
      %2639 = vst.msk [vmem:[#allocation3 + $0x60] sm:$0xf] %vm840, %v2575
      %2640 = vst.msk [vmem:[#allocation3 + $0x74] sm:$0xf] %vm840, %v2576
      %2641 = vst.msk [vmem:[#allocation3 + $0x88] sm:$0xf] %vm840, %v2577
      %2642 = vst.msk [vmem:[#allocation3 + $0x9c] sm:$0xf] %vm840, %v2578
      %2643 = vst.msk [vmem:[#allocation3 + $0xb0] sm:$0xf] %vm840, %v2579
      %2644 = vst.msk [vmem:[#allocation3 + $0xc4] sm:$0xf] %vm840, %v2580
      %2645 = vst.msk [vmem:[#allocation3 + $0xd8] sm:$0xf] %vm840, %v2581
      %2646 = vst.msk [vmem:[#allocation3 + $0xec] sm:$0xf] %vm840, %v2582
      %2647 = vst.msk [vmem:[#allocation3 + $0x100] sm:$0xf] %vm840, %v2583
      %2648 = vst.msk [vmem:[#allocation3 + $0x114] sm:$0xf] %vm840, %v2584
      %2649 = vst.msk [vmem:[#allocation3 + $0x128] sm:$0xf] %vm840, %v2585
      %2650 = vst.msk [vmem:[#allocation3 + $0x13c] sm:$0xf] %vm840, %v2586
      %2651 = vst.msk [vmem:[#allocation3 + $0x150] sm:$0xf] %vm840, %v2587
      %2652 = vst.msk [vmem:[#allocation3 + $0x164] sm:$0xf] %vm840, %v2588
      %2653 = vst.msk [vmem:[#allocation3 + $0x178] sm:$0xf] %vm840, %v2589
      %2654 = vst.msk [vmem:[#allocation3 + $0x18c] sm:$0xf] %vm840, %v2590
      %2655 = vst.msk [vmem:[#allocation3 + $0x1a0] sm:$0xf] %vm840, %v2591
      %2656 = vst.msk [vmem:[#allocation3 + $0x1b4] sm:$0xf] %vm840, %v2592
      %2657 = vst.msk [vmem:[#allocation3 + $0x1c8] sm:$0xf] %vm840, %v2593
      %2658 = vst.msk [vmem:[#allocation3 + $0x1dc] sm:$0xf] %vm840, %v2594
      %2659 = vst.msk [vmem:[#allocation3 + $0x1f0] sm:$0xf] %vm840, %v2595
      %2660 = vst.msk [vmem:[#allocation3 + $0x204] sm:$0xf] %vm840, %v2596
      %2661 = vst.msk [vmem:[#allocation3 + $0x218] sm:$0xf] %vm840, %v2597
      %2662 = vst.msk [vmem:[#allocation3 + $0x22c] sm:$0xf] %vm840, %v2598
      %2663 = vst.msk [vmem:[#allocation3 + $0x240] sm:$0xf] %vm840, %v2599
      %2664 = vst.msk [vmem:[#allocation3 + $0x254] sm:$0xf] %vm840, %v2600
      %2665 = vst.msk [vmem:[#allocation3 + $0x268] sm:$0xf] %vm840, %v2601
      %2666 = vst.msk [vmem:[#allocation3 + $0x27c] sm:$0xf] %vm840, %v2602
      %v2667 = vld [vmem:[#allocation3] sm:$0xff]
      %v2668 = vld [vmem:[#allocation3 + $0x8] sm:$0xff]
      %v2669 = vld [vmem:[#allocation3 + $0x10] sm:$0xf]
      %v2670 = vld [vmem:[#allocation3 + $0x14] sm:$0xff]
      %v2671 = vld [vmem:[#allocation3 + $0x1c] sm:$0xff]
      %v2672 = vld [vmem:[#allocation3 + $0x24] sm:$0xf]
      %v2673 = vld [vmem:[#allocation3 + $0x28] sm:$0xff]
      %v2674 = vld [vmem:[#allocation3 + $0x30] sm:$0xff]
      %v2675 = vld [vmem:[#allocation3 + $0x38] sm:$0xf]
      %v2676 = vld [vmem:[#allocation3 + $0x3c] sm:$0xff]
      %v2677 = vld [vmem:[#allocation3 + $0x44] sm:$0xff]
      %v2678 = vld [vmem:[#allocation3 + $0x4c] sm:$0xf]
      %v2679 = vld [vmem:[#allocation3 + $0x50] sm:$0xff]
      %v2680 = vld [vmem:[#allocation3 + $0x58] sm:$0xff]
      %v2681 = vld [vmem:[#allocation3 + $0x60] sm:$0xf]
      %v2682 = vld [vmem:[#allocation3 + $0x64] sm:$0xff]
      %v2683 = vld [vmem:[#allocation3 + $0x6c] sm:$0xff]
      %v2684 = vld [vmem:[#allocation3 + $0x74] sm:$0xf]
      %v2685 = vld [vmem:[#allocation3 + $0x78] sm:$0xff]
      %v2686 = vld [vmem:[#allocation3 + $0x80] sm:$0xff]
      %v2687 = vld [vmem:[#allocation3 + $0x88] sm:$0xf]
      %v2688 = vld [vmem:[#allocation3 + $0x8c] sm:$0xff]
      %v2689 = vld [vmem:[#allocation3 + $0x94] sm:$0xff]
      %v2690 = vld [vmem:[#allocation3 + $0x9c] sm:$0xf]
      %v2691 = vld [vmem:[#allocation3 + $0xa0] sm:$0xff]
      %v2692 = vld [vmem:[#allocation3 + $0xa8] sm:$0xff]
      %v2693 = vld [vmem:[#allocation3 + $0xb0] sm:$0xf]
      %v2694 = vld [vmem:[#allocation3 + $0xb4] sm:$0xff]
      %v2695 = vld [vmem:[#allocation3 + $0xbc] sm:$0xff]
      %v2696 = vld [vmem:[#allocation3 + $0xc4] sm:$0xf]
      %v2697 = vld [vmem:[#allocation3 + $0xc8] sm:$0xff]
      %v2698 = vld [vmem:[#allocation3 + $0xd0] sm:$0xff]
      %v2699 = vld [vmem:[#allocation3 + $0xd8] sm:$0xf]
      %v2700 = vld [vmem:[#allocation3 + $0xdc] sm:$0xff]
      %v2701 = vld [vmem:[#allocation3 + $0xe4] sm:$0xff]
      %v2702 = vld [vmem:[#allocation3 + $0xec] sm:$0xf]
      %v2703 = vld [vmem:[#allocation3 + $0xf0] sm:$0xff]
      %v2704 = vld [vmem:[#allocation3 + $0xf8] sm:$0xff]
      %v2705 = vld [vmem:[#allocation3 + $0x100] sm:$0xf]
      %v2706 = vld [vmem:[#allocation3 + $0x104] sm:$0xff]
      %v2707 = vld [vmem:[#allocation3 + $0x10c] sm:$0xff]
      %v2708 = vld [vmem:[#allocation3 + $0x114] sm:$0xf]
      %v2709 = vld [vmem:[#allocation3 + $0x118] sm:$0xff]
      %v2710 = vld [vmem:[#allocation3 + $0x120] sm:$0xff]
      %v2711 = vld [vmem:[#allocation3 + $0x128] sm:$0xf]
      %v2712 = vld [vmem:[#allocation3 + $0x12c] sm:$0xff]
      %v2713 = vld [vmem:[#allocation3 + $0x134] sm:$0xff]
      %v2714 = vld [vmem:[#allocation3 + $0x13c] sm:$0xf]
      %v2715 = vld [vmem:[#allocation3 + $0x140] sm:$0xff]
      %v2716 = vld [vmem:[#allocation3 + $0x148] sm:$0xff]
      %v2717 = vld [vmem:[#allocation3 + $0x150] sm:$0xf]
      %v2718 = vld [vmem:[#allocation3 + $0x154] sm:$0xff]
      %v2719 = vld [vmem:[#allocation3 + $0x15c] sm:$0xff]
      %v2720 = vld [vmem:[#allocation3 + $0x164] sm:$0xf]
      %v2721 = vld [vmem:[#allocation3 + $0x168] sm:$0xff]
      %v2722 = vld [vmem:[#allocation3 + $0x170] sm:$0xff]
      %v2723 = vld [vmem:[#allocation3 + $0x178] sm:$0xf]
      %v2724 = vld [vmem:[#allocation3 + $0x17c] sm:$0xff]
      %v2725 = vld [vmem:[#allocation3 + $0x184] sm:$0xff]
      %v2726 = vld [vmem:[#allocation3 + $0x18c] sm:$0xf]
      %v2727 = vld [vmem:[#allocation3 + $0x190] sm:$0xff]
      %v2728 = vld [vmem:[#allocation3 + $0x198] sm:$0xff]
      %v2729 = vld [vmem:[#allocation3 + $0x1a0] sm:$0xf]
      %v2730 = vld [vmem:[#allocation3 + $0x1a4] sm:$0xff]
      %v2731 = vld [vmem:[#allocation3 + $0x1ac] sm:$0xff]
      %v2732 = vld [vmem:[#allocation3 + $0x1b4] sm:$0xf]
      %v2733 = vld [vmem:[#allocation3 + $0x1b8] sm:$0xff]
      %v2734 = vld [vmem:[#allocation3 + $0x1c0] sm:$0xff]
      %v2735 = vld [vmem:[#allocation3 + $0x1c8] sm:$0xf]
      %v2736 = vld [vmem:[#allocation3 + $0x1cc] sm:$0xff]
      %v2737 = vld [vmem:[#allocation3 + $0x1d4] sm:$0xff]
      %v2738 = vld [vmem:[#allocation3 + $0x1dc] sm:$0xf]
      %v2739 = vld [vmem:[#allocation3 + $0x1e0] sm:$0xff]
      %v2740 = vld [vmem:[#allocation3 + $0x1e8] sm:$0xff]
      %v2741 = vld [vmem:[#allocation3 + $0x1f0] sm:$0xf]
      %v2742 = vld [vmem:[#allocation3 + $0x1f4] sm:$0xff]
      %v2743 = vld [vmem:[#allocation3 + $0x1fc] sm:$0xff]
      %v2744 = vld [vmem:[#allocation3 + $0x204] sm:$0xf]
      %v2745 = vld [vmem:[#allocation3 + $0x208] sm:$0xff]
      %v2746 = vld [vmem:[#allocation3 + $0x210] sm:$0xff]
      %v2747 = vld [vmem:[#allocation3 + $0x218] sm:$0xf]
      %v2748 = vld [vmem:[#allocation3 + $0x21c] sm:$0xff]
      %v2749 = vld [vmem:[#allocation3 + $0x224] sm:$0xff]
      %v2750 = vld [vmem:[#allocation3 + $0x22c] sm:$0xf]
      %v2751 = vld [vmem:[#allocation3 + $0x230] sm:$0xff]
      %v2752 = vld [vmem:[#allocation3 + $0x238] sm:$0xff]
      %v2753 = vld [vmem:[#allocation3 + $0x240] sm:$0xf]
      %v2754 = vld [vmem:[#allocation3 + $0x244] sm:$0xff]
      %v2755 = vld [vmem:[#allocation3 + $0x24c] sm:$0xff]
      %v2756 = vld [vmem:[#allocation3 + $0x254] sm:$0xf]
      %v2757 = vld [vmem:[#allocation3 + $0x258] sm:$0xff]
      %v2758 = vld [vmem:[#allocation3 + $0x260] sm:$0xff]
      %v2759 = vld [vmem:[#allocation3 + $0x268] sm:$0xf]
      %v2760 = vld [vmem:[#allocation3 + $0x26c] sm:$0xff]
      %v2761 = vld [vmem:[#allocation3 + $0x274] sm:$0xff]
      %v2762 = vld [vmem:[#allocation3 + $0x27c] sm:$0xf]
      %v2763 = vld [vmem:[%s3] sm:$0xf]
      %v2764 = vld [vmem:[%s3 + $0x4] sm:$0xf]
      %v2765 = vld [vmem:[%s3 + $0x8] sm:$0xf]
      %v2766 = vld [vmem:[%s3 + $0xc] sm:$0xf]
      %v2767 = vld [vmem:[%s3 + $0x10] sm:$0xf]
      %v2768 = vld [vmem:[%s3 + $0x14] sm:$0xf]
      %v2769 = vld [vmem:[%s3 + $0x18] sm:$0xf]
      %v2770 = vld [vmem:[%s3 + $0x1c] sm:$0xf]
      %v2771 = vld [vmem:[%s3 + $0x20] sm:$0xf]
      %v2772 = vld [vmem:[%s3 + $0x24] sm:$0xf]
      %v2773 = vld [vmem:[%s3 + $0x28] sm:$0xf]
      %v2774 = vld [vmem:[%s3 + $0x2c] sm:$0xf]
      %v2775 = vld [vmem:[%s3 + $0x30] sm:$0xf]
      %v2776 = vld [vmem:[%s3 + $0x34] sm:$0xf]
      %v2777 = vld [vmem:[%s3 + $0x38] sm:$0xf]
      %v2778 = vld [vmem:[%s3 + $0x3c] sm:$0xf]
      %v2779 = vld [vmem:[%s3 + $0x40] sm:$0xf]
      %v2780 = vld [vmem:[%s3 + $0x44] sm:$0xf]
      %v2781 = vld [vmem:[%s3 + $0x48] sm:$0xf]
      %v2782 = vld [vmem:[%s3 + $0x4c] sm:$0xf]
      %v2783 = vld [vmem:[%s3 + $0x50] sm:$0xf]
      %v2784 = vld [vmem:[%s3 + $0x54] sm:$0xf]
      %v2785 = vld [vmem:[%s3 + $0x58] sm:$0xf]
      %v2786 = vld [vmem:[%s3 + $0x5c] sm:$0xf]
      %v2787 = vld [vmem:[%s3 + $0x60] sm:$0xf]
      %v2788 = vld [vmem:[%s3 + $0x64] sm:$0xf]
      %v2789 = vld [vmem:[%s3 + $0x68] sm:$0xf]
      %v2790 = vld [vmem:[%s3 + $0x6c] sm:$0xf]
      %v2791 = vld [vmem:[%s3 + $0x70] sm:$0xf]
      %v2792 = vld [vmem:[%s3 + $0x74] sm:$0xf]
      %v2793 = vld [vmem:[%s3 + $0x78] sm:$0xf]
      %v2794 = vld [vmem:[%s3 + $0x7c] sm:$0xf]
      %v2795 = vld [vmem:[%s3 + $0x80] sm:$0xf]
      %v2796 = vld [vmem:[%s3 + $0x84] sm:$0xf]
      %v2797 = vld [vmem:[%s3 + $0x88] sm:$0xf]
      %v2798 = vld [vmem:[%s3 + $0x8c] sm:$0xf]
      %v2799 = vld [vmem:[%s3 + $0x90] sm:$0xf]
      %v2800 = vld [vmem:[%s3 + $0x94] sm:$0xf]
      %v2801 = vld [vmem:[%s3 + $0x98] sm:$0xf]
      %v2802 = vld [vmem:[%s3 + $0x9c] sm:$0xf]
      %v2803 = vld [vmem:[%s3 + $0xa0] sm:$0xf]
      %v2804 = vld [vmem:[%s3 + $0xa4] sm:$0xf]
      %v2805 = vld [vmem:[%s3 + $0xa8] sm:$0xf]
      %v2806 = vld [vmem:[%s3 + $0xac] sm:$0xf]
      %v2807 = vld [vmem:[%s3 + $0xb0] sm:$0xf]
      %v2808 = vld [vmem:[%s3 + $0xb4] sm:$0xf]
      %v2809 = vld [vmem:[%s3 + $0xb8] sm:$0xf]
      %v2810 = vld [vmem:[%s3 + $0xbc] sm:$0xf]
      %v2811 = vld [vmem:[%s3 + $0xc0] sm:$0xf]
      %v2812 = vld [vmem:[%s3 + $0xc4] sm:$0xf]
      %v2813 = vld [vmem:[%s3 + $0xc8] sm:$0xf]
      %v2814 = vld [vmem:[%s3 + $0xcc] sm:$0xf]
      %v2815 = vld [vmem:[%s3 + $0xd0] sm:$0xf]
      %v2816 = vld [vmem:[%s3 + $0xd4] sm:$0xf]
      %v2817 = vld [vmem:[%s3 + $0xd8] sm:$0xf]
      %v2818 = vld [vmem:[%s3 + $0xdc] sm:$0xf]
      %v2819 = vld [vmem:[%s3 + $0xe0] sm:$0xf]
      %v2820 = vld [vmem:[%s3 + $0xe4] sm:$0xf]
      %v2821 = vld [vmem:[%s3 + $0xe8] sm:$0xf]
      %v2822 = vld [vmem:[%s3 + $0xec] sm:$0xf]
      %v2823 = vld [vmem:[%s3 + $0xf0] sm:$0xf]
      %v2824 = vld [vmem:[%s3 + $0xf4] sm:$0xf]
      %v2825 = vld [vmem:[%s3 + $0xf8] sm:$0xf]
      %v2826 = vld [vmem:[%s3 + $0xfc] sm:$0xf]
      %v2827 = vld [vmem:[%s3 + $0x100] sm:$0xf]
      %v2828 = vld [vmem:[%s3 + $0x104] sm:$0xf]
      %v2829 = vld [vmem:[%s3 + $0x108] sm:$0xf]
      %v2830 = vld [vmem:[%s3 + $0x10c] sm:$0xf]
      %v2831 = vld [vmem:[%s3 + $0x110] sm:$0xf]
      %v2832 = vld [vmem:[%s3 + $0x114] sm:$0xf]
      %v2833 = vld [vmem:[%s3 + $0x118] sm:$0xf]
      %v2834 = vld [vmem:[%s3 + $0x11c] sm:$0xf]
      %v2835 = vld [vmem:[%s4] sm:$0x1]
      %v2837 = vlaneseq
      %v2838 = vshrl.u32 %v2837, 7
      %v2839 = vsub.s32 0, %v2838
      %v2840 = vrot.slane %v2835, %v2839
      %v2938 = vunpack.c.l.b16 %v2667
      %v2939 = vunpack.c.h.b16 %v2667
      %v2940 = vunpack.c.l.b16 %v2668
      %v2941 = vunpack.c.h.b16 %v2668
      %v2942 = vunpack.c.l.b16 %v2669
      %v2943 = vunpack.c.l.b16 %v2670
      %v2944 = vunpack.c.h.b16 %v2670
      %v2945 = vunpack.c.l.b16 %v2671
      %v2946 = vunpack.c.h.b16 %v2671
      %v2947 = vunpack.c.l.b16 %v2672
      %v2948 = vunpack.c.l.b16 %v2673
      %v2949 = vunpack.c.h.b16 %v2673
      %v2950 = vunpack.c.l.b16 %v2674
      %v2951 = vunpack.c.h.b16 %v2674
      %v2952 = vunpack.c.l.b16 %v2675
      %v2953 = vunpack.c.l.b16 %v2676
      %v2954 = vunpack.c.h.b16 %v2676
      %v2955 = vunpack.c.l.b16 %v2677
      %v2956 = vunpack.c.h.b16 %v2677
      %v2957 = vunpack.c.l.b16 %v2678
      %v2958 = vunpack.c.l.b16 %v2679
      %v2959 = vunpack.c.h.b16 %v2679
      %v2960 = vunpack.c.l.b16 %v2680
      %v2961 = vunpack.c.h.b16 %v2680
      %v2962 = vunpack.c.l.b16 %v2681
      %v2963 = vunpack.c.l.b16 %v2682
      %v2964 = vunpack.c.h.b16 %v2682
      %v2965 = vunpack.c.l.b16 %v2683
      %v2966 = vunpack.c.h.b16 %v2683
      %v2967 = vunpack.c.l.b16 %v2684
      %v2968 = vunpack.c.l.b16 %v2685
      %v2969 = vunpack.c.h.b16 %v2685
      %v2970 = vunpack.c.l.b16 %v2686
      %v2971 = vunpack.c.h.b16 %v2686
      %v2972 = vunpack.c.l.b16 %v2687
      %v2973 = vunpack.c.l.b16 %v2688
      %v2974 = vunpack.c.h.b16 %v2688
      %v2975 = vunpack.c.l.b16 %v2689
      %v2976 = vunpack.c.h.b16 %v2689
      %v2977 = vunpack.c.l.b16 %v2690
      %v2978 = vunpack.c.l.b16 %v2691
      %v2979 = vunpack.c.h.b16 %v2691
      %v2980 = vunpack.c.l.b16 %v2692
      %v2981 = vunpack.c.h.b16 %v2692
      %v2982 = vunpack.c.l.b16 %v2693
      %v2983 = vunpack.c.l.b16 %v2694
      %v2984 = vunpack.c.h.b16 %v2694
      %v2985 = vunpack.c.l.b16 %v2695
      %v2986 = vunpack.c.h.b16 %v2695
      %v2987 = vunpack.c.l.b16 %v2696
      %v2988 = vunpack.c.l.b16 %v2697
      %v2989 = vunpack.c.h.b16 %v2697
      %v2990 = vunpack.c.l.b16 %v2698
      %v2991 = vunpack.c.h.b16 %v2698
      %v2992 = vunpack.c.l.b16 %v2699
      %v2993 = vunpack.c.l.b16 %v2700
      %v2994 = vunpack.c.h.b16 %v2700
      %v2995 = vunpack.c.l.b16 %v2701
      %v2996 = vunpack.c.h.b16 %v2701
      %v2997 = vunpack.c.l.b16 %v2702
      %v2998 = vunpack.c.l.b16 %v2703
      %v2999 = vunpack.c.h.b16 %v2703
      %v3000 = vunpack.c.l.b16 %v2704
      %v3001 = vunpack.c.h.b16 %v2704
      %v3002 = vunpack.c.l.b16 %v2705
      %v3003 = vunpack.c.l.b16 %v2706
      %v3004 = vunpack.c.h.b16 %v2706
      %v3005 = vunpack.c.l.b16 %v2707
      %v3006 = vunpack.c.h.b16 %v2707
      %v3007 = vunpack.c.l.b16 %v2708
      %v3008 = vunpack.c.l.b16 %v2709
      %v3009 = vunpack.c.h.b16 %v2709
      %v3010 = vunpack.c.l.b16 %v2710
      %v3011 = vunpack.c.h.b16 %v2710
      %v3012 = vunpack.c.l.b16 %v2711
      %v3013 = vunpack.c.l.b16 %v2712
      %v3014 = vunpack.c.h.b16 %v2712
      %v3015 = vunpack.c.l.b16 %v2713
      %v3016 = vunpack.c.h.b16 %v2713
      %v3017 = vunpack.c.l.b16 %v2714
      %v3018 = vunpack.c.l.b16 %v2715
      %v3019 = vunpack.c.h.b16 %v2715
      %v3020 = vunpack.c.l.b16 %v2716
      %v3021 = vunpack.c.h.b16 %v2716
      %v3022 = vunpack.c.l.b16 %v2717
      %v3023 = vunpack.c.l.b16 %v2718
      %v3024 = vunpack.c.h.b16 %v2718
      %v3025 = vunpack.c.l.b16 %v2719
      %v3026 = vunpack.c.h.b16 %v2719
      %v3027 = vunpack.c.l.b16 %v2720
      %v3028 = vunpack.c.l.b16 %v2721
      %v3029 = vunpack.c.h.b16 %v2721
      %v3030 = vunpack.c.l.b16 %v2722
      %v3031 = vunpack.c.h.b16 %v2722
      %v3032 = vunpack.c.l.b16 %v2723
      %v3033 = vunpack.c.l.b16 %v2724
      %v3034 = vunpack.c.h.b16 %v2724
      %v3035 = vunpack.c.l.b16 %v2725
      %v3036 = vunpack.c.h.b16 %v2725
      %v3037 = vunpack.c.l.b16 %v2726
      %v3038 = vunpack.c.l.b16 %v2727
      %v3039 = vunpack.c.h.b16 %v2727
      %v3040 = vunpack.c.l.b16 %v2728
      %v3041 = vunpack.c.h.b16 %v2728
      %v3042 = vunpack.c.l.b16 %v2729
      %v3043 = vunpack.c.l.b16 %v2730
      %v3044 = vunpack.c.h.b16 %v2730
      %v3045 = vunpack.c.l.b16 %v2731
      %v3046 = vunpack.c.h.b16 %v2731
      %v3047 = vunpack.c.l.b16 %v2732
      %v3048 = vunpack.c.l.b16 %v2733
      %v3049 = vunpack.c.h.b16 %v2733
      %v3050 = vunpack.c.l.b16 %v2734
      %v3051 = vunpack.c.h.b16 %v2734
      %v3052 = vunpack.c.l.b16 %v2735
      %v3053 = vunpack.c.l.b16 %v2736
      %v3054 = vunpack.c.h.b16 %v2736
      %v3055 = vunpack.c.l.b16 %v2737
      %v3056 = vunpack.c.h.b16 %v2737
      %v3057 = vunpack.c.l.b16 %v2738
      %v3058 = vunpack.c.l.b16 %v2739
      %v3059 = vunpack.c.h.b16 %v2739
      %v3060 = vunpack.c.l.b16 %v2740
      %v3061 = vunpack.c.h.b16 %v2740
      %v3062 = vunpack.c.l.b16 %v2741
      %v3063 = vunpack.c.l.b16 %v2742
      %v3064 = vunpack.c.h.b16 %v2742
      %v3065 = vunpack.c.l.b16 %v2743
      %v3066 = vunpack.c.h.b16 %v2743
      %v3067 = vunpack.c.l.b16 %v2744
      %v3068 = vunpack.c.l.b16 %v2745
      %v3069 = vunpack.c.h.b16 %v2745
      %v3070 = vunpack.c.l.b16 %v2746
      %v3071 = vunpack.c.h.b16 %v2746
      %v3072 = vunpack.c.l.b16 %v2747
      %v3073 = vunpack.c.l.b16 %v2748
      %v3074 = vunpack.c.h.b16 %v2748
      %v3075 = vunpack.c.l.b16 %v2749
      %v3076 = vunpack.c.h.b16 %v2749
      %v3077 = vunpack.c.l.b16 %v2750
      %v3078 = vunpack.c.l.b16 %v2751
      %v3079 = vunpack.c.h.b16 %v2751
      %v3080 = vunpack.c.l.b16 %v2752
      %v3081 = vunpack.c.h.b16 %v2752
      %v3082 = vunpack.c.l.b16 %v2753
      %v3083 = vunpack.c.l.b16 %v2754
      %v3084 = vunpack.c.h.b16 %v2754
      %v3085 = vunpack.c.l.b16 %v2755
      %v3086 = vunpack.c.h.b16 %v2755
      %v3087 = vunpack.c.l.b16 %v2756
      %v3088 = vunpack.c.l.b16 %v2757
      %v3089 = vunpack.c.h.b16 %v2757
      %v3090 = vunpack.c.l.b16 %v2758
      %v3091 = vunpack.c.h.b16 %v2758
      %v3092 = vunpack.c.l.b16 %v2759
      %v3093 = vunpack.c.l.b16 %v2760
      %v3094 = vunpack.c.h.b16 %v2760
      %v3095 = vunpack.c.l.b16 %v2761
      %v3096 = vunpack.c.h.b16 %v2761
      %v3097 = vunpack.c.l.b16 %v2762
      %v3098 = vpack.c.b16 %v2943, %v2938
      %v3099 = vpack.c.b16 %v2944, %v2939
      %v3100 = vpack.c.b16 %v2945, %v2940
      %v3101 = vpack.c.b16 %v2946, %v2941
      %v3102 = vpack.c.b16 %v2947, %v2942
      %v3103 = vpack.c.b16 %v2953, %v2948
      %v3104 = vpack.c.b16 %v2954, %v2949
      %v3105 = vpack.c.b16 %v2955, %v2950
      %v3106 = vpack.c.b16 %v2956, %v2951
      %v3107 = vpack.c.b16 %v2957, %v2952
      %v3108 = vpack.c.b16 %v2963, %v2958
      %v3109 = vpack.c.b16 %v2964, %v2959
      %v3110 = vpack.c.b16 %v2965, %v2960
      %v3111 = vpack.c.b16 %v2966, %v2961
      %v3112 = vpack.c.b16 %v2967, %v2962
      %v3113 = vpack.c.b16 %v2973, %v2968
      %v3114 = vpack.c.b16 %v2974, %v2969
      %v3115 = vpack.c.b16 %v2975, %v2970
      %v3116 = vpack.c.b16 %v2976, %v2971
      %v3117 = vpack.c.b16 %v2977, %v2972
      %v3118 = vpack.c.b16 %v2983, %v2978
      %v3119 = vpack.c.b16 %v2984, %v2979
      %v3120 = vpack.c.b16 %v2985, %v2980
      %v3121 = vpack.c.b16 %v2986, %v2981
      %v3122 = vpack.c.b16 %v2987, %v2982
      %v3123 = vpack.c.b16 %v2993, %v2988
      %v3124 = vpack.c.b16 %v2994, %v2989
      %v3125 = vpack.c.b16 %v2995, %v2990
      %v3126 = vpack.c.b16 %v2996, %v2991
      %v3127 = vpack.c.b16 %v2997, %v2992
      %v3128 = vpack.c.b16 %v3003, %v2998
      %v3129 = vpack.c.b16 %v3004, %v2999
      %v3130 = vpack.c.b16 %v3005, %v3000
      %v3131 = vpack.c.b16 %v3006, %v3001
      %v3132 = vpack.c.b16 %v3007, %v3002
      %v3133 = vpack.c.b16 %v3013, %v3008
      %v3134 = vpack.c.b16 %v3014, %v3009
      %v3135 = vpack.c.b16 %v3015, %v3010
      %v3136 = vpack.c.b16 %v3016, %v3011
      %v3137 = vpack.c.b16 %v3017, %v3012
      %v3138 = vpack.c.b16 %v3023, %v3018
      %v3139 = vpack.c.b16 %v3024, %v3019
      %v3140 = vpack.c.b16 %v3025, %v3020
      %v3141 = vpack.c.b16 %v3026, %v3021
      %v3142 = vpack.c.b16 %v3027, %v3022
      %v3143 = vpack.c.b16 %v3033, %v3028
      %v3144 = vpack.c.b16 %v3034, %v3029
      %v3145 = vpack.c.b16 %v3035, %v3030
      %v3146 = vpack.c.b16 %v3036, %v3031
      %v3147 = vpack.c.b16 %v3037, %v3032
      %v3148 = vpack.c.b16 %v3043, %v3038
      %v3149 = vpack.c.b16 %v3044, %v3039
      %v3150 = vpack.c.b16 %v3045, %v3040
      %v3151 = vpack.c.b16 %v3046, %v3041
      %v3152 = vpack.c.b16 %v3047, %v3042
      %v3153 = vpack.c.b16 %v3053, %v3048
      %v3154 = vpack.c.b16 %v3054, %v3049
      %v3155 = vpack.c.b16 %v3055, %v3050
      %v3156 = vpack.c.b16 %v3056, %v3051
      %v3157 = vpack.c.b16 %v3057, %v3052
      %v3158 = vpack.c.b16 %v3063, %v3058
      %v3159 = vpack.c.b16 %v3064, %v3059
      %v3160 = vpack.c.b16 %v3065, %v3060
      %v3161 = vpack.c.b16 %v3066, %v3061
      %v3162 = vpack.c.b16 %v3067, %v3062
      %v3163 = vpack.c.b16 %v3073, %v3068
      %v3164 = vpack.c.b16 %v3074, %v3069
      %v3165 = vpack.c.b16 %v3075, %v3070
      %v3166 = vpack.c.b16 %v3076, %v3071
      %v3167 = vpack.c.b16 %v3077, %v3072
      %v3168 = vpack.c.b16 %v3083, %v3078
      %v3169 = vpack.c.b16 %v3084, %v3079
      %v3170 = vpack.c.b16 %v3085, %v3080
      %v3171 = vpack.c.b16 %v3086, %v3081
      %v3172 = vpack.c.b16 %v3087, %v3082
      %v3173 = vpack.c.b16 %v3093, %v3088
      %v3174 = vpack.c.b16 %v3094, %v3089
      %v3175 = vpack.c.b16 %v3095, %v3090
      %v3176 = vpack.c.b16 %v3096, %v3091
      %v3177 = vpack.c.b16 %v3097, %v3092
      %v3314 = vunpack.c.l.b16 %v2763
      %v3315 = vunpack.c.l.b16 %v2764
      %v3316 = vunpack.c.l.b16 %v2765
      %v3317 = vunpack.c.l.b16 %v2766
      %v3318 = vunpack.c.l.b16 %v2767
      %v3319 = vunpack.c.l.b16 %v2768
      %v3320 = vunpack.c.l.b16 %v2769
      %v3321 = vunpack.c.l.b16 %v2770
      %v3322 = vunpack.c.l.b16 %v2771
      %v3323 = vunpack.c.l.b16 %v2772
      %v3324 = vunpack.c.l.b16 %v2773
      %v3325 = vunpack.c.l.b16 %v2774
      %v3326 = vunpack.c.l.b16 %v2775
      %v3327 = vunpack.c.l.b16 %v2776
      %v3328 = vunpack.c.l.b16 %v2777
      %v3329 = vunpack.c.l.b16 %v2778
      %v3330 = vunpack.c.l.b16 %v2779
      %v3331 = vunpack.c.l.b16 %v2780
      %v3332 = vunpack.c.l.b16 %v2781
      %v3333 = vunpack.c.l.b16 %v2782
      %v3334 = vunpack.c.l.b16 %v2783
      %v3335 = vunpack.c.l.b16 %v2784
      %v3336 = vunpack.c.l.b16 %v2785
      %v3337 = vunpack.c.l.b16 %v2786
      %v3338 = vunpack.c.l.b16 %v2787
      %v3339 = vunpack.c.l.b16 %v2788
      %v3340 = vunpack.c.l.b16 %v2789
      %v3341 = vunpack.c.l.b16 %v2790
      %v3342 = vunpack.c.l.b16 %v2791
      %v3343 = vunpack.c.l.b16 %v2792
      %v3344 = vunpack.c.l.b16 %v2793
      %v3345 = vunpack.c.l.b16 %v2794
      %v3346 = vunpack.c.l.b16 %v2795
      %v3347 = vunpack.c.l.b16 %v2796
      %v3348 = vunpack.c.l.b16 %v2797
      %v3349 = vunpack.c.l.b16 %v2798
      %v3350 = vunpack.c.l.b16 %v2799
      %v3351 = vunpack.c.l.b16 %v2800
      %v3352 = vunpack.c.l.b16 %v2801
      %v3353 = vunpack.c.l.b16 %v2802
      %v3354 = vunpack.c.l.b16 %v2803
      %v3355 = vunpack.c.l.b16 %v2804
      %v3356 = vunpack.c.l.b16 %v2805
      %v3357 = vunpack.c.l.b16 %v2806
      %v3358 = vunpack.c.l.b16 %v2807
      %v3359 = vunpack.c.l.b16 %v2808
      %v3360 = vunpack.c.l.b16 %v2809
      %v3361 = vunpack.c.l.b16 %v2810
      %v3362 = vunpack.c.l.b16 %v2811
      %v3363 = vunpack.c.l.b16 %v2812
      %v3364 = vunpack.c.l.b16 %v2813
      %v3365 = vunpack.c.l.b16 %v2814
      %v3366 = vunpack.c.l.b16 %v2815
      %v3367 = vunpack.c.l.b16 %v2816
      %v3368 = vunpack.c.l.b16 %v2817
      %v3369 = vunpack.c.l.b16 %v2818
      %v3370 = vunpack.c.l.b16 %v2819
      %v3371 = vunpack.c.l.b16 %v2820
      %v3372 = vunpack.c.l.b16 %v2821
      %v3373 = vunpack.c.l.b16 %v2822
      %v3374 = vunpack.c.l.b16 %v2823
      %v3375 = vunpack.c.l.b16 %v2824
      %v3376 = vunpack.c.l.b16 %v2825
      %v3377 = vunpack.c.l.b16 %v2826
      %v3378 = vunpack.c.l.b16 %v2827
      %v3379 = vunpack.c.l.b16 %v2828
      %v3380 = vunpack.c.l.b16 %v2829
      %v3381 = vunpack.c.l.b16 %v2830
      %v3382 = vunpack.c.l.b16 %v2831
      %v3383 = vunpack.c.l.b16 %v2832
      %v3384 = vunpack.c.l.b16 %v2833
      %v3385 = vunpack.c.l.b16 %v2834
      %v3386 = vpack.c.b16 %v3315, %v3314
      %v3387 = vpack.c.b16 %v3317, %v3316
      %v3388 = vpack.c.b16 %v3319, %v3318
      %v3389 = vpack.c.b16 %v3321, %v3320
      %v3390 = vpack.c.b16 %v3323, %v3322
      %v3391 = vpack.c.b16 %v3325, %v3324
      %v3392 = vpack.c.b16 %v3327, %v3326
      %v3393 = vpack.c.b16 %v3329, %v3328
      %v3394 = vpack.c.b16 %v3331, %v3330
      %v3395 = vpack.c.b16 %v3333, %v3332
      %v3396 = vpack.c.b16 %v3335, %v3334
      %v3397 = vpack.c.b16 %v3337, %v3336
      %v3398 = vpack.c.b16 %v3339, %v3338
      %v3399 = vpack.c.b16 %v3341, %v3340
      %v3400 = vpack.c.b16 %v3343, %v3342
      %v3401 = vpack.c.b16 %v3345, %v3344
      %v3402 = vpack.c.b16 %v3347, %v3346
      %v3403 = vpack.c.b16 %v3349, %v3348
      %v3404 = vpack.c.b16 %v3351, %v3350
      %v3405 = vpack.c.b16 %v3353, %v3352
      %v3406 = vpack.c.b16 %v3355, %v3354
      %v3407 = vpack.c.b16 %v3357, %v3356
      %v3408 = vpack.c.b16 %v3359, %v3358
      %v3409 = vpack.c.b16 %v3361, %v3360
      %v3410 = vpack.c.b16 %v3363, %v3362
      %v3411 = vpack.c.b16 %v3365, %v3364
      %v3412 = vpack.c.b16 %v3367, %v3366
      %v3413 = vpack.c.b16 %v3369, %v3368
      %v3414 = vpack.c.b16 %v3371, %v3370
      %v3415 = vpack.c.b16 %v3373, %v3372
      %v3416 = vpack.c.b16 %v3375, %v3374
      %v3417 = vpack.c.b16 %v3377, %v3376
      %v3418 = vpack.c.b16 %v3379, %v3378
      %v3419 = vpack.c.b16 %v3381, %v3380
      %v3420 = vpack.c.b16 %v3383, %v3382
      %v3421 = vpack.c.b16 %v3385, %v3384
      %v3459 = vsel %vm601, %v3102, 0
      %v3462 = vsel %vm601, %v3107, 0
      %v3465 = vsel %vm601, %v3112, 0
      %v3468 = vsel %vm601, %v3117, 0
      %v3471 = vsel %vm601, %v3122, 0
      %v3474 = vsel %vm601, %v3127, 0
      %v3477 = vsel %vm601, %v3132, 0
      %v3480 = vsel %vm601, %v3137, 0
      %v3483 = vsel %vm601, %v3142, 0
      %v3486 = vsel %vm601, %v3147, 0
      %v3489 = vsel %vm601, %v3152, 0
      %v3492 = vsel %vm601, %v3157, 0
      %v3495 = vsel %vm601, %v3162, 0
      %v3498 = vsel %vm601, %v3167, 0
      %v3501 = vsel %vm601, %v3172, 0
      %v3504 = vsel %vm601, %v3177, 0
      %3506 = vmatprep.subr.bf16.mxu0 0
      %3507 = vmatpush1.bf16.msra.mxu0 %v3393
      %3508 = vmatprep.subr.bf16.mxu0 0
      %3509 = vmatpush1.bf16.msra.mxu0 %v3392
      %3510 = vmatprep.subr.bf16.mxu0 0
      %3511 = vmatpush1.bf16.msra.mxu0 %v3391
      %3512 = vmatprep.subr.bf16.mxu0 0
      %3513 = vmatpush1.bf16.msra.mxu0 %v3390
      %3514 = vmatprep.subr.bf16.mxu0 0
      %3515 = vmatpush1.bf16.msra.mxu0 %v3389
      %3516 = vmatprep.subr.bf16.mxu0 0
      %3517 = vmatpush1.bf16.msra.mxu0 %v3388
      %3518 = vmatprep.subr.bf16.mxu0 0
      %3519 = vmatpush1.bf16.msra.mxu0 %v3387
      %3520 = vmatprep.subr.bf16.mxu0 0
      %3521 = vmatpush1.bf16.msra.mxu0 %v3386
      %3522 = vmatprep.subr.bf16.mxu0 0
      %3523 = vmatpush2.bf16.msra.mxu0 %v3401
      %3524 = vmatprep.subr.bf16.mxu0 0
      %3525 = vmatpush2.bf16.msra.mxu0 %v3400
      %3526 = vmatprep.subr.bf16.mxu0 0
      %3527 = vmatpush2.bf16.msra.mxu0 %v3399
      %3528 = vmatprep.subr.bf16.mxu0 0
      %3529 = vmatpush2.bf16.msra.mxu0 %v3398
      %3530 = vmatprep.subr.bf16.mxu0 0
      %3531 = vmatpush2.bf16.msra.mxu0 %v3397
      %3532 = vmatprep.subr.bf16.mxu0 0
      %3533 = vmatpush2.bf16.msra.mxu0 %v3396
      %3534 = vmatprep.subr.bf16.mxu0 0
      %3535 = vmatpush2.bf16.msra.mxu0 %v3395
      %3536 = vmatprep.subr.bf16.mxu0 0
      %3537 = vmatpush2.bf16.msra.mxu0 %v3394
      %3538 = vmatprep.mubr.bf16.mxu0 %v3099
      %3539 = vmatmul.mubr.bf16.gmra.mxu0 %v3098
      %v3540 = vpop.f32.mrf.mxu0
      %v3541 = vadd.f32 %v2840, %v3540
      %v3542 = vpop.f32.mrf.mxu0
      %v3543 = vpop.f32.mrf.mxu0
      %v3544 = vadd.f32 %v2840, %v3543
      %v3545 = vpop.f32.mrf.mxu0
      %3546 = vmatprep.mubr.bf16.mxu0 %v3104
      %3547 = vmatmul.mubr.bf16.gmra.mxu0 %v3103
      %v3548 = vpop.f32.mrf.mxu0
      %v3549 = vadd.f32 %v2840, %v3548
      %v3550 = vpop.f32.mrf.mxu0
      %v3551 = vpop.f32.mrf.mxu0
      %v3552 = vadd.f32 %v2840, %v3551
      %v3553 = vpop.f32.mrf.mxu0
      %3554 = vmatprep.mubr.bf16.mxu0 %v3109
      %3555 = vmatmul.mubr.bf16.gmra.mxu0 %v3108
      %v3556 = vpop.f32.mrf.mxu0
      %v3557 = vadd.f32 %v2840, %v3556
      %v3558 = vpop.f32.mrf.mxu0
      %v3559 = vpop.f32.mrf.mxu0
      %v3560 = vadd.f32 %v2840, %v3559
      %v3561 = vpop.f32.mrf.mxu0
      %3562 = vmatprep.mubr.bf16.mxu0 %v3114
      %3563 = vmatmul.mubr.bf16.gmra.mxu0 %v3113
      %v3564 = vpop.f32.mrf.mxu0
      %v3565 = vadd.f32 %v2840, %v3564
      %v3566 = vpop.f32.mrf.mxu0
      %v3567 = vpop.f32.mrf.mxu0
      %v3568 = vadd.f32 %v2840, %v3567
      %v3569 = vpop.f32.mrf.mxu0
      %3570 = vmatprep.mubr.bf16.mxu0 %v3119
      %3571 = vmatmul.mubr.bf16.gmra.mxu0 %v3118
      %v3572 = vpop.f32.mrf.mxu0
      %v3573 = vadd.f32 %v2840, %v3572
      %v3574 = vpop.f32.mrf.mxu0
      %v3575 = vpop.f32.mrf.mxu0
      %v3576 = vadd.f32 %v2840, %v3575
      %v3577 = vpop.f32.mrf.mxu0
      %3578 = vmatprep.mubr.bf16.mxu0 %v3124
      %3579 = vmatmul.mubr.bf16.gmra.mxu0 %v3123
      %v3580 = vpop.f32.mrf.mxu0
      %v3581 = vadd.f32 %v2840, %v3580
      %v3582 = vpop.f32.mrf.mxu0
      %v3583 = vpop.f32.mrf.mxu0
      %v3584 = vadd.f32 %v2840, %v3583
      %v3585 = vpop.f32.mrf.mxu0
      %3586 = vmatprep.mubr.bf16.mxu0 %v3129
      %3587 = vmatmul.mubr.bf16.gmra.mxu0 %v3128
      %v3588 = vpop.f32.mrf.mxu0
      %v3589 = vadd.f32 %v2840, %v3588
      %v3590 = vpop.f32.mrf.mxu0
      %v3591 = vpop.f32.mrf.mxu0
      %v3592 = vadd.f32 %v2840, %v3591
      %v3593 = vpop.f32.mrf.mxu0
      %3594 = vmatprep.mubr.bf16.mxu0 %v3134
      %3595 = vmatmul.mubr.bf16.gmra.mxu0 %v3133
      %v3596 = vpop.f32.mrf.mxu0
      %v3597 = vadd.f32 %v2840, %v3596
      %v3598 = vpop.f32.mrf.mxu0
      %v3599 = vpop.f32.mrf.mxu0
      %v3600 = vadd.f32 %v2840, %v3599
      %v3601 = vpop.f32.mrf.mxu0
      %3602 = vmatprep.mubr.bf16.mxu0 %v3139
      %3603 = vmatmul.mubr.bf16.gmra.mxu0 %v3138
      %v3604 = vpop.f32.mrf.mxu0
      %v3605 = vadd.f32 %v2840, %v3604
      %v3606 = vpop.f32.mrf.mxu0
      %v3607 = vpop.f32.mrf.mxu0
      %v3608 = vadd.f32 %v2840, %v3607
      %v3609 = vpop.f32.mrf.mxu0
      %3610 = vmatprep.mubr.bf16.mxu0 %v3144
      %3611 = vmatmul.mubr.bf16.gmra.mxu0 %v3143
      %v3612 = vpop.f32.mrf.mxu0
      %v3613 = vadd.f32 %v2840, %v3612
      %v3614 = vpop.f32.mrf.mxu0
      %v3615 = vpop.f32.mrf.mxu0
      %v3616 = vadd.f32 %v2840, %v3615
      %v3617 = vpop.f32.mrf.mxu0
      %3618 = vmatprep.mubr.bf16.mxu0 %v3149
      %3619 = vmatmul.mubr.bf16.gmra.mxu0 %v3148
      %v3620 = vpop.f32.mrf.mxu0
      %v3621 = vadd.f32 %v2840, %v3620
      %v3622 = vpop.f32.mrf.mxu0
      %v3623 = vpop.f32.mrf.mxu0
      %v3624 = vadd.f32 %v2840, %v3623
      %v3625 = vpop.f32.mrf.mxu0
      %3626 = vmatprep.mubr.bf16.mxu0 %v3154
      %3627 = vmatmul.mubr.bf16.gmra.mxu0 %v3153
      %v3628 = vpop.f32.mrf.mxu0
      %v3629 = vadd.f32 %v2840, %v3628
      %v3630 = vpop.f32.mrf.mxu0
      %v3631 = vpop.f32.mrf.mxu0
      %v3632 = vadd.f32 %v2840, %v3631
      %v3633 = vpop.f32.mrf.mxu0
      %3634 = vmatprep.mubr.bf16.mxu0 %v3159
      %3635 = vmatmul.mubr.bf16.gmra.mxu0 %v3158
      %v3636 = vpop.f32.mrf.mxu0
      %v3637 = vadd.f32 %v2840, %v3636
      %v3638 = vpop.f32.mrf.mxu0
      %v3639 = vpop.f32.mrf.mxu0
      %v3640 = vadd.f32 %v2840, %v3639
      %v3641 = vpop.f32.mrf.mxu0
      %3642 = vmatprep.mubr.bf16.mxu0 %v3164
      %3643 = vmatmul.mubr.bf16.gmra.mxu0 %v3163
      %v3644 = vpop.f32.mrf.mxu0
      %v3645 = vadd.f32 %v2840, %v3644
      %v3646 = vpop.f32.mrf.mxu0
      %v3647 = vpop.f32.mrf.mxu0
      %v3648 = vadd.f32 %v2840, %v3647
      %v3649 = vpop.f32.mrf.mxu0
      %3650 = vmatprep.mubr.bf16.mxu0 %v3169
      %3651 = vmatmul.mubr.bf16.gmra.mxu0 %v3168
      %v3652 = vpop.f32.mrf.mxu0
      %v3653 = vadd.f32 %v2840, %v3652
      %v3654 = vpop.f32.mrf.mxu0
      %v3655 = vpop.f32.mrf.mxu0
      %v3656 = vadd.f32 %v2840, %v3655
      %v3657 = vpop.f32.mrf.mxu0
      %3658 = vmatprep.mubr.bf16.mxu0 %v3174
      %3659 = vmatmul.mubr.bf16.gmra.mxu0 %v3173
      %v3660 = vpop.f32.mrf.mxu0
      %v3661 = vadd.f32 %v2840, %v3660
      %v3662 = vpop.f32.mrf.mxu0
      %v3663 = vpop.f32.mrf.mxu0
      %v3664 = vadd.f32 %v2840, %v3663
      %v3665 = vpop.f32.mrf.mxu0
      %3666 = vdwg.mxu0
      %3667 = vmatprep.subr.bf16.mxu0 0
      %3668 = vmatpush1.bf16.msra.mxu0 %v3409
      %3669 = vmatprep.subr.bf16.mxu0 0
      %3670 = vmatpush1.bf16.msra.mxu0 %v3408
      %3671 = vmatprep.subr.bf16.mxu0 0
      %3672 = vmatpush1.bf16.msra.mxu0 %v3407
      %3673 = vmatprep.subr.bf16.mxu0 0
      %3674 = vmatpush1.bf16.msra.mxu0 %v3406
      %3675 = vmatprep.subr.bf16.mxu0 0
      %3676 = vmatpush1.bf16.msra.mxu0 %v3405
      %3677 = vmatprep.subr.bf16.mxu0 0
      %3678 = vmatpush1.bf16.msra.mxu0 %v3404
      %3679 = vmatprep.subr.bf16.mxu0 0
      %3680 = vmatpush1.bf16.msra.mxu0 %v3403
      %3681 = vmatprep.subr.bf16.mxu0 0
      %3682 = vmatpush1.bf16.msra.mxu0 %v3402
      %3683 = vmatprep.subr.bf16.mxu0 0
      %3684 = vmatpush2.bf16.msra.mxu0 %v3417
      %3685 = vmatprep.subr.bf16.mxu0 0
      %3686 = vmatpush2.bf16.msra.mxu0 %v3416
      %3687 = vmatprep.subr.bf16.mxu0 0
      %3688 = vmatpush2.bf16.msra.mxu0 %v3415
      %3689 = vmatprep.subr.bf16.mxu0 0
      %3690 = vmatpush2.bf16.msra.mxu0 %v3414
      %3691 = vmatprep.subr.bf16.mxu0 0
      %3692 = vmatpush2.bf16.msra.mxu0 %v3413
      %3693 = vmatprep.subr.bf16.mxu0 0
      %3694 = vmatpush2.bf16.msra.mxu0 %v3412
      %3695 = vmatprep.subr.bf16.mxu0 0
      %3696 = vmatpush2.bf16.msra.mxu0 %v3411
      %3697 = vmatprep.subr.bf16.mxu0 0
      %3698 = vmatpush2.bf16.msra.mxu0 %v3410
      %3699 = vmatprep.mubr.bf16.mxu0 %v3101
      %3700 = vmatmul.mubr.bf16.gmra.mxu0 %v3100
      %v3701 = vpop.f32.mrf.mxu0
      %v3702 = vadd.f32 %v3541, %v3701
      %v3703 = vpop.f32.mrf.mxu0
      %v3704 = vpop.f32.mrf.mxu0
      %v3705 = vadd.f32 %v3544, %v3704
      %v3706 = vpop.f32.mrf.mxu0
      %3707 = vmatprep.mubr.bf16.mxu0 %v3106
      %3708 = vmatmul.mubr.bf16.gmra.mxu0 %v3105
      %v3709 = vpop.f32.mrf.mxu0
      %v3710 = vadd.f32 %v3549, %v3709
      %v3711 = vpop.f32.mrf.mxu0
      %v3712 = vpop.f32.mrf.mxu0
      %v3713 = vadd.f32 %v3552, %v3712
      %v3714 = vpop.f32.mrf.mxu0
      %3715 = vmatprep.mubr.bf16.mxu0 %v3111
      %3716 = vmatmul.mubr.bf16.gmra.mxu0 %v3110
      %v3717 = vpop.f32.mrf.mxu0
      %v3718 = vadd.f32 %v3557, %v3717
      %v3719 = vpop.f32.mrf.mxu0
      %v3720 = vpop.f32.mrf.mxu0
      %v3721 = vadd.f32 %v3560, %v3720
      %v3722 = vpop.f32.mrf.mxu0
      %3723 = vmatprep.mubr.bf16.mxu0 %v3116
      %3724 = vmatmul.mubr.bf16.gmra.mxu0 %v3115
      %v3725 = vpop.f32.mrf.mxu0
      %v3726 = vadd.f32 %v3565, %v3725
      %v3727 = vpop.f32.mrf.mxu0
      %v3728 = vpop.f32.mrf.mxu0
      %v3729 = vadd.f32 %v3568, %v3728
      %v3730 = vpop.f32.mrf.mxu0
      %3731 = vmatprep.mubr.bf16.mxu0 %v3121
      %3732 = vmatmul.mubr.bf16.gmra.mxu0 %v3120
      %v3733 = vpop.f32.mrf.mxu0
      %v3734 = vadd.f32 %v3573, %v3733
      %v3735 = vpop.f32.mrf.mxu0
      %v3736 = vpop.f32.mrf.mxu0
      %v3737 = vadd.f32 %v3576, %v3736
      %v3738 = vpop.f32.mrf.mxu0
      %3739 = vmatprep.mubr.bf16.mxu0 %v3126
      %3740 = vmatmul.mubr.bf16.gmra.mxu0 %v3125
      %v3741 = vpop.f32.mrf.mxu0
      %v3742 = vadd.f32 %v3581, %v3741
      %v3743 = vpop.f32.mrf.mxu0
      %v3744 = vpop.f32.mrf.mxu0
      %v3745 = vadd.f32 %v3584, %v3744
      %v3746 = vpop.f32.mrf.mxu0
      %3747 = vmatprep.mubr.bf16.mxu0 %v3131
      %3748 = vmatmul.mubr.bf16.gmra.mxu0 %v3130
      %v3749 = vpop.f32.mrf.mxu0
      %v3750 = vadd.f32 %v3589, %v3749
      %v3751 = vpop.f32.mrf.mxu0
      %v3752 = vpop.f32.mrf.mxu0
      %v3753 = vadd.f32 %v3592, %v3752
      %v3754 = vpop.f32.mrf.mxu0
      %3755 = vmatprep.mubr.bf16.mxu0 %v3136
      %3756 = vmatmul.mubr.bf16.gmra.mxu0 %v3135
      %v3757 = vpop.f32.mrf.mxu0
      %v3758 = vadd.f32 %v3597, %v3757
      %v3759 = vpop.f32.mrf.mxu0
      %v3760 = vpop.f32.mrf.mxu0
      %v3761 = vadd.f32 %v3600, %v3760
      %v3762 = vpop.f32.mrf.mxu0
      %3763 = vmatprep.mubr.bf16.mxu0 %v3141
      %3764 = vmatmul.mubr.bf16.gmra.mxu0 %v3140
      %v3765 = vpop.f32.mrf.mxu0
      %v3766 = vadd.f32 %v3605, %v3765
      %v3767 = vpop.f32.mrf.mxu0
      %v3768 = vpop.f32.mrf.mxu0
      %v3769 = vadd.f32 %v3608, %v3768
      %v3770 = vpop.f32.mrf.mxu0
      %3771 = vmatprep.mubr.bf16.mxu0 %v3146
      %3772 = vmatmul.mubr.bf16.gmra.mxu0 %v3145
      %v3773 = vpop.f32.mrf.mxu0
      %v3774 = vadd.f32 %v3613, %v3773
      %v3775 = vpop.f32.mrf.mxu0
      %v3776 = vpop.f32.mrf.mxu0
      %v3777 = vadd.f32 %v3616, %v3776
      %v3778 = vpop.f32.mrf.mxu0
      %3779 = vmatprep.mubr.bf16.mxu0 %v3151
      %3780 = vmatmul.mubr.bf16.gmra.mxu0 %v3150
      %v3781 = vpop.f32.mrf.mxu0
      %v3782 = vadd.f32 %v3621, %v3781
      %v3783 = vpop.f32.mrf.mxu0
      %v3784 = vpop.f32.mrf.mxu0
      %v3785 = vadd.f32 %v3624, %v3784
      %v3786 = vpop.f32.mrf.mxu0
      %3787 = vmatprep.mubr.bf16.mxu0 %v3156
      %3788 = vmatmul.mubr.bf16.gmra.mxu0 %v3155
      %v3789 = vpop.f32.mrf.mxu0
      %v3790 = vadd.f32 %v3629, %v3789
      %v3791 = vpop.f32.mrf.mxu0
      %v3792 = vpop.f32.mrf.mxu0
      %v3793 = vadd.f32 %v3632, %v3792
      %v3794 = vpop.f32.mrf.mxu0
      %3795 = vmatprep.mubr.bf16.mxu0 %v3161
      %3796 = vmatmul.mubr.bf16.gmra.mxu0 %v3160
      %v3797 = vpop.f32.mrf.mxu0
      %v3798 = vadd.f32 %v3637, %v3797
      %v3799 = vpop.f32.mrf.mxu0
      %v3800 = vpop.f32.mrf.mxu0
      %v3801 = vadd.f32 %v3640, %v3800
      %v3802 = vpop.f32.mrf.mxu0
      %3803 = vmatprep.mubr.bf16.mxu0 %v3166
      %3804 = vmatmul.mubr.bf16.gmra.mxu0 %v3165
      %v3805 = vpop.f32.mrf.mxu0
      %v3806 = vadd.f32 %v3645, %v3805
      %v3807 = vpop.f32.mrf.mxu0
      %v3808 = vpop.f32.mrf.mxu0
      %v3809 = vadd.f32 %v3648, %v3808
      %v3810 = vpop.f32.mrf.mxu0
      %3811 = vmatprep.mubr.bf16.mxu0 %v3171
      %3812 = vmatmul.mubr.bf16.gmra.mxu0 %v3170
      %v3813 = vpop.f32.mrf.mxu0
      %v3814 = vadd.f32 %v3653, %v3813
      %v3815 = vpop.f32.mrf.mxu0
      %v3816 = vpop.f32.mrf.mxu0
      %v3817 = vadd.f32 %v3656, %v3816
      %v3818 = vpop.f32.mrf.mxu0
      %3819 = vmatprep.mubr.bf16.mxu0 %v3176
      %3820 = vmatmul.mubr.bf16.gmra.mxu0 %v3175
      %v3821 = vpop.f32.mrf.mxu0
      %v3822 = vadd.f32 %v3661, %v3821
      %v3823 = vpop.f32.mrf.mxu0
      %v3824 = vpop.f32.mrf.mxu0
      %v3825 = vadd.f32 %v3664, %v3824
      %v3826 = vpop.f32.mrf.mxu0
      %3827 = vdwg.mxu0
      %3828 = vmatprep.subr.bf16.mxu0 0
      %3829 = vmatpush1.bf16.msra.mxu0 0
      %3830 = vmatprep.subr.bf16.mxu0 0
      %3831 = vmatpush1.bf16.msra.mxu0 0
      %3832 = vmatprep.subr.bf16.mxu0 0
      %3833 = vmatpush1.bf16.msra.mxu0 0
      %3834 = vmatprep.subr.bf16.mxu0 0
      %3835 = vmatpush1.bf16.msra.mxu0 0
      %3836 = vmatprep.subr.bf16.mxu0 0
      %3837 = vmatpush1.bf16.msra.mxu0 %v3421
      %3838 = vmatprep.subr.bf16.mxu0 0
      %3839 = vmatpush1.bf16.msra.mxu0 %v3420
      %3840 = vmatprep.subr.bf16.mxu0 0
      %3841 = vmatpush1.bf16.msra.mxu0 %v3419
      %3842 = vmatprep.subr.bf16.mxu0 0
      %3843 = vmatpush1.bf16.msra.mxu0 %v3418
      %3844 = vmatprep.subr.bf16.mxu0 0
      %3845 = vmatpush2.bf16.msra.mxu0 0
      %3846 = vmatprep.subr.bf16.mxu0 0
      %3847 = vmatpush2.bf16.msra.mxu0 0
      %3848 = vmatprep.subr.bf16.mxu0 0
      %3849 = vmatpush2.bf16.msra.mxu0 0
      %3850 = vmatprep.subr.bf16.mxu0 0
      %3851 = vmatpush2.bf16.msra.mxu0 0
      %3852 = vmatprep.subr.bf16.mxu0 0
      %3853 = vmatpush2.bf16.msra.mxu0 0
      %3854 = vmatprep.subr.bf16.mxu0 0
      %3855 = vmatpush2.bf16.msra.mxu0 0
      %3856 = vmatprep.subr.bf16.mxu0 0
      %3857 = vmatpush2.bf16.msra.mxu0 0
      %3858 = vmatprep.subr.bf16.mxu0 0
      %3859 = vmatpush2.bf16.msra.mxu0 0
      %3860 = vmatprep.mubr.bf16.mxu0 0
      %3861 = vmatmul.mubr.bf16.gmra.mxu0 %v3459
      %v3862 = vpop.f32.mrf.mxu0
      %v3863 = vadd.f32 %v3702, %v3862
      %v3864 = vpop.f32.mrf.mxu0
      %v3865 = vpop.f32.mrf.mxu0
      %v3866 = vadd.f32 %v3705, %v3865
      %v3867 = vpop.f32.mrf.mxu0
      %3868 = vmatprep.mubr.bf16.mxu0 0
      %3869 = vmatmul.mubr.bf16.gmra.mxu0 %v3462
      %v3870 = vpop.f32.mrf.mxu0
      %v3871 = vadd.f32 %v3710, %v3870
      %v3872 = vpop.f32.mrf.mxu0
      %v3873 = vpop.f32.mrf.mxu0
      %v3874 = vadd.f32 %v3713, %v3873
      %v3875 = vpop.f32.mrf.mxu0
      %3876 = vmatprep.mubr.bf16.mxu0 0
      %3877 = vmatmul.mubr.bf16.gmra.mxu0 %v3465
      %v3878 = vpop.f32.mrf.mxu0
      %v3879 = vadd.f32 %v3718, %v3878
      %v3880 = vpop.f32.mrf.mxu0
      %v3881 = vpop.f32.mrf.mxu0
      %v3882 = vadd.f32 %v3721, %v3881
      %v3883 = vpop.f32.mrf.mxu0
      %3884 = vmatprep.mubr.bf16.mxu0 0
      %3885 = vmatmul.mubr.bf16.gmra.mxu0 %v3468
      %v3886 = vpop.f32.mrf.mxu0
      %v3887 = vadd.f32 %v3726, %v3886
      %v3888 = vpop.f32.mrf.mxu0
      %v3889 = vpop.f32.mrf.mxu0
      %v3890 = vadd.f32 %v3729, %v3889
      %v3891 = vpop.f32.mrf.mxu0
      %3892 = vmatprep.mubr.bf16.mxu0 0
      %3893 = vmatmul.mubr.bf16.gmra.mxu0 %v3471
      %v3894 = vpop.f32.mrf.mxu0
      %v3895 = vadd.f32 %v3734, %v3894
      %v3896 = vpop.f32.mrf.mxu0
      %v3897 = vpop.f32.mrf.mxu0
      %v3898 = vadd.f32 %v3737, %v3897
      %v3899 = vpop.f32.mrf.mxu0
      %3900 = vmatprep.mubr.bf16.mxu0 0
      %3901 = vmatmul.mubr.bf16.gmra.mxu0 %v3474
      %v3902 = vpop.f32.mrf.mxu0
      %v3903 = vadd.f32 %v3742, %v3902
      %v3904 = vpop.f32.mrf.mxu0
      %v3905 = vpop.f32.mrf.mxu0
      %v3906 = vadd.f32 %v3745, %v3905
      %v3907 = vpop.f32.mrf.mxu0
      %3908 = vmatprep.mubr.bf16.mxu0 0
      %3909 = vmatmul.mubr.bf16.gmra.mxu0 %v3477
      %v3910 = vpop.f32.mrf.mxu0
      %v3911 = vadd.f32 %v3750, %v3910
      %v3912 = vpop.f32.mrf.mxu0
      %v3913 = vpop.f32.mrf.mxu0
      %v3914 = vadd.f32 %v3753, %v3913
      %v3915 = vpop.f32.mrf.mxu0
      %3916 = vmatprep.mubr.bf16.mxu0 0
      %3917 = vmatmul.mubr.bf16.gmra.mxu0 %v3480
      %v3918 = vpop.f32.mrf.mxu0
      %v3919 = vadd.f32 %v3758, %v3918
      %v3920 = vpop.f32.mrf.mxu0
      %v3921 = vpop.f32.mrf.mxu0
      %v3922 = vadd.f32 %v3761, %v3921
      %v3923 = vpop.f32.mrf.mxu0
      %3924 = vmatprep.mubr.bf16.mxu0 0
      %3925 = vmatmul.mubr.bf16.gmra.mxu0 %v3483
      %v3926 = vpop.f32.mrf.mxu0
      %v3927 = vadd.f32 %v3766, %v3926
      %v3928 = vpop.f32.mrf.mxu0
      %v3929 = vpop.f32.mrf.mxu0
      %v3930 = vadd.f32 %v3769, %v3929
      %v3931 = vpop.f32.mrf.mxu0
      %3932 = vmatprep.mubr.bf16.mxu0 0
      %3933 = vmatmul.mubr.bf16.gmra.mxu0 %v3486
      %v3934 = vpop.f32.mrf.mxu0
      %v3935 = vadd.f32 %v3774, %v3934
      %v3936 = vpop.f32.mrf.mxu0
      %v3937 = vpop.f32.mrf.mxu0
      %v3938 = vadd.f32 %v3777, %v3937
      %v3939 = vpop.f32.mrf.mxu0
      %3940 = vmatprep.mubr.bf16.mxu0 0
      %3941 = vmatmul.mubr.bf16.gmra.mxu0 %v3489
      %v3942 = vpop.f32.mrf.mxu0
      %v3943 = vadd.f32 %v3782, %v3942
      %v3944 = vpop.f32.mrf.mxu0
      %v3945 = vpop.f32.mrf.mxu0
      %v3946 = vadd.f32 %v3785, %v3945
      %v3947 = vpop.f32.mrf.mxu0
      %3948 = vmatprep.mubr.bf16.mxu0 0
      %3949 = vmatmul.mubr.bf16.gmra.mxu0 %v3492
      %v3950 = vpop.f32.mrf.mxu0
      %v3951 = vadd.f32 %v3790, %v3950
      %v3952 = vpop.f32.mrf.mxu0
      %v3953 = vpop.f32.mrf.mxu0
      %v3954 = vadd.f32 %v3793, %v3953
      %v3955 = vpop.f32.mrf.mxu0
      %3956 = vmatprep.mubr.bf16.mxu0 0
      %3957 = vmatmul.mubr.bf16.gmra.mxu0 %v3495
      %v3958 = vpop.f32.mrf.mxu0
      %v3959 = vadd.f32 %v3798, %v3958
      %v3960 = vpop.f32.mrf.mxu0
      %v3961 = vpop.f32.mrf.mxu0
      %v3962 = vadd.f32 %v3801, %v3961
      %v3963 = vpop.f32.mrf.mxu0
      %3964 = vmatprep.mubr.bf16.mxu0 0
      %3965 = vmatmul.mubr.bf16.gmra.mxu0 %v3498
      %v3966 = vpop.f32.mrf.mxu0
      %v3967 = vadd.f32 %v3806, %v3966
      %v3968 = vpop.f32.mrf.mxu0
      %v3969 = vpop.f32.mrf.mxu0
      %v3970 = vadd.f32 %v3809, %v3969
      %v3971 = vpop.f32.mrf.mxu0
      %3972 = vmatprep.mubr.bf16.mxu0 0
      %3973 = vmatmul.mubr.bf16.gmra.mxu0 %v3501
      %v3974 = vpop.f32.mrf.mxu0
      %v3975 = vadd.f32 %v3814, %v3974
      %v3976 = vpop.f32.mrf.mxu0
      %v3977 = vpop.f32.mrf.mxu0
      %v3978 = vadd.f32 %v3817, %v3977
      %v3979 = vpop.f32.mrf.mxu0
      %3980 = vmatprep.mubr.bf16.mxu0 0
      %3981 = vmatmul.mubr.bf16.gmra.mxu0 %v3504
      %v3982 = vpop.f32.mrf.mxu0
      %v3983 = vadd.f32 %v3822, %v3982
      %v3984 = vpop.f32.mrf.mxu0
      %v3985 = vpop.f32.mrf.mxu0
      %v3986 = vadd.f32 %v3825, %v3985
      %v3987 = vpop.f32.mrf.mxu0
      %3988 = vdwg.mxu0
      %v3989 = vmax.f32 %v3863, 0.0
      %v3990 = vmax.f32 %v3866, 0.0
      %v3991 = vmax.f32 %v3871, 0.0
      %v3992 = vmax.f32 %v3874, 0.0
      %v3993 = vmax.f32 %v3879, 0.0
      %v3994 = vmax.f32 %v3882, 0.0
      %v3995 = vmax.f32 %v3887, 0.0
      %v3996 = vmax.f32 %v3890, 0.0
      %v3997 = vmax.f32 %v3895, 0.0
      %v3998 = vmax.f32 %v3898, 0.0
      %v3999 = vmax.f32 %v3903, 0.0
      %v4000 = vmax.f32 %v3906, 0.0
      %v4001 = vmax.f32 %v3911, 0.0
      %v4002 = vmax.f32 %v3914, 0.0
      %v4003 = vmax.f32 %v3919, 0.0
      %v4004 = vmax.f32 %v3922, 0.0
      %v4005 = vmax.f32 %v3927, 0.0
      %v4006 = vmax.f32 %v3930, 0.0
      %v4007 = vmax.f32 %v3935, 0.0
      %v4008 = vmax.f32 %v3938, 0.0
      %v4009 = vmax.f32 %v3943, 0.0
      %v4010 = vmax.f32 %v3946, 0.0
      %v4011 = vmax.f32 %v3951, 0.0
      %v4012 = vmax.f32 %v3954, 0.0
      %v4013 = vmax.f32 %v3959, 0.0
      %v4014 = vmax.f32 %v3962, 0.0
      %v4015 = vmax.f32 %v3967, 0.0
      %v4016 = vmax.f32 %v3970, 0.0
      %v4017 = vmax.f32 %v3975, 0.0
      %v4018 = vmax.f32 %v3978, 0.0
      %v4019 = vmax.f32 %v3983, 0.0
      %v4020 = vmax.f32 %v3986, 0.0
      %4021 = vst.msk [vmem:[%s224] sm:$0xff] %vm601, %v3989
      %4022 = vst.msk [vmem:[%s224 + $0x8] sm:$0xff] %vm601, %v3990
      %4023 = vst.msk [vmem:[%s224 + $0x10] sm:$0xff] %vm601, %v3991
      %4024 = vst.msk [vmem:[%s224 + $0x18] sm:$0xff] %vm601, %v3992
      %4025 = vst.msk [vmem:[%s224 + $0x20] sm:$0xff] %vm601, %v3993
      %4026 = vst.msk [vmem:[%s224 + $0x28] sm:$0xff] %vm601, %v3994
      %4027 = vst.msk [vmem:[%s224 + $0x30] sm:$0xff] %vm601, %v3995
      %4028 = vst.msk [vmem:[%s224 + $0x38] sm:$0xff] %vm601, %v3996
      %4029 = vst.msk [vmem:[%s224 + $0x40] sm:$0xff] %vm601, %v3997
      %4030 = vst.msk [vmem:[%s224 + $0x48] sm:$0xff] %vm601, %v3998
      %4031 = vst.msk [vmem:[%s224 + $0x50] sm:$0xff] %vm601, %v3999
      %4032 = vst.msk [vmem:[%s224 + $0x58] sm:$0xff] %vm601, %v4000
      %4033 = vst.msk [vmem:[%s224 + $0x60] sm:$0xff] %vm601, %v4001
      %4034 = vst.msk [vmem:[%s224 + $0x68] sm:$0xff] %vm601, %v4002
      %4035 = vst.msk [vmem:[%s224 + $0x70] sm:$0xff] %vm601, %v4003
      %4036 = vst.msk [vmem:[%s224 + $0x78] sm:$0xff] %vm601, %v4004
      %4037 = vst.msk [vmem:[%s224 + $0x80] sm:$0xff] %vm601, %v4005
      %4038 = vst.msk [vmem:[%s224 + $0x88] sm:$0xff] %vm601, %v4006
      %4039 = vst.msk [vmem:[%s224 + $0x90] sm:$0xff] %vm601, %v4007
      %4040 = vst.msk [vmem:[%s224 + $0x98] sm:$0xff] %vm601, %v4008
      %4041 = vst.msk [vmem:[%s224 + $0xa0] sm:$0xff] %vm601, %v4009
      %4042 = vst.msk [vmem:[%s224 + $0xa8] sm:$0xff] %vm601, %v4010
      %4043 = vst.msk [vmem:[%s224 + $0xb0] sm:$0xff] %vm601, %v4011
      %4044 = vst.msk [vmem:[%s224 + $0xb8] sm:$0xff] %vm601, %v4012
      %4045 = vst.msk [vmem:[%s224 + $0xc0] sm:$0xff] %vm601, %v4013
      %4046 = vst.msk [vmem:[%s224 + $0xc8] sm:$0xff] %vm601, %v4014
      %4047 = vst.msk [vmem:[%s224 + $0xd0] sm:$0xff] %vm601, %v4015
      %4048 = vst.msk [vmem:[%s224 + $0xd8] sm:$0xff] %vm601, %v4016
      %4049 = vst.msk [vmem:[%s224 + $0xe0] sm:$0xff] %vm601, %v4017
      %4050 = vst.msk [vmem:[%s224 + $0xe8] sm:$0xff] %vm601, %v4018
      %4051 = vst.msk [vmem:[%s224 + $0xf0] sm:$0xff] %vm601, %v4019
      %4052 = vst.msk [vmem:[%s224 + $0xf8] sm:$0xff] %vm601, %v4020
      %p4053 = scmp.lt.s32.totalorder %s16, 3
      %s4054 = scalar_select %p4053, %s16, 3
      %s4055 = smul.addr %s4054, 32
      %s4056 = smul.addr %s4055, 8
      %s4057 = scalar_lea.vmem %s5, %s4056
      // Predicated region
      $region41: #{combined_loss.11} parent=39 // pred_check
        %p4058 = pneg %p144
      $region42: #{combined_loss.11} parent=39 // pred_check_branch
        %4060 = sbr.rel (%p4058) target = $region44
      $region43: #{combined_loss.11} parent=39 // pred_region
        _
      $region44: #{combined_loss.11} parent=39 // pred_fallthru
        _
    $region40: #{combined_loss.11} parent=5 // pred_fallthru
      _
    %p4061 = scmp.le.s32.totalorder 2, %s11
    // Predicated region
    $region45: #{combined_loss.11} parent=5 // pred_check
      %p4062 = pneg %p4061
    $region46: #{combined_loss.11} parent=5 // pred_check_branch
      %4064 = sbr.rel (%p4062) target = $region48
    $region47: #{combined_loss.11} parent=5 // pred_region
      %s4065 = ssub.s32 %s11, 2
      // Predicated region
      $region49: #{combined_loss.11} parent=47 // pred_check
        %p4066 = pneg %p150
      $region50: #{combined_loss.11} parent=47 // pred_check_branch
        %4068 = sbr.rel (%p4066) target = $region52
      $region51: #{combined_loss.11} parent=47 // pred_region
        %p4069 = scmp.lt.s32.totalorder %s17, 3
        %s4070 = scalar_select %p4069, %s17, 3
        %s4071 = smul.addr %s4070, 32
        %s4072 = smul.addr %s4071, 8
        %s4073 = scalar_lea.vmem %s5, %s4072
      $region52: #{combined_loss.11} parent=47 // pred_fallthru
        _
    $region48: #{combined_loss.11} parent=5 // pred_fallthru
      _
  $region6: #{combined_loss.11} parent=0 // loop_footer
    %s15 = sadd.s32 1, %s11
  $region7: #{combined_loss.11} parent=0 // loop_footer_branch
    %10 = sbr.rel target = $region3
  $region8: #{combined_loss.11} parent=0 // loop_exit
    _

// kernel: combined_loss.12
$region0: #{combined_loss.12}
  #allocation0 [shape = 'u32[]', space=smem, size = 0x4, offset = 0x4, fixed_abs, tag = 'smem constant byte address 0x4 - core index']
  #allocation1 [shape = 'u32[144,128]{1,0:T(1,128)}', space=vmem, size = 0x12000, scoped, tag = 'internal scratch']
  #allocation2 [shape = 'f32[10,10,64]{2,1,0:T(8,128)}', space=vmem, size = 0x14000, scoped, tag = 'scratch operand']
  #allocation3 [shape = 'f32[10,10,128]{2,1,0:T(8,128)}', space=vmem, size = 0x14000, scoped, tag = 'scratch operand']
  #allocation4 [shape = 'bf16[64,1152]{1,0:T(8,128)(2,1)}', space=vmem, size = 0x24000, scoped, tag = 'scratch operand']
  %s0 = inlined_call_operand.vmem [shape: bf16[4,8,8,64], index: 0, kind: input, shape index: {}]
  %s1 = inlined_call_operand.vmem [shape: bf16[576,128], index: 1, kind: input, shape index: {}]
  %s2 = inlined_call_operand.vmem [shape: f32[1,128], index: 2, kind: input, shape index: {}]
  %s3 = inlined_call_operand.vmem [shape: bf16[1152,128], index: 3, kind: input, shape index: {}]
  %s4 = inlined_call_operand.vmem [shape: f32[1,128], index: 4, kind: input, shape index: {}]
  %s5 = inlined_call_operand.vmem [shape: f32[4,64,128], index: 5, kind: output, shape index: {}]
  %s6 = sld [smem:[#allocation0]]
  $region53: #{combined_loss.12} parent=0
    _
  %s8 = ssub.s32 1, %s6
  %s9 = scalar_select 0, %s8, %s6
  loop: start=0, step=1, limit=6
  $region2: #{combined_loss.12} parent=0 // loop_pre_header
    _
  $region3: #{combined_loss.12} parent=0 // loop_header
    %s11 = sphi 0, %s15
    %p12 = scmp.ge.s32.totalorder %s11, 6
    %s21 = sphi 0, %s23
    %s24 = sphi 0, %s21
    %s25 = sphi 0, %s24
    %s41 = sphi 0, %s25
    %s45 = sphi 0, %s45
    %s47 = sphi 0, %s45
    %s48 = sphi 0, %s47
    %s62 = sphi 0, %s48
    %s66 = sphi 0, %s66
    %s68 = sphi 0, %s66
    %s69 = sphi 0, %s68
    %s83 = sphi 0, %s69
    %s87 = sphi 0, %s87
    %s89 = sphi 0, %s87
    %s90 = sphi 0, %s89
    %s104 = sphi 0, %s90
    %s108 = sphi 0, %s108
    %s110 = sphi 0, %s108
    %s111 = sphi 0, %s110
    %s125 = sphi 0, %s111
    %s131 = sphi 0, %s133
    %s134 = sphi 0, %s131
    %s135 = sphi 0, %s134
    %s151 = sphi 0, %s135
  $region4: #{combined_loss.12} parent=0 // loop_header_branch
    %14 = sbr.rel (%p12) target = $region8
  $region5: #{combined_loss.12} parent=0 // loop_body
    %s16 = ssub.s32 %s11, 1
    %s17 = ssub.s32 %s11, 2
    %s18 = sadd.s32 %s11, 1
    %s19 = ssub.s32 %s11, %s18
    %p20 = scmp.eq.s32.totalorder %s19, 0
    %s22 = sadd.s32 %s21, 1
    %s23 = scalar_select %p20, %s21, %s22
    %p26 = pneg %p20
    %p27 = scmp.eq.s32.totalorder %s11, 3
    %p28 = por %p26, %p27
    %p29 = scmp.ne.s32.totalorder %s21, %s24
    %p30 = scmp.eq.s32.totalorder %s11, 0
    %p31 = por %p29, %p30
    %p32 = scmp.ne.s32.totalorder %s21, %s24
    %p33 = scmp.eq.s32.totalorder %s16, 3
    %p34 = por %p32, %p33
    %p35 = scmp.ne.s32.totalorder %s24, %s25
    %p36 = scmp.eq.s32.totalorder %s16, 0
    %p37 = por %p35, %p36
    %p38 = scmp.ne.s32.totalorder %s24, %s25
    %p39 = scmp.eq.s32.totalorder %s17, 3
    %p40 = por %p38, %p39
    %p42 = scmp.ne.s32.totalorder %s25, %s41
    %p43 = scmp.eq.s32.totalorder %s17, 0
    %p44 = por %p42, %p43
    %s46 = sadd.s32 %s45, 1
    %p49 = scmp.eq.s32.totalorder %s11, 3
    %p50 = scmp.ne.s32.totalorder %s45, %s47
    %p51 = scmp.eq.s32.totalorder %s11, 0
    %p52 = por %p50, %p51
    %p53 = scmp.ne.s32.totalorder %s45, %s47
    %p54 = scmp.eq.s32.totalorder %s16, 3
    %p55 = por %p53, %p54
    %p56 = scmp.ne.s32.totalorder %s47, %s48
    %p57 = scmp.eq.s32.totalorder %s16, 0
    %p58 = por %p56, %p57
    %p59 = scmp.ne.s32.totalorder %s47, %s48
    %p60 = scmp.eq.s32.totalorder %s17, 3
    %p61 = por %p59, %p60
    %p63 = scmp.ne.s32.totalorder %s48, %s62
    %p64 = scmp.eq.s32.totalorder %s17, 0
    %p65 = por %p63, %p64
    %s67 = sadd.s32 %s66, 1
    %p70 = scmp.eq.s32.totalorder %s11, 3
    %p71 = scmp.ne.s32.totalorder %s66, %s68
    %p72 = scmp.eq.s32.totalorder %s11, 0
    %p73 = por %p71, %p72
    %p74 = scmp.ne.s32.totalorder %s66, %s68
    %p75 = scmp.eq.s32.totalorder %s16, 3
    %p76 = por %p74, %p75
    %p77 = scmp.ne.s32.totalorder %s68, %s69
    %p78 = scmp.eq.s32.totalorder %s16, 0
    %p79 = por %p77, %p78
    %p80 = scmp.ne.s32.totalorder %s68, %s69
    %p81 = scmp.eq.s32.totalorder %s17, 3
    %p82 = por %p80, %p81
    %p84 = scmp.ne.s32.totalorder %s69, %s83
    %p85 = scmp.eq.s32.totalorder %s17, 0
    %p86 = por %p84, %p85
    %s88 = sadd.s32 %s87, 1
    %p91 = scmp.eq.s32.totalorder %s11, 3
    %p92 = scmp.ne.s32.totalorder %s87, %s89
    %p93 = scmp.eq.s32.totalorder %s11, 0
    %p94 = por %p92, %p93
    %p95 = scmp.ne.s32.totalorder %s87, %s89
    %p96 = scmp.eq.s32.totalorder %s16, 3
    %p97 = por %p95, %p96
    %p98 = scmp.ne.s32.totalorder %s89, %s90
    %p99 = scmp.eq.s32.totalorder %s16, 0
    %p100 = por %p98, %p99
    %p101 = scmp.ne.s32.totalorder %s89, %s90
    %p102 = scmp.eq.s32.totalorder %s17, 3
    %p103 = por %p101, %p102
    %p105 = scmp.ne.s32.totalorder %s90, %s104
    %p106 = scmp.eq.s32.totalorder %s17, 0
    %p107 = por %p105, %p106
    %s109 = sadd.s32 %s108, 1
    %p112 = scmp.eq.s32.totalorder %s11, 3
    %p113 = scmp.ne.s32.totalorder %s108, %s110
    %p114 = scmp.eq.s32.totalorder %s11, 0
    %p115 = por %p113, %p114
    %p116 = scmp.ne.s32.totalorder %s108, %s110
    %p117 = scmp.eq.s32.totalorder %s16, 3
    %p118 = por %p116, %p117
    %p119 = scmp.ne.s32.totalorder %s110, %s111
    %p120 = scmp.eq.s32.totalorder %s16, 0
    %p121 = por %p119, %p120
    %p122 = scmp.ne.s32.totalorder %s110, %s111
    %p123 = scmp.eq.s32.totalorder %s17, 3
    %p124 = por %p122, %p123
    %p126 = scmp.ne.s32.totalorder %s111, %s125
    %p127 = scmp.eq.s32.totalorder %s17, 0
    %p128 = por %p126, %p127
    %s129 = ssub.s32 %s11, %s18
    %p130 = scmp.eq.s32.totalorder %s129, 0
    %s132 = sadd.s32 %s131, 1
    %s133 = scalar_select %p130, %s131, %s132
    %p136 = pneg %p130
    %p137 = scmp.eq.s32.totalorder %s11, 3
    %p138 = por %p136, %p137
    %p139 = scmp.ne.s32.totalorder %s131, %s134
    %p140 = scmp.eq.s32.totalorder %s11, 0
    %p141 = por %p139, %p140
    %p142 = scmp.ne.s32.totalorder %s131, %s134
    %p143 = scmp.eq.s32.totalorder %s16, 3
    %p144 = por %p142, %p143
    %p145 = scmp.ne.s32.totalorder %s134, %s135
    %p146 = scmp.eq.s32.totalorder %s16, 0
    %p147 = por %p145, %p146
    %p148 = scmp.ne.s32.totalorder %s134, %s135
    %p149 = scmp.eq.s32.totalorder %s17, 3
    %p150 = por %p148, %p149
    %p152 = scmp.ne.s32.totalorder %s135, %s151
    %p153 = scmp.eq.s32.totalorder %s17, 0
    %p154 = por %p152, %p153
    %p155 = scmp.le.s32.totalorder 1, %s11
    %p156 = scmp.lt.s32.totalorder %s11, 5
    %p157 = pnand %p155, %p156
    %p158 = pneg %p157
    // Predicated region
    $region9: #{combined_loss.12} parent=5 // pred_check
      _
    $region10: #{combined_loss.12} parent=5 // pred_check_branch
      %160 = sbr.rel (%p157) target = $region12
    $region11: #{combined_loss.12} parent=5 // pred_region
      %s161 = ssub.s32 %s11, 1
      // Predicated region
      $region13: #{combined_loss.12} parent=11 // pred_check
        %p162 = pneg %p58
      $region14: #{combined_loss.12} parent=11 // pred_check_branch
        %164 = sbr.rel (%p162) target = $region16
      $region15: #{combined_loss.12} parent=11 // pred_region
        _
      $region16: #{combined_loss.12} parent=11 // pred_fallthru
        _
      // Predicated region
      $region17: #{combined_loss.12} parent=11 // pred_check
        %p165 = pneg %p79
      $region18: #{combined_loss.12} parent=11 // pred_check_branch
        %167 = sbr.rel (%p165) target = $region20
      $region19: #{combined_loss.12} parent=11 // pred_region
        _
      $region20: #{combined_loss.12} parent=11 // pred_fallthru
        _
      // Predicated region
      $region21: #{combined_loss.12} parent=11 // pred_check
        %p168 = pneg %p100
      $region22: #{combined_loss.12} parent=11 // pred_check_branch
        %170 = sbr.rel (%p168) target = $region24
      $region23: #{combined_loss.12} parent=11 // pred_region
        _
      $region24: #{combined_loss.12} parent=11 // pred_fallthru
        _
      // Predicated region
      $region25: #{combined_loss.12} parent=11 // pred_check
        %p171 = pneg %p121
      $region26: #{combined_loss.12} parent=11 // pred_check_branch
        %173 = sbr.rel (%p171) target = $region28
      $region27: #{combined_loss.12} parent=11 // pred_region
        _
      $region28: #{combined_loss.12} parent=11 // pred_fallthru
        _
    $region12: #{combined_loss.12} parent=5 // pred_fallthru
      _
    %p174 = scmp.lt.s32.totalorder %s11, 4
    // Predicated region
    $region29: #{combined_loss.12} parent=5 // pred_check
      %p175 = pneg %p174
    $region30: #{combined_loss.12} parent=5 // pred_check_branch
      %177 = sbr.rel (%p175) target = $region32
    $region31: #{combined_loss.12} parent=5 // pred_region
      // Predicated region
      $region33: #{combined_loss.12} parent=31 // pred_check
        %p178 = pneg %p31
      $region34: #{combined_loss.12} parent=31 // pred_check_branch
        %180 = sbr.rel (%p178) target = $region36
      $region35: #{combined_loss.12} parent=31 // pred_region
        %p181 = scmp.lt.s32.totalorder %s11, 3
        %s182 = scalar_select %p181, %s11, 3
        %s183 = smul.addr %s182, 8
        %s184 = smul.addr %s183, 4
        %s185 = scalar_lea.vmem %s0, %s184
      $region36: #{combined_loss.12} parent=31 // pred_fallthru
        _
    $region32: #{combined_loss.12} parent=5 // pred_fallthru
      _
    %p186 = scmp.le.s32.totalorder 1, %s11
    %p187 = scmp.lt.s32.totalorder %s11, 5
    %p188 = pnand %p186, %p187
    %p189 = pneg %p188
    // Predicated region
    $region37: #{combined_loss.12} parent=5 // pred_check
      _
    $region38: #{combined_loss.12} parent=5 // pred_check_branch
      %191 = sbr.rel (%p188) target = $region40
    $region39: #{combined_loss.12} parent=5 // pred_region
      %s192 = ssub.s32 %s11, 1
      %p193 = scmp.lt.s32.totalorder %s16, 3
      %s194 = scalar_select %p193, %s16, 3
      %s195 = smul.addr %s194, 8
      %s196 = smul.addr %s195, 4
      %s197 = scalar_lea.vmem %s0, %s196
      %p198 = pneg %p37
      %p199 = pneg %p34
      %p200 = pneg %p58
      %p201 = pneg %p55
      %p202 = pneg %p79
      %p203 = pneg %p76
      %p204 = pneg %p100
      %p205 = pneg %p97
      %p206 = pneg %p121
      %p207 = pneg %p118
      %p208 = pneg %p147
      %p209 = pneg %p144
      %p210 = scmp.lt.s32.totalorder %s16, 3
      %s211 = scalar_select %p210, %s16, 3
      %s212 = smul.addr %s211, 8
      %s213 = smul.addr %s212, 8
      %s214 = scalar_lea.vmem %s5, %s213
      %p215 = scmp.lt.s32.totalorder %s16, 3
      %s216 = scalar_select %p215, %s16, 3
      %s217 = smul.addr %s216, 8
      %s218 = smul.addr %s217, 4
      %s219 = scalar_lea.vmem %s0, %s218
      %p220 = scmp.lt.s32.totalorder %s16, 3
      %s221 = scalar_select %p220, %s16, 3
      %s222 = smul.addr %s221, 8
      %s223 = smul.addr %s222, 8
      %s224 = scalar_lea.vmem %s5, %s223
      %vm226 = vcmask 523264
      %227 = vst.msk [vmem:[#allocation2] sm:$0xff] %vm226, 0.0
      %vm228 = vcmask 517120
      %229 = vst.msk [vmem:[#allocation2 + $0x8] sm:$0x3] %vm228, 0.0
      %s230 = scalar_lea.vmem [#allocation2], 144
      %231 = vst.msk [vmem:[%s230] sm:$0xff] %vm226, 0.0
      %232 = vst.msk [vmem:[%s230 + $0x8] sm:$0x3] %vm228, 0.0
      %vm233 = vcmask 516096
      %234 = vst.msk [vmem:[#allocation2] sm:$0x1] %vm233, 0.0
      %235 = vst.msk [vmem:[#allocation2 + $0x10] sm:$0x1] %vm233, 0.0
      %236 = vst.msk [vmem:[#allocation2 + $0x20] sm:$0x1] %vm233, 0.0
      %237 = vst.msk [vmem:[#allocation2 + $0x30] sm:$0x1] %vm233, 0.0
      %238 = vst.msk [vmem:[#allocation2 + $0x40] sm:$0x1] %vm233, 0.0
      %239 = vst.msk [vmem:[#allocation2 + $0x50] sm:$0x1] %vm233, 0.0
      %240 = vst.msk [vmem:[#allocation2 + $0x60] sm:$0x1] %vm233, 0.0
      %241 = vst.msk [vmem:[#allocation2 + $0x70] sm:$0x1] %vm233, 0.0
      %242 = vst.msk [vmem:[#allocation2 + $0x80] sm:$0x1] %vm233, 0.0
      %243 = vst.msk [vmem:[#allocation2 + $0x90] sm:$0x1] %vm233, 0.0
      %244 = vst.msk [vmem:[#allocation2 + $0x9] sm:$0x1] %vm233, 0.0
      %245 = vst.msk [vmem:[#allocation2 + $0x19] sm:$0x1] %vm233, 0.0
      %246 = vst.msk [vmem:[#allocation2 + $0x29] sm:$0x1] %vm233, 0.0
      %247 = vst.msk [vmem:[#allocation2 + $0x39] sm:$0x1] %vm233, 0.0
      %248 = vst.msk [vmem:[#allocation2 + $0x49] sm:$0x1] %vm233, 0.0
      %249 = vst.msk [vmem:[#allocation2 + $0x59] sm:$0x1] %vm233, 0.0
      %250 = vst.msk [vmem:[#allocation2 + $0x69] sm:$0x1] %vm233, 0.0
      %251 = vst.msk [vmem:[#allocation2 + $0x79] sm:$0x1] %vm233, 0.0
      %252 = vst.msk [vmem:[#allocation2 + $0x89] sm:$0x1] %vm233, 0.0
      %253 = vst.msk [vmem:[#allocation2 + $0x99] sm:$0x1] %vm233, 0.0
      %v254 = vld [vmem:[%s219] sm:$0xf]
      %v255 = vld [vmem:[%s219 + $0x4] sm:$0xf]
      %v256 = vld [vmem:[%s219 + $0x8] sm:$0xf]
      %v257 = vld [vmem:[%s219 + $0xc] sm:$0xf]
      %v258 = vld [vmem:[%s219 + $0x10] sm:$0xf]
      %v259 = vld [vmem:[%s219 + $0x14] sm:$0xf]
      %v260 = vld [vmem:[%s219 + $0x18] sm:$0xf]
      %v261 = vld [vmem:[%s219 + $0x1c] sm:$0xf]
      %v262 = vunpack.c.l.bf16 %v254
      %v263 = vunpack.c.l.bf16 %v255
      %v264 = vunpack.c.l.bf16 %v256
      %v265 = vunpack.c.l.bf16 %v257
      %v266 = vunpack.c.l.bf16 %v258
      %v267 = vunpack.c.l.bf16 %v259
      %v268 = vunpack.c.l.bf16 %v260
      %v269 = vunpack.c.l.bf16 %v261
      %s270 = scalar_lea.vmem [#allocation2], 16
      %271 = vst.msk [vmem:[%s270 + $0x1] sm:$0xff] %vm226, %v262
      %272 = vst.msk [vmem:[%s270 + $0x11] sm:$0xff] %vm226, %v263
      %273 = vst.msk [vmem:[%s270 + $0x21] sm:$0xff] %vm226, %v264
      %274 = vst.msk [vmem:[%s270 + $0x31] sm:$0xff] %vm226, %v265
      %275 = vst.msk [vmem:[%s270 + $0x41] sm:$0xff] %vm226, %v266
      %276 = vst.msk [vmem:[%s270 + $0x51] sm:$0xff] %vm226, %v267
      %277 = vst.msk [vmem:[%s270 + $0x61] sm:$0xff] %vm226, %v268
      %278 = vst.msk [vmem:[%s270 + $0x71] sm:$0xff] %vm226, %v269
      %v279 = vld [vmem:[#allocation2] sm:$0xff]
      %v280 = vld [vmem:[#allocation2 + $0x10] sm:$0xff]
      %v281 = vld [vmem:[#allocation2 + $0x20] sm:$0xff]
      %v282 = vld [vmem:[#allocation2 + $0x30] sm:$0xff]
      %v283 = vld [vmem:[#allocation2 + $0x40] sm:$0xff]
      %v284 = vld [vmem:[#allocation2 + $0x50] sm:$0xff]
      %v285 = vld [vmem:[#allocation2 + $0x60] sm:$0xff]
      %v286 = vld [vmem:[#allocation2 + $0x70] sm:$0xff]
      %v287 = vpack.c.bf16 %v280, %v279
      %v288 = vpack.c.bf16 %v282, %v281
      %v289 = vpack.c.bf16 %v284, %v283
      %v290 = vpack.c.bf16 %v286, %v285
      %v295 = vunpack.c.l.b16 %v287
      %v296 = vunpack.c.h.b16 %v287
      %v297 = vunpack.c.l.b16 %v288
      %v298 = vunpack.c.h.b16 %v288
      %v299 = vunpack.c.l.b16 %v289
      %v300 = vunpack.c.h.b16 %v289
      %v301 = vunpack.c.l.b16 %v290
      %v302 = vunpack.c.h.b16 %v290
      %v303 = vpack.c.b16 %v295, %v295
      %v304 = vpack.c.b16 %v296, %v296
      %v305 = vpack.c.b16 %v297, %v297
      %v306 = vpack.c.b16 %v298, %v298
      %v307 = vpack.c.b16 %v299, %v299
      %v308 = vpack.c.b16 %v300, %v300
      %v309 = vpack.c.b16 %v301, %v301
      %v310 = vpack.c.b16 %v302, %v302
      %vm319 = vcmask 519168
      %320 = vst.msk [vmem:[#allocation4] sm:$0xf] %vm319, %v303
      %321 = vst.msk [vmem:[#allocation4 + $0x24] sm:$0xf] %vm319, %v304
      %322 = vst.msk [vmem:[#allocation4 + $0x48] sm:$0xf] %vm319, %v305
      %323 = vst.msk [vmem:[#allocation4 + $0x6c] sm:$0xf] %vm319, %v306
      %324 = vst.msk [vmem:[#allocation4 + $0x90] sm:$0xf] %vm319, %v307
      %325 = vst.msk [vmem:[#allocation4 + $0xb4] sm:$0xf] %vm319, %v308
      %326 = vst.msk [vmem:[#allocation4 + $0xd8] sm:$0xf] %vm319, %v309
      %327 = vst.msk [vmem:[#allocation4 + $0xfc] sm:$0xf] %vm319, %v310
      %v328 = vld [vmem:[#allocation2 + $0x1] sm:$0xff]
      %v329 = vld [vmem:[#allocation2 + $0x11] sm:$0xff]
      %v330 = vld [vmem:[#allocation2 + $0x21] sm:$0xff]
      %v331 = vld [vmem:[#allocation2 + $0x31] sm:$0xff]
      %v332 = vld [vmem:[#allocation2 + $0x41] sm:$0xff]
      %v333 = vld [vmem:[#allocation2 + $0x51] sm:$0xff]
      %v334 = vld [vmem:[#allocation2 + $0x61] sm:$0xff]
      %v335 = vld [vmem:[#allocation2 + $0x71] sm:$0xff]
      %v336 = vpack.c.bf16 %v329, %v328
      %v337 = vpack.c.bf16 %v331, %v330
      %v338 = vpack.c.bf16 %v333, %v332
      %v339 = vpack.c.bf16 %v335, %v334
      %v344 = vunpack.c.l.b16 %v336
      %v345 = vunpack.c.h.b16 %v336
      %v346 = vunpack.c.l.b16 %v337
      %v347 = vunpack.c.h.b16 %v337
      %v348 = vunpack.c.l.b16 %v338
      %v349 = vunpack.c.h.b16 %v338
      %v350 = vunpack.c.l.b16 %v339
      %v351 = vunpack.c.h.b16 %v339
      %v352 = vpack.c.b16 %v344, %v344
      %v353 = vpack.c.b16 %v345, %v345
      %v354 = vpack.c.b16 %v346, %v346
      %v355 = vpack.c.b16 %v347, %v347
      %v356 = vpack.c.b16 %v348, %v348
      %v357 = vpack.c.b16 %v349, %v349
      %v358 = vpack.c.b16 %v350, %v350
      %v359 = vpack.c.b16 %v351, %v351
      %360 = vrot.lane.b32.xlu0 %v352, 64
      %v361 = vpop.permute.xlu0 %360
      %362 = vrot.lane.b32.xlu0 %v353, 64
      %v363 = vpop.permute.xlu0 %362
      %364 = vrot.lane.b32.xlu0 %v354, 64
      %v365 = vpop.permute.xlu0 %364
      %366 = vrot.lane.b32.xlu0 %v355, 64
      %v367 = vpop.permute.xlu0 %366
      %368 = vrot.lane.b32.xlu0 %v356, 64
      %v369 = vpop.permute.xlu0 %368
      %370 = vrot.lane.b32.xlu0 %v357, 64
      %v371 = vpop.permute.xlu0 %370
      %372 = vrot.lane.b32.xlu0 %v358, 64
      %v373 = vpop.permute.xlu0 %372
      %374 = vrot.lane.b32.xlu0 %v359, 64
      %v375 = vpop.permute.xlu0 %374
      %vm384 = vcmask 1043968
      %385 = vst.msk [vmem:[#allocation4] sm:$0xf] %vm384, %v361
      %386 = vst.msk [vmem:[#allocation4 + $0x24] sm:$0xf] %vm384, %v363
      %387 = vst.msk [vmem:[#allocation4 + $0x48] sm:$0xf] %vm384, %v365
      %388 = vst.msk [vmem:[#allocation4 + $0x6c] sm:$0xf] %vm384, %v367
      %389 = vst.msk [vmem:[#allocation4 + $0x90] sm:$0xf] %vm384, %v369
      %390 = vst.msk [vmem:[#allocation4 + $0xb4] sm:$0xf] %vm384, %v371
      %391 = vst.msk [vmem:[#allocation4 + $0xd8] sm:$0xf] %vm384, %v373
      %392 = vst.msk [vmem:[#allocation4 + $0xfc] sm:$0xf] %vm384, %v375
      %v393 = vld [vmem:[#allocation2 + $0x2] sm:$0xff]
      %v394 = vld [vmem:[#allocation2 + $0x12] sm:$0xff]
      %v395 = vld [vmem:[#allocation2 + $0x22] sm:$0xff]
      %v396 = vld [vmem:[#allocation2 + $0x32] sm:$0xff]
      %v397 = vld [vmem:[#allocation2 + $0x42] sm:$0xff]
      %v398 = vld [vmem:[#allocation2 + $0x52] sm:$0xff]
      %v399 = vld [vmem:[#allocation2 + $0x62] sm:$0xff]
      %v400 = vld [vmem:[#allocation2 + $0x72] sm:$0xff]
      %v401 = vpack.c.bf16 %v394, %v393
      %v402 = vpack.c.bf16 %v396, %v395
      %v403 = vpack.c.bf16 %v398, %v397
      %v404 = vpack.c.bf16 %v400, %v399
      %v409 = vunpack.c.l.b16 %v401
      %v410 = vunpack.c.h.b16 %v401
      %v411 = vunpack.c.l.b16 %v402
      %v412 = vunpack.c.h.b16 %v402
      %v413 = vunpack.c.l.b16 %v403
      %v414 = vunpack.c.h.b16 %v403
      %v415 = vunpack.c.l.b16 %v404
      %v416 = vunpack.c.h.b16 %v404
      %v417 = vpack.c.b16 %v409, %v409
      %v418 = vpack.c.b16 %v410, %v410
      %v419 = vpack.c.b16 %v411, %v411
      %v420 = vpack.c.b16 %v412, %v412
      %v421 = vpack.c.b16 %v413, %v413
      %v422 = vpack.c.b16 %v414, %v414
      %v423 = vpack.c.b16 %v415, %v415
      %v424 = vpack.c.b16 %v416, %v416
      %433 = vst.msk [vmem:[#allocation4 + $0x4] sm:$0xf] %vm319, %v417
      %434 = vst.msk [vmem:[#allocation4 + $0x28] sm:$0xf] %vm319, %v418
      %435 = vst.msk [vmem:[#allocation4 + $0x4c] sm:$0xf] %vm319, %v419
      %436 = vst.msk [vmem:[#allocation4 + $0x70] sm:$0xf] %vm319, %v420
      %437 = vst.msk [vmem:[#allocation4 + $0x94] sm:$0xf] %vm319, %v421
      %438 = vst.msk [vmem:[#allocation4 + $0xb8] sm:$0xf] %vm319, %v422
      %439 = vst.msk [vmem:[#allocation4 + $0xdc] sm:$0xf] %vm319, %v423
      %440 = vst.msk [vmem:[#allocation4 + $0x100] sm:$0xf] %vm319, %v424
      %v441 = vld [vmem:[%s270] sm:$0xff]
      %v442 = vld [vmem:[%s270 + $0x10] sm:$0xff]
      %v443 = vld [vmem:[%s270 + $0x20] sm:$0xff]
      %v444 = vld [vmem:[%s270 + $0x30] sm:$0xff]
      %v445 = vld [vmem:[%s270 + $0x40] sm:$0xff]
      %v446 = vld [vmem:[%s270 + $0x50] sm:$0xff]
      %v447 = vld [vmem:[%s270 + $0x60] sm:$0xff]
      %v448 = vld [vmem:[%s270 + $0x70] sm:$0xff]
      %v449 = vpack.c.bf16 %v442, %v441
      %v450 = vpack.c.bf16 %v444, %v443
      %v451 = vpack.c.bf16 %v446, %v445
      %v452 = vpack.c.bf16 %v448, %v447
      %v457 = vunpack.c.l.b16 %v449
      %v458 = vunpack.c.h.b16 %v449
      %v459 = vunpack.c.l.b16 %v450
      %v460 = vunpack.c.h.b16 %v450
      %v461 = vunpack.c.l.b16 %v451
      %v462 = vunpack.c.h.b16 %v451
      %v463 = vunpack.c.l.b16 %v452
      %v464 = vunpack.c.h.b16 %v452
      %v465 = vpack.c.b16 %v457, %v457
      %v466 = vpack.c.b16 %v458, %v458
      %v467 = vpack.c.b16 %v459, %v459
      %v468 = vpack.c.b16 %v460, %v460
      %v469 = vpack.c.b16 %v461, %v461
      %v470 = vpack.c.b16 %v462, %v462
      %v471 = vpack.c.b16 %v463, %v463
      %v472 = vpack.c.b16 %v464, %v464
      %473 = vrot.lane.b32.xlu0 %v465, 64
      %v474 = vpop.permute.xlu0 %473
      %475 = vrot.lane.b32.xlu0 %v466, 64
      %v476 = vpop.permute.xlu0 %475
      %477 = vrot.lane.b32.xlu0 %v467, 64
      %v478 = vpop.permute.xlu0 %477
      %479 = vrot.lane.b32.xlu0 %v468, 64
      %v480 = vpop.permute.xlu0 %479
      %481 = vrot.lane.b32.xlu0 %v469, 64
      %v482 = vpop.permute.xlu0 %481
      %483 = vrot.lane.b32.xlu0 %v470, 64
      %v484 = vpop.permute.xlu0 %483
      %485 = vrot.lane.b32.xlu0 %v471, 64
      %v486 = vpop.permute.xlu0 %485
      %487 = vrot.lane.b32.xlu0 %v472, 64
      %v488 = vpop.permute.xlu0 %487
      %497 = vst.msk [vmem:[#allocation4 + $0x4] sm:$0xf] %vm384, %v474
      %498 = vst.msk [vmem:[#allocation4 + $0x28] sm:$0xf] %vm384, %v476
      %499 = vst.msk [vmem:[#allocation4 + $0x4c] sm:$0xf] %vm384, %v478
      %500 = vst.msk [vmem:[#allocation4 + $0x70] sm:$0xf] %vm384, %v480
      %501 = vst.msk [vmem:[#allocation4 + $0x94] sm:$0xf] %vm384, %v482
      %502 = vst.msk [vmem:[#allocation4 + $0xb8] sm:$0xf] %vm384, %v484
      %503 = vst.msk [vmem:[#allocation4 + $0xdc] sm:$0xf] %vm384, %v486
      %504 = vst.msk [vmem:[#allocation4 + $0x100] sm:$0xf] %vm384, %v488
      %v505 = vld [vmem:[%s270 + $0x1] sm:$0xff]
      %v506 = vld [vmem:[%s270 + $0x11] sm:$0xff]
      %v507 = vld [vmem:[%s270 + $0x21] sm:$0xff]
      %v508 = vld [vmem:[%s270 + $0x31] sm:$0xff]
      %v509 = vld [vmem:[%s270 + $0x41] sm:$0xff]
      %v510 = vld [vmem:[%s270 + $0x51] sm:$0xff]
      %v511 = vld [vmem:[%s270 + $0x61] sm:$0xff]
      %v512 = vld [vmem:[%s270 + $0x71] sm:$0xff]
      %v513 = vpack.c.bf16 %v506, %v505
      %v514 = vpack.c.bf16 %v508, %v507
      %v515 = vpack.c.bf16 %v510, %v509
      %v516 = vpack.c.bf16 %v512, %v511
      %v521 = vunpack.c.l.b16 %v513
      %v522 = vunpack.c.h.b16 %v513
      %v523 = vunpack.c.l.b16 %v514
      %v524 = vunpack.c.h.b16 %v514
      %v525 = vunpack.c.l.b16 %v515
      %v526 = vunpack.c.h.b16 %v515
      %v527 = vunpack.c.l.b16 %v516
      %v528 = vunpack.c.h.b16 %v516
      %v529 = vpack.c.b16 %v521, %v521
      %v530 = vpack.c.b16 %v522, %v522
      %v531 = vpack.c.b16 %v523, %v523
      %v532 = vpack.c.b16 %v524, %v524
      %v533 = vpack.c.b16 %v525, %v525
      %v534 = vpack.c.b16 %v526, %v526
      %v535 = vpack.c.b16 %v527, %v527
      %v536 = vpack.c.b16 %v528, %v528
      %545 = vst.msk [vmem:[#allocation4 + $0x8] sm:$0xf] %vm319, %v529
      %546 = vst.msk [vmem:[#allocation4 + $0x2c] sm:$0xf] %vm319, %v530
      %547 = vst.msk [vmem:[#allocation4 + $0x50] sm:$0xf] %vm319, %v531
      %548 = vst.msk [vmem:[#allocation4 + $0x74] sm:$0xf] %vm319, %v532
      %549 = vst.msk [vmem:[#allocation4 + $0x98] sm:$0xf] %vm319, %v533
      %550 = vst.msk [vmem:[#allocation4 + $0xbc] sm:$0xf] %vm319, %v534
      %551 = vst.msk [vmem:[#allocation4 + $0xe0] sm:$0xf] %vm319, %v535
      %552 = vst.msk [vmem:[#allocation4 + $0x104] sm:$0xf] %vm319, %v536
      %v553 = vld [vmem:[%s270 + $0x2] sm:$0xff]
      %v554 = vld [vmem:[%s270 + $0x12] sm:$0xff]
      %v555 = vld [vmem:[%s270 + $0x22] sm:$0xff]
      %v556 = vld [vmem:[%s270 + $0x32] sm:$0xff]
      %v557 = vld [vmem:[%s270 + $0x42] sm:$0xff]
      %v558 = vld [vmem:[%s270 + $0x52] sm:$0xff]
      %v559 = vld [vmem:[%s270 + $0x62] sm:$0xff]
      %v560 = vld [vmem:[%s270 + $0x72] sm:$0xff]
      %v561 = vpack.c.bf16 %v554, %v553
      %v562 = vpack.c.bf16 %v556, %v555
      %v563 = vpack.c.bf16 %v558, %v557
      %v564 = vpack.c.bf16 %v560, %v559
      %v569 = vunpack.c.l.b16 %v561
      %v570 = vunpack.c.h.b16 %v561
      %v571 = vunpack.c.l.b16 %v562
      %v572 = vunpack.c.h.b16 %v562
      %v573 = vunpack.c.l.b16 %v563
      %v574 = vunpack.c.h.b16 %v563
      %v575 = vunpack.c.l.b16 %v564
      %v576 = vunpack.c.h.b16 %v564
      %v577 = vpack.c.b16 %v569, %v569
      %v578 = vpack.c.b16 %v570, %v570
      %v579 = vpack.c.b16 %v571, %v571
      %v580 = vpack.c.b16 %v572, %v572
      %v581 = vpack.c.b16 %v573, %v573
      %v582 = vpack.c.b16 %v574, %v574
      %v583 = vpack.c.b16 %v575, %v575
      %v584 = vpack.c.b16 %v576, %v576
      %585 = vrot.lane.b32.xlu0 %v577, 64
      %v586 = vpop.permute.xlu0 %585
      %587 = vrot.lane.b32.xlu0 %v578, 64
      %v588 = vpop.permute.xlu0 %587
      %589 = vrot.lane.b32.xlu0 %v579, 64
      %v590 = vpop.permute.xlu0 %589
      %591 = vrot.lane.b32.xlu0 %v580, 64
      %v592 = vpop.permute.xlu0 %591
      %593 = vrot.lane.b32.xlu0 %v581, 64
      %v594 = vpop.permute.xlu0 %593
      %595 = vrot.lane.b32.xlu0 %v582, 64
      %v596 = vpop.permute.xlu0 %595
      %597 = vrot.lane.b32.xlu0 %v583, 64
      %v598 = vpop.permute.xlu0 %597
      %599 = vrot.lane.b32.xlu0 %v584, 64
      %v600 = vpop.permute.xlu0 %599
      %609 = vst.msk [vmem:[#allocation4 + $0x8] sm:$0xf] %vm384, %v586
      %610 = vst.msk [vmem:[#allocation4 + $0x2c] sm:$0xf] %vm384, %v588
      %611 = vst.msk [vmem:[#allocation4 + $0x50] sm:$0xf] %vm384, %v590
      %612 = vst.msk [vmem:[#allocation4 + $0x74] sm:$0xf] %vm384, %v592
      %613 = vst.msk [vmem:[#allocation4 + $0x98] sm:$0xf] %vm384, %v594
      %614 = vst.msk [vmem:[#allocation4 + $0xbc] sm:$0xf] %vm384, %v596
      %615 = vst.msk [vmem:[#allocation4 + $0xe0] sm:$0xf] %vm384, %v598
      %616 = vst.msk [vmem:[#allocation4 + $0x104] sm:$0xf] %vm384, %v600
      %s617 = scalar_lea.vmem [#allocation2], 32
      %v618 = vld [vmem:[%s617] sm:$0xff]
      %v619 = vld [vmem:[%s617 + $0x10] sm:$0xff]
      %v620 = vld [vmem:[%s617 + $0x20] sm:$0xff]
      %v621 = vld [vmem:[%s617 + $0x30] sm:$0xff]
      %v622 = vld [vmem:[%s617 + $0x40] sm:$0xff]
      %v623 = vld [vmem:[%s617 + $0x50] sm:$0xff]
      %v624 = vld [vmem:[%s617 + $0x60] sm:$0xff]
      %v625 = vld [vmem:[%s617 + $0x70] sm:$0xff]
      %v626 = vpack.c.bf16 %v619, %v618
      %v627 = vpack.c.bf16 %v621, %v620
      %v628 = vpack.c.bf16 %v623, %v622
      %v629 = vpack.c.bf16 %v625, %v624
      %v634 = vunpack.c.l.b16 %v626
      %v635 = vunpack.c.h.b16 %v626
      %v636 = vunpack.c.l.b16 %v627
      %v637 = vunpack.c.h.b16 %v627
      %v638 = vunpack.c.l.b16 %v628
      %v639 = vunpack.c.h.b16 %v628
      %v640 = vunpack.c.l.b16 %v629
      %v641 = vunpack.c.h.b16 %v629
      %v642 = vpack.c.b16 %v634, %v634
      %v643 = vpack.c.b16 %v635, %v635
      %v644 = vpack.c.b16 %v636, %v636
      %v645 = vpack.c.b16 %v637, %v637
      %v646 = vpack.c.b16 %v638, %v638
      %v647 = vpack.c.b16 %v639, %v639
      %v648 = vpack.c.b16 %v640, %v640
      %v649 = vpack.c.b16 %v641, %v641
      %658 = vst.msk [vmem:[#allocation4 + $0xc] sm:$0xf] %vm319, %v642
      %659 = vst.msk [vmem:[#allocation4 + $0x30] sm:$0xf] %vm319, %v643
      %660 = vst.msk [vmem:[#allocation4 + $0x54] sm:$0xf] %vm319, %v644
      %661 = vst.msk [vmem:[#allocation4 + $0x78] sm:$0xf] %vm319, %v645
      %662 = vst.msk [vmem:[#allocation4 + $0x9c] sm:$0xf] %vm319, %v646
      %663 = vst.msk [vmem:[#allocation4 + $0xc0] sm:$0xf] %vm319, %v647
      %664 = vst.msk [vmem:[#allocation4 + $0xe4] sm:$0xf] %vm319, %v648
      %665 = vst.msk [vmem:[#allocation4 + $0x108] sm:$0xf] %vm319, %v649
      %v666 = vld [vmem:[%s617 + $0x1] sm:$0xff]
      %v667 = vld [vmem:[%s617 + $0x11] sm:$0xff]
      %v668 = vld [vmem:[%s617 + $0x21] sm:$0xff]
      %v669 = vld [vmem:[%s617 + $0x31] sm:$0xff]
      %v670 = vld [vmem:[%s617 + $0x41] sm:$0xff]
      %v671 = vld [vmem:[%s617 + $0x51] sm:$0xff]
      %v672 = vld [vmem:[%s617 + $0x61] sm:$0xff]
      %v673 = vld [vmem:[%s617 + $0x71] sm:$0xff]
      %v674 = vpack.c.bf16 %v667, %v666
      %v675 = vpack.c.bf16 %v669, %v668
      %v676 = vpack.c.bf16 %v671, %v670
      %v677 = vpack.c.bf16 %v673, %v672
      %v682 = vunpack.c.l.b16 %v674
      %v683 = vunpack.c.h.b16 %v674
      %v684 = vunpack.c.l.b16 %v675
      %v685 = vunpack.c.h.b16 %v675
      %v686 = vunpack.c.l.b16 %v676
      %v687 = vunpack.c.h.b16 %v676
      %v688 = vunpack.c.l.b16 %v677
      %v689 = vunpack.c.h.b16 %v677
      %v690 = vpack.c.b16 %v682, %v682
      %v691 = vpack.c.b16 %v683, %v683
      %v692 = vpack.c.b16 %v684, %v684
      %v693 = vpack.c.b16 %v685, %v685
      %v694 = vpack.c.b16 %v686, %v686
      %v695 = vpack.c.b16 %v687, %v687
      %v696 = vpack.c.b16 %v688, %v688
      %v697 = vpack.c.b16 %v689, %v689
      %698 = vrot.lane.b32.xlu0 %v690, 64
      %v699 = vpop.permute.xlu0 %698
      %700 = vrot.lane.b32.xlu0 %v691, 64
      %v701 = vpop.permute.xlu0 %700
      %702 = vrot.lane.b32.xlu0 %v692, 64
      %v703 = vpop.permute.xlu0 %702
      %704 = vrot.lane.b32.xlu0 %v693, 64
      %v705 = vpop.permute.xlu0 %704
      %706 = vrot.lane.b32.xlu0 %v694, 64
      %v707 = vpop.permute.xlu0 %706
      %708 = vrot.lane.b32.xlu0 %v695, 64
      %v709 = vpop.permute.xlu0 %708
      %710 = vrot.lane.b32.xlu0 %v696, 64
      %v711 = vpop.permute.xlu0 %710
      %712 = vrot.lane.b32.xlu0 %v697, 64
      %v713 = vpop.permute.xlu0 %712
      %722 = vst.msk [vmem:[#allocation4 + $0xc] sm:$0xf] %vm384, %v699
      %723 = vst.msk [vmem:[#allocation4 + $0x30] sm:$0xf] %vm384, %v701
      %724 = vst.msk [vmem:[#allocation4 + $0x54] sm:$0xf] %vm384, %v703
      %725 = vst.msk [vmem:[#allocation4 + $0x78] sm:$0xf] %vm384, %v705
      %726 = vst.msk [vmem:[#allocation4 + $0x9c] sm:$0xf] %vm384, %v707
      %727 = vst.msk [vmem:[#allocation4 + $0xc0] sm:$0xf] %vm384, %v709
      %728 = vst.msk [vmem:[#allocation4 + $0xe4] sm:$0xf] %vm384, %v711
      %729 = vst.msk [vmem:[#allocation4 + $0x108] sm:$0xf] %vm384, %v713
      %v730 = vld [vmem:[%s617 + $0x2] sm:$0xff]
      %v731 = vld [vmem:[%s617 + $0x12] sm:$0xff]
      %v732 = vld [vmem:[%s617 + $0x22] sm:$0xff]
      %v733 = vld [vmem:[%s617 + $0x32] sm:$0xff]
      %v734 = vld [vmem:[%s617 + $0x42] sm:$0xff]
      %v735 = vld [vmem:[%s617 + $0x52] sm:$0xff]
      %v736 = vld [vmem:[%s617 + $0x62] sm:$0xff]
      %v737 = vld [vmem:[%s617 + $0x72] sm:$0xff]
      %v738 = vpack.c.bf16 %v731, %v730
      %v739 = vpack.c.bf16 %v733, %v732
      %v740 = vpack.c.bf16 %v735, %v734
      %v741 = vpack.c.bf16 %v737, %v736
      %v746 = vunpack.c.l.b16 %v738
      %v747 = vunpack.c.h.b16 %v738
      %v748 = vunpack.c.l.b16 %v739
      %v749 = vunpack.c.h.b16 %v739
      %v750 = vunpack.c.l.b16 %v740
      %v751 = vunpack.c.h.b16 %v740
      %v752 = vunpack.c.l.b16 %v741
      %v753 = vunpack.c.h.b16 %v741
      %v754 = vpack.c.b16 %v746, %v746
      %v755 = vpack.c.b16 %v747, %v747
      %v756 = vpack.c.b16 %v748, %v748
      %v757 = vpack.c.b16 %v749, %v749
      %v758 = vpack.c.b16 %v750, %v750
      %v759 = vpack.c.b16 %v751, %v751
      %v760 = vpack.c.b16 %v752, %v752
      %v761 = vpack.c.b16 %v753, %v753
      %770 = vst.msk [vmem:[#allocation4 + $0x10] sm:$0xf] %vm319, %v754
      %771 = vst.msk [vmem:[#allocation4 + $0x34] sm:$0xf] %vm319, %v755
      %772 = vst.msk [vmem:[#allocation4 + $0x58] sm:$0xf] %vm319, %v756
      %773 = vst.msk [vmem:[#allocation4 + $0x7c] sm:$0xf] %vm319, %v757
      %774 = vst.msk [vmem:[#allocation4 + $0xa0] sm:$0xf] %vm319, %v758
      %775 = vst.msk [vmem:[#allocation4 + $0xc4] sm:$0xf] %vm319, %v759
      %776 = vst.msk [vmem:[#allocation4 + $0xe8] sm:$0xf] %vm319, %v760
      %777 = vst.msk [vmem:[#allocation4 + $0x10c] sm:$0xf] %vm319, %v761
      %v778 = vld [vmem:[#allocation4] sm:$0xff]
      %v779 = vld [vmem:[#allocation4 + $0x8] sm:$0xff]
      %v780 = vld [vmem:[#allocation4 + $0x10] sm:$0xf]
      %v781 = vld [vmem:[#allocation4 + $0x24] sm:$0xff]
      %v782 = vld [vmem:[#allocation4 + $0x2c] sm:$0xff]
      %v783 = vld [vmem:[#allocation4 + $0x34] sm:$0xf]
      %v784 = vld [vmem:[#allocation4 + $0x48] sm:$0xff]
      %v785 = vld [vmem:[#allocation4 + $0x50] sm:$0xff]
      %v786 = vld [vmem:[#allocation4 + $0x58] sm:$0xf]
      %v787 = vld [vmem:[#allocation4 + $0x6c] sm:$0xff]
      %v788 = vld [vmem:[#allocation4 + $0x74] sm:$0xff]
      %v789 = vld [vmem:[#allocation4 + $0x7c] sm:$0xf]
      %v790 = vld [vmem:[#allocation4 + $0x90] sm:$0xff]
      %v791 = vld [vmem:[#allocation4 + $0x98] sm:$0xff]
      %v792 = vld [vmem:[#allocation4 + $0xa0] sm:$0xf]
      %v793 = vld [vmem:[#allocation4 + $0xb4] sm:$0xff]
      %v794 = vld [vmem:[#allocation4 + $0xbc] sm:$0xff]
      %v795 = vld [vmem:[#allocation4 + $0xc4] sm:$0xf]
      %v796 = vld [vmem:[#allocation4 + $0xd8] sm:$0xff]
      %v797 = vld [vmem:[#allocation4 + $0xe0] sm:$0xff]
      %v798 = vld [vmem:[#allocation4 + $0xe8] sm:$0xf]
      %v799 = vld [vmem:[#allocation4 + $0xfc] sm:$0xff]
      %v800 = vld [vmem:[#allocation4 + $0x104] sm:$0xff]
      %v801 = vld [vmem:[#allocation4 + $0x10c] sm:$0xf]
      %v802 = vld [vmem:[%s1] sm:$0xf]
      %v803 = vld [vmem:[%s1 + $0x4] sm:$0xf]
      %v804 = vld [vmem:[%s1 + $0x8] sm:$0xf]
      %v805 = vld [vmem:[%s1 + $0xc] sm:$0xf]
      %v806 = vld [vmem:[%s1 + $0x10] sm:$0xf]
      %v807 = vld [vmem:[%s1 + $0x14] sm:$0xf]
      %v808 = vld [vmem:[%s1 + $0x18] sm:$0xf]
      %v809 = vld [vmem:[%s1 + $0x1c] sm:$0xf]
      %v810 = vld [vmem:[%s1 + $0x20] sm:$0xf]
      %v811 = vld [vmem:[%s1 + $0x24] sm:$0xf]
      %v812 = vld [vmem:[%s1 + $0x28] sm:$0xf]
      %v813 = vld [vmem:[%s1 + $0x2c] sm:$0xf]
      %v814 = vld [vmem:[%s1 + $0x30] sm:$0xf]
      %v815 = vld [vmem:[%s1 + $0x34] sm:$0xf]
      %v816 = vld [vmem:[%s1 + $0x38] sm:$0xf]
      %v817 = vld [vmem:[%s1 + $0x3c] sm:$0xf]
      %v818 = vld [vmem:[%s1 + $0x40] sm:$0xf]
      %v819 = vld [vmem:[%s1 + $0x44] sm:$0xf]
      %v820 = vld [vmem:[%s1 + $0x48] sm:$0xf]
      %v821 = vld [vmem:[%s1 + $0x4c] sm:$0xf]
      %v822 = vld [vmem:[%s1 + $0x50] sm:$0xf]
      %v823 = vld [vmem:[%s1 + $0x54] sm:$0xf]
      %v824 = vld [vmem:[%s1 + $0x58] sm:$0xf]
      %v825 = vld [vmem:[%s1 + $0x5c] sm:$0xf]
      %v826 = vld [vmem:[%s1 + $0x60] sm:$0xf]
      %v827 = vld [vmem:[%s1 + $0x64] sm:$0xf]
      %v828 = vld [vmem:[%s1 + $0x68] sm:$0xf]
      %v829 = vld [vmem:[%s1 + $0x6c] sm:$0xf]
      %v830 = vld [vmem:[%s1 + $0x70] sm:$0xf]
      %v831 = vld [vmem:[%s1 + $0x74] sm:$0xf]
      %v832 = vld [vmem:[%s1 + $0x78] sm:$0xf]
      %v833 = vld [vmem:[%s1 + $0x7c] sm:$0xf]
      %v834 = vld [vmem:[%s1 + $0x80] sm:$0xf]
      %v835 = vld [vmem:[%s1 + $0x84] sm:$0xf]
      %v836 = vld [vmem:[%s1 + $0x88] sm:$0xf]
      %v837 = vld [vmem:[%s1 + $0x8c] sm:$0xf]
      %v838 = vld [vmem:[%s1 + $0x90] sm:$0xf]
      %v839 = vld [vmem:[%s1 + $0x94] sm:$0xf]
      %v840 = vld [vmem:[%s1 + $0x98] sm:$0xf]
      %v841 = vld [vmem:[%s1 + $0x9c] sm:$0xf]
      %v842 = vld [vmem:[%s1 + $0xa0] sm:$0xf]
      %v843 = vld [vmem:[%s1 + $0xa4] sm:$0xf]
      %v844 = vld [vmem:[%s1 + $0xa8] sm:$0xf]
      %v845 = vld [vmem:[%s1 + $0xac] sm:$0xf]
      %v846 = vld [vmem:[%s1 + $0xb0] sm:$0xf]
      %v847 = vld [vmem:[%s1 + $0xb4] sm:$0xf]
      %v848 = vld [vmem:[%s1 + $0xb8] sm:$0xf]
      %v849 = vld [vmem:[%s1 + $0xbc] sm:$0xf]
      %v850 = vld [vmem:[%s1 + $0xc0] sm:$0xf]
      %v851 = vld [vmem:[%s1 + $0xc4] sm:$0xf]
      %v852 = vld [vmem:[%s1 + $0xc8] sm:$0xf]
      %v853 = vld [vmem:[%s1 + $0xcc] sm:$0xf]
      %v854 = vld [vmem:[%s1 + $0xd0] sm:$0xf]
      %v855 = vld [vmem:[%s1 + $0xd4] sm:$0xf]
      %v856 = vld [vmem:[%s1 + $0xd8] sm:$0xf]
      %v857 = vld [vmem:[%s1 + $0xdc] sm:$0xf]
      %v858 = vld [vmem:[%s1 + $0xe0] sm:$0xf]
      %v859 = vld [vmem:[%s1 + $0xe4] sm:$0xf]
      %v860 = vld [vmem:[%s1 + $0xe8] sm:$0xf]
      %v861 = vld [vmem:[%s1 + $0xec] sm:$0xf]
      %v862 = vld [vmem:[%s1 + $0xf0] sm:$0xf]
      %v863 = vld [vmem:[%s1 + $0xf4] sm:$0xf]
      %v864 = vld [vmem:[%s1 + $0xf8] sm:$0xf]
      %v865 = vld [vmem:[%s1 + $0xfc] sm:$0xf]
      %v866 = vld [vmem:[%s1 + $0x100] sm:$0xf]
      %v867 = vld [vmem:[%s1 + $0x104] sm:$0xf]
      %v868 = vld [vmem:[%s1 + $0x108] sm:$0xf]
      %v869 = vld [vmem:[%s1 + $0x10c] sm:$0xf]
      %v870 = vld [vmem:[%s1 + $0x110] sm:$0xf]
      %v871 = vld [vmem:[%s1 + $0x114] sm:$0xf]
      %v872 = vld [vmem:[%s1 + $0x118] sm:$0xf]
      %v873 = vld [vmem:[%s1 + $0x11c] sm:$0xf]
      %v874 = vld [vmem:[%s2] sm:$0x1]
      %v876 = vlaneseq
      %v877 = vshrl.u32 %v876, 7
      %v878 = vsub.s32 0, %v877
      %v879 = vrot.slane %v874, %v878
      %v905 = vunpack.c.l.b16 %v778
      %v906 = vunpack.c.h.b16 %v778
      %v907 = vunpack.c.l.b16 %v779
      %v908 = vunpack.c.h.b16 %v779
      %v909 = vunpack.c.l.b16 %v780
      %v910 = vunpack.c.l.b16 %v781
      %v911 = vunpack.c.h.b16 %v781
      %v912 = vunpack.c.l.b16 %v782
      %v913 = vunpack.c.h.b16 %v782
      %v914 = vunpack.c.l.b16 %v783
      %v915 = vunpack.c.l.b16 %v784
      %v916 = vunpack.c.h.b16 %v784
      %v917 = vunpack.c.l.b16 %v785
      %v918 = vunpack.c.h.b16 %v785
      %v919 = vunpack.c.l.b16 %v786
      %v920 = vunpack.c.l.b16 %v787
      %v921 = vunpack.c.h.b16 %v787
      %v922 = vunpack.c.l.b16 %v788
      %v923 = vunpack.c.h.b16 %v788
      %v924 = vunpack.c.l.b16 %v789
      %v925 = vunpack.c.l.b16 %v790
      %v926 = vunpack.c.h.b16 %v790
      %v927 = vunpack.c.l.b16 %v791
      %v928 = vunpack.c.h.b16 %v791
      %v929 = vunpack.c.l.b16 %v792
      %v930 = vunpack.c.l.b16 %v793
      %v931 = vunpack.c.h.b16 %v793
      %v932 = vunpack.c.l.b16 %v794
      %v933 = vunpack.c.h.b16 %v794
      %v934 = vunpack.c.l.b16 %v795
      %v935 = vunpack.c.l.b16 %v796
      %v936 = vunpack.c.h.b16 %v796
      %v937 = vunpack.c.l.b16 %v797
      %v938 = vunpack.c.h.b16 %v797
      %v939 = vunpack.c.l.b16 %v798
      %v940 = vunpack.c.l.b16 %v799
      %v941 = vunpack.c.h.b16 %v799
      %v942 = vunpack.c.l.b16 %v800
      %v943 = vunpack.c.h.b16 %v800
      %v944 = vunpack.c.l.b16 %v801
      %v945 = vpack.c.b16 %v910, %v905
      %v946 = vpack.c.b16 %v911, %v906
      %v947 = vpack.c.b16 %v912, %v907
      %v948 = vpack.c.b16 %v913, %v908
      %v949 = vpack.c.b16 %v914, %v909
      %v950 = vpack.c.b16 %v920, %v915
      %v951 = vpack.c.b16 %v921, %v916
      %v952 = vpack.c.b16 %v922, %v917
      %v953 = vpack.c.b16 %v923, %v918
      %v954 = vpack.c.b16 %v924, %v919
      %v955 = vpack.c.b16 %v930, %v925
      %v956 = vpack.c.b16 %v931, %v926
      %v957 = vpack.c.b16 %v932, %v927
      %v958 = vpack.c.b16 %v933, %v928
      %v959 = vpack.c.b16 %v934, %v929
      %v960 = vpack.c.b16 %v940, %v935
      %v961 = vpack.c.b16 %v941, %v936
      %v962 = vpack.c.b16 %v942, %v937
      %v963 = vpack.c.b16 %v943, %v938
      %v964 = vpack.c.b16 %v944, %v939
      %v1053 = vunpack.c.l.b16 %v802
      %v1054 = vunpack.c.l.b16 %v803
      %v1055 = vunpack.c.l.b16 %v804
      %v1056 = vunpack.c.l.b16 %v805
      %v1057 = vunpack.c.l.b16 %v806
      %v1058 = vunpack.c.l.b16 %v807
      %v1059 = vunpack.c.l.b16 %v808
      %v1060 = vunpack.c.l.b16 %v809
      %v1061 = vunpack.c.l.b16 %v810
      %v1062 = vunpack.c.l.b16 %v811
      %v1063 = vunpack.c.l.b16 %v812
      %v1064 = vunpack.c.l.b16 %v813
      %v1065 = vunpack.c.l.b16 %v814
      %v1066 = vunpack.c.l.b16 %v815
      %v1067 = vunpack.c.l.b16 %v816
      %v1068 = vunpack.c.l.b16 %v817
      %v1069 = vunpack.c.l.b16 %v818
      %v1070 = vunpack.c.l.b16 %v819
      %v1071 = vunpack.c.l.b16 %v820
      %v1072 = vunpack.c.l.b16 %v821
      %v1073 = vunpack.c.l.b16 %v822
      %v1074 = vunpack.c.l.b16 %v823
      %v1075 = vunpack.c.l.b16 %v824
      %v1076 = vunpack.c.l.b16 %v825
      %v1077 = vunpack.c.l.b16 %v826
      %v1078 = vunpack.c.l.b16 %v827
      %v1079 = vunpack.c.l.b16 %v828
      %v1080 = vunpack.c.l.b16 %v829
      %v1081 = vunpack.c.l.b16 %v830
      %v1082 = vunpack.c.l.b16 %v831
      %v1083 = vunpack.c.l.b16 %v832
      %v1084 = vunpack.c.l.b16 %v833
      %v1085 = vunpack.c.l.b16 %v834
      %v1086 = vunpack.c.l.b16 %v835
      %v1087 = vunpack.c.l.b16 %v836
      %v1088 = vunpack.c.l.b16 %v837
      %v1089 = vunpack.c.l.b16 %v838
      %v1090 = vunpack.c.l.b16 %v839
      %v1091 = vunpack.c.l.b16 %v840
      %v1092 = vunpack.c.l.b16 %v841
      %v1093 = vunpack.c.l.b16 %v842
      %v1094 = vunpack.c.l.b16 %v843
      %v1095 = vunpack.c.l.b16 %v844
      %v1096 = vunpack.c.l.b16 %v845
      %v1097 = vunpack.c.l.b16 %v846
      %v1098 = vunpack.c.l.b16 %v847
      %v1099 = vunpack.c.l.b16 %v848
      %v1100 = vunpack.c.l.b16 %v849
      %v1101 = vunpack.c.l.b16 %v850
      %v1102 = vunpack.c.l.b16 %v851
      %v1103 = vunpack.c.l.b16 %v852
      %v1104 = vunpack.c.l.b16 %v853
      %v1105 = vunpack.c.l.b16 %v854
      %v1106 = vunpack.c.l.b16 %v855
      %v1107 = vunpack.c.l.b16 %v856
      %v1108 = vunpack.c.l.b16 %v857
      %v1109 = vunpack.c.l.b16 %v858
      %v1110 = vunpack.c.l.b16 %v859
      %v1111 = vunpack.c.l.b16 %v860
      %v1112 = vunpack.c.l.b16 %v861
      %v1113 = vunpack.c.l.b16 %v862
      %v1114 = vunpack.c.l.b16 %v863
      %v1115 = vunpack.c.l.b16 %v864
      %v1116 = vunpack.c.l.b16 %v865
      %v1117 = vunpack.c.l.b16 %v866
      %v1118 = vunpack.c.l.b16 %v867
      %v1119 = vunpack.c.l.b16 %v868
      %v1120 = vunpack.c.l.b16 %v869
      %v1121 = vunpack.c.l.b16 %v870
      %v1122 = vunpack.c.l.b16 %v871
      %v1123 = vunpack.c.l.b16 %v872
      %v1124 = vunpack.c.l.b16 %v873
      %v1125 = vpack.c.b16 %v1054, %v1053
      %v1126 = vpack.c.b16 %v1056, %v1055
      %v1127 = vpack.c.b16 %v1058, %v1057
      %v1128 = vpack.c.b16 %v1060, %v1059
      %v1129 = vpack.c.b16 %v1062, %v1061
      %v1130 = vpack.c.b16 %v1064, %v1063
      %v1131 = vpack.c.b16 %v1066, %v1065
      %v1132 = vpack.c.b16 %v1068, %v1067
      %v1133 = vpack.c.b16 %v1070, %v1069
      %v1134 = vpack.c.b16 %v1072, %v1071
      %v1135 = vpack.c.b16 %v1074, %v1073
      %v1136 = vpack.c.b16 %v1076, %v1075
      %v1137 = vpack.c.b16 %v1078, %v1077
      %v1138 = vpack.c.b16 %v1080, %v1079
      %v1139 = vpack.c.b16 %v1082, %v1081
      %v1140 = vpack.c.b16 %v1084, %v1083
      %v1141 = vpack.c.b16 %v1086, %v1085
      %v1142 = vpack.c.b16 %v1088, %v1087
      %v1143 = vpack.c.b16 %v1090, %v1089
      %v1144 = vpack.c.b16 %v1092, %v1091
      %v1145 = vpack.c.b16 %v1094, %v1093
      %v1146 = vpack.c.b16 %v1096, %v1095
      %v1147 = vpack.c.b16 %v1098, %v1097
      %v1148 = vpack.c.b16 %v1100, %v1099
      %v1149 = vpack.c.b16 %v1102, %v1101
      %v1150 = vpack.c.b16 %v1104, %v1103
      %v1151 = vpack.c.b16 %v1106, %v1105
      %v1152 = vpack.c.b16 %v1108, %v1107
      %v1153 = vpack.c.b16 %v1110, %v1109
      %v1154 = vpack.c.b16 %v1112, %v1111
      %v1155 = vpack.c.b16 %v1114, %v1113
      %v1156 = vpack.c.b16 %v1116, %v1115
      %v1157 = vpack.c.b16 %v1118, %v1117
      %v1158 = vpack.c.b16 %v1120, %v1119
      %v1159 = vpack.c.b16 %v1122, %v1121
      %v1160 = vpack.c.b16 %v1124, %v1123
      %v1198 = vsel %vm226, %v949, 0
      %v1201 = vsel %vm226, %v954, 0
      %v1204 = vsel %vm226, %v959, 0
      %v1207 = vsel %vm226, %v964, 0
      %1209 = vmatprep.subr.bf16.mxu0 0
      %1210 = vmatpush1.bf16.msra.mxu0 %v1132
      %1211 = vmatprep.subr.bf16.mxu0 0
      %1212 = vmatpush1.bf16.msra.mxu0 %v1131
      %1213 = vmatprep.subr.bf16.mxu0 0
      %1214 = vmatpush1.bf16.msra.mxu0 %v1130
      %1215 = vmatprep.subr.bf16.mxu0 0
      %1216 = vmatpush1.bf16.msra.mxu0 %v1129
      %1217 = vmatprep.subr.bf16.mxu0 0
      %1218 = vmatpush1.bf16.msra.mxu0 %v1128
      %1219 = vmatprep.subr.bf16.mxu0 0
      %1220 = vmatpush1.bf16.msra.mxu0 %v1127
      %1221 = vmatprep.subr.bf16.mxu0 0
      %1222 = vmatpush1.bf16.msra.mxu0 %v1126
      %1223 = vmatprep.subr.bf16.mxu0 0
      %1224 = vmatpush1.bf16.msra.mxu0 %v1125
      %1225 = vmatprep.subr.bf16.mxu0 0
      %1226 = vmatpush2.bf16.msra.mxu0 %v1140
      %1227 = vmatprep.subr.bf16.mxu0 0
      %1228 = vmatpush2.bf16.msra.mxu0 %v1139
      %1229 = vmatprep.subr.bf16.mxu0 0
      %1230 = vmatpush2.bf16.msra.mxu0 %v1138
      %1231 = vmatprep.subr.bf16.mxu0 0
      %1232 = vmatpush2.bf16.msra.mxu0 %v1137
      %1233 = vmatprep.subr.bf16.mxu0 0
      %1234 = vmatpush2.bf16.msra.mxu0 %v1136
      %1235 = vmatprep.subr.bf16.mxu0 0
      %1236 = vmatpush2.bf16.msra.mxu0 %v1135
      %1237 = vmatprep.subr.bf16.mxu0 0
      %1238 = vmatpush2.bf16.msra.mxu0 %v1134
      %1239 = vmatprep.subr.bf16.mxu0 0
      %1240 = vmatpush2.bf16.msra.mxu0 %v1133
      %1241 = vmatprep.mubr.bf16.mxu0 %v946
      %1242 = vmatmul.mubr.bf16.gmra.mxu0 %v945
      %v1243 = vpop.f32.mrf.mxu0
      %v1244 = vadd.f32 %v879, %v1243
      %v1245 = vpop.f32.mrf.mxu0
      %v1246 = vpop.f32.mrf.mxu0
      %v1247 = vadd.f32 %v879, %v1246
      %v1248 = vpop.f32.mrf.mxu0
      %1249 = vmatprep.mubr.bf16.mxu0 %v951
      %1250 = vmatmul.mubr.bf16.gmra.mxu0 %v950
      %v1251 = vpop.f32.mrf.mxu0
      %v1252 = vadd.f32 %v879, %v1251
      %v1253 = vpop.f32.mrf.mxu0
      %v1254 = vpop.f32.mrf.mxu0
      %v1255 = vadd.f32 %v879, %v1254
      %v1256 = vpop.f32.mrf.mxu0
      %1257 = vmatprep.mubr.bf16.mxu0 %v956
      %1258 = vmatmul.mubr.bf16.gmra.mxu0 %v955
      %v1259 = vpop.f32.mrf.mxu0
      %v1260 = vadd.f32 %v879, %v1259
      %v1261 = vpop.f32.mrf.mxu0
      %v1262 = vpop.f32.mrf.mxu0
      %v1263 = vadd.f32 %v879, %v1262
      %v1264 = vpop.f32.mrf.mxu0
      %1265 = vmatprep.mubr.bf16.mxu0 %v961
      %1266 = vmatmul.mubr.bf16.gmra.mxu0 %v960
      %v1267 = vpop.f32.mrf.mxu0
      %v1268 = vadd.f32 %v879, %v1267
      %v1269 = vpop.f32.mrf.mxu0
      %v1270 = vpop.f32.mrf.mxu0
      %v1271 = vadd.f32 %v879, %v1270
      %v1272 = vpop.f32.mrf.mxu0
      %1273 = vdwg.mxu0
      %1274 = vmatprep.subr.bf16.mxu0 0
      %1275 = vmatpush1.bf16.msra.mxu0 %v1148
      %1276 = vmatprep.subr.bf16.mxu0 0
      %1277 = vmatpush1.bf16.msra.mxu0 %v1147
      %1278 = vmatprep.subr.bf16.mxu0 0
      %1279 = vmatpush1.bf16.msra.mxu0 %v1146
      %1280 = vmatprep.subr.bf16.mxu0 0
      %1281 = vmatpush1.bf16.msra.mxu0 %v1145
      %1282 = vmatprep.subr.bf16.mxu0 0
      %1283 = vmatpush1.bf16.msra.mxu0 %v1144
      %1284 = vmatprep.subr.bf16.mxu0 0
      %1285 = vmatpush1.bf16.msra.mxu0 %v1143
      %1286 = vmatprep.subr.bf16.mxu0 0
      %1287 = vmatpush1.bf16.msra.mxu0 %v1142
      %1288 = vmatprep.subr.bf16.mxu0 0
      %1289 = vmatpush1.bf16.msra.mxu0 %v1141
      %1290 = vmatprep.subr.bf16.mxu0 0
      %1291 = vmatpush2.bf16.msra.mxu0 %v1156
      %1292 = vmatprep.subr.bf16.mxu0 0
      %1293 = vmatpush2.bf16.msra.mxu0 %v1155
      %1294 = vmatprep.subr.bf16.mxu0 0
      %1295 = vmatpush2.bf16.msra.mxu0 %v1154
      %1296 = vmatprep.subr.bf16.mxu0 0
      %1297 = vmatpush2.bf16.msra.mxu0 %v1153
      %1298 = vmatprep.subr.bf16.mxu0 0
      %1299 = vmatpush2.bf16.msra.mxu0 %v1152
      %1300 = vmatprep.subr.bf16.mxu0 0
      %1301 = vmatpush2.bf16.msra.mxu0 %v1151
      %1302 = vmatprep.subr.bf16.mxu0 0
      %1303 = vmatpush2.bf16.msra.mxu0 %v1150
      %1304 = vmatprep.subr.bf16.mxu0 0
      %1305 = vmatpush2.bf16.msra.mxu0 %v1149
      %1306 = vmatprep.mubr.bf16.mxu0 %v948
      %1307 = vmatmul.mubr.bf16.gmra.mxu0 %v947
      %v1308 = vpop.f32.mrf.mxu0
      %v1309 = vadd.f32 %v1244, %v1308
      %v1310 = vpop.f32.mrf.mxu0
      %v1311 = vpop.f32.mrf.mxu0
      %v1312 = vadd.f32 %v1247, %v1311
      %v1313 = vpop.f32.mrf.mxu0
      %1314 = vmatprep.mubr.bf16.mxu0 %v953
      %1315 = vmatmul.mubr.bf16.gmra.mxu0 %v952
      %v1316 = vpop.f32.mrf.mxu0
      %v1317 = vadd.f32 %v1252, %v1316
      %v1318 = vpop.f32.mrf.mxu0
      %v1319 = vpop.f32.mrf.mxu0
      %v1320 = vadd.f32 %v1255, %v1319
      %v1321 = vpop.f32.mrf.mxu0
      %1322 = vmatprep.mubr.bf16.mxu0 %v958
      %1323 = vmatmul.mubr.bf16.gmra.mxu0 %v957
      %v1324 = vpop.f32.mrf.mxu0
      %v1325 = vadd.f32 %v1260, %v1324
      %v1326 = vpop.f32.mrf.mxu0
      %v1327 = vpop.f32.mrf.mxu0
      %v1328 = vadd.f32 %v1263, %v1327
      %v1329 = vpop.f32.mrf.mxu0
      %1330 = vmatprep.mubr.bf16.mxu0 %v963
      %1331 = vmatmul.mubr.bf16.gmra.mxu0 %v962
      %v1332 = vpop.f32.mrf.mxu0
      %v1333 = vadd.f32 %v1268, %v1332
      %v1334 = vpop.f32.mrf.mxu0
      %v1335 = vpop.f32.mrf.mxu0
      %v1336 = vadd.f32 %v1271, %v1335
      %v1337 = vpop.f32.mrf.mxu0
      %1338 = vdwg.mxu0
      %1339 = vmatprep.subr.bf16.mxu0 0
      %1340 = vmatpush1.bf16.msra.mxu0 0
      %1341 = vmatprep.subr.bf16.mxu0 0
      %1342 = vmatpush1.bf16.msra.mxu0 0
      %1343 = vmatprep.subr.bf16.mxu0 0
      %1344 = vmatpush1.bf16.msra.mxu0 0
      %1345 = vmatprep.subr.bf16.mxu0 0
      %1346 = vmatpush1.bf16.msra.mxu0 0
      %1347 = vmatprep.subr.bf16.mxu0 0
      %1348 = vmatpush1.bf16.msra.mxu0 %v1160
      %1349 = vmatprep.subr.bf16.mxu0 0
      %1350 = vmatpush1.bf16.msra.mxu0 %v1159
      %1351 = vmatprep.subr.bf16.mxu0 0
      %1352 = vmatpush1.bf16.msra.mxu0 %v1158
      %1353 = vmatprep.subr.bf16.mxu0 0
      %1354 = vmatpush1.bf16.msra.mxu0 %v1157
      %1355 = vmatprep.subr.bf16.mxu0 0
      %1356 = vmatpush2.bf16.msra.mxu0 0
      %1357 = vmatprep.subr.bf16.mxu0 0
      %1358 = vmatpush2.bf16.msra.mxu0 0
      %1359 = vmatprep.subr.bf16.mxu0 0
      %1360 = vmatpush2.bf16.msra.mxu0 0
      %1361 = vmatprep.subr.bf16.mxu0 0
      %1362 = vmatpush2.bf16.msra.mxu0 0
      %1363 = vmatprep.subr.bf16.mxu0 0
      %1364 = vmatpush2.bf16.msra.mxu0 0
      %1365 = vmatprep.subr.bf16.mxu0 0
      %1366 = vmatpush2.bf16.msra.mxu0 0
      %1367 = vmatprep.subr.bf16.mxu0 0
      %1368 = vmatpush2.bf16.msra.mxu0 0
      %1369 = vmatprep.subr.bf16.mxu0 0
      %1370 = vmatpush2.bf16.msra.mxu0 0
      %1371 = vmatprep.mubr.bf16.mxu0 0
      %1372 = vmatmul.mubr.bf16.gmra.mxu0 %v1198
      %v1373 = vpop.f32.mrf.mxu0
      %v1374 = vadd.f32 %v1309, %v1373
      %v1375 = vpop.f32.mrf.mxu0
      %v1376 = vpop.f32.mrf.mxu0
      %v1377 = vadd.f32 %v1312, %v1376
      %v1378 = vpop.f32.mrf.mxu0
      %1379 = vmatprep.mubr.bf16.mxu0 0
      %1380 = vmatmul.mubr.bf16.gmra.mxu0 %v1201
      %v1381 = vpop.f32.mrf.mxu0
      %v1382 = vadd.f32 %v1317, %v1381
      %v1383 = vpop.f32.mrf.mxu0
      %v1384 = vpop.f32.mrf.mxu0
      %v1385 = vadd.f32 %v1320, %v1384
      %v1386 = vpop.f32.mrf.mxu0
      %1387 = vmatprep.mubr.bf16.mxu0 0
      %1388 = vmatmul.mubr.bf16.gmra.mxu0 %v1204
      %v1389 = vpop.f32.mrf.mxu0
      %v1390 = vadd.f32 %v1325, %v1389
      %v1391 = vpop.f32.mrf.mxu0
      %v1392 = vpop.f32.mrf.mxu0
      %v1393 = vadd.f32 %v1328, %v1392
      %v1394 = vpop.f32.mrf.mxu0
      %1395 = vmatprep.mubr.bf16.mxu0 0
      %1396 = vmatmul.mubr.bf16.gmra.mxu0 %v1207
      %v1397 = vpop.f32.mrf.mxu0
      %v1398 = vadd.f32 %v1333, %v1397
      %v1399 = vpop.f32.mrf.mxu0
      %v1400 = vpop.f32.mrf.mxu0
      %v1401 = vadd.f32 %v1336, %v1400
      %v1402 = vpop.f32.mrf.mxu0
      %1403 = vdwg.mxu0
      %v1404 = vmax.f32 %v1374, 0.0
      %v1405 = vmax.f32 %v1377, 0.0
      %v1406 = vmax.f32 %v1382, 0.0
      %v1407 = vmax.f32 %v1385, 0.0
      %v1408 = vmax.f32 %v1390, 0.0
      %v1409 = vmax.f32 %v1393, 0.0
      %v1410 = vmax.f32 %v1398, 0.0
      %v1411 = vmax.f32 %v1401, 0.0
      %1412 = vst [vmem:[#allocation3] sm:$0xff] 0.0
      %1413 = vst [vmem:[#allocation3 + $0x8] sm:$0x3] 0.0
      %s1414 = scalar_lea.vmem [#allocation3], 144
      %1415 = vst [vmem:[%s1414] sm:$0xff] 0.0
      %1416 = vst [vmem:[%s1414 + $0x8] sm:$0x3] 0.0
      %1417 = vst [vmem:[#allocation3] sm:$0x1] 0.0
      %1418 = vst [vmem:[#allocation3 + $0x10] sm:$0x1] 0.0
      %1419 = vst [vmem:[#allocation3 + $0x20] sm:$0x1] 0.0
      %1420 = vst [vmem:[#allocation3 + $0x30] sm:$0x1] 0.0
      %1421 = vst [vmem:[#allocation3 + $0x40] sm:$0x1] 0.0
      %1422 = vst [vmem:[#allocation3 + $0x50] sm:$0x1] 0.0
      %1423 = vst [vmem:[#allocation3 + $0x60] sm:$0x1] 0.0
      %1424 = vst [vmem:[#allocation3 + $0x70] sm:$0x1] 0.0
      %1425 = vst [vmem:[#allocation3 + $0x80] sm:$0x1] 0.0
      %1426 = vst [vmem:[#allocation3 + $0x90] sm:$0x1] 0.0
      %1427 = vst [vmem:[#allocation3 + $0x9] sm:$0x1] 0.0
      %1428 = vst [vmem:[#allocation3 + $0x19] sm:$0x1] 0.0
      %1429 = vst [vmem:[#allocation3 + $0x29] sm:$0x1] 0.0
      %1430 = vst [vmem:[#allocation3 + $0x39] sm:$0x1] 0.0
      %1431 = vst [vmem:[#allocation3 + $0x49] sm:$0x1] 0.0
      %1432 = vst [vmem:[#allocation3 + $0x59] sm:$0x1] 0.0
      %1433 = vst [vmem:[#allocation3 + $0x69] sm:$0x1] 0.0
      %1434 = vst [vmem:[#allocation3 + $0x79] sm:$0x1] 0.0
      %1435 = vst [vmem:[#allocation3 + $0x89] sm:$0x1] 0.0
      %1436 = vst [vmem:[#allocation3 + $0x99] sm:$0x1] 0.0
      %s1437 = scalar_lea.vmem [#allocation3], 16
      %1438 = vst [vmem:[%s1437 + $0x1] sm:$0xff] %v1404
      %1439 = vst [vmem:[%s1437 + $0x11] sm:$0xff] %v1405
      %1440 = vst [vmem:[%s1437 + $0x21] sm:$0xff] %v1406
      %1441 = vst [vmem:[%s1437 + $0x31] sm:$0xff] %v1407
      %1442 = vst [vmem:[%s1437 + $0x41] sm:$0xff] %v1408
      %1443 = vst [vmem:[%s1437 + $0x51] sm:$0xff] %v1409
      %1444 = vst [vmem:[%s1437 + $0x61] sm:$0xff] %v1410
      %1445 = vst [vmem:[%s1437 + $0x71] sm:$0xff] %v1411
      %v1446 = vld [vmem:[#allocation3] sm:$0xff]
      %v1447 = vld [vmem:[#allocation3 + $0x10] sm:$0xff]
      %v1448 = vld [vmem:[#allocation3 + $0x20] sm:$0xff]
      %v1449 = vld [vmem:[#allocation3 + $0x30] sm:$0xff]
      %v1450 = vld [vmem:[#allocation3 + $0x40] sm:$0xff]
      %v1451 = vld [vmem:[#allocation3 + $0x50] sm:$0xff]
      %v1452 = vld [vmem:[#allocation3 + $0x60] sm:$0xff]
      %v1453 = vld [vmem:[#allocation3 + $0x70] sm:$0xff]
      %v1454 = vpack.c.bf16 %v1447, %v1446
      %v1455 = vpack.c.bf16 %v1449, %v1448
      %v1456 = vpack.c.bf16 %v1451, %v1450
      %v1457 = vpack.c.bf16 %v1453, %v1452
      %v1462 = vunpack.c.l.b16 %v1454
      %v1463 = vunpack.c.h.b16 %v1454
      %v1464 = vunpack.c.l.b16 %v1455
      %v1465 = vunpack.c.h.b16 %v1455
      %v1466 = vunpack.c.l.b16 %v1456
      %v1467 = vunpack.c.h.b16 %v1456
      %v1468 = vunpack.c.l.b16 %v1457
      %v1469 = vunpack.c.h.b16 %v1457
      %v1470 = vpack.c.b16 %v1462, %v1462
      %v1471 = vpack.c.b16 %v1463, %v1463
      %v1472 = vpack.c.b16 %v1464, %v1464
      %v1473 = vpack.c.b16 %v1465, %v1465
      %v1474 = vpack.c.b16 %v1466, %v1466
      %v1475 = vpack.c.b16 %v1467, %v1467
      %v1476 = vpack.c.b16 %v1468, %v1468
      %v1477 = vpack.c.b16 %v1469, %v1469
      %1486 = vst [vmem:[#allocation4] sm:$0xf] %v1470
      %1487 = vst [vmem:[#allocation4 + $0x24] sm:$0xf] %v1471
      %1488 = vst [vmem:[#allocation4 + $0x48] sm:$0xf] %v1472
      %1489 = vst [vmem:[#allocation4 + $0x6c] sm:$0xf] %v1473
      %1490 = vst [vmem:[#allocation4 + $0x90] sm:$0xf] %v1474
      %1491 = vst [vmem:[#allocation4 + $0xb4] sm:$0xf] %v1475
      %1492 = vst [vmem:[#allocation4 + $0xd8] sm:$0xf] %v1476
      %1493 = vst [vmem:[#allocation4 + $0xfc] sm:$0xf] %v1477
      %v1494 = vld [vmem:[#allocation3 + $0x1] sm:$0xff]
      %v1495 = vld [vmem:[#allocation3 + $0x11] sm:$0xff]
      %v1496 = vld [vmem:[#allocation3 + $0x21] sm:$0xff]
      %v1497 = vld [vmem:[#allocation3 + $0x31] sm:$0xff]
      %v1498 = vld [vmem:[#allocation3 + $0x41] sm:$0xff]
      %v1499 = vld [vmem:[#allocation3 + $0x51] sm:$0xff]
      %v1500 = vld [vmem:[#allocation3 + $0x61] sm:$0xff]
      %v1501 = vld [vmem:[#allocation3 + $0x71] sm:$0xff]
      %v1502 = vpack.c.bf16 %v1495, %v1494
      %v1503 = vpack.c.bf16 %v1497, %v1496
      %v1504 = vpack.c.bf16 %v1499, %v1498
      %v1505 = vpack.c.bf16 %v1501, %v1500
      %v1510 = vunpack.c.l.b16 %v1502
      %v1511 = vunpack.c.h.b16 %v1502
      %v1512 = vunpack.c.l.b16 %v1503
      %v1513 = vunpack.c.h.b16 %v1503
      %v1514 = vunpack.c.l.b16 %v1504
      %v1515 = vunpack.c.h.b16 %v1504
      %v1516 = vunpack.c.l.b16 %v1505
      %v1517 = vunpack.c.h.b16 %v1505
      %v1518 = vpack.c.b16 %v1510, %v1510
      %v1519 = vpack.c.b16 %v1511, %v1511
      %v1520 = vpack.c.b16 %v1512, %v1512
      %v1521 = vpack.c.b16 %v1513, %v1513
      %v1522 = vpack.c.b16 %v1514, %v1514
      %v1523 = vpack.c.b16 %v1515, %v1515
      %v1524 = vpack.c.b16 %v1516, %v1516
      %v1525 = vpack.c.b16 %v1517, %v1517
      %1534 = vst [vmem:[#allocation4 + $0x4] sm:$0xf] %v1518
      %1535 = vst [vmem:[#allocation4 + $0x28] sm:$0xf] %v1519
      %1536 = vst [vmem:[#allocation4 + $0x4c] sm:$0xf] %v1520
      %1537 = vst [vmem:[#allocation4 + $0x70] sm:$0xf] %v1521
      %1538 = vst [vmem:[#allocation4 + $0x94] sm:$0xf] %v1522
      %1539 = vst [vmem:[#allocation4 + $0xb8] sm:$0xf] %v1523
      %1540 = vst [vmem:[#allocation4 + $0xdc] sm:$0xf] %v1524
      %1541 = vst [vmem:[#allocation4 + $0x100] sm:$0xf] %v1525
      %v1542 = vld [vmem:[#allocation3 + $0x2] sm:$0xff]
      %v1543 = vld [vmem:[#allocation3 + $0x12] sm:$0xff]
      %v1544 = vld [vmem:[#allocation3 + $0x22] sm:$0xff]
      %v1545 = vld [vmem:[#allocation3 + $0x32] sm:$0xff]
      %v1546 = vld [vmem:[#allocation3 + $0x42] sm:$0xff]
      %v1547 = vld [vmem:[#allocation3 + $0x52] sm:$0xff]
      %v1548 = vld [vmem:[#allocation3 + $0x62] sm:$0xff]
      %v1549 = vld [vmem:[#allocation3 + $0x72] sm:$0xff]
      %v1550 = vpack.c.bf16 %v1543, %v1542
      %v1551 = vpack.c.bf16 %v1545, %v1544
      %v1552 = vpack.c.bf16 %v1547, %v1546
      %v1553 = vpack.c.bf16 %v1549, %v1548
      %v1558 = vunpack.c.l.b16 %v1550
      %v1559 = vunpack.c.h.b16 %v1550
      %v1560 = vunpack.c.l.b16 %v1551
      %v1561 = vunpack.c.h.b16 %v1551
      %v1562 = vunpack.c.l.b16 %v1552
      %v1563 = vunpack.c.h.b16 %v1552
      %v1564 = vunpack.c.l.b16 %v1553
      %v1565 = vunpack.c.h.b16 %v1553
      %v1566 = vpack.c.b16 %v1558, %v1558
      %v1567 = vpack.c.b16 %v1559, %v1559
      %v1568 = vpack.c.b16 %v1560, %v1560
      %v1569 = vpack.c.b16 %v1561, %v1561
      %v1570 = vpack.c.b16 %v1562, %v1562
      %v1571 = vpack.c.b16 %v1563, %v1563
      %v1572 = vpack.c.b16 %v1564, %v1564
      %v1573 = vpack.c.b16 %v1565, %v1565
      %1582 = vst [vmem:[#allocation4 + $0x8] sm:$0xf] %v1566
      %1583 = vst [vmem:[#allocation4 + $0x2c] sm:$0xf] %v1567
      %1584 = vst [vmem:[#allocation4 + $0x50] sm:$0xf] %v1568
      %1585 = vst [vmem:[#allocation4 + $0x74] sm:$0xf] %v1569
      %1586 = vst [vmem:[#allocation4 + $0x98] sm:$0xf] %v1570
      %1587 = vst [vmem:[#allocation4 + $0xbc] sm:$0xf] %v1571
      %1588 = vst [vmem:[#allocation4 + $0xe0] sm:$0xf] %v1572
      %1589 = vst [vmem:[#allocation4 + $0x104] sm:$0xf] %v1573
      %v1590 = vld [vmem:[%s1437] sm:$0xff]
      %v1591 = vld [vmem:[%s1437 + $0x10] sm:$0xff]
      %v1592 = vld [vmem:[%s1437 + $0x20] sm:$0xff]
      %v1593 = vld [vmem:[%s1437 + $0x30] sm:$0xff]
      %v1594 = vld [vmem:[%s1437 + $0x40] sm:$0xff]
      %v1595 = vld [vmem:[%s1437 + $0x50] sm:$0xff]
      %v1596 = vld [vmem:[%s1437 + $0x60] sm:$0xff]
      %v1597 = vld [vmem:[%s1437 + $0x70] sm:$0xff]
      %v1598 = vpack.c.bf16 %v1591, %v1590
      %v1599 = vpack.c.bf16 %v1593, %v1592
      %v1600 = vpack.c.bf16 %v1595, %v1594
      %v1601 = vpack.c.bf16 %v1597, %v1596
      %v1606 = vunpack.c.l.b16 %v1598
      %v1607 = vunpack.c.h.b16 %v1598
      %v1608 = vunpack.c.l.b16 %v1599
      %v1609 = vunpack.c.h.b16 %v1599
      %v1610 = vunpack.c.l.b16 %v1600
      %v1611 = vunpack.c.h.b16 %v1600
      %v1612 = vunpack.c.l.b16 %v1601
      %v1613 = vunpack.c.h.b16 %v1601
      %v1614 = vpack.c.b16 %v1606, %v1606
      %v1615 = vpack.c.b16 %v1607, %v1607
      %v1616 = vpack.c.b16 %v1608, %v1608
      %v1617 = vpack.c.b16 %v1609, %v1609
      %v1618 = vpack.c.b16 %v1610, %v1610
      %v1619 = vpack.c.b16 %v1611, %v1611
      %v1620 = vpack.c.b16 %v1612, %v1612
      %v1621 = vpack.c.b16 %v1613, %v1613
      %1630 = vst [vmem:[#allocation4 + $0xc] sm:$0xf] %v1614
      %1631 = vst [vmem:[#allocation4 + $0x30] sm:$0xf] %v1615
      %1632 = vst [vmem:[#allocation4 + $0x54] sm:$0xf] %v1616
      %1633 = vst [vmem:[#allocation4 + $0x78] sm:$0xf] %v1617
      %1634 = vst [vmem:[#allocation4 + $0x9c] sm:$0xf] %v1618
      %1635 = vst [vmem:[#allocation4 + $0xc0] sm:$0xf] %v1619
      %1636 = vst [vmem:[#allocation4 + $0xe4] sm:$0xf] %v1620
      %1637 = vst [vmem:[#allocation4 + $0x108] sm:$0xf] %v1621
      %v1638 = vld [vmem:[%s1437 + $0x1] sm:$0xff]
      %v1639 = vld [vmem:[%s1437 + $0x11] sm:$0xff]
      %v1640 = vld [vmem:[%s1437 + $0x21] sm:$0xff]
      %v1641 = vld [vmem:[%s1437 + $0x31] sm:$0xff]
      %v1642 = vld [vmem:[%s1437 + $0x41] sm:$0xff]
      %v1643 = vld [vmem:[%s1437 + $0x51] sm:$0xff]
      %v1644 = vld [vmem:[%s1437 + $0x61] sm:$0xff]
      %v1645 = vld [vmem:[%s1437 + $0x71] sm:$0xff]
      %v1646 = vpack.c.bf16 %v1639, %v1638
      %v1647 = vpack.c.bf16 %v1641, %v1640
      %v1648 = vpack.c.bf16 %v1643, %v1642
      %v1649 = vpack.c.bf16 %v1645, %v1644
      %v1654 = vunpack.c.l.b16 %v1646
      %v1655 = vunpack.c.h.b16 %v1646
      %v1656 = vunpack.c.l.b16 %v1647
      %v1657 = vunpack.c.h.b16 %v1647
      %v1658 = vunpack.c.l.b16 %v1648
      %v1659 = vunpack.c.h.b16 %v1648
      %v1660 = vunpack.c.l.b16 %v1649
      %v1661 = vunpack.c.h.b16 %v1649
      %v1662 = vpack.c.b16 %v1654, %v1654
      %v1663 = vpack.c.b16 %v1655, %v1655
      %v1664 = vpack.c.b16 %v1656, %v1656
      %v1665 = vpack.c.b16 %v1657, %v1657
      %v1666 = vpack.c.b16 %v1658, %v1658
      %v1667 = vpack.c.b16 %v1659, %v1659
      %v1668 = vpack.c.b16 %v1660, %v1660
      %v1669 = vpack.c.b16 %v1661, %v1661
      %1678 = vst [vmem:[#allocation4 + $0x10] sm:$0xf] %v1662
      %1679 = vst [vmem:[#allocation4 + $0x34] sm:$0xf] %v1663
      %1680 = vst [vmem:[#allocation4 + $0x58] sm:$0xf] %v1664
      %1681 = vst [vmem:[#allocation4 + $0x7c] sm:$0xf] %v1665
      %1682 = vst [vmem:[#allocation4 + $0xa0] sm:$0xf] %v1666
      %1683 = vst [vmem:[#allocation4 + $0xc4] sm:$0xf] %v1667
      %1684 = vst [vmem:[#allocation4 + $0xe8] sm:$0xf] %v1668
      %1685 = vst [vmem:[#allocation4 + $0x10c] sm:$0xf] %v1669
      %v1686 = vld [vmem:[%s1437 + $0x2] sm:$0xff]
      %v1687 = vld [vmem:[%s1437 + $0x12] sm:$0xff]
      %v1688 = vld [vmem:[%s1437 + $0x22] sm:$0xff]
      %v1689 = vld [vmem:[%s1437 + $0x32] sm:$0xff]
      %v1690 = vld [vmem:[%s1437 + $0x42] sm:$0xff]
      %v1691 = vld [vmem:[%s1437 + $0x52] sm:$0xff]
      %v1692 = vld [vmem:[%s1437 + $0x62] sm:$0xff]
      %v1693 = vld [vmem:[%s1437 + $0x72] sm:$0xff]
      %v1694 = vpack.c.bf16 %v1687, %v1686
      %v1695 = vpack.c.bf16 %v1689, %v1688
      %v1696 = vpack.c.bf16 %v1691, %v1690
      %v1697 = vpack.c.bf16 %v1693, %v1692
      %v1702 = vunpack.c.l.b16 %v1694
      %v1703 = vunpack.c.h.b16 %v1694
      %v1704 = vunpack.c.l.b16 %v1695
      %v1705 = vunpack.c.h.b16 %v1695
      %v1706 = vunpack.c.l.b16 %v1696
      %v1707 = vunpack.c.h.b16 %v1696
      %v1708 = vunpack.c.l.b16 %v1697
      %v1709 = vunpack.c.h.b16 %v1697
      %v1710 = vpack.c.b16 %v1702, %v1702
      %v1711 = vpack.c.b16 %v1703, %v1703
      %v1712 = vpack.c.b16 %v1704, %v1704
      %v1713 = vpack.c.b16 %v1705, %v1705
      %v1714 = vpack.c.b16 %v1706, %v1706
      %v1715 = vpack.c.b16 %v1707, %v1707
      %v1716 = vpack.c.b16 %v1708, %v1708
      %v1717 = vpack.c.b16 %v1709, %v1709
      %1726 = vst [vmem:[#allocation4 + $0x14] sm:$0xf] %v1710
      %1727 = vst [vmem:[#allocation4 + $0x38] sm:$0xf] %v1711
      %1728 = vst [vmem:[#allocation4 + $0x5c] sm:$0xf] %v1712
      %1729 = vst [vmem:[#allocation4 + $0x80] sm:$0xf] %v1713
      %1730 = vst [vmem:[#allocation4 + $0xa4] sm:$0xf] %v1714
      %1731 = vst [vmem:[#allocation4 + $0xc8] sm:$0xf] %v1715
      %1732 = vst [vmem:[#allocation4 + $0xec] sm:$0xf] %v1716
      %1733 = vst [vmem:[#allocation4 + $0x110] sm:$0xf] %v1717
      %s1734 = scalar_lea.vmem [#allocation3], 32
      %v1735 = vld [vmem:[%s1734] sm:$0xff]
      %v1736 = vld [vmem:[%s1734 + $0x10] sm:$0xff]
      %v1737 = vld [vmem:[%s1734 + $0x20] sm:$0xff]
      %v1738 = vld [vmem:[%s1734 + $0x30] sm:$0xff]
      %v1739 = vld [vmem:[%s1734 + $0x40] sm:$0xff]
      %v1740 = vld [vmem:[%s1734 + $0x50] sm:$0xff]
      %v1741 = vld [vmem:[%s1734 + $0x60] sm:$0xff]
      %v1742 = vld [vmem:[%s1734 + $0x70] sm:$0xff]
      %v1743 = vpack.c.bf16 %v1736, %v1735
      %v1744 = vpack.c.bf16 %v1738, %v1737
      %v1745 = vpack.c.bf16 %v1740, %v1739
      %v1746 = vpack.c.bf16 %v1742, %v1741
      %v1751 = vunpack.c.l.b16 %v1743
      %v1752 = vunpack.c.h.b16 %v1743
      %v1753 = vunpack.c.l.b16 %v1744
      %v1754 = vunpack.c.h.b16 %v1744
      %v1755 = vunpack.c.l.b16 %v1745
      %v1756 = vunpack.c.h.b16 %v1745
      %v1757 = vunpack.c.l.b16 %v1746
      %v1758 = vunpack.c.h.b16 %v1746
      %v1759 = vpack.c.b16 %v1751, %v1751
      %v1760 = vpack.c.b16 %v1752, %v1752
      %v1761 = vpack.c.b16 %v1753, %v1753
      %v1762 = vpack.c.b16 %v1754, %v1754
      %v1763 = vpack.c.b16 %v1755, %v1755
      %v1764 = vpack.c.b16 %v1756, %v1756
      %v1765 = vpack.c.b16 %v1757, %v1757
      %v1766 = vpack.c.b16 %v1758, %v1758
      %1775 = vst [vmem:[#allocation4 + $0x18] sm:$0xf] %v1759
      %1776 = vst [vmem:[#allocation4 + $0x3c] sm:$0xf] %v1760
      %1777 = vst [vmem:[#allocation4 + $0x60] sm:$0xf] %v1761
      %1778 = vst [vmem:[#allocation4 + $0x84] sm:$0xf] %v1762
      %1779 = vst [vmem:[#allocation4 + $0xa8] sm:$0xf] %v1763
      %1780 = vst [vmem:[#allocation4 + $0xcc] sm:$0xf] %v1764
      %1781 = vst [vmem:[#allocation4 + $0xf0] sm:$0xf] %v1765
      %1782 = vst [vmem:[#allocation4 + $0x114] sm:$0xf] %v1766
      %v1783 = vld [vmem:[%s1734 + $0x1] sm:$0xff]
      %v1784 = vld [vmem:[%s1734 + $0x11] sm:$0xff]
      %v1785 = vld [vmem:[%s1734 + $0x21] sm:$0xff]
      %v1786 = vld [vmem:[%s1734 + $0x31] sm:$0xff]
      %v1787 = vld [vmem:[%s1734 + $0x41] sm:$0xff]
      %v1788 = vld [vmem:[%s1734 + $0x51] sm:$0xff]
      %v1789 = vld [vmem:[%s1734 + $0x61] sm:$0xff]
      %v1790 = vld [vmem:[%s1734 + $0x71] sm:$0xff]
      %v1791 = vpack.c.bf16 %v1784, %v1783
      %v1792 = vpack.c.bf16 %v1786, %v1785
      %v1793 = vpack.c.bf16 %v1788, %v1787
      %v1794 = vpack.c.bf16 %v1790, %v1789
      %v1799 = vunpack.c.l.b16 %v1791
      %v1800 = vunpack.c.h.b16 %v1791
      %v1801 = vunpack.c.l.b16 %v1792
      %v1802 = vunpack.c.h.b16 %v1792
      %v1803 = vunpack.c.l.b16 %v1793
      %v1804 = vunpack.c.h.b16 %v1793
      %v1805 = vunpack.c.l.b16 %v1794
      %v1806 = vunpack.c.h.b16 %v1794
      %v1807 = vpack.c.b16 %v1799, %v1799
      %v1808 = vpack.c.b16 %v1800, %v1800
      %v1809 = vpack.c.b16 %v1801, %v1801
      %v1810 = vpack.c.b16 %v1802, %v1802
      %v1811 = vpack.c.b16 %v1803, %v1803
      %v1812 = vpack.c.b16 %v1804, %v1804
      %v1813 = vpack.c.b16 %v1805, %v1805
      %v1814 = vpack.c.b16 %v1806, %v1806
      %1823 = vst [vmem:[#allocation4 + $0x1c] sm:$0xf] %v1807
      %1824 = vst [vmem:[#allocation4 + $0x40] sm:$0xf] %v1808
      %1825 = vst [vmem:[#allocation4 + $0x64] sm:$0xf] %v1809
      %1826 = vst [vmem:[#allocation4 + $0x88] sm:$0xf] %v1810
      %1827 = vst [vmem:[#allocation4 + $0xac] sm:$0xf] %v1811
      %1828 = vst [vmem:[#allocation4 + $0xd0] sm:$0xf] %v1812
      %1829 = vst [vmem:[#allocation4 + $0xf4] sm:$0xf] %v1813
      %1830 = vst [vmem:[#allocation4 + $0x118] sm:$0xf] %v1814
      %v1831 = vld [vmem:[%s1734 + $0x2] sm:$0xff]
      %v1832 = vld [vmem:[%s1734 + $0x12] sm:$0xff]
      %v1833 = vld [vmem:[%s1734 + $0x22] sm:$0xff]
      %v1834 = vld [vmem:[%s1734 + $0x32] sm:$0xff]
      %v1835 = vld [vmem:[%s1734 + $0x42] sm:$0xff]
      %v1836 = vld [vmem:[%s1734 + $0x52] sm:$0xff]
      %v1837 = vld [vmem:[%s1734 + $0x62] sm:$0xff]
      %v1838 = vld [vmem:[%s1734 + $0x72] sm:$0xff]
      %v1839 = vpack.c.bf16 %v1832, %v1831
      %v1840 = vpack.c.bf16 %v1834, %v1833
      %v1841 = vpack.c.bf16 %v1836, %v1835
      %v1842 = vpack.c.bf16 %v1838, %v1837
      %v1847 = vunpack.c.l.b16 %v1839
      %v1848 = vunpack.c.h.b16 %v1839
      %v1849 = vunpack.c.l.b16 %v1840
      %v1850 = vunpack.c.h.b16 %v1840
      %v1851 = vunpack.c.l.b16 %v1841
      %v1852 = vunpack.c.h.b16 %v1841
      %v1853 = vunpack.c.l.b16 %v1842
      %v1854 = vunpack.c.h.b16 %v1842
      %v1855 = vpack.c.b16 %v1847, %v1847
      %v1856 = vpack.c.b16 %v1848, %v1848
      %v1857 = vpack.c.b16 %v1849, %v1849
      %v1858 = vpack.c.b16 %v1850, %v1850
      %v1859 = vpack.c.b16 %v1851, %v1851
      %v1860 = vpack.c.b16 %v1852, %v1852
      %v1861 = vpack.c.b16 %v1853, %v1853
      %v1862 = vpack.c.b16 %v1854, %v1854
      %1871 = vst [vmem:[#allocation4 + $0x20] sm:$0xf] %v1855
      %1872 = vst [vmem:[#allocation4 + $0x44] sm:$0xf] %v1856
      %1873 = vst [vmem:[#allocation4 + $0x68] sm:$0xf] %v1857
      %1874 = vst [vmem:[#allocation4 + $0x8c] sm:$0xf] %v1858
      %1875 = vst [vmem:[#allocation4 + $0xb0] sm:$0xf] %v1859
      %1876 = vst [vmem:[#allocation4 + $0xd4] sm:$0xf] %v1860
      %1877 = vst [vmem:[#allocation4 + $0xf8] sm:$0xf] %v1861
      %1878 = vst [vmem:[#allocation4 + $0x11c] sm:$0xf] %v1862
      %v1879 = vld [vmem:[#allocation4] sm:$0xff]
      %v1880 = vld [vmem:[#allocation4 + $0x8] sm:$0xff]
      %v1881 = vld [vmem:[#allocation4 + $0x10] sm:$0xff]
      %v1882 = vld [vmem:[#allocation4 + $0x18] sm:$0xff]
      %v1883 = vld [vmem:[#allocation4 + $0x20] sm:$0xf]
      %v1884 = vld [vmem:[#allocation4 + $0x24] sm:$0xff]
      %v1885 = vld [vmem:[#allocation4 + $0x2c] sm:$0xff]
      %v1886 = vld [vmem:[#allocation4 + $0x34] sm:$0xff]
      %v1887 = vld [vmem:[#allocation4 + $0x3c] sm:$0xff]
      %v1888 = vld [vmem:[#allocation4 + $0x44] sm:$0xf]
      %v1889 = vld [vmem:[#allocation4 + $0x48] sm:$0xff]
      %v1890 = vld [vmem:[#allocation4 + $0x50] sm:$0xff]
      %v1891 = vld [vmem:[#allocation4 + $0x58] sm:$0xff]
      %v1892 = vld [vmem:[#allocation4 + $0x60] sm:$0xff]
      %v1893 = vld [vmem:[#allocation4 + $0x68] sm:$0xf]
      %v1894 = vld [vmem:[#allocation4 + $0x6c] sm:$0xff]
      %v1895 = vld [vmem:[#allocation4 + $0x74] sm:$0xff]
      %v1896 = vld [vmem:[#allocation4 + $0x7c] sm:$0xff]
      %v1897 = vld [vmem:[#allocation4 + $0x84] sm:$0xff]
      %v1898 = vld [vmem:[#allocation4 + $0x8c] sm:$0xf]
      %v1899 = vld [vmem:[#allocation4 + $0x90] sm:$0xff]
      %v1900 = vld [vmem:[#allocation4 + $0x98] sm:$0xff]
      %v1901 = vld [vmem:[#allocation4 + $0xa0] sm:$0xff]
      %v1902 = vld [vmem:[#allocation4 + $0xa8] sm:$0xff]
      %v1903 = vld [vmem:[#allocation4 + $0xb0] sm:$0xf]
      %v1904 = vld [vmem:[#allocation4 + $0xb4] sm:$0xff]
      %v1905 = vld [vmem:[#allocation4 + $0xbc] sm:$0xff]
      %v1906 = vld [vmem:[#allocation4 + $0xc4] sm:$0xff]
      %v1907 = vld [vmem:[#allocation4 + $0xcc] sm:$0xff]
      %v1908 = vld [vmem:[#allocation4 + $0xd4] sm:$0xf]
      %v1909 = vld [vmem:[#allocation4 + $0xd8] sm:$0xff]
      %v1910 = vld [vmem:[#allocation4 + $0xe0] sm:$0xff]
      %v1911 = vld [vmem:[#allocation4 + $0xe8] sm:$0xff]
      %v1912 = vld [vmem:[#allocation4 + $0xf0] sm:$0xff]
      %v1913 = vld [vmem:[#allocation4 + $0xf8] sm:$0xf]
      %v1914 = vld [vmem:[#allocation4 + $0xfc] sm:$0xff]
      %v1915 = vld [vmem:[#allocation4 + $0x104] sm:$0xff]
      %v1916 = vld [vmem:[#allocation4 + $0x10c] sm:$0xff]
      %v1917 = vld [vmem:[#allocation4 + $0x114] sm:$0xff]
      %v1918 = vld [vmem:[#allocation4 + $0x11c] sm:$0xf]
      %v1919 = vld [vmem:[%s3] sm:$0xf]
      %v1920 = vld [vmem:[%s3 + $0x4] sm:$0xf]
      %v1921 = vld [vmem:[%s3 + $0x8] sm:$0xf]
      %v1922 = vld [vmem:[%s3 + $0xc] sm:$0xf]
      %v1923 = vld [vmem:[%s3 + $0x10] sm:$0xf]
      %v1924 = vld [vmem:[%s3 + $0x14] sm:$0xf]
      %v1925 = vld [vmem:[%s3 + $0x18] sm:$0xf]
      %v1926 = vld [vmem:[%s3 + $0x1c] sm:$0xf]
      %v1927 = vld [vmem:[%s3 + $0x20] sm:$0xf]
      %v1928 = vld [vmem:[%s3 + $0x24] sm:$0xf]
      %v1929 = vld [vmem:[%s3 + $0x28] sm:$0xf]
      %v1930 = vld [vmem:[%s3 + $0x2c] sm:$0xf]
      %v1931 = vld [vmem:[%s3 + $0x30] sm:$0xf]
      %v1932 = vld [vmem:[%s3 + $0x34] sm:$0xf]
      %v1933 = vld [vmem:[%s3 + $0x38] sm:$0xf]
      %v1934 = vld [vmem:[%s3 + $0x3c] sm:$0xf]
      %v1935 = vld [vmem:[%s3 + $0x40] sm:$0xf]
      %v1936 = vld [vmem:[%s3 + $0x44] sm:$0xf]
      %v1937 = vld [vmem:[%s3 + $0x48] sm:$0xf]
      %v1938 = vld [vmem:[%s3 + $0x4c] sm:$0xf]
      %v1939 = vld [vmem:[%s3 + $0x50] sm:$0xf]
      %v1940 = vld [vmem:[%s3 + $0x54] sm:$0xf]
      %v1941 = vld [vmem:[%s3 + $0x58] sm:$0xf]
      %v1942 = vld [vmem:[%s3 + $0x5c] sm:$0xf]
      %v1943 = vld [vmem:[%s3 + $0x60] sm:$0xf]
      %v1944 = vld [vmem:[%s3 + $0x64] sm:$0xf]
      %v1945 = vld [vmem:[%s3 + $0x68] sm:$0xf]
      %v1946 = vld [vmem:[%s3 + $0x6c] sm:$0xf]
      %v1947 = vld [vmem:[%s3 + $0x70] sm:$0xf]
      %v1948 = vld [vmem:[%s3 + $0x74] sm:$0xf]
      %v1949 = vld [vmem:[%s3 + $0x78] sm:$0xf]
      %v1950 = vld [vmem:[%s3 + $0x7c] sm:$0xf]
      %v1951 = vld [vmem:[%s3 + $0x80] sm:$0xf]
      %v1952 = vld [vmem:[%s3 + $0x84] sm:$0xf]
      %v1953 = vld [vmem:[%s3 + $0x88] sm:$0xf]
      %v1954 = vld [vmem:[%s3 + $0x8c] sm:$0xf]
      %v1955 = vld [vmem:[%s3 + $0x90] sm:$0xf]
      %v1956 = vld [vmem:[%s3 + $0x94] sm:$0xf]
      %v1957 = vld [vmem:[%s3 + $0x98] sm:$0xf]
      %v1958 = vld [vmem:[%s3 + $0x9c] sm:$0xf]
      %v1959 = vld [vmem:[%s3 + $0xa0] sm:$0xf]
      %v1960 = vld [vmem:[%s3 + $0xa4] sm:$0xf]
      %v1961 = vld [vmem:[%s3 + $0xa8] sm:$0xf]
      %v1962 = vld [vmem:[%s3 + $0xac] sm:$0xf]
      %v1963 = vld [vmem:[%s3 + $0xb0] sm:$0xf]
      %v1964 = vld [vmem:[%s3 + $0xb4] sm:$0xf]
      %v1965 = vld [vmem:[%s3 + $0xb8] sm:$0xf]
      %v1966 = vld [vmem:[%s3 + $0xbc] sm:$0xf]
      %v1967 = vld [vmem:[%s3 + $0xc0] sm:$0xf]
      %v1968 = vld [vmem:[%s3 + $0xc4] sm:$0xf]
      %v1969 = vld [vmem:[%s3 + $0xc8] sm:$0xf]
      %v1970 = vld [vmem:[%s3 + $0xcc] sm:$0xf]
      %v1971 = vld [vmem:[%s3 + $0xd0] sm:$0xf]
      %v1972 = vld [vmem:[%s3 + $0xd4] sm:$0xf]
      %v1973 = vld [vmem:[%s3 + $0xd8] sm:$0xf]
      %v1974 = vld [vmem:[%s3 + $0xdc] sm:$0xf]
      %v1975 = vld [vmem:[%s3 + $0xe0] sm:$0xf]
      %v1976 = vld [vmem:[%s3 + $0xe4] sm:$0xf]
      %v1977 = vld [vmem:[%s3 + $0xe8] sm:$0xf]
      %v1978 = vld [vmem:[%s3 + $0xec] sm:$0xf]
      %v1979 = vld [vmem:[%s3 + $0xf0] sm:$0xf]
      %v1980 = vld [vmem:[%s3 + $0xf4] sm:$0xf]
      %v1981 = vld [vmem:[%s3 + $0xf8] sm:$0xf]
      %v1982 = vld [vmem:[%s3 + $0xfc] sm:$0xf]
      %v1983 = vld [vmem:[%s3 + $0x100] sm:$0xf]
      %v1984 = vld [vmem:[%s3 + $0x104] sm:$0xf]
      %v1985 = vld [vmem:[%s3 + $0x108] sm:$0xf]
      %v1986 = vld [vmem:[%s3 + $0x10c] sm:$0xf]
      %v1987 = vld [vmem:[%s3 + $0x110] sm:$0xf]
      %v1988 = vld [vmem:[%s3 + $0x114] sm:$0xf]
      %v1989 = vld [vmem:[%s3 + $0x118] sm:$0xf]
      %v1990 = vld [vmem:[%s3 + $0x11c] sm:$0xf]
      %v1991 = vld [vmem:[%s3 + $0x120] sm:$0xf]
      %v1992 = vld [vmem:[%s3 + $0x124] sm:$0xf]
      %v1993 = vld [vmem:[%s3 + $0x128] sm:$0xf]
      %v1994 = vld [vmem:[%s3 + $0x12c] sm:$0xf]
      %v1995 = vld [vmem:[%s3 + $0x130] sm:$0xf]
      %v1996 = vld [vmem:[%s3 + $0x134] sm:$0xf]
      %v1997 = vld [vmem:[%s3 + $0x138] sm:$0xf]
      %v1998 = vld [vmem:[%s3 + $0x13c] sm:$0xf]
      %v1999 = vld [vmem:[%s3 + $0x140] sm:$0xf]
      %v2000 = vld [vmem:[%s3 + $0x144] sm:$0xf]
      %v2001 = vld [vmem:[%s3 + $0x148] sm:$0xf]
      %v2002 = vld [vmem:[%s3 + $0x14c] sm:$0xf]
      %v2003 = vld [vmem:[%s3 + $0x150] sm:$0xf]
      %v2004 = vld [vmem:[%s3 + $0x154] sm:$0xf]
      %v2005 = vld [vmem:[%s3 + $0x158] sm:$0xf]
      %v2006 = vld [vmem:[%s3 + $0x15c] sm:$0xf]
      %v2007 = vld [vmem:[%s3 + $0x160] sm:$0xf]
      %v2008 = vld [vmem:[%s3 + $0x164] sm:$0xf]
      %v2009 = vld [vmem:[%s3 + $0x168] sm:$0xf]
      %v2010 = vld [vmem:[%s3 + $0x16c] sm:$0xf]
      %v2011 = vld [vmem:[%s3 + $0x170] sm:$0xf]
      %v2012 = vld [vmem:[%s3 + $0x174] sm:$0xf]
      %v2013 = vld [vmem:[%s3 + $0x178] sm:$0xf]
      %v2014 = vld [vmem:[%s3 + $0x17c] sm:$0xf]
      %v2015 = vld [vmem:[%s3 + $0x180] sm:$0xf]
      %v2016 = vld [vmem:[%s3 + $0x184] sm:$0xf]
      %v2017 = vld [vmem:[%s3 + $0x188] sm:$0xf]
      %v2018 = vld [vmem:[%s3 + $0x18c] sm:$0xf]
      %v2019 = vld [vmem:[%s3 + $0x190] sm:$0xf]
      %v2020 = vld [vmem:[%s3 + $0x194] sm:$0xf]
      %v2021 = vld [vmem:[%s3 + $0x198] sm:$0xf]
      %v2022 = vld [vmem:[%s3 + $0x19c] sm:$0xf]
      %v2023 = vld [vmem:[%s3 + $0x1a0] sm:$0xf]
      %v2024 = vld [vmem:[%s3 + $0x1a4] sm:$0xf]
      %v2025 = vld [vmem:[%s3 + $0x1a8] sm:$0xf]
      %v2026 = vld [vmem:[%s3 + $0x1ac] sm:$0xf]
      %v2027 = vld [vmem:[%s3 + $0x1b0] sm:$0xf]
      %v2028 = vld [vmem:[%s3 + $0x1b4] sm:$0xf]
      %v2029 = vld [vmem:[%s3 + $0x1b8] sm:$0xf]
      %v2030 = vld [vmem:[%s3 + $0x1bc] sm:$0xf]
      %v2031 = vld [vmem:[%s3 + $0x1c0] sm:$0xf]
      %v2032 = vld [vmem:[%s3 + $0x1c4] sm:$0xf]
      %v2033 = vld [vmem:[%s3 + $0x1c8] sm:$0xf]
      %v2034 = vld [vmem:[%s3 + $0x1cc] sm:$0xf]
      %v2035 = vld [vmem:[%s3 + $0x1d0] sm:$0xf]
      %v2036 = vld [vmem:[%s3 + $0x1d4] sm:$0xf]
      %v2037 = vld [vmem:[%s3 + $0x1d8] sm:$0xf]
      %v2038 = vld [vmem:[%s3 + $0x1dc] sm:$0xf]
      %v2039 = vld [vmem:[%s3 + $0x1e0] sm:$0xf]
      %v2040 = vld [vmem:[%s3 + $0x1e4] sm:$0xf]
      %v2041 = vld [vmem:[%s3 + $0x1e8] sm:$0xf]
      %v2042 = vld [vmem:[%s3 + $0x1ec] sm:$0xf]
      %v2043 = vld [vmem:[%s3 + $0x1f0] sm:$0xf]
      %v2044 = vld [vmem:[%s3 + $0x1f4] sm:$0xf]
      %v2045 = vld [vmem:[%s3 + $0x1f8] sm:$0xf]
      %v2046 = vld [vmem:[%s3 + $0x1fc] sm:$0xf]
      %v2047 = vld [vmem:[%s3 + $0x200] sm:$0xf]
      %v2048 = vld [vmem:[%s3 + $0x204] sm:$0xf]
      %v2049 = vld [vmem:[%s3 + $0x208] sm:$0xf]
      %v2050 = vld [vmem:[%s3 + $0x20c] sm:$0xf]
      %v2051 = vld [vmem:[%s3 + $0x210] sm:$0xf]
      %v2052 = vld [vmem:[%s3 + $0x214] sm:$0xf]
      %v2053 = vld [vmem:[%s3 + $0x218] sm:$0xf]
      %v2054 = vld [vmem:[%s3 + $0x21c] sm:$0xf]
      %v2055 = vld [vmem:[%s3 + $0x220] sm:$0xf]
      %v2056 = vld [vmem:[%s3 + $0x224] sm:$0xf]
      %v2057 = vld [vmem:[%s3 + $0x228] sm:$0xf]
      %v2058 = vld [vmem:[%s3 + $0x22c] sm:$0xf]
      %v2059 = vld [vmem:[%s3 + $0x230] sm:$0xf]
      %v2060 = vld [vmem:[%s3 + $0x234] sm:$0xf]
      %v2061 = vld [vmem:[%s3 + $0x238] sm:$0xf]
      %v2062 = vld [vmem:[%s3 + $0x23c] sm:$0xf]
      %v2063 = vld [vmem:[%s4] sm:$0x1]
      %v2065 = vlaneseq
      %v2066 = vshrl.u32 %v2065, 7
      %v2067 = vsub.s32 0, %v2066
      %v2068 = vrot.slane %v2063, %v2067
      %v2110 = vunpack.c.l.b16 %v1879
      %v2111 = vunpack.c.h.b16 %v1879
      %v2112 = vunpack.c.l.b16 %v1880
      %v2113 = vunpack.c.h.b16 %v1880
      %v2114 = vunpack.c.l.b16 %v1881
      %v2115 = vunpack.c.h.b16 %v1881
      %v2116 = vunpack.c.l.b16 %v1882
      %v2117 = vunpack.c.h.b16 %v1882
      %v2118 = vunpack.c.l.b16 %v1883
      %v2119 = vunpack.c.l.b16 %v1884
      %v2120 = vunpack.c.h.b16 %v1884
      %v2121 = vunpack.c.l.b16 %v1885
      %v2122 = vunpack.c.h.b16 %v1885
      %v2123 = vunpack.c.l.b16 %v1886
      %v2124 = vunpack.c.h.b16 %v1886
      %v2125 = vunpack.c.l.b16 %v1887
      %v2126 = vunpack.c.h.b16 %v1887
      %v2127 = vunpack.c.l.b16 %v1888
      %v2128 = vunpack.c.l.b16 %v1889
      %v2129 = vunpack.c.h.b16 %v1889
      %v2130 = vunpack.c.l.b16 %v1890
      %v2131 = vunpack.c.h.b16 %v1890
      %v2132 = vunpack.c.l.b16 %v1891
      %v2133 = vunpack.c.h.b16 %v1891
      %v2134 = vunpack.c.l.b16 %v1892
      %v2135 = vunpack.c.h.b16 %v1892
      %v2136 = vunpack.c.l.b16 %v1893
      %v2137 = vunpack.c.l.b16 %v1894
      %v2138 = vunpack.c.h.b16 %v1894
      %v2139 = vunpack.c.l.b16 %v1895
      %v2140 = vunpack.c.h.b16 %v1895
      %v2141 = vunpack.c.l.b16 %v1896
      %v2142 = vunpack.c.h.b16 %v1896
      %v2143 = vunpack.c.l.b16 %v1897
      %v2144 = vunpack.c.h.b16 %v1897
      %v2145 = vunpack.c.l.b16 %v1898
      %v2146 = vunpack.c.l.b16 %v1899
      %v2147 = vunpack.c.h.b16 %v1899
      %v2148 = vunpack.c.l.b16 %v1900
      %v2149 = vunpack.c.h.b16 %v1900
      %v2150 = vunpack.c.l.b16 %v1901
      %v2151 = vunpack.c.h.b16 %v1901
      %v2152 = vunpack.c.l.b16 %v1902
      %v2153 = vunpack.c.h.b16 %v1902
      %v2154 = vunpack.c.l.b16 %v1903
      %v2155 = vunpack.c.l.b16 %v1904
      %v2156 = vunpack.c.h.b16 %v1904
      %v2157 = vunpack.c.l.b16 %v1905
      %v2158 = vunpack.c.h.b16 %v1905
      %v2159 = vunpack.c.l.b16 %v1906
      %v2160 = vunpack.c.h.b16 %v1906
      %v2161 = vunpack.c.l.b16 %v1907
      %v2162 = vunpack.c.h.b16 %v1907
      %v2163 = vunpack.c.l.b16 %v1908
      %v2164 = vunpack.c.l.b16 %v1909
      %v2165 = vunpack.c.h.b16 %v1909
      %v2166 = vunpack.c.l.b16 %v1910
      %v2167 = vunpack.c.h.b16 %v1910
      %v2168 = vunpack.c.l.b16 %v1911
      %v2169 = vunpack.c.h.b16 %v1911
      %v2170 = vunpack.c.l.b16 %v1912
      %v2171 = vunpack.c.h.b16 %v1912
      %v2172 = vunpack.c.l.b16 %v1913
      %v2173 = vunpack.c.l.b16 %v1914
      %v2174 = vunpack.c.h.b16 %v1914
      %v2175 = vunpack.c.l.b16 %v1915
      %v2176 = vunpack.c.h.b16 %v1915
      %v2177 = vunpack.c.l.b16 %v1916
      %v2178 = vunpack.c.h.b16 %v1916
      %v2179 = vunpack.c.l.b16 %v1917
      %v2180 = vunpack.c.h.b16 %v1917
      %v2181 = vunpack.c.l.b16 %v1918
      %v2182 = vpack.c.b16 %v2119, %v2110
      %v2183 = vpack.c.b16 %v2120, %v2111
      %v2184 = vpack.c.b16 %v2121, %v2112
      %v2185 = vpack.c.b16 %v2122, %v2113
      %v2186 = vpack.c.b16 %v2123, %v2114
      %v2187 = vpack.c.b16 %v2124, %v2115
      %v2188 = vpack.c.b16 %v2125, %v2116
      %v2189 = vpack.c.b16 %v2126, %v2117
      %v2190 = vpack.c.b16 %v2127, %v2118
      %v2191 = vpack.c.b16 %v2137, %v2128
      %v2192 = vpack.c.b16 %v2138, %v2129
      %v2193 = vpack.c.b16 %v2139, %v2130
      %v2194 = vpack.c.b16 %v2140, %v2131
      %v2195 = vpack.c.b16 %v2141, %v2132
      %v2196 = vpack.c.b16 %v2142, %v2133
      %v2197 = vpack.c.b16 %v2143, %v2134
      %v2198 = vpack.c.b16 %v2144, %v2135
      %v2199 = vpack.c.b16 %v2145, %v2136
      %v2200 = vpack.c.b16 %v2155, %v2146
      %v2201 = vpack.c.b16 %v2156, %v2147
      %v2202 = vpack.c.b16 %v2157, %v2148
      %v2203 = vpack.c.b16 %v2158, %v2149
      %v2204 = vpack.c.b16 %v2159, %v2150
      %v2205 = vpack.c.b16 %v2160, %v2151
      %v2206 = vpack.c.b16 %v2161, %v2152
      %v2207 = vpack.c.b16 %v2162, %v2153
      %v2208 = vpack.c.b16 %v2163, %v2154
      %v2209 = vpack.c.b16 %v2173, %v2164
      %v2210 = vpack.c.b16 %v2174, %v2165
      %v2211 = vpack.c.b16 %v2175, %v2166
      %v2212 = vpack.c.b16 %v2176, %v2167
      %v2213 = vpack.c.b16 %v2177, %v2168
      %v2214 = vpack.c.b16 %v2178, %v2169
      %v2215 = vpack.c.b16 %v2179, %v2170
      %v2216 = vpack.c.b16 %v2180, %v2171
      %v2217 = vpack.c.b16 %v2181, %v2172
      %v2398 = vunpack.c.l.b16 %v1919
      %v2399 = vunpack.c.l.b16 %v1920
      %v2400 = vunpack.c.l.b16 %v1921
      %v2401 = vunpack.c.l.b16 %v1922
      %v2402 = vunpack.c.l.b16 %v1923
      %v2403 = vunpack.c.l.b16 %v1924
      %v2404 = vunpack.c.l.b16 %v1925
      %v2405 = vunpack.c.l.b16 %v1926
      %v2406 = vunpack.c.l.b16 %v1927
      %v2407 = vunpack.c.l.b16 %v1928
      %v2408 = vunpack.c.l.b16 %v1929
      %v2409 = vunpack.c.l.b16 %v1930
      %v2410 = vunpack.c.l.b16 %v1931
      %v2411 = vunpack.c.l.b16 %v1932
      %v2412 = vunpack.c.l.b16 %v1933
      %v2413 = vunpack.c.l.b16 %v1934
      %v2414 = vunpack.c.l.b16 %v1935
      %v2415 = vunpack.c.l.b16 %v1936
      %v2416 = vunpack.c.l.b16 %v1937
      %v2417 = vunpack.c.l.b16 %v1938
      %v2418 = vunpack.c.l.b16 %v1939
      %v2419 = vunpack.c.l.b16 %v1940
      %v2420 = vunpack.c.l.b16 %v1941
      %v2421 = vunpack.c.l.b16 %v1942
      %v2422 = vunpack.c.l.b16 %v1943
      %v2423 = vunpack.c.l.b16 %v1944
      %v2424 = vunpack.c.l.b16 %v1945
      %v2425 = vunpack.c.l.b16 %v1946
      %v2426 = vunpack.c.l.b16 %v1947
      %v2427 = vunpack.c.l.b16 %v1948
      %v2428 = vunpack.c.l.b16 %v1949
      %v2429 = vunpack.c.l.b16 %v1950
      %v2430 = vunpack.c.l.b16 %v1951
      %v2431 = vunpack.c.l.b16 %v1952
      %v2432 = vunpack.c.l.b16 %v1953
      %v2433 = vunpack.c.l.b16 %v1954
      %v2434 = vunpack.c.l.b16 %v1955
      %v2435 = vunpack.c.l.b16 %v1956
      %v2436 = vunpack.c.l.b16 %v1957
      %v2437 = vunpack.c.l.b16 %v1958
      %v2438 = vunpack.c.l.b16 %v1959
      %v2439 = vunpack.c.l.b16 %v1960
      %v2440 = vunpack.c.l.b16 %v1961
      %v2441 = vunpack.c.l.b16 %v1962
      %v2442 = vunpack.c.l.b16 %v1963
      %v2443 = vunpack.c.l.b16 %v1964
      %v2444 = vunpack.c.l.b16 %v1965
      %v2445 = vunpack.c.l.b16 %v1966
      %v2446 = vunpack.c.l.b16 %v1967
      %v2447 = vunpack.c.l.b16 %v1968
      %v2448 = vunpack.c.l.b16 %v1969
      %v2449 = vunpack.c.l.b16 %v1970
      %v2450 = vunpack.c.l.b16 %v1971
      %v2451 = vunpack.c.l.b16 %v1972
      %v2452 = vunpack.c.l.b16 %v1973
      %v2453 = vunpack.c.l.b16 %v1974
      %v2454 = vunpack.c.l.b16 %v1975
      %v2455 = vunpack.c.l.b16 %v1976
      %v2456 = vunpack.c.l.b16 %v1977
      %v2457 = vunpack.c.l.b16 %v1978
      %v2458 = vunpack.c.l.b16 %v1979
      %v2459 = vunpack.c.l.b16 %v1980
      %v2460 = vunpack.c.l.b16 %v1981
      %v2461 = vunpack.c.l.b16 %v1982
      %v2462 = vunpack.c.l.b16 %v1983
      %v2463 = vunpack.c.l.b16 %v1984
      %v2464 = vunpack.c.l.b16 %v1985
      %v2465 = vunpack.c.l.b16 %v1986
      %v2466 = vunpack.c.l.b16 %v1987
      %v2467 = vunpack.c.l.b16 %v1988
      %v2468 = vunpack.c.l.b16 %v1989
      %v2469 = vunpack.c.l.b16 %v1990
      %v2470 = vunpack.c.l.b16 %v1991
      %v2471 = vunpack.c.l.b16 %v1992
      %v2472 = vunpack.c.l.b16 %v1993
      %v2473 = vunpack.c.l.b16 %v1994
      %v2474 = vunpack.c.l.b16 %v1995
      %v2475 = vunpack.c.l.b16 %v1996
      %v2476 = vunpack.c.l.b16 %v1997
      %v2477 = vunpack.c.l.b16 %v1998
      %v2478 = vunpack.c.l.b16 %v1999
      %v2479 = vunpack.c.l.b16 %v2000
      %v2480 = vunpack.c.l.b16 %v2001
      %v2481 = vunpack.c.l.b16 %v2002
      %v2482 = vunpack.c.l.b16 %v2003
      %v2483 = vunpack.c.l.b16 %v2004
      %v2484 = vunpack.c.l.b16 %v2005
      %v2485 = vunpack.c.l.b16 %v2006
      %v2486 = vunpack.c.l.b16 %v2007
      %v2487 = vunpack.c.l.b16 %v2008
      %v2488 = vunpack.c.l.b16 %v2009
      %v2489 = vunpack.c.l.b16 %v2010
      %v2490 = vunpack.c.l.b16 %v2011
      %v2491 = vunpack.c.l.b16 %v2012
      %v2492 = vunpack.c.l.b16 %v2013
      %v2493 = vunpack.c.l.b16 %v2014
      %v2494 = vunpack.c.l.b16 %v2015
      %v2495 = vunpack.c.l.b16 %v2016
      %v2496 = vunpack.c.l.b16 %v2017
      %v2497 = vunpack.c.l.b16 %v2018
      %v2498 = vunpack.c.l.b16 %v2019
      %v2499 = vunpack.c.l.b16 %v2020
      %v2500 = vunpack.c.l.b16 %v2021
      %v2501 = vunpack.c.l.b16 %v2022
      %v2502 = vunpack.c.l.b16 %v2023
      %v2503 = vunpack.c.l.b16 %v2024
      %v2504 = vunpack.c.l.b16 %v2025
      %v2505 = vunpack.c.l.b16 %v2026
      %v2506 = vunpack.c.l.b16 %v2027
      %v2507 = vunpack.c.l.b16 %v2028
      %v2508 = vunpack.c.l.b16 %v2029
      %v2509 = vunpack.c.l.b16 %v2030
      %v2510 = vunpack.c.l.b16 %v2031
      %v2511 = vunpack.c.l.b16 %v2032
      %v2512 = vunpack.c.l.b16 %v2033
      %v2513 = vunpack.c.l.b16 %v2034
      %v2514 = vunpack.c.l.b16 %v2035
      %v2515 = vunpack.c.l.b16 %v2036
      %v2516 = vunpack.c.l.b16 %v2037
      %v2517 = vunpack.c.l.b16 %v2038
      %v2518 = vunpack.c.l.b16 %v2039
      %v2519 = vunpack.c.l.b16 %v2040
      %v2520 = vunpack.c.l.b16 %v2041
      %v2521 = vunpack.c.l.b16 %v2042
      %v2522 = vunpack.c.l.b16 %v2043
      %v2523 = vunpack.c.l.b16 %v2044
      %v2524 = vunpack.c.l.b16 %v2045
      %v2525 = vunpack.c.l.b16 %v2046
      %v2526 = vunpack.c.l.b16 %v2047
      %v2527 = vunpack.c.l.b16 %v2048
      %v2528 = vunpack.c.l.b16 %v2049
      %v2529 = vunpack.c.l.b16 %v2050
      %v2530 = vunpack.c.l.b16 %v2051
      %v2531 = vunpack.c.l.b16 %v2052
      %v2532 = vunpack.c.l.b16 %v2053
      %v2533 = vunpack.c.l.b16 %v2054
      %v2534 = vunpack.c.l.b16 %v2055
      %v2535 = vunpack.c.l.b16 %v2056
      %v2536 = vunpack.c.l.b16 %v2057
      %v2537 = vunpack.c.l.b16 %v2058
      %v2538 = vunpack.c.l.b16 %v2059
      %v2539 = vunpack.c.l.b16 %v2060
      %v2540 = vunpack.c.l.b16 %v2061
      %v2541 = vunpack.c.l.b16 %v2062
      %v2542 = vpack.c.b16 %v2399, %v2398
      %v2543 = vpack.c.b16 %v2401, %v2400
      %v2544 = vpack.c.b16 %v2403, %v2402
      %v2545 = vpack.c.b16 %v2405, %v2404
      %v2546 = vpack.c.b16 %v2407, %v2406
      %v2547 = vpack.c.b16 %v2409, %v2408
      %v2548 = vpack.c.b16 %v2411, %v2410
      %v2549 = vpack.c.b16 %v2413, %v2412
      %v2550 = vpack.c.b16 %v2415, %v2414
      %v2551 = vpack.c.b16 %v2417, %v2416
      %v2552 = vpack.c.b16 %v2419, %v2418
      %v2553 = vpack.c.b16 %v2421, %v2420
      %v2554 = vpack.c.b16 %v2423, %v2422
      %v2555 = vpack.c.b16 %v2425, %v2424
      %v2556 = vpack.c.b16 %v2427, %v2426
      %v2557 = vpack.c.b16 %v2429, %v2428
      %v2558 = vpack.c.b16 %v2431, %v2430
      %v2559 = vpack.c.b16 %v2433, %v2432
      %v2560 = vpack.c.b16 %v2435, %v2434
      %v2561 = vpack.c.b16 %v2437, %v2436
      %v2562 = vpack.c.b16 %v2439, %v2438
      %v2563 = vpack.c.b16 %v2441, %v2440
      %v2564 = vpack.c.b16 %v2443, %v2442
      %v2565 = vpack.c.b16 %v2445, %v2444
      %v2566 = vpack.c.b16 %v2447, %v2446
      %v2567 = vpack.c.b16 %v2449, %v2448
      %v2568 = vpack.c.b16 %v2451, %v2450
      %v2569 = vpack.c.b16 %v2453, %v2452
      %v2570 = vpack.c.b16 %v2455, %v2454
      %v2571 = vpack.c.b16 %v2457, %v2456
      %v2572 = vpack.c.b16 %v2459, %v2458
      %v2573 = vpack.c.b16 %v2461, %v2460
      %v2574 = vpack.c.b16 %v2463, %v2462
      %v2575 = vpack.c.b16 %v2465, %v2464
      %v2576 = vpack.c.b16 %v2467, %v2466
      %v2577 = vpack.c.b16 %v2469, %v2468
      %v2578 = vpack.c.b16 %v2471, %v2470
      %v2579 = vpack.c.b16 %v2473, %v2472
      %v2580 = vpack.c.b16 %v2475, %v2474
      %v2581 = vpack.c.b16 %v2477, %v2476
      %v2582 = vpack.c.b16 %v2479, %v2478
      %v2583 = vpack.c.b16 %v2481, %v2480
      %v2584 = vpack.c.b16 %v2483, %v2482
      %v2585 = vpack.c.b16 %v2485, %v2484
      %v2586 = vpack.c.b16 %v2487, %v2486
      %v2587 = vpack.c.b16 %v2489, %v2488
      %v2588 = vpack.c.b16 %v2491, %v2490
      %v2589 = vpack.c.b16 %v2493, %v2492
      %v2590 = vpack.c.b16 %v2495, %v2494
      %v2591 = vpack.c.b16 %v2497, %v2496
      %v2592 = vpack.c.b16 %v2499, %v2498
      %v2593 = vpack.c.b16 %v2501, %v2500
      %v2594 = vpack.c.b16 %v2503, %v2502
      %v2595 = vpack.c.b16 %v2505, %v2504
      %v2596 = vpack.c.b16 %v2507, %v2506
      %v2597 = vpack.c.b16 %v2509, %v2508
      %v2598 = vpack.c.b16 %v2511, %v2510
      %v2599 = vpack.c.b16 %v2513, %v2512
      %v2600 = vpack.c.b16 %v2515, %v2514
      %v2601 = vpack.c.b16 %v2517, %v2516
      %v2602 = vpack.c.b16 %v2519, %v2518
      %v2603 = vpack.c.b16 %v2521, %v2520
      %v2604 = vpack.c.b16 %v2523, %v2522
      %v2605 = vpack.c.b16 %v2525, %v2524
      %v2606 = vpack.c.b16 %v2527, %v2526
      %v2607 = vpack.c.b16 %v2529, %v2528
      %v2608 = vpack.c.b16 %v2531, %v2530
      %v2609 = vpack.c.b16 %v2533, %v2532
      %v2610 = vpack.c.b16 %v2535, %v2534
      %v2611 = vpack.c.b16 %v2537, %v2536
      %v2612 = vpack.c.b16 %v2539, %v2538
      %v2613 = vpack.c.b16 %v2541, %v2540
      %2686 = vmatprep.subr.bf16.mxu0 0
      %2687 = vmatpush1.bf16.msra.mxu0 %v2549
      %2688 = vmatprep.subr.bf16.mxu0 0
      %2689 = vmatpush1.bf16.msra.mxu0 %v2548
      %2690 = vmatprep.subr.bf16.mxu0 0
      %2691 = vmatpush1.bf16.msra.mxu0 %v2547
      %2692 = vmatprep.subr.bf16.mxu0 0
      %2693 = vmatpush1.bf16.msra.mxu0 %v2546
      %2694 = vmatprep.subr.bf16.mxu0 0
      %2695 = vmatpush1.bf16.msra.mxu0 %v2545
      %2696 = vmatprep.subr.bf16.mxu0 0
      %2697 = vmatpush1.bf16.msra.mxu0 %v2544
      %2698 = vmatprep.subr.bf16.mxu0 0
      %2699 = vmatpush1.bf16.msra.mxu0 %v2543
      %2700 = vmatprep.subr.bf16.mxu0 0
      %2701 = vmatpush1.bf16.msra.mxu0 %v2542
      %2702 = vmatprep.subr.bf16.mxu0 0
      %2703 = vmatpush2.bf16.msra.mxu0 %v2557
      %2704 = vmatprep.subr.bf16.mxu0 0
      %2705 = vmatpush2.bf16.msra.mxu0 %v2556
      %2706 = vmatprep.subr.bf16.mxu0 0
      %2707 = vmatpush2.bf16.msra.mxu0 %v2555
      %2708 = vmatprep.subr.bf16.mxu0 0
      %2709 = vmatpush2.bf16.msra.mxu0 %v2554
      %2710 = vmatprep.subr.bf16.mxu0 0
      %2711 = vmatpush2.bf16.msra.mxu0 %v2553
      %2712 = vmatprep.subr.bf16.mxu0 0
      %2713 = vmatpush2.bf16.msra.mxu0 %v2552
      %2714 = vmatprep.subr.bf16.mxu0 0
      %2715 = vmatpush2.bf16.msra.mxu0 %v2551
      %2716 = vmatprep.subr.bf16.mxu0 0
      %2717 = vmatpush2.bf16.msra.mxu0 %v2550
      %2718 = vmatprep.mubr.bf16.mxu0 %v2183
      %2719 = vmatmul.mubr.bf16.gmra.mxu0 %v2182
      %v2720 = vpop.f32.mrf.mxu0
      %v2721 = vadd.f32 %v2068, %v2720
      %v2722 = vpop.f32.mrf.mxu0
      %v2723 = vpop.f32.mrf.mxu0
      %v2724 = vadd.f32 %v2068, %v2723
      %v2725 = vpop.f32.mrf.mxu0
      %2726 = vmatprep.mubr.bf16.mxu0 %v2192
      %2727 = vmatmul.mubr.bf16.gmra.mxu0 %v2191
      %v2728 = vpop.f32.mrf.mxu0
      %v2729 = vadd.f32 %v2068, %v2728
      %v2730 = vpop.f32.mrf.mxu0
      %v2731 = vpop.f32.mrf.mxu0
      %v2732 = vadd.f32 %v2068, %v2731
      %v2733 = vpop.f32.mrf.mxu0
      %2734 = vmatprep.mubr.bf16.mxu0 %v2201
      %2735 = vmatmul.mubr.bf16.gmra.mxu0 %v2200
      %v2736 = vpop.f32.mrf.mxu0
      %v2737 = vadd.f32 %v2068, %v2736
      %v2738 = vpop.f32.mrf.mxu0
      %v2739 = vpop.f32.mrf.mxu0
      %v2740 = vadd.f32 %v2068, %v2739
      %v2741 = vpop.f32.mrf.mxu0
      %2742 = vmatprep.mubr.bf16.mxu0 %v2210
      %2743 = vmatmul.mubr.bf16.gmra.mxu0 %v2209
      %v2744 = vpop.f32.mrf.mxu0
      %v2745 = vadd.f32 %v2068, %v2744
      %v2746 = vpop.f32.mrf.mxu0
      %v2747 = vpop.f32.mrf.mxu0
      %v2748 = vadd.f32 %v2068, %v2747
      %v2749 = vpop.f32.mrf.mxu0
      %2750 = vdwg.mxu0
      %2751 = vmatprep.subr.bf16.mxu0 0
      %2752 = vmatpush1.bf16.msra.mxu0 %v2565
      %2753 = vmatprep.subr.bf16.mxu0 0
      %2754 = vmatpush1.bf16.msra.mxu0 %v2564
      %2755 = vmatprep.subr.bf16.mxu0 0
      %2756 = vmatpush1.bf16.msra.mxu0 %v2563
      %2757 = vmatprep.subr.bf16.mxu0 0
      %2758 = vmatpush1.bf16.msra.mxu0 %v2562
      %2759 = vmatprep.subr.bf16.mxu0 0
      %2760 = vmatpush1.bf16.msra.mxu0 %v2561
      %2761 = vmatprep.subr.bf16.mxu0 0
      %2762 = vmatpush1.bf16.msra.mxu0 %v2560
      %2763 = vmatprep.subr.bf16.mxu0 0
      %2764 = vmatpush1.bf16.msra.mxu0 %v2559
      %2765 = vmatprep.subr.bf16.mxu0 0
      %2766 = vmatpush1.bf16.msra.mxu0 %v2558
      %2767 = vmatprep.subr.bf16.mxu0 0
      %2768 = vmatpush2.bf16.msra.mxu0 %v2573
      %2769 = vmatprep.subr.bf16.mxu0 0
      %2770 = vmatpush2.bf16.msra.mxu0 %v2572
      %2771 = vmatprep.subr.bf16.mxu0 0
      %2772 = vmatpush2.bf16.msra.mxu0 %v2571
      %2773 = vmatprep.subr.bf16.mxu0 0
      %2774 = vmatpush2.bf16.msra.mxu0 %v2570
      %2775 = vmatprep.subr.bf16.mxu0 0
      %2776 = vmatpush2.bf16.msra.mxu0 %v2569
      %2777 = vmatprep.subr.bf16.mxu0 0
      %2778 = vmatpush2.bf16.msra.mxu0 %v2568
      %2779 = vmatprep.subr.bf16.mxu0 0
      %2780 = vmatpush2.bf16.msra.mxu0 %v2567
      %2781 = vmatprep.subr.bf16.mxu0 0
      %2782 = vmatpush2.bf16.msra.mxu0 %v2566
      %2783 = vmatprep.mubr.bf16.mxu0 %v2185
      %2784 = vmatmul.mubr.bf16.gmra.mxu0 %v2184
      %v2785 = vpop.f32.mrf.mxu0
      %v2786 = vadd.f32 %v2721, %v2785
      %v2787 = vpop.f32.mrf.mxu0
      %v2788 = vpop.f32.mrf.mxu0
      %v2789 = vadd.f32 %v2724, %v2788
      %v2790 = vpop.f32.mrf.mxu0
      %2791 = vmatprep.mubr.bf16.mxu0 %v2194
      %2792 = vmatmul.mubr.bf16.gmra.mxu0 %v2193
      %v2793 = vpop.f32.mrf.mxu0
      %v2794 = vadd.f32 %v2729, %v2793
      %v2795 = vpop.f32.mrf.mxu0
      %v2796 = vpop.f32.mrf.mxu0
      %v2797 = vadd.f32 %v2732, %v2796
      %v2798 = vpop.f32.mrf.mxu0
      %2799 = vmatprep.mubr.bf16.mxu0 %v2203
      %2800 = vmatmul.mubr.bf16.gmra.mxu0 %v2202
      %v2801 = vpop.f32.mrf.mxu0
      %v2802 = vadd.f32 %v2737, %v2801
      %v2803 = vpop.f32.mrf.mxu0
      %v2804 = vpop.f32.mrf.mxu0
      %v2805 = vadd.f32 %v2740, %v2804
      %v2806 = vpop.f32.mrf.mxu0
      %2807 = vmatprep.mubr.bf16.mxu0 %v2212
      %2808 = vmatmul.mubr.bf16.gmra.mxu0 %v2211
      %v2809 = vpop.f32.mrf.mxu0
      %v2810 = vadd.f32 %v2745, %v2809
      %v2811 = vpop.f32.mrf.mxu0
      %v2812 = vpop.f32.mrf.mxu0
      %v2813 = vadd.f32 %v2748, %v2812
      %v2814 = vpop.f32.mrf.mxu0
      %2815 = vdwg.mxu0
      %2816 = vmatprep.subr.bf16.mxu0 0
      %2817 = vmatpush1.bf16.msra.mxu0 %v2581
      %2818 = vmatprep.subr.bf16.mxu0 0
      %2819 = vmatpush1.bf16.msra.mxu0 %v2580
      %2820 = vmatprep.subr.bf16.mxu0 0
      %2821 = vmatpush1.bf16.msra.mxu0 %v2579
      %2822 = vmatprep.subr.bf16.mxu0 0
      %2823 = vmatpush1.bf16.msra.mxu0 %v2578
      %2824 = vmatprep.subr.bf16.mxu0 0
      %2825 = vmatpush1.bf16.msra.mxu0 %v2577
      %2826 = vmatprep.subr.bf16.mxu0 0
      %2827 = vmatpush1.bf16.msra.mxu0 %v2576
      %2828 = vmatprep.subr.bf16.mxu0 0
      %2829 = vmatpush1.bf16.msra.mxu0 %v2575
      %2830 = vmatprep.subr.bf16.mxu0 0
      %2831 = vmatpush1.bf16.msra.mxu0 %v2574
      %2832 = vmatprep.subr.bf16.mxu0 0
      %2833 = vmatpush2.bf16.msra.mxu0 %v2589
      %2834 = vmatprep.subr.bf16.mxu0 0
      %2835 = vmatpush2.bf16.msra.mxu0 %v2588
      %2836 = vmatprep.subr.bf16.mxu0 0
      %2837 = vmatpush2.bf16.msra.mxu0 %v2587
      %2838 = vmatprep.subr.bf16.mxu0 0
      %2839 = vmatpush2.bf16.msra.mxu0 %v2586
      %2840 = vmatprep.subr.bf16.mxu0 0
      %2841 = vmatpush2.bf16.msra.mxu0 %v2585
      %2842 = vmatprep.subr.bf16.mxu0 0
      %2843 = vmatpush2.bf16.msra.mxu0 %v2584
      %2844 = vmatprep.subr.bf16.mxu0 0
      %2845 = vmatpush2.bf16.msra.mxu0 %v2583
      %2846 = vmatprep.subr.bf16.mxu0 0
      %2847 = vmatpush2.bf16.msra.mxu0 %v2582
      %2848 = vmatprep.mubr.bf16.mxu0 %v2187
      %2849 = vmatmul.mubr.bf16.gmra.mxu0 %v2186
      %v2850 = vpop.f32.mrf.mxu0
      %v2851 = vadd.f32 %v2786, %v2850
      %v2852 = vpop.f32.mrf.mxu0
      %v2853 = vpop.f32.mrf.mxu0
      %v2854 = vadd.f32 %v2789, %v2853
      %v2855 = vpop.f32.mrf.mxu0
      %2856 = vmatprep.mubr.bf16.mxu0 %v2196
      %2857 = vmatmul.mubr.bf16.gmra.mxu0 %v2195
      %v2858 = vpop.f32.mrf.mxu0
      %v2859 = vadd.f32 %v2794, %v2858
      %v2860 = vpop.f32.mrf.mxu0
      %v2861 = vpop.f32.mrf.mxu0
      %v2862 = vadd.f32 %v2797, %v2861
      %v2863 = vpop.f32.mrf.mxu0
      %2864 = vmatprep.mubr.bf16.mxu0 %v2205
      %2865 = vmatmul.mubr.bf16.gmra.mxu0 %v2204
      %v2866 = vpop.f32.mrf.mxu0
      %v2867 = vadd.f32 %v2802, %v2866
      %v2868 = vpop.f32.mrf.mxu0
      %v2869 = vpop.f32.mrf.mxu0
      %v2870 = vadd.f32 %v2805, %v2869
      %v2871 = vpop.f32.mrf.mxu0
      %2872 = vmatprep.mubr.bf16.mxu0 %v2214
      %2873 = vmatmul.mubr.bf16.gmra.mxu0 %v2213
      %v2874 = vpop.f32.mrf.mxu0
      %v2875 = vadd.f32 %v2810, %v2874
      %v2876 = vpop.f32.mrf.mxu0
      %v2877 = vpop.f32.mrf.mxu0
      %v2878 = vadd.f32 %v2813, %v2877
      %v2879 = vpop.f32.mrf.mxu0
      %2880 = vdwg.mxu0
      %2881 = vmatprep.subr.bf16.mxu0 0
      %2882 = vmatpush1.bf16.msra.mxu0 %v2597
      %2883 = vmatprep.subr.bf16.mxu0 0
      %2884 = vmatpush1.bf16.msra.mxu0 %v2596
      %2885 = vmatprep.subr.bf16.mxu0 0
      %2886 = vmatpush1.bf16.msra.mxu0 %v2595
      %2887 = vmatprep.subr.bf16.mxu0 0
      %2888 = vmatpush1.bf16.msra.mxu0 %v2594
      %2889 = vmatprep.subr.bf16.mxu0 0
      %2890 = vmatpush1.bf16.msra.mxu0 %v2593
      %2891 = vmatprep.subr.bf16.mxu0 0
      %2892 = vmatpush1.bf16.msra.mxu0 %v2592
      %2893 = vmatprep.subr.bf16.mxu0 0
      %2894 = vmatpush1.bf16.msra.mxu0 %v2591
      %2895 = vmatprep.subr.bf16.mxu0 0
      %2896 = vmatpush1.bf16.msra.mxu0 %v2590
      %2897 = vmatprep.subr.bf16.mxu0 0
      %2898 = vmatpush2.bf16.msra.mxu0 %v2605
      %2899 = vmatprep.subr.bf16.mxu0 0
      %2900 = vmatpush2.bf16.msra.mxu0 %v2604
      %2901 = vmatprep.subr.bf16.mxu0 0
      %2902 = vmatpush2.bf16.msra.mxu0 %v2603
      %2903 = vmatprep.subr.bf16.mxu0 0
      %2904 = vmatpush2.bf16.msra.mxu0 %v2602
      %2905 = vmatprep.subr.bf16.mxu0 0
      %2906 = vmatpush2.bf16.msra.mxu0 %v2601
      %2907 = vmatprep.subr.bf16.mxu0 0
      %2908 = vmatpush2.bf16.msra.mxu0 %v2600
      %2909 = vmatprep.subr.bf16.mxu0 0
      %2910 = vmatpush2.bf16.msra.mxu0 %v2599
      %2911 = vmatprep.subr.bf16.mxu0 0
      %2912 = vmatpush2.bf16.msra.mxu0 %v2598
      %2913 = vmatprep.mubr.bf16.mxu0 %v2189
      %2914 = vmatmul.mubr.bf16.gmra.mxu0 %v2188
      %v2915 = vpop.f32.mrf.mxu0
      %v2916 = vadd.f32 %v2851, %v2915
      %v2917 = vpop.f32.mrf.mxu0
      %v2918 = vpop.f32.mrf.mxu0
      %v2919 = vadd.f32 %v2854, %v2918
      %v2920 = vpop.f32.mrf.mxu0
      %2921 = vmatprep.mubr.bf16.mxu0 %v2198
      %2922 = vmatmul.mubr.bf16.gmra.mxu0 %v2197
      %v2923 = vpop.f32.mrf.mxu0
      %v2924 = vadd.f32 %v2859, %v2923
      %v2925 = vpop.f32.mrf.mxu0
      %v2926 = vpop.f32.mrf.mxu0
      %v2927 = vadd.f32 %v2862, %v2926
      %v2928 = vpop.f32.mrf.mxu0
      %2929 = vmatprep.mubr.bf16.mxu0 %v2207
      %2930 = vmatmul.mubr.bf16.gmra.mxu0 %v2206
      %v2931 = vpop.f32.mrf.mxu0
      %v2932 = vadd.f32 %v2867, %v2931
      %v2933 = vpop.f32.mrf.mxu0
      %v2934 = vpop.f32.mrf.mxu0
      %v2935 = vadd.f32 %v2870, %v2934
      %v2936 = vpop.f32.mrf.mxu0
      %2937 = vmatprep.mubr.bf16.mxu0 %v2216
      %2938 = vmatmul.mubr.bf16.gmra.mxu0 %v2215
      %v2939 = vpop.f32.mrf.mxu0
      %v2940 = vadd.f32 %v2875, %v2939
      %v2941 = vpop.f32.mrf.mxu0
      %v2942 = vpop.f32.mrf.mxu0
      %v2943 = vadd.f32 %v2878, %v2942
      %v2944 = vpop.f32.mrf.mxu0
      %2945 = vdwg.mxu0
      %2946 = vmatprep.subr.bf16.mxu0 0
      %2947 = vmatpush1.bf16.msra.mxu0 %v2613
      %2948 = vmatprep.subr.bf16.mxu0 0
      %2949 = vmatpush1.bf16.msra.mxu0 %v2612
      %2950 = vmatprep.subr.bf16.mxu0 0
      %2951 = vmatpush1.bf16.msra.mxu0 %v2611
      %2952 = vmatprep.subr.bf16.mxu0 0
      %2953 = vmatpush1.bf16.msra.mxu0 %v2610
      %2954 = vmatprep.subr.bf16.mxu0 0
      %2955 = vmatpush1.bf16.msra.mxu0 %v2609
      %2956 = vmatprep.subr.bf16.mxu0 0
      %2957 = vmatpush1.bf16.msra.mxu0 %v2608
      %2958 = vmatprep.subr.bf16.mxu0 0
      %2959 = vmatpush1.bf16.msra.mxu0 %v2607
      %2960 = vmatprep.subr.bf16.mxu0 0
      %2961 = vmatpush1.bf16.msra.mxu0 %v2606
      %2962 = vmatprep.subr.bf16.mxu0 0
      %2963 = vmatpush2.bf16.msra.mxu0 0
      %2964 = vmatprep.subr.bf16.mxu0 0
      %2965 = vmatpush2.bf16.msra.mxu0 0
      %2966 = vmatprep.subr.bf16.mxu0 0
      %2967 = vmatpush2.bf16.msra.mxu0 0
      %2968 = vmatprep.subr.bf16.mxu0 0
      %2969 = vmatpush2.bf16.msra.mxu0 0
      %2970 = vmatprep.subr.bf16.mxu0 0
      %2971 = vmatpush2.bf16.msra.mxu0 0
      %2972 = vmatprep.subr.bf16.mxu0 0
      %2973 = vmatpush2.bf16.msra.mxu0 0
      %2974 = vmatprep.subr.bf16.mxu0 0
      %2975 = vmatpush2.bf16.msra.mxu0 0
      %2976 = vmatprep.subr.bf16.mxu0 0
      %2977 = vmatpush2.bf16.msra.mxu0 0
      %2978 = vmatprep.mubr.bf16.mxu0 0
      %2979 = vmatmul.mubr.bf16.gmra.mxu0 %v2190
      %v2980 = vpop.f32.mrf.mxu0
      %v2981 = vadd.f32 %v2916, %v2980
      %v2982 = vpop.f32.mrf.mxu0
      %v2983 = vpop.f32.mrf.mxu0
      %v2984 = vadd.f32 %v2919, %v2983
      %v2985 = vpop.f32.mrf.mxu0
      %2986 = vmatprep.mubr.bf16.mxu0 0
      %2987 = vmatmul.mubr.bf16.gmra.mxu0 %v2199
      %v2988 = vpop.f32.mrf.mxu0
      %v2989 = vadd.f32 %v2924, %v2988
      %v2990 = vpop.f32.mrf.mxu0
      %v2991 = vpop.f32.mrf.mxu0
      %v2992 = vadd.f32 %v2927, %v2991
      %v2993 = vpop.f32.mrf.mxu0
      %2994 = vmatprep.mubr.bf16.mxu0 0
      %2995 = vmatmul.mubr.bf16.gmra.mxu0 %v2208
      %v2996 = vpop.f32.mrf.mxu0
      %v2997 = vadd.f32 %v2932, %v2996
      %v2998 = vpop.f32.mrf.mxu0
      %v2999 = vpop.f32.mrf.mxu0
      %v3000 = vadd.f32 %v2935, %v2999
      %v3001 = vpop.f32.mrf.mxu0
      %3002 = vmatprep.mubr.bf16.mxu0 0
      %3003 = vmatmul.mubr.bf16.gmra.mxu0 %v2217
      %v3004 = vpop.f32.mrf.mxu0
      %v3005 = vadd.f32 %v2940, %v3004
      %v3006 = vpop.f32.mrf.mxu0
      %v3007 = vpop.f32.mrf.mxu0
      %v3008 = vadd.f32 %v2943, %v3007
      %v3009 = vpop.f32.mrf.mxu0
      %3010 = vdwg.mxu0
      %v3011 = vmax.f32 %v2981, 0.0
      %v3012 = vmax.f32 %v2984, 0.0
      %v3013 = vmax.f32 %v2989, 0.0
      %v3014 = vmax.f32 %v2992, 0.0
      %v3015 = vmax.f32 %v2997, 0.0
      %v3016 = vmax.f32 %v3000, 0.0
      %v3017 = vmax.f32 %v3005, 0.0
      %v3018 = vmax.f32 %v3008, 0.0
      %3019 = vst [vmem:[%s224] sm:$0xff] %v3011
      %3020 = vst [vmem:[%s224 + $0x8] sm:$0xff] %v3012
      %3021 = vst [vmem:[%s224 + $0x10] sm:$0xff] %v3013
      %3022 = vst [vmem:[%s224 + $0x18] sm:$0xff] %v3014
      %3023 = vst [vmem:[%s224 + $0x20] sm:$0xff] %v3015
      %3024 = vst [vmem:[%s224 + $0x28] sm:$0xff] %v3016
      %3025 = vst [vmem:[%s224 + $0x30] sm:$0xff] %v3017
      %3026 = vst [vmem:[%s224 + $0x38] sm:$0xff] %v3018
      %p3027 = scmp.lt.s32.totalorder %s16, 3
      %s3028 = scalar_select %p3027, %s16, 3
      %s3029 = smul.addr %s3028, 8
      %s3030 = smul.addr %s3029, 8
      %s3031 = scalar_lea.vmem %s5, %s3030
      // Predicated region
      $region41: #{combined_loss.12} parent=39 // pred_check
        %p3032 = pneg %p144
      $region42: #{combined_loss.12} parent=39 // pred_check_branch
        %3034 = sbr.rel (%p3032) target = $region44
      $region43: #{combined_loss.12} parent=39 // pred_region
        _
      $region44: #{combined_loss.12} parent=39 // pred_fallthru
        _
    $region40: #{combined_loss.12} parent=5 // pred_fallthru
      _
    %p3035 = scmp.le.s32.totalorder 2, %s11
    // Predicated region
    $region45: #{combined_loss.12} parent=5 // pred_check
      %p3036 = pneg %p3035
    $region46: #{combined_loss.12} parent=5 // pred_check_branch
      %3038 = sbr.rel (%p3036) target = $region48
    $region47: #{combined_loss.12} parent=5 // pred_region
      %s3039 = ssub.s32 %s11, 2
      // Predicated region
      $region49: #{combined_loss.12} parent=47 // pred_check
        %p3040 = pneg %p150
      $region50: #{combined_loss.12} parent=47 // pred_check_branch
        %3042 = sbr.rel (%p3040) target = $region52
      $region51: #{combined_loss.12} parent=47 // pred_region
        %p3043 = scmp.lt.s32.totalorder %s17, 3
        %s3044 = scalar_select %p3043, %s17, 3
        %s3045 = smul.addr %s3044, 8
        %s3046 = smul.addr %s3045, 8
        %s3047 = scalar_lea.vmem %s5, %s3046
      $region52: #{combined_loss.12} parent=47 // pred_fallthru
        _
    $region48: #{combined_loss.12} parent=5 // pred_fallthru
      _
  $region6: #{combined_loss.12} parent=0 // loop_footer
    %s15 = sadd.s32 1, %s11
  $region7: #{combined_loss.12} parent=0 // loop_footer_branch
    %10 = sbr.rel target = $region3
  $region8: #{combined_loss.12} parent=0 // loop_exit
    _

</llo_original>
